<compile_context>
chip_gen: v5e
topology: v5e:2x2
jax: 0.10.0
libtpu: 0.0.40
codegen_flags: <defaults>
</compile_context>

<pallas_src>
import numpy as np
import jax
import jax.numpy as jnp
from jax import lax
from jax.experimental import pallas as pl
from jax.experimental.pallas import tpu as pltpu

# ---------------- hyper-parameters (match the PyTorch module __init__) -------
FOV = 9                      # -> inW = inH = 11, CNN flattened feature map = 128
NUM_FEATURES = 128           # numInputFeatures == cnn_output_size
HEADS = 2                    # num_attention_heads
GNN_OUT = 128                # embedding_sizes_gnn entries
NUM_GNN_LAYERS = 2
NUM_CLASSES = 5
N_AGENTS = 8                 # number of graph nodes (multiple of 8 for sublane alignment)

# CNN layer geometry: (spatial size in==out, Cin, Cout, maxpool-after?)
CNN_LAYERS = ((11, 3, 32, True),
              (5, 32, 32, False),
              (5, 32, 64, True),
              (2, 64, 64, False),
              (2, 64, 128, True))

# Lane-aligned lowered-conv geometry used by the fused kernel:
#   (W_in, Cin, Cout, cin_step, in_stride, out_stride)
#   cin_step   lane distance between successive input columns in one buffer row
#              (2*Cin when the previous pool's column decimation is folded in)
#   in_stride  lanes per vertically-zero-padded activation row (multiple of 128)
#   out_stride lanes per conv-output row (W_in*Cout rounded up to 128)
CONV_GEOM = ((11, 3, 32, 3, 128, 384),
             (5, 32, 32, 64, 384, 256),
             (5, 32, 64, 32, 256, 384),
             (2, 64, 64, 128, 384, 128),
             (2, 64, 128, 64, 128, 256))


# ================== the fused kernel ==================

def _gatnet_kernel(x_ref,
                   t1, b1, t2, b2, t3, b3, t4, b4, t5, b5,
                   cpw, cpb,
                   g1w, g1s, g1d, g1b,
                   g2w, g2s, g2d, g2b,
                   m1w, m1b, m2w, m2b,
                   adj_ref,
                   o_ref,
                   p_sc, buf2, buf3, buf4, buf5):
    n = x_ref.shape[0]
    f32 = jnp.float32
    bf16 = jnp.bfloat16

    # Zero only the vertical zero-halo rows (first/last row stride) of each
    # padded activation buffer; all interior rows are fully overwritten below.
    for buf, stride, hp in ((buf2, 384, 7), (buf3, 256, 7),
                            (buf4, 384, 4), (buf5, 128, 4)):
        buf[:, :stride] = jnp.zeros((n, stride), f32)
        buf[:, (hp - 1) * stride:hp * stride] = jnp.zeros((n, stride), f32)

    def conv(src, t_ref, b_ref, H, in_stride):
        """conv(+folded BN)+ReLU as ONE stacked MXU matmul per layer.

        The H per-output-row patches (each a 128-aligned slice of the
        vertically padded activation) are stacked on the sublane axis, then a
        single (H*n, 3*in_stride) x (3*in_stride, out_stride) bf16 matmul with
        f32 accumulation is issued; bias + ReLU applied once on the result.
        """
        pw = 3 * in_stride
        for h in range(H):
            p_sc[h * n:(h + 1) * n, :pw] = src[:, h * in_stride:h * in_stride + pw]
        y = jnp.dot(p_sc[:H * n, :pw].astype(bf16), t_ref[...],
                    preferred_element_type=f32) + b_ref[...]
        return jnp.maximum(y, 0.0)                       # (H*n, out_stride)

    def pool_store(y, dst, C):
        """2x2 / stride-2 max pool (floor mode) -> next padded buffer.

        Vertical max = aligned sublane-slice max; horizontal max via
        pltpu.roll (XLU) so each full out_stride-wide row is stored with one
        unmasked 128-aligned store.  Non-decimated (odd) column positions are
        simply ignored by the next layer's Toeplitz matrix (zero rows).
        """
        width = y.shape[-1]
        for p in range(y.shape[0] // n // 2):
            v = jnp.maximum(y[(2 * p) * n:(2 * p + 1) * n, :],
                            y[(2 * p + 1) * n:(2 * p + 2) * n, :])
            m = jnp.maximum(v, pltpu.roll(v, shift=width - C, axis=1))
            dst[:, (p + 1) * width:(p + 2) * width] = m

    def row_store(y, dst):
        width = y.shape[-1]
        for h in range(y.shape[0] // n):
            dst[:, (h + 1) * width:(h + 2) * width] = y[h * n:(h + 1) * n, :]

    # ---- CNN encoder: conv(+BN folded)+relu, maxpool after layers 0 / 2 / 4 ----
    y = conv(x_ref, t1, b1, 11, 128)                     # 11x11x32
    pool_store(y, buf2, 32)                              # -> 5 rows, decimated cols
    y = conv(buf2, t2, b2, 5, 384)                       # 5x5x32
    row_store(y, buf3)
    y = conv(buf3, t3, b3, 5, 256)                       # 5x5x64
    pool_store(y, buf4, 64)                              # -> 2 rows, decimated cols
    y = conv(buf4, t4, b4, 2, 384)                       # 2x2x64
    row_store(y, buf5)
    y = conv(buf5, t5, b5, 2, 128)                       # 2x2x128
    v = jnp.maximum(y[:n, :], y[n:2 * n, :])             # final 2x2 max pool
    feat = jnp.maximum(v[:, :128], v[:, 128:])           # (n, 128)

    # ---- compress MLP ----
    x = jnp.dot(feat.astype(bf16), cpw[...], preferred_element_type=f32) + cpb[...]
    x = jnp.maximum(x, 0.0)

    # ---- GAT layers (dense adjacency incl. self loops) ----
    adj = adj_ref[...]
    neg = jnp.float32(-1e30)

    def gat(x, w_ref, asrc_ref, adst_ref, b_ref):
        h = jnp.dot(x.astype(bf16), w_ref[...], preferred_element_type=f32)  # (n, H*C)
        # fused attention scores: one VPU multiply over (n, 2*C) per vector,
        # then per-head 128-lane segment sums
        ps = h * asrc_ref[...]
        pd = h * adst_ref[...]
        outs = []
        for hd in range(HEADS):
            lo, hi = hd * GNN_OUT, (hd + 1) * GNN_OUT
            h_hd = h[:, lo:hi]
            a_s = jnp.sum(ps[:, lo:hi], axis=1, keepdims=True)        # (n, 1)
            a_d = jnp.sum(pd[:, lo:hi], axis=1, keepdims=True)
            e = a_d + a_s.T                        # e[i,j] = a_dst[i] + a_src[j]
            e = jnp.where(e >= 0, e, 0.2 * e)      # leaky_relu(0.2)
            e = jnp.where(adj > 0, e, neg)         # mask non-edges
            m = jnp.max(e, axis=1, keepdims=True)
            p = jnp.where(adj > 0, jnp.exp(e - m), 0.0)
            alpha = p * pl.reciprocal(jnp.sum(p, axis=1, keepdims=True), approx=True)
            outs.append(jnp.dot(alpha.astype(bf16), h_hd.astype(bf16),
                                preferred_element_type=f32))
        yv = jnp.concatenate(outs, axis=-1) + b_ref[...]
        return jnp.maximum(yv, 0.0)

    x = gat(x, g1w, g1s, g1d, g1b)
    x = gat(x, g2w, g2s, g2d, g2b)

    # ---- actions MLP (dropout identity in eval mode); lane-dense 128-wide out ----
    x = jnp.maximum(jnp.dot(x.astype(bf16), m1w[...], preferred_element_type=f32)
                    + m1b[...], 0.0)
    o_ref[...] = jnp.dot(x.astype(bf16), m2w[...], preferred_element_type=f32) + m2b[...]


# ================== host-side parameter preparation ==================

def _fold_bn(w, b, gamma, beta, mean, var, eps=1e-5):
    s = gamma / np.sqrt(var + eps)
    return w * s[None, None, None, :], b * s + (beta - mean * s)


def _lower_conv(w_hwio, *, W_in, cin_step, in_stride, out_stride):
    """Lane-aligned lowered (block-Toeplitz) 3x3 / stride-1 conv matrix.

    Maps a 3-row slice of the vertically zero-padded activation buffer
    (3*in_stride lanes; input column j sits at lane offset j*cin_step) to one
    full conv-output row (out_stride lanes; output column w at lane w*Cout).
    The horizontal zero halo and the previous max-pool's column decimation
    (cin_step == 2*Cin) are folded into the matrix (zero rows elsewhere).
    """
    Cin, Cout = w_hwio.shape[2], w_hwio.shape[3]
    mat = np.zeros((3 * in_stride, out_stride), np.float32)
    for kr in range(3):
        for kc in range(3):
            blk = w_hwio[kr, kc]                                    # (Cin, Cout)
            for w in range(W_in):
                j = w + kc - 1
                if 0 <= j < W_in:
                    r0 = kr * in_stride + j * cin_step
                    mat[r0:r0 + Cin, w * Cout:w * Cout + Cout] = blk
    return mat


def prepare_operands(params):
    """Fold BN, build lane-aligned Toeplitz matrices (bf16), pad biases -> operand list."""
    ops = []
    for (W_in, _cin, cout, cin_step, in_stride, out_stride), p in zip(CONV_GEOM,
                                                                      params['cnn']):
        wf, bf = _fold_bn(np.asarray(p['w'], np.float32), np.asarray(p['b'], np.float32),
                          np.asarray(p['gamma'], np.float32), np.asarray(p['beta'], np.float32),
                          np.asarray(p['mean'], np.float32), np.asarray(p['var'], np.float32))
        mat = _lower_conv(wf, W_in=W_in, cin_step=cin_step,
                          in_stride=in_stride, out_stride=out_stride)
        ops.append(jnp.asarray(mat, jnp.bfloat16))
        brow = np.zeros((1, out_stride), np.float32)
        brow[0, :W_in * cout] = np.tile(bf, W_in)
        ops.append(jnp.asarray(brow))
    cp = params['compress']
    ops += [cp['w'].astype(jnp.bfloat16), cp['b'].reshape(1, -1).astype(jnp.float32)]
    for g in params['gnns']:
        ops += [g['w'].astype(jnp.bfloat16),
                g['att_src'].reshape(1, -1).astype(jnp.float32),
                g['att_dst'].reshape(1, -1).astype(jnp.float32),
                g['bias'].reshape(1, -1).astype(jnp.float32)]
    m1, m2 = params['mlp']
    ops += [m1['w'].astype(jnp.bfloat16), m1['b'].reshape(1, -1).astype(jnp.float32)]
    # pad the final Linear to 128 output lanes -> unmasked (lane-dense) output store
    w2 = np.zeros((GNN_OUT, 128), np.float32)
    w2[:, :NUM_CLASSES] = np.asarray(m2['w'], np.float32)
    b2 = np.zeros((1, 128), np.float32)
    b2[0, :NUM_CLASSES] = np.asarray(m2['b'], np.float32)
    ops += [jnp.asarray(w2, jnp.bfloat16), jnp.asarray(b2)]
    return ops


def init_params(key):
    keys = jax.random.split(key, 64)
    it = iter(keys)

    def nrm(shape, scale=0.1):
        return scale * jax.random.normal(next(it), shape, dtype=jnp.float32)

    cnn = []
    for (_, cin, cout, _) in CNN_LAYERS:
        cnn.append(dict(
            w=nrm((3, 3, cin, cout)),          # HWIO
            b=nrm((cout,)),
            gamma=1.0 + nrm((cout,)),
            beta=nrm((cout,)),
            mean=nrm((cout,)),
            var=1.0 + jnp.abs(nrm((cout,))),
        ))

    compress = dict(w=nrm((128, NUM_FEATURES)), b=nrm((NUM_FEATURES,)))

    gnns = []
    in_ch = NUM_FEATURES
    for _ in range(NUM_GNN_LAYERS):
        gnns.append(dict(
            w=nrm((in_ch, HEADS * GNN_OUT)),
            att_src=nrm((HEADS, GNN_OUT)),
            att_dst=nrm((HEADS, GNN_OUT)),
            bias=nrm((HEADS * GNN_OUT,)),
        ))
        in_ch = HEADS * GNN_OUT

    mlp = [dict(w=nrm((HEADS * GNN_OUT, GNN_OUT)), b=nrm((GNN_OUT,))),
           dict(w=nrm((GNN_OUT, NUM_CLASSES)), b=nrm((NUM_CLASSES,)))]

    return dict(cnn=cnn, compress=compress, gnns=gnns, mlp=mlp)


def edges_to_adj(edge_index, n):
    """Dense adjacency with self loops: adj[i, j] = 1 if message j -> i exists."""
    adj = jnp.zeros((n, n), jnp.float32)
    src, dst = edge_index
    adj = adj.at[dst, src].set(1.0)
    return jnp.minimum(adj + jnp.eye(n, dtype=jnp.float32), 1.0)


# ================== forward wrapper (single pallas_call) ==================

@jax.jit
def decentral_planner_gatnet(operands, x_nchw, adj):
    n = x_nchw.shape[0]
    s = FOV + 2                                                    # 11
    xh = jnp.transpose(x_nchw.astype(jnp.float32), (0, 2, 3, 1))   # NCHW -> NHWC
    # vertically zero-padded, 128-lane-stride row layout for the first conv
    xrow = jnp.zeros((n, s + 2, 128), jnp.float32)
    xrow = xrow.at[:, 1:s + 1, :s * 3].set(xh.reshape(n, s, s * 3))
    xrow = xrow.reshape(n, (s + 2) * 128)

    scratch = [pltpu.VMEM((11 * n, 3 * 384), jnp.float32),   # stacked conv patches
               pltpu.VMEM((n, 7 * 384), jnp.float32),        # padded input of conv2
               pltpu.VMEM((n, 7 * 256), jnp.float32),        # padded input of conv3
               pltpu.VMEM((n, 4 * 384), jnp.float32),        # padded input of conv4
               pltpu.VMEM((n, 4 * 128), jnp.float32)]        # padded input of conv5

    out = pl.pallas_call(
        _gatnet_kernel,
        out_shape=jax.ShapeDtypeStruct((n, 128), jnp.float32),
        scratch_shapes=scratch,
        compiler_params=pltpu.CompilerParams(vmem_limit_bytes=32 * 1024 * 1024),
        cost_estimate=pl.CostEstimate(flops=85_000_000,
                                      transcendentals=512,
                                      bytes_accessed=3_500_000),
    )(xrow, *operands, adj)
    return out[:, :NUM_CLASSES]


# ================== pure-JAX reference (for a sanity check) ==================

def reference_forward(params, x_nchw, adj):
    x = jnp.transpose(x_nchw.astype(jnp.float32), (0, 2, 3, 1))
    for (_, _cin, _cout, pool), p in zip(CNN_LAYERS, params['cnn']):
        y = lax.conv_general_dilated(x, p['w'], (1, 1), 'SAME',
                                     dimension_numbers=('NHWC', 'HWIO', 'NHWC'),
                                     precision=lax.Precision.HIGHEST)
        y = y + p['b']
        s = p['gamma'] / jnp.sqrt(p['var'] + 1e-5)
        y = s * y + (p['beta'] - p['mean'] * s)
        y = jnp.maximum(y, 0.0)
        if pool:
            y = lax.reduce_window(y, -jnp.inf, lax.max,
                                  (1, 2, 2, 1), (1, 2, 2, 1), 'VALID')
        x = y
    n = x.shape[0]
    x = jnp.transpose(x, (0, 3, 1, 2)).reshape(n, -1)             # (C,H,W) flatten
    hi = lax.Precision.HIGHEST
    x = jnp.maximum(jnp.dot(x, params['compress']['w'], precision=hi)
                    + params['compress']['b'], 0.0)
    for g in params['gnns']:
        h = jnp.dot(x, g['w'], precision=hi)
        outs = []
        for hd in range(HEADS):
            h_hd = h[:, hd * GNN_OUT:(hd + 1) * GNN_OUT]
            a_s = jnp.sum(h_hd * g['att_src'][hd], axis=1)
            a_d = jnp.sum(h_hd * g['att_dst'][hd], axis=1)
            e = a_d[:, None] + a_s[None, :]
            e = jnp.where(e >= 0, e, 0.2 * e)
            e = jnp.where(adj > 0, e, -1e30)
            p_ = jnp.where(adj > 0, jnp.exp(e - e.max(axis=1, keepdims=True)), 0.0)
            alpha = p_ / p_.sum(axis=1, keepdims=True)
            outs.append(jnp.dot(alpha, h_hd, precision=hi))
        x = jnp.maximum(jnp.concatenate(outs, axis=-1) + g['bias'], 0.0)
    a0, a1 = params['mlp']
    x = jnp.maximum(jnp.dot(x, a0['w'], precision=hi) + a0['b'], 0.0)
    return jnp.dot(x, a1['w'], precision=hi) + a1['b']


if __name__ == "__main__":
    key = jax.random.PRNGKey(0)
    k_param, k_x = jax.random.split(key)
    params = init_params(k_param)
    operands = prepare_operands(params)

    # input: N_AGENTS FOV maps, NCHW, 3 channels, (FOV+2) x (FOV+2) spatial
    x = jax.random.normal(k_x, (N_AGENTS, 3, FOV + 2, FOV + 2), dtype=jnp.float32)

    # bidirectional ring graph over the agents (16 directed edges)
    src = jnp.arange(N_AGENTS, dtype=jnp.int32)
    dst = (src + 1) % N_AGENTS
    edge_index = jnp.stack([jnp.concatenate([src, dst]),
                            jnp.concatenate([dst, src])], axis=0)
    adj = edges_to_adj(edge_index, N_AGENTS)

    out = decentral_planner_gatnet(operands, x, adj)
    out = jax.block_until_ready(out)
    assert out.shape == (N_AGENTS, NUM_CLASSES)
    assert bool(jnp.all(jnp.isfinite(out)))

    # numerical sanity check against a pure-JAX f32 reference of the same module
    # (kernel uses bf16 MXU operands with f32 accumulation -> slightly looser tol)
    ref = reference_forward(params, x, adj)
    err = float(jnp.max(jnp.abs(out - ref)))
    tol = 3e-2 * (float(jnp.max(jnp.abs(ref))) + 1.0)
    assert err <= tol, f"mismatch vs reference: {err} > {tol}"

    print("KERNEL_OK")
</pallas_src>

<mosaic_0001>
module attributes {stable_mosaic.version = 11 : i64} {
  func.func @_gatnet_kernel(%arg0: memref<8x1664xf32, #tpu.memory_space<vmem>>, %arg1: memref<384x384xbf16, #tpu.memory_space<vmem>>, %arg2: memref<1x384xf32, #tpu.memory_space<vmem>>, %arg3: memref<1152x256xbf16, #tpu.memory_space<vmem>>, %arg4: memref<1x256xf32, #tpu.memory_space<vmem>>, %arg5: memref<768x384xbf16, #tpu.memory_space<vmem>>, %arg6: memref<1x384xf32, #tpu.memory_space<vmem>>, %arg7: memref<1152x128xbf16, #tpu.memory_space<vmem>>, %arg8: memref<1x128xf32, #tpu.memory_space<vmem>>, %arg9: memref<384x256xbf16, #tpu.memory_space<vmem>>, %arg10: memref<1x256xf32, #tpu.memory_space<vmem>>, %arg11: memref<128x128xbf16, #tpu.memory_space<vmem>>, %arg12: memref<1x128xf32, #tpu.memory_space<vmem>>, %arg13: memref<128x256xbf16, #tpu.memory_space<vmem>>, %arg14: memref<1x256xf32, #tpu.memory_space<vmem>>, %arg15: memref<1x256xf32, #tpu.memory_space<vmem>>, %arg16: memref<1x256xf32, #tpu.memory_space<vmem>>, %arg17: memref<256x256xbf16, #tpu.memory_space<vmem>>, %arg18: memref<1x256xf32, #tpu.memory_space<vmem>>, %arg19: memref<1x256xf32, #tpu.memory_space<vmem>>, %arg20: memref<1x256xf32, #tpu.memory_space<vmem>>, %arg21: memref<256x128xbf16, #tpu.memory_space<vmem>>, %arg22: memref<1x128xf32, #tpu.memory_space<vmem>>, %arg23: memref<128x128xbf16, #tpu.memory_space<vmem>>, %arg24: memref<1x128xf32, #tpu.memory_space<vmem>>, %arg25: memref<8x8xf32, #tpu.memory_space<vmem>>, %arg26: memref<8x128xf32, #tpu.memory_space<vmem>>, %arg27: memref<88x1152xf32, #tpu.memory_space<vmem>>, %arg28: memref<8x2688xf32, #tpu.memory_space<vmem>>, %arg29: memref<8x1792xf32, #tpu.memory_space<vmem>>, %arg30: memref<8x1536xf32, #tpu.memory_space<vmem>>, %arg31: memref<8x512xf32, #tpu.memory_space<vmem>>) attributes {dimension_semantics = [], scalar_prefetch = 0 : i64, scratch_operands = 5 : i64, tpu.core_type = #tpu.core_type<tc>} {
    %cst = arith.constant 0.000000e+00 : f32
    %0 = vector.broadcast %cst : f32 to vector<8x384xf32>
    %c0 = arith.constant 0 : index
    %c0_0 = arith.constant 0 : index
    %1 = vector.load %arg28[%c0, %c0_0] : memref<8x2688xf32, #tpu.memory_space<vmem>>, vector<8x384xf32>
    tpu.vector_store %arg28[%c0, %c0_0], %0 {strides = array<i32>} : memref<8x2688xf32, #tpu.memory_space<vmem>>, vector<8x384xf32>,
    %cst_1 = arith.constant 0.000000e+00 : f32
    %2 = vector.broadcast %cst_1 : f32 to vector<8x384xf32>
    %c0_2 = arith.constant 0 : index
    %c2304 = arith.constant 2304 : index
    %3 = vector.load %arg28[%c0_2, %c2304] : memref<8x2688xf32, #tpu.memory_space<vmem>>, vector<8x384xf32>
    tpu.vector_store %arg28[%c0_2, %c2304], %2 {strides = array<i32>} : memref<8x2688xf32, #tpu.memory_space<vmem>>, vector<8x384xf32>,
    %cst_3 = arith.constant 0.000000e+00 : f32
    %4 = vector.broadcast %cst_3 : f32 to vector<8x256xf32>
    %c0_4 = arith.constant 0 : index
    %c0_5 = arith.constant 0 : index
    %5 = vector.load %arg29[%c0_4, %c0_5] : memref<8x1792xf32, #tpu.memory_space<vmem>>, vector<8x256xf32>
    tpu.vector_store %arg29[%c0_4, %c0_5], %4 {strides = array<i32>} : memref<8x1792xf32, #tpu.memory_space<vmem>>, vector<8x256xf32>,
    %cst_6 = arith.constant 0.000000e+00 : f32
    %6 = vector.broadcast %cst_6 : f32 to vector<8x256xf32>
    %c0_7 = arith.constant 0 : index
    %c1536 = arith.constant 1536 : index
    %7 = vector.load %arg29[%c0_7, %c1536] : memref<8x1792xf32, #tpu.memory_space<vmem>>, vector<8x256xf32>
    tpu.vector_store %arg29[%c0_7, %c1536], %6 {strides = array<i32>} : memref<8x1792xf32, #tpu.memory_space<vmem>>, vector<8x256xf32>,
    %cst_8 = arith.constant 0.000000e+00 : f32
    %8 = vector.broadcast %cst_8 : f32 to vector<8x384xf32>
    %c0_9 = arith.constant 0 : index
    %c0_10 = arith.constant 0 : index
    %9 = vector.load %arg30[%c0_9, %c0_10] : memref<8x1536xf32, #tpu.memory_space<vmem>>, vector<8x384xf32>
    tpu.vector_store %arg30[%c0_9, %c0_10], %8 {strides = array<i32>} : memref<8x1536xf32, #tpu.memory_space<vmem>>, vector<8x384xf32>,
    %cst_11 = arith.constant 0.000000e+00 : f32
    %10 = vector.broadcast %cst_11 : f32 to vector<8x384xf32>
    %c0_12 = arith.constant 0 : index
    %c1152 = arith.constant 1152 : index
    %11 = vector.load %arg30[%c0_12, %c1152] : memref<8x1536xf32, #tpu.memory_space<vmem>>, vector<8x384xf32>
    tpu.vector_store %arg30[%c0_12, %c1152], %10 {strides = array<i32>} : memref<8x1536xf32, #tpu.memory_space<vmem>>, vector<8x384xf32>,
    %cst_13 = arith.constant 0.000000e+00 : f32
    %12 = vector.broadcast %cst_13 : f32 to vector<8x128xf32>
    %c0_14 = arith.constant 0 : index
    %c0_15 = arith.constant 0 : index
    %13 = vector.load %arg31[%c0_14, %c0_15] : memref<8x512xf32, #tpu.memory_space<vmem>>, vector<8x128xf32>
    tpu.vector_store %arg31[%c0_14, %c0_15], %12 {strides = array<i32>} : memref<8x512xf32, #tpu.memory_space<vmem>>, vector<8x128xf32>,
    %cst_16 = arith.constant 0.000000e+00 : f32
    %14 = vector.broadcast %cst_16 : f32 to vector<8x128xf32>
    %c0_17 = arith.constant 0 : index
    %c384 = arith.constant 384 : index
    %15 = vector.load %arg31[%c0_17, %c384] : memref<8x512xf32, #tpu.memory_space<vmem>>, vector<8x128xf32>
    tpu.vector_store %arg31[%c0_17, %c384], %14 {strides = array<i32>} : memref<8x512xf32, #tpu.memory_space<vmem>>, vector<8x128xf32>,
    %c0_18 = arith.constant 0 : index
    %c0_19 = arith.constant 0 : index
    %16 = vector.load %arg0[%c0_18, %c0_19] : memref<8x1664xf32, #tpu.memory_space<vmem>>, vector<8x384xf32>
    %c0_20 = arith.constant 0 : index
    %c0_21 = arith.constant 0 : index
    %17 = vector.load %arg27[%c0_20, %c0_21] : memref<88x1152xf32, #tpu.memory_space<vmem>>, vector<8x384xf32>
    tpu.vector_store %arg27[%c0_20, %c0_21], %16 {strides = array<i32>} : memref<88x1152xf32, #tpu.memory_space<vmem>>, vector<8x384xf32>,
    %c0_22 = arith.constant 0 : index
    %c128 = arith.constant 128 : index
    %18 = vector.load %arg0[%c0_22, %c128] : memref<8x1664xf32, #tpu.memory_space<vmem>>, vector<8x384xf32>
    %c8 = arith.constant 8 : index
    %c0_23 = arith.constant 0 : index
    %19 = vector.load %arg27[%c8, %c0_23] : memref<88x1152xf32, #tpu.memory_space<vmem>>, vector<8x384xf32>
    tpu.vector_store %arg27[%c8, %c0_23], %18 {strides = array<i32>} : memref<88x1152xf32, #tpu.memory_space<vmem>>, vector<8x384xf32>,
    %c0_24 = arith.constant 0 : index
    %c256 = arith.constant 256 : index
    %20 = vector.load %arg0[%c0_24, %c256] : memref<8x1664xf32, #tpu.memory_space<vmem>>, vector<8x384xf32>
    %c16 = arith.constant 16 : index
    %c0_25 = arith.constant 0 : index
    %21 = vector.load %arg27[%c16, %c0_25] : memref<88x1152xf32, #tpu.memory_space<vmem>>, vector<8x384xf32>
    tpu.vector_store %arg27[%c16, %c0_25], %20 {strides = array<i32>} : memref<88x1152xf32, #tpu.memory_space<vmem>>, vector<8x384xf32>,
    %c0_26 = arith.constant 0 : index
    %c384_27 = arith.constant 384 : index
    %22 = vector.load %arg0[%c0_26, %c384_27] : memref<8x1664xf32, #tpu.memory_space<vmem>>, vector<8x384xf32>
    %c24 = arith.constant 24 : index
    %c0_28 = arith.constant 0 : index
    %23 = vector.load %arg27[%c24, %c0_28] : memref<88x1152xf32, #tpu.memory_space<vmem>>, vector<8x384xf32>
    tpu.vector_store %arg27[%c24, %c0_28], %22 {strides = array<i32>} : memref<88x1152xf32, #tpu.memory_space<vmem>>, vector<8x384xf32>,
    %c0_29 = arith.constant 0 : index
    %c512 = arith.constant 512 : index
    %24 = vector.load %arg0[%c0_29, %c512] : memref<8x1664xf32, #tpu.memory_space<vmem>>, vector<8x384xf32>
    %c32 = arith.constant 32 : index
    %c0_30 = arith.constant 0 : index
    %25 = vector.load %arg27[%c32, %c0_30] : memref<88x1152xf32, #tpu.memory_space<vmem>>, vector<8x384xf32>
    tpu.vector_store %arg27[%c32, %c0_30], %24 {strides = array<i32>} : memref<88x1152xf32, #tpu.memory_space<vmem>>, vector<8x384xf32>,
    %c0_31 = arith.constant 0 : index
    %c640 = arith.constant 640 : index
    %26 = vector.load %arg0[%c0_31, %c640] : memref<8x1664xf32, #tpu.memory_space<vmem>>, vector<8x384xf32>
    %c40 = arith.constant 40 : index
    %c0_32 = arith.constant 0 : index
    %27 = vector.load %arg27[%c40, %c0_32] : memref<88x1152xf32, #tpu.memory_space<vmem>>, vector<8x384xf32>
    tpu.vector_store %arg27[%c40, %c0_32], %26 {strides = array<i32>} : memref<88x1152xf32, #tpu.memory_space<vmem>>, vector<8x384xf32>,
    %c0_33 = arith.constant 0 : index
    %c768 = arith.constant 768 : index
    %28 = vector.load %arg0[%c0_33, %c768] : memref<8x1664xf32, #tpu.memory_space<vmem>>, vector<8x384xf32>
    %c48 = arith.constant 48 : index
    %c0_34 = arith.constant 0 : index
    %29 = vector.load %arg27[%c48, %c0_34] : memref<88x1152xf32, #tpu.memory_space<vmem>>, vector<8x384xf32>
    tpu.vector_store %arg27[%c48, %c0_34], %28 {strides = array<i32>} : memref<88x1152xf32, #tpu.memory_space<vmem>>, vector<8x384xf32>,
    %c0_35 = arith.constant 0 : index
    %c896 = arith.constant 896 : index
    %30 = vector.load %arg0[%c0_35, %c896] : memref<8x1664xf32, #tpu.memory_space<vmem>>, vector<8x384xf32>
    %c56 = arith.constant 56 : index
    %c0_36 = arith.constant 0 : index
    %31 = vector.load %arg27[%c56, %c0_36] : memref<88x1152xf32, #tpu.memory_space<vmem>>, vector<8x384xf32>
    tpu.vector_store %arg27[%c56, %c0_36], %30 {strides = array<i32>} : memref<88x1152xf32, #tpu.memory_space<vmem>>, vector<8x384xf32>,
    %c0_37 = arith.constant 0 : index
    %c1024 = arith.constant 1024 : index
    %32 = vector.load %arg0[%c0_37, %c1024] : memref<8x1664xf32, #tpu.memory_space<vmem>>, vector<8x384xf32>
    %c64 = arith.constant 64 : index
    %c0_38 = arith.constant 0 : index
    %33 = vector.load %arg27[%c64, %c0_38] : memref<88x1152xf32, #tpu.memory_space<vmem>>, vector<8x384xf32>
    tpu.vector_store %arg27[%c64, %c0_38], %32 {strides = array<i32>} : memref<88x1152xf32, #tpu.memory_space<vmem>>, vector<8x384xf32>,
    %c0_39 = arith.constant 0 : index
    %c1152_40 = arith.constant 1152 : index
    %34 = vector.load %arg0[%c0_39, %c1152_40] : memref<8x1664xf32, #tpu.memory_space<vmem>>, vector<8x384xf32>
    %c72 = arith.constant 72 : index
    %c0_41 = arith.constant 0 : index
    %35 = vector.load %arg27[%c72, %c0_41] : memref<88x1152xf32, #tpu.memory_space<vmem>>, vector<8x384xf32>
    tpu.vector_store %arg27[%c72, %c0_41], %34 {strides = array<i32>} : memref<88x1152xf32, #tpu.memory_space<vmem>>, vector<8x384xf32>,
    %c0_42 = arith.constant 0 : index
    %c1280 = arith.constant 1280 : index
    %36 = vector.load %arg0[%c0_42, %c1280] : memref<8x1664xf32, #tpu.memory_space<vmem>>, vector<8x384xf32>
    %c80 = arith.constant 80 : index
    %c0_43 = arith.constant 0 : index
    %37 = vector.load %arg27[%c80, %c0_43] : memref<88x1152xf32, #tpu.memory_space<vmem>>, vector<8x384xf32>
    tpu.vector_store %arg27[%c80, %c0_43], %36 {strides = array<i32>} : memref<88x1152xf32, #tpu.memory_space<vmem>>, vector<8x384xf32>,
    %c0_44 = arith.constant 0 : index
    %c0_45 = arith.constant 0 : index
    %38 = vector.load %arg27[%c0_44, %c0_45] : memref<88x1152xf32, #tpu.memory_space<vmem>>, vector<88x384xf32>
    %39 = arith.truncf %38 : vector<88x384xf32> to vector<88x384xbf16>
    %c0_46 = arith.constant 0 : index
    %c0_47 = arith.constant 0 : index
    %40 = vector.load %arg1[%c0_46, %c0_47] : memref<384x384xbf16, #tpu.memory_space<vmem>>, vector<384x384xbf16>
    %cst_48 = arith.constant dense<0.000000e+00> : vector<88x384xf32>
    %41 = tpu.matmul %39, %40, %cst_48 {dimension_numbers = #tpu.dot_dimension_numbers<[1], [0], [0], [1], [0, 0, 1, 1], [], []>} : vector<88x384xbf16>, vector<384x384xbf16>, vector<88x384xf32> -> vector<88x384xf32>
    %c0_49 = arith.constant 0 : index
    %c0_50 = arith.constant 0 : index
    %42 = vector.load %arg2[%c0_49, %c0_50] : memref<1x384xf32, #tpu.memory_space<vmem>>, vector<1x384xf32>
    %43 = vector.broadcast %42 : vector<1x384xf32> to vector<88x384xf32>
    %44 = arith.addf %41, %43 : vector<88x384xf32>
    %cst_51 = arith.constant 0.000000e+00 : f32
    %45 = vector.broadcast %cst_51 : f32 to vector<88x384xf32>
    %46 = arith.maximumf %44, %45 : vector<88x384xf32>
    %47 = vector.extract_strided_slice %46 {offsets = [0, 0], sizes = [8, 384], strides = [1, 1]} : vector<88x384xf32> to vector<8x384xf32>
    %48 = vector.extract_strided_slice %46 {offsets = [8, 0], sizes = [8, 384], strides = [1, 1]} : vector<88x384xf32> to vector<8x384xf32>
    %49 = arith.maximumf %47, %48 : vector<8x384xf32>
    %c352_i32 = arith.constant 352 : i32
    %50 = tpu.dynamic_rotate %49 by %c352_i32 dim 1 : vector<8x384xf32>, i32 -> vector<8x384xf32>
    %51 = arith.maximumf %49, %50 : vector<8x384xf32>
    %c0_52 = arith.constant 0 : index
    %c384_53 = arith.constant 384 : index
    %52 = vector.load %arg28[%c0_52, %c384_53] : memref<8x2688xf32, #tpu.memory_space<vmem>>, vector<8x384xf32>
    tpu.vector_store %arg28[%c0_52, %c384_53], %51 {strides = array<i32>} : memref<8x2688xf32, #tpu.memory_space<vmem>>, vector<8x384xf32>,
    %53 = vector.extract_strided_slice %46 {offsets = [16, 0], sizes = [8, 384], strides = [1, 1]} : vector<88x384xf32> to vector<8x384xf32>
    %54 = vector.extract_strided_slice %46 {offsets = [24, 0], sizes = [8, 384], strides = [1, 1]} : vector<88x384xf32> to vector<8x384xf32>
    %55 = arith.maximumf %53, %54 : vector<8x384xf32>
    %c352_i32_54 = arith.constant 352 : i32
    %56 = tpu.dynamic_rotate %55 by %c352_i32_54 dim 1 : vector<8x384xf32>, i32 -> vector<8x384xf32>
    %57 = arith.maximumf %55, %56 : vector<8x384xf32>
    %c0_55 = arith.constant 0 : index
    %c768_56 = arith.constant 768 : index
    %58 = vector.load %arg28[%c0_55, %c768_56] : memref<8x2688xf32, #tpu.memory_space<vmem>>, vector<8x384xf32>
    tpu.vector_store %arg28[%c0_55, %c768_56], %57 {strides = array<i32>} : memref<8x2688xf32, #tpu.memory_space<vmem>>, vector<8x384xf32>,
    %59 = vector.extract_strided_slice %46 {offsets = [32, 0], sizes = [8, 384], strides = [1, 1]} : vector<88x384xf32> to vector<8x384xf32>
    %60 = vector.extract_strided_slice %46 {offsets = [40, 0], sizes = [8, 384], strides = [1, 1]} : vector<88x384xf32> to vector<8x384xf32>
    %61 = arith.maximumf %59, %60 : vector<8x384xf32>
    %c352_i32_57 = arith.constant 352 : i32
    %62 = tpu.dynamic_rotate %61 by %c352_i32_57 dim 1 : vector<8x384xf32>, i32 -> vector<8x384xf32>
    %63 = arith.maximumf %61, %62 : vector<8x384xf32>
    %c0_58 = arith.constant 0 : index
    %c1152_59 = arith.constant 1152 : index
    %64 = vector.load %arg28[%c0_58, %c1152_59] : memref<8x2688xf32, #tpu.memory_space<vmem>>, vector<8x384xf32>
    tpu.vector_store %arg28[%c0_58, %c1152_59], %63 {strides = array<i32>} : memref<8x2688xf32, #tpu.memory_space<vmem>>, vector<8x384xf32>,
    %65 = vector.extract_strided_slice %46 {offsets = [48, 0], sizes = [8, 384], strides = [1, 1]} : vector<88x384xf32> to vector<8x384xf32>
    %66 = vector.extract_strided_slice %46 {offsets = [56, 0], sizes = [8, 384], strides = [1, 1]} : vector<88x384xf32> to vector<8x384xf32>
    %67 = arith.maximumf %65, %66 : vector<8x384xf32>
    %c352_i32_60 = arith.constant 352 : i32
    %68 = tpu.dynamic_rotate %67 by %c352_i32_60 dim 1 : vector<8x384xf32>, i32 -> vector<8x384xf32>
    %69 = arith.maximumf %67, %68 : vector<8x384xf32>
    %c0_61 = arith.constant 0 : index
    %c1536_62 = arith.constant 1536 : index
    %70 = vector.load %arg28[%c0_61, %c1536_62] : memref<8x2688xf32, #tpu.memory_space<vmem>>, vector<8x384xf32>
    tpu.vector_store %arg28[%c0_61, %c1536_62], %69 {strides = array<i32>} : memref<8x2688xf32, #tpu.memory_space<vmem>>, vector<8x384xf32>,
    %71 = vector.extract_strided_slice %46 {offsets = [64, 0], sizes = [8, 384], strides = [1, 1]} : vector<88x384xf32> to vector<8x384xf32>
    %72 = vector.extract_strided_slice %46 {offsets = [72, 0], sizes = [8, 384], strides = [1, 1]} : vector<88x384xf32> to vector<8x384xf32>
    %73 = arith.maximumf %71, %72 : vector<8x384xf32>
    %c352_i32_63 = arith.constant 352 : i32
    %74 = tpu.dynamic_rotate %73 by %c352_i32_63 dim 1 : vector<8x384xf32>, i32 -> vector<8x384xf32>
    %75 = arith.maximumf %73, %74 : vector<8x384xf32>
    %c0_64 = arith.constant 0 : index
    %c1920 = arith.constant 1920 : index
    %76 = vector.load %arg28[%c0_64, %c1920] : memref<8x2688xf32, #tpu.memory_space<vmem>>, vector<8x384xf32>
    tpu.vector_store %arg28[%c0_64, %c1920], %75 {strides = array<i32>} : memref<8x2688xf32, #tpu.memory_space<vmem>>, vector<8x384xf32>,
    %c0_65 = arith.constant 0 : index
    %c0_66 = arith.constant 0 : index
    %77 = vector.load %arg28[%c0_65, %c0_66] : memref<8x2688xf32, #tpu.memory_space<vmem>>, vector<8x1152xf32>
    %c0_67 = arith.constant 0 : index
    %c0_68 = arith.constant 0 : index
    %78 = vector.load %arg27[%c0_67, %c0_68] : memref<88x1152xf32, #tpu.memory_space<vmem>>, vector<8x1152xf32>
    tpu.vector_store %arg27[%c0_67, %c0_68], %77 {strides = array<i32>} : memref<88x1152xf32, #tpu.memory_space<vmem>>, vector<8x1152xf32>,
    %c0_69 = arith.constant 0 : index
    %c384_70 = arith.constant 384 : index
    %79 = vector.load %arg28[%c0_69, %c384_70] : memref<8x2688xf32, #tpu.memory_space<vmem>>, vector<8x1152xf32>
    %c8_71 = arith.constant 8 : index
    %c0_72 = arith.constant 0 : index
    %80 = vector.load %arg27[%c8_71, %c0_72] : memref<88x1152xf32, #tpu.memory_space<vmem>>, vector<8x1152xf32>
    tpu.vector_store %arg27[%c8_71, %c0_72], %79 {strides = array<i32>} : memref<88x1152xf32, #tpu.memory_space<vmem>>, vector<8x1152xf32>,
    %c0_73 = arith.constant 0 : index
    %c768_74 = arith.constant 768 : index
    %81 = vector.load %arg28[%c0_73, %c768_74] : memref<8x2688xf32, #tpu.memory_space<vmem>>, vector<8x1152xf32>
    %c16_75 = arith.constant 16 : index
    %c0_76 = arith.constant 0 : index
    %82 = vector.load %arg27[%c16_75, %c0_76] : memref<88x1152xf32, #tpu.memory_space<vmem>>, vector<8x1152xf32>
    tpu.vector_store %arg27[%c16_75, %c0_76], %81 {strides = array<i32>} : memref<88x1152xf32, #tpu.memory_space<vmem>>, vector<8x1152xf32>,
    %c0_77 = arith.constant 0 : index
    %c1152_78 = arith.constant 1152 : index
    %83 = vector.load %arg28[%c0_77, %c1152_78] : memref<8x2688xf32, #tpu.memory_space<vmem>>, vector<8x1152xf32>
    %c24_79 = arith.constant 24 : index
    %c0_80 = arith.constant 0 : index
    %84 = vector.load %arg27[%c24_79, %c0_80] : memref<88x1152xf32, #tpu.memory_space<vmem>>, vector<8x1152xf32>
    tpu.vector_store %arg27[%c24_79, %c0_80], %83 {strides = array<i32>} : memref<88x1152xf32, #tpu.memory_space<vmem>>, vector<8x1152xf32>,
    %c0_81 = arith.constant 0 : index
    %c1536_82 = arith.constant 1536 : index
    %85 = vector.load %arg28[%c0_81, %c1536_82] : memref<8x2688xf32, #tpu.memory_space<vmem>>, vector<8x1152xf32>
    %c32_83 = arith.constant 32 : index
    %c0_84 = arith.constant 0 : index
    %86 = vector.load %arg27[%c32_83, %c0_84] : memref<88x1152xf32, #tpu.memory_space<vmem>>, vector<8x1152xf32>
    tpu.vector_store %arg27[%c32_83, %c0_84], %85 {strides = array<i32>} : memref<88x1152xf32, #tpu.memory_space<vmem>>, vector<8x1152xf32>,
    %c0_85 = arith.constant 0 : index
    %c0_86 = arith.constant 0 : index
    %87 = vector.load %arg27[%c0_85, %c0_86] : memref<88x1152xf32, #tpu.memory_space<vmem>>, vector<40x1152xf32>
    %88 = arith.truncf %87 : vector<40x1152xf32> to vector<40x1152xbf16>
    %c0_87 = arith.constant 0 : index
    %c0_88 = arith.constant 0 : index
    %89 = vector.load %arg3[%c0_87, %c0_88] : memref<1152x256xbf16, #tpu.memory_space<vmem>>, vector<1152x256xbf16>
    %cst_89 = arith.constant dense<0.000000e+00> : vector<40x256xf32>
    %90 = tpu.matmul %88, %89, %cst_89 {dimension_numbers = #tpu.dot_dimension_numbers<[1], [0], [0], [1], [0, 0, 1, 1], [], []>} : vector<40x1152xbf16>, vector<1152x256xbf16>, vector<40x256xf32> -> vector<40x256xf32>
    %c0_90 = arith.constant 0 : index
    %c0_91 = arith.constant 0 : index
    %91 = vector.load %arg4[%c0_90, %c0_91] : memref<1x256xf32, #tpu.memory_space<vmem>>, vector<1x256xf32>
    %92 = vector.broadcast %91 : vector<1x256xf32> to vector<40x256xf32>
    %93 = arith.addf %90, %92 : vector<40x256xf32>
    %cst_92 = arith.constant 0.000000e+00 : f32
    %94 = vector.broadcast %cst_92 : f32 to vector<40x256xf32>
    %95 = arith.maximumf %93, %94 : vector<40x256xf32>
    %96 = vector.extract_strided_slice %95 {offsets = [0, 0], sizes = [8, 256], strides = [1, 1]} : vector<40x256xf32> to vector<8x256xf32>
    %c0_93 = arith.constant 0 : index
    %c256_94 = arith.constant 256 : index
    %97 = vector.load %arg29[%c0_93, %c256_94] : memref<8x1792xf32, #tpu.memory_space<vmem>>, vector<8x256xf32>
    tpu.vector_store %arg29[%c0_93, %c256_94], %96 {strides = array<i32>} : memref<8x1792xf32, #tpu.memory_space<vmem>>, vector<8x256xf32>,
    %98 = vector.extract_strided_slice %95 {offsets = [8, 0], sizes = [8, 256], strides = [1, 1]} : vector<40x256xf32> to vector<8x256xf32>
    %c0_95 = arith.constant 0 : index
    %c512_96 = arith.constant 512 : index
    %99 = vector.load %arg29[%c0_95, %c512_96] : memref<8x1792xf32, #tpu.memory_space<vmem>>, vector<8x256xf32>
    tpu.vector_store %arg29[%c0_95, %c512_96], %98 {strides = array<i32>} : memref<8x1792xf32, #tpu.memory_space<vmem>>, vector<8x256xf32>,
    %100 = vector.extract_strided_slice %95 {offsets = [16, 0], sizes = [8, 256], strides = [1, 1]} : vector<40x256xf32> to vector<8x256xf32>
    %c0_97 = arith.constant 0 : index
    %c768_98 = arith.constant 768 : index
    %101 = vector.load %arg29[%c0_97, %c768_98] : memref<8x1792xf32, #tpu.memory_space<vmem>>, vector<8x256xf32>
    tpu.vector_store %arg29[%c0_97, %c768_98], %100 {strides = array<i32>} : memref<8x1792xf32, #tpu.memory_space<vmem>>, vector<8x256xf32>,
    %102 = vector.extract_strided_slice %95 {offsets = [24, 0], sizes = [8, 256], strides = [1, 1]} : vector<40x256xf32> to vector<8x256xf32>
    %c0_99 = arith.constant 0 : index
    %c1024_100 = arith.constant 1024 : index
    %103 = vector.load %arg29[%c0_99, %c1024_100] : memref<8x1792xf32, #tpu.memory_space<vmem>>, vector<8x256xf32>
    tpu.vector_store %arg29[%c0_99, %c1024_100], %102 {strides = array<i32>} : memref<8x1792xf32, #tpu.memory_space<vmem>>, vector<8x256xf32>,
    %104 = vector.extract_strided_slice %95 {offsets = [32, 0], sizes = [8, 256], strides = [1, 1]} : vector<40x256xf32> to vector<8x256xf32>
    %c0_101 = arith.constant 0 : index
    %c1280_102 = arith.constant 1280 : index
    %105 = vector.load %arg29[%c0_101, %c1280_102] : memref<8x1792xf32, #tpu.memory_space<vmem>>, vector<8x256xf32>
    tpu.vector_store %arg29[%c0_101, %c1280_102], %104 {strides = array<i32>} : memref<8x1792xf32, #tpu.memory_space<vmem>>, vector<8x256xf32>,
    %c0_103 = arith.constant 0 : index
    %c0_104 = arith.constant 0 : index
    %106 = vector.load %arg29[%c0_103, %c0_104] : memref<8x1792xf32, #tpu.memory_space<vmem>>, vector<8x768xf32>
    %c0_105 = arith.constant 0 : index
    %c0_106 = arith.constant 0 : index
    %107 = vector.load %arg27[%c0_105, %c0_106] : memref<88x1152xf32, #tpu.memory_space<vmem>>, vector<8x768xf32>
    tpu.vector_store %arg27[%c0_105, %c0_106], %106 {strides = array<i32>} : memref<88x1152xf32, #tpu.memory_space<vmem>>, vector<8x768xf32>,
    %c0_107 = arith.constant 0 : index
    %c256_108 = arith.constant 256 : index
    %108 = vector.load %arg29[%c0_107, %c256_108] : memref<8x1792xf32, #tpu.memory_space<vmem>>, vector<8x768xf32>
    %c8_109 = arith.constant 8 : index
    %c0_110 = arith.constant 0 : index
    %109 = vector.load %arg27[%c8_109, %c0_110] : memref<88x1152xf32, #tpu.memory_space<vmem>>, vector<8x768xf32>
    tpu.vector_store %arg27[%c8_109, %c0_110], %108 {strides = array<i32>} : memref<88x1152xf32, #tpu.memory_space<vmem>>, vector<8x768xf32>,
    %c0_111 = arith.constant 0 : index
    %c512_112 = arith.constant 512 : index
    %110 = vector.load %arg29[%c0_111, %c512_112] : memref<8x1792xf32, #tpu.memory_space<vmem>>, vector<8x768xf32>
    %c16_113 = arith.constant 16 : index
    %c0_114 = arith.constant 0 : index
    %111 = vector.load %arg27[%c16_113, %c0_114] : memref<88x1152xf32, #tpu.memory_space<vmem>>, vector<8x768xf32>
    tpu.vector_store %arg27[%c16_113, %c0_114], %110 {strides = array<i32>} : memref<88x1152xf32, #tpu.memory_space<vmem>>, vector<8x768xf32>,
    %c0_115 = arith.constant 0 : index
    %c768_116 = arith.constant 768 : index
    %112 = vector.load %arg29[%c0_115, %c768_116] : memref<8x1792xf32, #tpu.memory_space<vmem>>, vector<8x768xf32>
    %c24_117 = arith.constant 24 : index
    %c0_118 = arith.constant 0 : index
    %113 = vector.load %arg27[%c24_117, %c0_118] : memref<88x1152xf32, #tpu.memory_space<vmem>>, vector<8x768xf32>
    tpu.vector_store %arg27[%c24_117, %c0_118], %112 {strides = array<i32>} : memref<88x1152xf32, #tpu.memory_space<vmem>>, vector<8x768xf32>,
    %c0_119 = arith.constant 0 : index
    %c1024_120 = arith.constant 1024 : index
    %114 = vector.load %arg29[%c0_119, %c1024_120] : memref<8x1792xf32, #tpu.memory_space<vmem>>, vector<8x768xf32>
    %c32_121 = arith.constant 32 : index
    %c0_122 = arith.constant 0 : index
    %115 = vector.load %arg27[%c32_121, %c0_122] : memref<88x1152xf32, #tpu.memory_space<vmem>>, vector<8x768xf32>
    tpu.vector_store %arg27[%c32_121, %c0_122], %114 {strides = array<i32>} : memref<88x1152xf32, #tpu.memory_space<vmem>>, vector<8x768xf32>,
    %c0_123 = arith.constant 0 : index
    %c0_124 = arith.constant 0 : index
    %116 = vector.load %arg27[%c0_123, %c0_124] : memref<88x1152xf32, #tpu.memory_space<vmem>>, vector<40x768xf32>
    %117 = arith.truncf %116 : vector<40x768xf32> to vector<40x768xbf16>
    %c0_125 = arith.constant 0 : index
    %c0_126 = arith.constant 0 : index
    %118 = vector.load %arg5[%c0_125, %c0_126] : memref<768x384xbf16, #tpu.memory_space<vmem>>, vector<768x384xbf16>
    %cst_127 = arith.constant dense<0.000000e+00> : vector<40x384xf32>
    %119 = tpu.matmul %117, %118, %cst_127 {dimension_numbers = #tpu.dot_dimension_numbers<[1], [0], [0], [1], [0, 0, 1, 1], [], []>} : vector<40x768xbf16>, vector<768x384xbf16>, vector<40x384xf32> -> vector<40x384xf32>
    %c0_128 = arith.constant 0 : index
    %c0_129 = arith.constant 0 : index
    %120 = vector.load %arg6[%c0_128, %c0_129] : memref<1x384xf32, #tpu.memory_space<vmem>>, vector<1x384xf32>
    %121 = vector.broadcast %120 : vector<1x384xf32> to vector<40x384xf32>
    %122 = arith.addf %119, %121 : vector<40x384xf32>
    %cst_130 = arith.constant 0.000000e+00 : f32
    %123 = vector.broadcast %cst_130 : f32 to vector<40x384xf32>
    %124 = arith.maximumf %122, %123 : vector<40x384xf32>
    %125 = vector.extract_strided_slice %124 {offsets = [0, 0], sizes = [8, 384], strides = [1, 1]} : vector<40x384xf32> to vector<8x384xf32>
    %126 = vector.extract_strided_slice %124 {offsets = [8, 0], sizes = [8, 384], strides = [1, 1]} : vector<40x384xf32> to vector<8x384xf32>
    %127 = arith.maximumf %125, %126 : vector<8x384xf32>
    %c320_i32 = arith.constant 320 : i32
    %128 = tpu.dynamic_rotate %127 by %c320_i32 dim 1 : vector<8x384xf32>, i32 -> vector<8x384xf32>
    %129 = arith.maximumf %127, %128 : vector<8x384xf32>
    %c0_131 = arith.constant 0 : index
    %c384_132 = arith.constant 384 : index
    %130 = vector.load %arg30[%c0_131, %c384_132] : memref<8x1536xf32, #tpu.memory_space<vmem>>, vector<8x384xf32>
    tpu.vector_store %arg30[%c0_131, %c384_132], %129 {strides = array<i32>} : memref<8x1536xf32, #tpu.memory_space<vmem>>, vector<8x384xf32>,
    %131 = vector.extract_strided_slice %124 {offsets = [16, 0], sizes = [8, 384], strides = [1, 1]} : vector<40x384xf32> to vector<8x384xf32>
    %132 = vector.extract_strided_slice %124 {offsets = [24, 0], sizes = [8, 384], strides = [1, 1]} : vector<40x384xf32> to vector<8x384xf32>
    %133 = arith.maximumf %131, %132 : vector<8x384xf32>
    %c320_i32_133 = arith.constant 320 : i32
    %134 = tpu.dynamic_rotate %133 by %c320_i32_133 dim 1 : vector<8x384xf32>, i32 -> vector<8x384xf32>
    %135 = arith.maximumf %133, %134 : vector<8x384xf32>
    %c0_134 = arith.constant 0 : index
    %c768_135 = arith.constant 768 : index
    %136 = vector.load %arg30[%c0_134, %c768_135] : memref<8x1536xf32, #tpu.memory_space<vmem>>, vector<8x384xf32>
    tpu.vector_store %arg30[%c0_134, %c768_135], %135 {strides = array<i32>} : memref<8x1536xf32, #tpu.memory_space<vmem>>, vector<8x384xf32>,
    %c0_136 = arith.constant 0 : index
    %c0_137 = arith.constant 0 : index
    %137 = vector.load %arg30[%c0_136, %c0_137] : memref<8x1536xf32, #tpu.memory_space<vmem>>, vector<8x1152xf32>
    %c0_138 = arith.constant 0 : index
    %c0_139 = arith.constant 0 : index
    %138 = vector.load %arg27[%c0_138, %c0_139] : memref<88x1152xf32, #tpu.memory_space<vmem>>, vector<8x1152xf32>
    tpu.vector_store %arg27[%c0_138, %c0_139], %137 {strides = array<i32>} : memref<88x1152xf32, #tpu.memory_space<vmem>>, vector<8x1152xf32>,
    %c0_140 = arith.constant 0 : index
    %c384_141 = arith.constant 384 : index
    %139 = vector.load %arg30[%c0_140, %c384_141] : memref<8x1536xf32, #tpu.memory_space<vmem>>, vector<8x1152xf32>
    %c8_142 = arith.constant 8 : index
    %c0_143 = arith.constant 0 : index
    %140 = vector.load %arg27[%c8_142, %c0_143] : memref<88x1152xf32, #tpu.memory_space<vmem>>, vector<8x1152xf32>
    tpu.vector_store %arg27[%c8_142, %c0_143], %139 {strides = array<i32>} : memref<88x1152xf32, #tpu.memory_space<vmem>>, vector<8x1152xf32>,
    %c0_144 = arith.constant 0 : index
    %c0_145 = arith.constant 0 : index
    %141 = vector.load %arg27[%c0_144, %c0_145] : memref<88x1152xf32, #tpu.memory_space<vmem>>, vector<16x1152xf32>
    %142 = arith.truncf %141 : vector<16x1152xf32> to vector<16x1152xbf16>
    %c0_146 = arith.constant 0 : index
    %c0_147 = arith.constant 0 : index
    %143 = vector.load %arg7[%c0_146, %c0_147] : memref<1152x128xbf16, #tpu.memory_space<vmem>>, vector<1152x128xbf16>
    %cst_148 = arith.constant dense<0.000000e+00> : vector<16x128xf32>
    %144 = tpu.matmul %142, %143, %cst_148 {dimension_numbers = #tpu.dot_dimension_numbers<[1], [0], [0], [1], [0, 0, 1, 1], [], []>} : vector<16x1152xbf16>, vector<1152x128xbf16>, vector<16x128xf32> -> vector<16x128xf32>
    %c0_149 = arith.constant 0 : index
    %c0_150 = arith.constant 0 : index
    %145 = vector.load %arg8[%c0_149, %c0_150] : memref<1x128xf32, #tpu.memory_space<vmem>>, vector<1x128xf32>
    %146 = vector.broadcast %145 : vector<1x128xf32> to vector<16x128xf32>
    %147 = arith.addf %144, %146 : vector<16x128xf32>
    %cst_151 = arith.constant 0.000000e+00 : f32
    %148 = vector.broadcast %cst_151 : f32 to vector<16x128xf32>
    %149 = arith.maximumf %147, %148 : vector<16x128xf32>
    %150 = vector.extract_strided_slice %149 {offsets = [0, 0], sizes = [8, 128], strides = [1, 1]} : vector<16x128xf32> to vector<8x128xf32>
    %c0_152 = arith.constant 0 : index
    %c128_153 = arith.constant 128 : index
    %151 = vector.load %arg31[%c0_152, %c128_153] : memref<8x512xf32, #tpu.memory_space<vmem>>, vector<8x128xf32>
    tpu.vector_store %arg31[%c0_152, %c128_153], %150 {strides = array<i32>} : memref<8x512xf32, #tpu.memory_space<vmem>>, vector<8x128xf32>,
    %152 = vector.extract_strided_slice %149 {offsets = [8, 0], sizes = [8, 128], strides = [1, 1]} : vector<16x128xf32> to vector<8x128xf32>
    %c0_154 = arith.constant 0 : index
    %c256_155 = arith.constant 256 : index
    %153 = vector.load %arg31[%c0_154, %c256_155] : memref<8x512xf32, #tpu.memory_space<vmem>>, vector<8x128xf32>
    tpu.vector_store %arg31[%c0_154, %c256_155], %152 {strides = array<i32>} : memref<8x512xf32, #tpu.memory_space<vmem>>, vector<8x128xf32>,
    %c0_156 = arith.constant 0 : index
    %c0_157 = arith.constant 0 : index
    %154 = vector.load %arg31[%c0_156, %c0_157] : memref<8x512xf32, #tpu.memory_space<vmem>>, vector<8x384xf32>
    %c0_158 = arith.constant 0 : index
    %c0_159 = arith.constant 0 : index
    %155 = vector.load %arg27[%c0_158, %c0_159] : memref<88x1152xf32, #tpu.memory_space<vmem>>, vector<8x384xf32>
    tpu.vector_store %arg27[%c0_158, %c0_159], %154 {strides = array<i32>} : memref<88x1152xf32, #tpu.memory_space<vmem>>, vector<8x384xf32>,
    %c0_160 = arith.constant 0 : index
    %c128_161 = arith.constant 128 : index
    %156 = vector.load %arg31[%c0_160, %c128_161] : memref<8x512xf32, #tpu.memory_space<vmem>>, vector<8x384xf32>
    %c8_162 = arith.constant 8 : index
    %c0_163 = arith.constant 0 : index
    %157 = vector.load %arg27[%c8_162, %c0_163] : memref<88x1152xf32, #tpu.memory_space<vmem>>, vector<8x384xf32>
    tpu.vector_store %arg27[%c8_162, %c0_163], %156 {strides = array<i32>} : memref<88x1152xf32, #tpu.memory_space<vmem>>, vector<8x384xf32>,
    %c0_164 = arith.constant 0 : index
    %c0_165 = arith.constant 0 : index
    %158 = vector.load %arg27[%c0_164, %c0_165] : memref<88x1152xf32, #tpu.memory_space<vmem>>, vector<16x384xf32>
    %159 = arith.truncf %158 : vector<16x384xf32> to vector<16x384xbf16>
    %c0_166 = arith.constant 0 : index
    %c0_167 = arith.constant 0 : index
    %160 = vector.load %arg9[%c0_166, %c0_167] : memref<384x256xbf16, #tpu.memory_space<vmem>>, vector<384x256xbf16>
    %cst_168 = arith.constant dense<0.000000e+00> : vector<16x256xf32>
    %161 = tpu.matmul %159, %160, %cst_168 {dimension_numbers = #tpu.dot_dimension_numbers<[1], [0], [0], [1], [0, 0, 1, 1], [], []>} : vector<16x384xbf16>, vector<384x256xbf16>, vector<16x256xf32> -> vector<16x256xf32>
    %c0_169 = arith.constant 0 : index
    %c0_170 = arith.constant 0 : index
    %162 = vector.load %arg10[%c0_169, %c0_170] : memref<1x256xf32, #tpu.memory_space<vmem>>, vector<1x256xf32>
    %163 = vector.broadcast %162 : vector<1x256xf32> to vector<16x256xf32>
    %164 = arith.addf %161, %163 : vector<16x256xf32>
    %cst_171 = arith.constant 0.000000e+00 : f32
    %165 = vector.broadcast %cst_171 : f32 to vector<16x256xf32>
    %166 = arith.maximumf %164, %165 : vector<16x256xf32>
    %167 = vector.extract_strided_slice %166 {offsets = [0, 0], sizes = [8, 256], strides = [1, 1]} : vector<16x256xf32> to vector<8x256xf32>
    %168 = vector.extract_strided_slice %166 {offsets = [8, 0], sizes = [8, 256], strides = [1, 1]} : vector<16x256xf32> to vector<8x256xf32>
    %169 = arith.maximumf %167, %168 : vector<8x256xf32>
    %170 = vector.extract_strided_slice %169 {offsets = [0, 0], sizes = [8, 128], strides = [1, 1]} : vector<8x256xf32> to vector<8x128xf32>
    %171 = vector.extract_strided_slice %169 {offsets = [0, 128], sizes = [8, 128], strides = [1, 1]} : vector<8x256xf32> to vector<8x128xf32>
    %172 = arith.maximumf %170, %171 : vector<8x128xf32>
    %173 = arith.truncf %172 : vector<8x128xf32> to vector<8x128xbf16>
    %c0_172 = arith.constant 0 : index
    %c0_173 = arith.constant 0 : index
    %174 = vector.load %arg11[%c0_172, %c0_173] : memref<128x128xbf16, #tpu.memory_space<vmem>>, vector<128x128xbf16>
    %cst_174 = arith.constant dense<0.000000e+00> : vector<8x128xf32>
    %175 = tpu.matmul %173, %174, %cst_174 {dimension_numbers = #tpu.dot_dimension_numbers<[1], [0], [0], [1], [0, 0, 1, 1], [], []>} : vector<8x128xbf16>, vector<128x128xbf16>, vector<8x128xf32> -> vector<8x128xf32>
    %c0_175 = arith.constant 0 : index
    %c0_176 = arith.constant 0 : index
    %176 = vector.load %arg12[%c0_175, %c0_176] : memref<1x128xf32, #tpu.memory_space<vmem>>, vector<1x128xf32>
    %177 = vector.broadcast %176 : vector<1x128xf32> to vector<8x128xf32>
    %178 = arith.addf %175, %177 : vector<8x128xf32>
    %cst_177 = arith.constant 0.000000e+00 : f32
    %179 = vector.broadcast %cst_177 : f32 to vector<8x128xf32>
    %180 = arith.maximumf %178, %179 : vector<8x128xf32>
    %c0_178 = arith.constant 0 : index
    %c0_179 = arith.constant 0 : index
    %181 = vector.load %arg25[%c0_178, %c0_179] : memref<8x8xf32, #tpu.memory_space<vmem>>, vector<8x8xf32>
    %182 = arith.truncf %180 : vector<8x128xf32> to vector<8x128xbf16>
    %c0_180 = arith.constant 0 : index
    %c0_181 = arith.constant 0 : index
    %183 = vector.load %arg13[%c0_180, %c0_181] : memref<128x256xbf16, #tpu.memory_space<vmem>>, vector<128x256xbf16>
    %cst_182 = arith.constant dense<0.000000e+00> : vector<8x256xf32>
    %184 = tpu.matmul %182, %183, %cst_182 {dimension_numbers = #tpu.dot_dimension_numbers<[1], [0], [0], [1], [0, 0, 1, 1], [], []>} : vector<8x128xbf16>, vector<128x256xbf16>, vector<8x256xf32> -> vector<8x256xf32>
    %c0_183 = arith.constant 0 : index
    %c0_184 = arith.constant 0 : index
    %185 = vector.load %arg14[%c0_183, %c0_184] : memref<1x256xf32, #tpu.memory_space<vmem>>, vector<1x256xf32>
    %186 = vector.broadcast %185 : vector<1x256xf32> to vector<8x256xf32>
    %187 = arith.mulf %184, %186 : vector<8x256xf32>
    %c0_185 = arith.constant 0 : index
    %c0_186 = arith.constant 0 : index
    %188 = vector.load %arg15[%c0_185, %c0_186] : memref<1x256xf32, #tpu.memory_space<vmem>>, vector<1x256xf32>
    %189 = vector.broadcast %188 : vector<1x256xf32> to vector<8x256xf32>
    %190 = arith.mulf %184, %189 : vector<8x256xf32>
    %191 = vector.extract_strided_slice %184 {offsets = [0, 0], sizes = [8, 128], strides = [1, 1]} : vector<8x256xf32> to vector<8x128xf32>
    %192 = vector.extract_strided_slice %187 {offsets = [0, 0], sizes = [8, 128], strides = [1, 1]} : vector<8x256xf32> to vector<8x128xf32>
    %cst_187 = arith.constant dense<0.000000e+00> : vector<8xf32>
    %193 = vector.multi_reduction <add>, %192, %cst_187 [1] : vector<8x128xf32> to vector<8xf32>
    %194 = vector.shape_cast %193 : vector<8xf32> to vector<8x1xf32>
    %195 = vector.extract_strided_slice %190 {offsets = [0, 0], sizes = [8, 128], strides = [1, 1]} : vector<8x256xf32> to vector<8x128xf32>
    %cst_188 = arith.constant dense<0.000000e+00> : vector<8xf32>
    %196 = vector.multi_reduction <add>, %195, %cst_188 [1] : vector<8x128xf32> to vector<8xf32>
    %197 = vector.shape_cast %196 : vector<8xf32> to vector<8x1xf32>
    %198 = tpu.transpose %194, [1, 0] : vector<8x1xf32> -> vector<1x8xf32>
    %199 = vector.broadcast %197 : vector<8x1xf32> to vector<8x8xf32>
    %200 = vector.broadcast %198 : vector<1x8xf32> to vector<8x8xf32>
    %201 = arith.addf %199, %200 : vector<8x8xf32>
    %cst_189 = arith.constant 0.000000e+00 : f32
    %202 = vector.broadcast %cst_189 : f32 to vector<8x8xf32>
    %203 = arith.cmpf oge, %201, %202 : vector<8x8xf32>
    %cst_190 = arith.constant 2.000000e-01 : f32
    %204 = vector.broadcast %cst_190 : f32 to vector<8x8xf32>
    %205 = arith.mulf %204, %201 : vector<8x8xf32>
    %206 = arith.select %203, %201, %205 : vector<8x8xi1>, vector<8x8xf32>
    %cst_191 = arith.constant 0.000000e+00 : f32
    %207 = vector.broadcast %cst_191 : f32 to vector<8x8xf32>
    %208 = arith.cmpf ogt, %181, %207 : vector<8x8xf32>
    %cst_192 = arith.constant -1.000000e+30 : f32
    %209 = vector.broadcast %cst_192 : f32 to vector<8x8xf32>
    %210 = arith.select %208, %206, %209 : vector<8x8xi1>, vector<8x8xf32>
    %cst_193 = arith.constant dense<0xFF800000> : vector<8xf32>
    %211 = vector.multi_reduction <maximumf>, %210, %cst_193 [1] : vector<8x8xf32> to vector<8xf32>
    %212 = vector.shape_cast %211 : vector<8xf32> to vector<8x1xf32>
    %cst_194 = arith.constant 0.000000e+00 : f32
    %213 = vector.broadcast %cst_194 : f32 to vector<8x8xf32>
    %214 = arith.cmpf ogt, %181, %213 : vector<8x8xf32>
    %215 = vector.broadcast %212 : vector<8x1xf32> to vector<8x8xf32>
    %216 = arith.subf %210, %215 : vector<8x8xf32>
    %217 = math.exp %216 : vector<8x8xf32>
    %cst_195 = arith.constant 0.000000e+00 : f32
    %218 = vector.broadcast %cst_195 : f32 to vector<8x8xf32>
    %219 = arith.select %214, %217, %218 : vector<8x8xi1>, vector<8x8xf32>
    %cst_196 = arith.constant dense<0.000000e+00> : vector<8xf32>
    %220 = vector.multi_reduction <add>, %219, %cst_196 [1] : vector<8x8xf32> to vector<8xf32>
    %221 = vector.shape_cast %220 : vector<8xf32> to vector<8x1xf32>
    %222 = tpu.reciprocal %221 {approx = true} : vector<8x1xf32> -> vector<8x1xf32>
    %223 = vector.broadcast %222 : vector<8x1xf32> to vector<8x8xf32>
    %224 = arith.mulf %219, %223 : vector<8x8xf32>
    %225 = arith.truncf %224 : vector<8x8xf32> to vector<8x8xbf16>
    %226 = arith.truncf %191 : vector<8x128xf32> to vector<8x128xbf16>
    %cst_197 = arith.constant dense<0.000000e+00> : vector<8x128xf32>
    %227 = tpu.matmul %225, %226, %cst_197 {dimension_numbers = #tpu.dot_dimension_numbers<[1], [0], [0], [1], [0, 0, 1, 1], [], []>} : vector<8x8xbf16>, vector<8x128xbf16>, vector<8x128xf32> -> vector<8x128xf32>
    %228 = vector.extract_strided_slice %184 {offsets = [0, 128], sizes = [8, 128], strides = [1, 1]} : vector<8x256xf32> to vector<8x128xf32>
    %229 = vector.extract_strided_slice %187 {offsets = [0, 128], sizes = [8, 128], strides = [1, 1]} : vector<8x256xf32> to vector<8x128xf32>
    %cst_198 = arith.constant dense<0.000000e+00> : vector<8xf32>
    %230 = vector.multi_reduction <add>, %229, %cst_198 [1] : vector<8x128xf32> to vector<8xf32>
    %231 = vector.shape_cast %230 : vector<8xf32> to vector<8x1xf32>
    %232 = vector.extract_strided_slice %190 {offsets = [0, 128], sizes = [8, 128], strides = [1, 1]} : vector<8x256xf32> to vector<8x128xf32>
    %cst_199 = arith.constant dense<0.000000e+00> : vector<8xf32>
    %233 = vector.multi_reduction <add>, %232, %cst_199 [1] : vector<8x128xf32> to vector<8xf32>
    %234 = vector.shape_cast %233 : vector<8xf32> to vector<8x1xf32>
    %235 = tpu.transpose %231, [1, 0] : vector<8x1xf32> -> vector<1x8xf32>
    %236 = vector.broadcast %234 : vector<8x1xf32> to vector<8x8xf32>
    %237 = vector.broadcast %235 : vector<1x8xf32> to vector<8x8xf32>
    %238 = arith.addf %236, %237 : vector<8x8xf32>
    %cst_200 = arith.constant 0.000000e+00 : f32
    %239 = vector.broadcast %cst_200 : f32 to vector<8x8xf32>
    %240 = arith.cmpf oge, %238, %239 : vector<8x8xf32>
    %cst_201 = arith.constant 2.000000e-01 : f32
    %241 = vector.broadcast %cst_201 : f32 to vector<8x8xf32>
    %242 = arith.mulf %241, %238 : vector<8x8xf32>
    %243 = arith.select %240, %238, %242 : vector<8x8xi1>, vector<8x8xf32>
    %cst_202 = arith.constant 0.000000e+00 : f32
    %244 = vector.broadcast %cst_202 : f32 to vector<8x8xf32>
    %245 = arith.cmpf ogt, %181, %244 : vector<8x8xf32>
    %cst_203 = arith.constant -1.000000e+30 : f32
    %246 = vector.broadcast %cst_203 : f32 to vector<8x8xf32>
    %247 = arith.select %245, %243, %246 : vector<8x8xi1>, vector<8x8xf32>
    %cst_204 = arith.constant dense<0xFF800000> : vector<8xf32>
    %248 = vector.multi_reduction <maximumf>, %247, %cst_204 [1] : vector<8x8xf32> to vector<8xf32>
    %249 = vector.shape_cast %248 : vector<8xf32> to vector<8x1xf32>
    %cst_205 = arith.constant 0.000000e+00 : f32
    %250 = vector.broadcast %cst_205 : f32 to vector<8x8xf32>
    %251 = arith.cmpf ogt, %181, %250 : vector<8x8xf32>
    %252 = vector.broadcast %249 : vector<8x1xf32> to vector<8x8xf32>
    %253 = arith.subf %247, %252 : vector<8x8xf32>
    %254 = math.exp %253 : vector<8x8xf32>
    %cst_206 = arith.constant 0.000000e+00 : f32
    %255 = vector.broadcast %cst_206 : f32 to vector<8x8xf32>
    %256 = arith.select %251, %254, %255 : vector<8x8xi1>, vector<8x8xf32>
    %cst_207 = arith.constant dense<0.000000e+00> : vector<8xf32>
    %257 = vector.multi_reduction <add>, %256, %cst_207 [1] : vector<8x8xf32> to vector<8xf32>
    %258 = vector.shape_cast %257 : vector<8xf32> to vector<8x1xf32>
    %259 = tpu.reciprocal %258 {approx = true} : vector<8x1xf32> -> vector<8x1xf32>
    %260 = vector.broadcast %259 : vector<8x1xf32> to vector<8x8xf32>
    %261 = arith.mulf %256, %260 : vector<8x8xf32>
    %262 = arith.truncf %261 : vector<8x8xf32> to vector<8x8xbf16>
    %263 = arith.truncf %228 : vector<8x128xf32> to vector<8x128xbf16>
    %cst_208 = arith.constant dense<0.000000e+00> : vector<8x128xf32>
    %264 = tpu.matmul %262, %263, %cst_208 {dimension_numbers = #tpu.dot_dimension_numbers<[1], [0], [0], [1], [0, 0, 1, 1], [], []>} : vector<8x8xbf16>, vector<8x128xbf16>, vector<8x128xf32> -> vector<8x128xf32>
    %265 = tpu.concatenate %227, %264 in 1 : vector<8x128xf32>, vector<8x128xf32> -> vector<8x256xf32>
    %c0_209 = arith.constant 0 : index
    %c0_210 = arith.constant 0 : index
    %266 = vector.load %arg16[%c0_209, %c0_210] : memref<1x256xf32, #tpu.memory_space<vmem>>, vector<1x256xf32>
    %267 = vector.broadcast %266 : vector<1x256xf32> to vector<8x256xf32>
    %268 = arith.addf %265, %267 : vector<8x256xf32>
    %cst_211 = arith.constant 0.000000e+00 : f32
    %269 = vector.broadcast %cst_211 : f32 to vector<8x256xf32>
    %270 = arith.maximumf %268, %269 : vector<8x256xf32>
    %271 = arith.truncf %270 : vector<8x256xf32> to vector<8x256xbf16>
    %c0_212 = arith.constant 0 : index
    %c0_213 = arith.constant 0 : index
    %272 = vector.load %arg17[%c0_212, %c0_213] : memref<256x256xbf16, #tpu.memory_space<vmem>>, vector<256x256xbf16>
    %cst_214 = arith.constant dense<0.000000e+00> : vector<8x256xf32>
    %273 = tpu.matmul %271, %272, %cst_214 {dimension_numbers = #tpu.dot_dimension_numbers<[1], [0], [0], [1], [0, 0, 1, 1], [], []>} : vector<8x256xbf16>, vector<256x256xbf16>, vector<8x256xf32> -> vector<8x256xf32>
    %c0_215 = arith.constant 0 : index
    %c0_216 = arith.constant 0 : index
    %274 = vector.load %arg18[%c0_215, %c0_216] : memref<1x256xf32, #tpu.memory_space<vmem>>, vector<1x256xf32>
    %275 = vector.broadcast %274 : vector<1x256xf32> to vector<8x256xf32>
    %276 = arith.mulf %273, %275 : vector<8x256xf32>
    %c0_217 = arith.constant 0 : index
    %c0_218 = arith.constant 0 : index
    %277 = vector.load %arg19[%c0_217, %c0_218] : memref<1x256xf32, #tpu.memory_space<vmem>>, vector<1x256xf32>
    %278 = vector.broadcast %277 : vector<1x256xf32> to vector<8x256xf32>
    %279 = arith.mulf %273, %278 : vector<8x256xf32>
    %280 = vector.extract_strided_slice %273 {offsets = [0, 0], sizes = [8, 128], strides = [1, 1]} : vector<8x256xf32> to vector<8x128xf32>
    %281 = vector.extract_strided_slice %276 {offsets = [0, 0], sizes = [8, 128], strides = [1, 1]} : vector<8x256xf32> to vector<8x128xf32>
    %cst_219 = arith.constant dense<0.000000e+00> : vector<8xf32>
    %282 = vector.multi_reduction <add>, %281, %cst_219 [1] : vector<8x128xf32> to vector<8xf32>
    %283 = vector.shape_cast %282 : vector<8xf32> to vector<8x1xf32>
    %284 = vector.extract_strided_slice %279 {offsets = [0, 0], sizes = [8, 128], strides = [1, 1]} : vector<8x256xf32> to vector<8x128xf32>
    %cst_220 = arith.constant dense<0.000000e+00> : vector<8xf32>
    %285 = vector.multi_reduction <add>, %284, %cst_220 [1] : vector<8x128xf32> to vector<8xf32>
    %286 = vector.shape_cast %285 : vector<8xf32> to vector<8x1xf32>
    %287 = tpu.transpose %283, [1, 0] : vector<8x1xf32> -> vector<1x8xf32>
    %288 = vector.broadcast %286 : vector<8x1xf32> to vector<8x8xf32>
    %289 = vector.broadcast %287 : vector<1x8xf32> to vector<8x8xf32>
    %290 = arith.addf %288, %289 : vector<8x8xf32>
    %cst_221 = arith.constant 0.000000e+00 : f32
    %291 = vector.broadcast %cst_221 : f32 to vector<8x8xf32>
    %292 = arith.cmpf oge, %290, %291 : vector<8x8xf32>
    %cst_222 = arith.constant 2.000000e-01 : f32
    %293 = vector.broadcast %cst_222 : f32 to vector<8x8xf32>
    %294 = arith.mulf %293, %290 : vector<8x8xf32>
    %295 = arith.select %292, %290, %294 : vector<8x8xi1>, vector<8x8xf32>
    %cst_223 = arith.constant 0.000000e+00 : f32
    %296 = vector.broadcast %cst_223 : f32 to vector<8x8xf32>
    %297 = arith.cmpf ogt, %181, %296 : vector<8x8xf32>
    %cst_224 = arith.constant -1.000000e+30 : f32
    %298 = vector.broadcast %cst_224 : f32 to vector<8x8xf32>
    %299 = arith.select %297, %295, %298 : vector<8x8xi1>, vector<8x8xf32>
    %cst_225 = arith.constant dense<0xFF800000> : vector<8xf32>
    %300 = vector.multi_reduction <maximumf>, %299, %cst_225 [1] : vector<8x8xf32> to vector<8xf32>
    %301 = vector.shape_cast %300 : vector<8xf32> to vector<8x1xf32>
    %cst_226 = arith.constant 0.000000e+00 : f32
    %302 = vector.broadcast %cst_226 : f32 to vector<8x8xf32>
    %303 = arith.cmpf ogt, %181, %302 : vector<8x8xf32>
    %304 = vector.broadcast %301 : vector<8x1xf32> to vector<8x8xf32>
    %305 = arith.subf %299, %304 : vector<8x8xf32>
    %306 = math.exp %305 : vector<8x8xf32>
    %cst_227 = arith.constant 0.000000e+00 : f32
    %307 = vector.broadcast %cst_227 : f32 to vector<8x8xf32>
    %308 = arith.select %303, %306, %307 : vector<8x8xi1>, vector<8x8xf32>
    %cst_228 = arith.constant dense<0.000000e+00> : vector<8xf32>
    %309 = vector.multi_reduction <add>, %308, %cst_228 [1] : vector<8x8xf32> to vector<8xf32>
    %310 = vector.shape_cast %309 : vector<8xf32> to vector<8x1xf32>
    %311 = tpu.reciprocal %310 {approx = true} : vector<8x1xf32> -> vector<8x1xf32>
    %312 = vector.broadcast %311 : vector<8x1xf32> to vector<8x8xf32>
    %313 = arith.mulf %308, %312 : vector<8x8xf32>
    %314 = arith.truncf %313 : vector<8x8xf32> to vector<8x8xbf16>
    %315 = arith.truncf %280 : vector<8x128xf32> to vector<8x128xbf16>
    %cst_229 = arith.constant dense<0.000000e+00> : vector<8x128xf32>
    %316 = tpu.matmul %314, %315, %cst_229 {dimension_numbers = #tpu.dot_dimension_numbers<[1], [0], [0], [1], [0, 0, 1, 1], [], []>} : vector<8x8xbf16>, vector<8x128xbf16>, vector<8x128xf32> -> vector<8x128xf32>
    %317 = vector.extract_strided_slice %273 {offsets = [0, 128], sizes = [8, 128], strides = [1, 1]} : vector<8x256xf32> to vector<8x128xf32>
    %318 = vector.extract_strided_slice %276 {offsets = [0, 128], sizes = [8, 128], strides = [1, 1]} : vector<8x256xf32> to vector<8x128xf32>
    %cst_230 = arith.constant dense<0.000000e+00> : vector<8xf32>
    %319 = vector.multi_reduction <add>, %318, %cst_230 [1] : vector<8x128xf32> to vector<8xf32>
    %320 = vector.shape_cast %319 : vector<8xf32> to vector<8x1xf32>
    %321 = vector.extract_strided_slice %279 {offsets = [0, 128], sizes = [8, 128], strides = [1, 1]} : vector<8x256xf32> to vector<8x128xf32>
    %cst_231 = arith.constant dense<0.000000e+00> : vector<8xf32>
    %322 = vector.multi_reduction <add>, %321, %cst_231 [1] : vector<8x128xf32> to vector<8xf32>
    %323 = vector.shape_cast %322 : vector<8xf32> to vector<8x1xf32>
    %324 = tpu.transpose %320, [1, 0] : vector<8x1xf32> -> vector<1x8xf32>
    %325 = vector.broadcast %323 : vector<8x1xf32> to vector<8x8xf32>
    %326 = vector.broadcast %324 : vector<1x8xf32> to vector<8x8xf32>
    %327 = arith.addf %325, %326 : vector<8x8xf32>
    %cst_232 = arith.constant 0.000000e+00 : f32
    %328 = vector.broadcast %cst_232 : f32 to vector<8x8xf32>
    %329 = arith.cmpf oge, %327, %328 : vector<8x8xf32>
    %cst_233 = arith.constant 2.000000e-01 : f32
    %330 = vector.broadcast %cst_233 : f32 to vector<8x8xf32>
    %331 = arith.mulf %330, %327 : vector<8x8xf32>
    %332 = arith.select %329, %327, %331 : vector<8x8xi1>, vector<8x8xf32>
    %cst_234 = arith.constant 0.000000e+00 : f32
    %333 = vector.broadcast %cst_234 : f32 to vector<8x8xf32>
    %334 = arith.cmpf ogt, %181, %333 : vector<8x8xf32>
    %cst_235 = arith.constant -1.000000e+30 : f32
    %335 = vector.broadcast %cst_235 : f32 to vector<8x8xf32>
    %336 = arith.select %334, %332, %335 : vector<8x8xi1>, vector<8x8xf32>
    %cst_236 = arith.constant dense<0xFF800000> : vector<8xf32>
    %337 = vector.multi_reduction <maximumf>, %336, %cst_236 [1] : vector<8x8xf32> to vector<8xf32>
    %338 = vector.shape_cast %337 : vector<8xf32> to vector<8x1xf32>
    %cst_237 = arith.constant 0.000000e+00 : f32
    %339 = vector.broadcast %cst_237 : f32 to vector<8x8xf32>
    %340 = arith.cmpf ogt, %181, %339 : vector<8x8xf32>
    %341 = vector.broadcast %338 : vector<8x1xf32> to vector<8x8xf32>
    %342 = arith.subf %336, %341 : vector<8x8xf32>
    %343 = math.exp %342 : vector<8x8xf32>
    %cst_238 = arith.constant 0.000000e+00 : f32
    %344 = vector.broadcast %cst_238 : f32 to vector<8x8xf32>
    %345 = arith.select %340, %343, %344 : vector<8x8xi1>, vector<8x8xf32>
    %cst_239 = arith.constant dense<0.000000e+00> : vector<8xf32>
    %346 = vector.multi_reduction <add>, %345, %cst_239 [1] : vector<8x8xf32> to vector<8xf32>
    %347 = vector.shape_cast %346 : vector<8xf32> to vector<8x1xf32>
    %348 = tpu.reciprocal %347 {approx = true} : vector<8x1xf32> -> vector<8x1xf32>
    %349 = vector.broadcast %348 : vector<8x1xf32> to vector<8x8xf32>
    %350 = arith.mulf %345, %349 : vector<8x8xf32>
    %351 = arith.truncf %350 : vector<8x8xf32> to vector<8x8xbf16>
    %352 = arith.truncf %317 : vector<8x128xf32> to vector<8x128xbf16>
    %cst_240 = arith.constant dense<0.000000e+00> : vector<8x128xf32>
    %353 = tpu.matmul %351, %352, %cst_240 {dimension_numbers = #tpu.dot_dimension_numbers<[1], [0], [0], [1], [0, 0, 1, 1], [], []>} : vector<8x8xbf16>, vector<8x128xbf16>, vector<8x128xf32> -> vector<8x128xf32>
    %354 = tpu.concatenate %316, %353 in 1 : vector<8x128xf32>, vector<8x128xf32> -> vector<8x256xf32>
    %c0_241 = arith.constant 0 : index
    %c0_242 = arith.constant 0 : index
    %355 = vector.load %arg20[%c0_241, %c0_242] : memref<1x256xf32, #tpu.memory_space<vmem>>, vector<1x256xf32>
    %356 = vector.broadcast %355 : vector<1x256xf32> to vector<8x256xf32>
    %357 = arith.addf %354, %356 : vector<8x256xf32>
    %cst_243 = arith.constant 0.000000e+00 : f32
    %358 = vector.broadcast %cst_243 : f32 to vector<8x256xf32>
    %359 = arith.maximumf %357, %358 : vector<8x256xf32>
    %360 = arith.truncf %359 : vector<8x256xf32> to vector<8x256xbf16>
    %c0_244 = arith.constant 0 : index
    %c0_245 = arith.constant 0 : index
    %361 = vector.load %arg21[%c0_244, %c0_245] : memref<256x128xbf16, #tpu.memory_space<vmem>>, vector<256x128xbf16>
    %cst_246 = arith.constant dense<0.000000e+00> : vector<8x128xf32>
    %362 = tpu.matmul %360, %361, %cst_246 {dimension_numbers = #tpu.dot_dimension_numbers<[1], [0], [0], [1], [0, 0, 1, 1], [], []>} : vector<8x256xbf16>, vector<256x128xbf16>, vector<8x128xf32> -> vector<8x128xf32>
    %c0_247 = arith.constant 0 : index
    %c0_248 = arith.constant 0 : index
    %363 = vector.load %arg22[%c0_247, %c0_248] : memref<1x128xf32, #tpu.memory_space<vmem>>, vector<1x128xf32>
    %364 = vector.broadcast %363 : vector<1x128xf32> to vector<8x128xf32>
    %365 = arith.addf %362, %364 : vector<8x128xf32>
    %cst_249 = arith.constant 0.000000e+00 : f32
    %366 = vector.broadcast %cst_249 : f32 to vector<8x128xf32>
    %367 = arith.maximumf %365, %366 : vector<8x128xf32>
    %368 = arith.truncf %367 : vector<8x128xf32> to vector<8x128xbf16>
    %c0_250 = arith.constant 0 : index
    %c0_251 = arith.constant 0 : index
    %369 = vector.load %arg23[%c0_250, %c0_251] : memref<128x128xbf16, #tpu.memory_space<vmem>>, vector<128x128xbf16>
    %cst_252 = arith.constant dense<0.000000e+00> : vector<8x128xf32>
    %370 = tpu.matmul %368, %369, %cst_252 {dimension_numbers = #tpu.dot_dimension_numbers<[1], [0], [0], [1], [0, 0, 1, 1], [], []>} : vector<8x128xbf16>, vector<128x128xbf16>, vector<8x128xf32> -> vector<8x128xf32>
    %c0_253 = arith.constant 0 : index
    %c0_254 = arith.constant 0 : index
    %371 = vector.load %arg24[%c0_253, %c0_254] : memref<1x128xf32, #tpu.memory_space<vmem>>, vector<1x128xf32>
    %372 = vector.broadcast %371 : vector<1x128xf32> to vector<8x128xf32>
    %373 = arith.addf %370, %372 : vector<8x128xf32>
    %c0_255 = arith.constant 0 : index
    %c0_256 = arith.constant 0 : index
    %374 = vector.load %arg26[%c0_255, %c0_256] : memref<8x128xf32, #tpu.memory_space<vmem>>, vector<8x128xf32>
    tpu.vector_store %arg26[%c0_255, %c0_256], %373 {strides = array<i32>} : memref<8x128xf32, #tpu.memory_space<vmem>>, vector<8x128xf32>,
    return
  }
}

</mosaic_0001>

<llo_original>
// kernel: decentral_planner_gatnet.1
$region0: #{decentral_planner_gatnet.1}
  #allocation0 [shape = 'u32[]', space=smem, size = 0x4, offset = 0x4, fixed_abs, tag = 'smem constant byte address 0x4 - core index']
  #allocation1 [shape = 'u32[72,128]{1,0:T(1,128)}', space=vmem, size = 0x9000, scoped, tag = 'internal scratch']
  #allocation2 [shape = 'f32[88,1152]{1,0:T(8,128)}', space=vmem, size = 0x63000, scoped, tag = 'scratch operand']
  #allocation3 [shape = 'f32[8,2688]{1,0:T(8,128)}', space=vmem, size = 0x15000, scoped, tag = 'scratch operand']
  #allocation4 [shape = 'f32[8,1792]{1,0:T(8,128)}', space=vmem, size = 0xe000, scoped, tag = 'scratch operand']
  #allocation5 [shape = 'f32[8,1536]{1,0:T(8,128)}', space=vmem, size = 0xc000, scoped, tag = 'scratch operand']
  #allocation6 [shape = 'f32[8,512]{1,0:T(8,128)}', space=vmem, size = 0x4000, scoped, tag = 'scratch operand']
  %s0 = inlined_call_operand.vmem [shape: f32[8,1664], index: 0, kind: input, shape index: {}]
  %s1 = inlined_call_operand.vmem [shape: bf16[384,384], index: 1, kind: input, shape index: {}]
  %s2 = inlined_call_operand.vmem [shape: f32[1,384], index: 2, kind: input, shape index: {}]
  %s3 = inlined_call_operand.hbm [shape: bf16[1152,256], index: 3, kind: input, shape index: {}]
  %s4 = inlined_call_operand.vmem [shape: f32[1,256], index: 4, kind: input, shape index: {}]
  %s5 = inlined_call_operand.hbm [shape: bf16[768,384], index: 5, kind: input, shape index: {}]
  %s6 = inlined_call_operand.vmem [shape: f32[1,384], index: 6, kind: input, shape index: {}]
  %s7 = inlined_call_operand.hbm [shape: bf16[1152,128], index: 7, kind: input, shape index: {}]
  %s8 = inlined_call_operand.vmem [shape: f32[1,128], index: 8, kind: input, shape index: {}]
  %s9 = inlined_call_operand.vmem [shape: bf16[384,256], index: 9, kind: input, shape index: {}]
  %s10 = inlined_call_operand.vmem [shape: f32[1,256], index: 10, kind: input, shape index: {}]
  %s11 = inlined_call_operand.vmem [shape: bf16[128,128], index: 11, kind: input, shape index: {}]
  %s12 = inlined_call_operand.vmem [shape: f32[1,128], index: 12, kind: input, shape index: {}]
  %s13 = inlined_call_operand.hbm [shape: bf16[128,256], index: 13, kind: input, shape index: {}]
  %s14 = inlined_call_operand.vmem [shape: f32[1,256], index: 14, kind: input, shape index: {}]
  %s15 = inlined_call_operand.vmem [shape: f32[1,256], index: 15, kind: input, shape index: {}]
  %s16 = inlined_call_operand.vmem [shape: f32[1,256], index: 16, kind: input, shape index: {}]
  %s17 = inlined_call_operand.hbm [shape: bf16[256,256], index: 17, kind: input, shape index: {}]
  %s18 = inlined_call_operand.vmem [shape: f32[1,256], index: 18, kind: input, shape index: {}]
  %s19 = inlined_call_operand.vmem [shape: f32[1,256], index: 19, kind: input, shape index: {}]
  %s20 = inlined_call_operand.vmem [shape: f32[1,256], index: 20, kind: input, shape index: {}]
  %s21 = inlined_call_operand.hbm [shape: bf16[256,128], index: 21, kind: input, shape index: {}]
  %s22 = inlined_call_operand.vmem [shape: f32[1,128], index: 22, kind: input, shape index: {}]
  %s23 = inlined_call_operand.hbm [shape: bf16[128,128], index: 23, kind: input, shape index: {}]
  %s24 = inlined_call_operand.vmem [shape: f32[1,128], index: 24, kind: input, shape index: {}]
  %s25 = inlined_call_operand.vmem [shape: f32[8,8], index: 25, kind: input, shape index: {}]
  %s26 = inlined_call_operand.hbm [shape: f32[8,128], index: 26, kind: output, shape index: {}]
  %s27 = sld [smem:[#allocation0]]
  $region142: #{decentral_planner_gatnet.1} parent=0
    _
  %s29 = ssub.s32 1, %s27
  %s30 = scalar_select 0, %s29, %s27
  $region1: #{decentral_planner_gatnet.1} parent=0
    #allocation7 [shape = 'u8[589824]{0}', space=vmem, size = 0x90000, scoped, tag = 'input window, operand 3, single buffered']
    #allocation8 [shape = 's32[1]{0}', space=sflag, size = 0x4, scoped, tag = 'scoped memory for decentral_planner_gatnet.1']
    #allocation9 [shape = 's32[1]{0}', space=sflag, size = 0x4, scoped, tag = 'scoped memory for decentral_planner_gatnet.1']
    #allocation10 [shape = 'u8[589824]{0}', space=vmem, size = 0x90000, scoped, tag = 'input window, operand 5, single buffered']
    #allocation11 [shape = 's32[1]{0}', space=sflag, size = 0x4, scoped, tag = 'scoped memory for decentral_planner_gatnet.1']
    #allocation12 [shape = 'u8[294912]{0}', space=vmem, size = 0x48000, scoped, tag = 'input window, operand 7, single buffered']
    #allocation13 [shape = 'u8[65536]{0}', space=vmem, size = 0x10000, scoped, tag = 'input window, operand 13, single buffered']
    #allocation14 [shape = 's32[1]{0}', space=sflag, size = 0x4, scoped, tag = 'scoped memory for decentral_planner_gatnet.1']
    #allocation15 [shape = 'u8[131072]{0}', space=vmem, size = 0x20000, scoped, tag = 'input window, operand 17, single buffered']
    #allocation16 [shape = 'u8[65536]{0}', space=vmem, size = 0x10000, scoped, tag = 'input window, operand 21, single buffered']
    #allocation17 [shape = 's32[1]{0}', space=sflag, size = 0x4, scoped, tag = 'scoped memory for decentral_planner_gatnet.1']
    #allocation18 [shape = 'u8[32768]{0}', space=vmem, size = 0x8000, scoped, tag = 'input window, operand 23, single buffered']
    #allocation19 [shape = 'u8[4096]{0}', space=vmem, size = 0x1000, scoped, tag = 'output window, operand 0, single buffered']
    %31 = vsyncpa [#allocation8], 0
    %32 = vsyncpa [#allocation11], 0
    %33 = vsyncpa [#allocation14], 0
    %34 = vsyncpa [#allocation17], 0
    %35 = vsyncpa [#allocation9], 0
    // Predicated region
    $region2: #{decentral_planner_gatnet.1} parent=1 // pred_check
      _
    $region3: #{decentral_planner_gatnet.1} parent=1 // pred_check_branch
      %37 = sbr.rel (0) target = $region5
    $region4: #{decentral_planner_gatnet.1} parent=1 // pred_region
      _
    $region5: #{decentral_planner_gatnet.1} parent=1 // pred_fallthru
      _
    // Predicated region
    $region6: #{decentral_planner_gatnet.1} parent=1 // pred_check
      _
    $region7: #{decentral_planner_gatnet.1} parent=1 // pred_check_branch
      %39 = sbr.rel (0) target = $region9
    $region8: #{decentral_planner_gatnet.1} parent=1 // pred_region
      _
    $region9: #{decentral_planner_gatnet.1} parent=1 // pred_fallthru
      _
    // Predicated region
    $region10: #{decentral_planner_gatnet.1} parent=1 // pred_check
      _
    $region11: #{decentral_planner_gatnet.1} parent=1 // pred_check_branch
      %41 = sbr.rel (0) target = $region13
    $region12: #{decentral_planner_gatnet.1} parent=1 // pred_region
      _
    $region13: #{decentral_planner_gatnet.1} parent=1 // pred_fallthru
      _
    // Predicated region
    $region14: #{decentral_planner_gatnet.1} parent=1 // pred_check
      _
    $region15: #{decentral_planner_gatnet.1} parent=1 // pred_check_branch
      %43 = sbr.rel (0) target = $region17
    $region16: #{decentral_planner_gatnet.1} parent=1 // pred_region
      %45 = vsyncadd [#allocation8], 0
      %s46 = sshll.u32 %s3, 4
      %s47 = int_to_ptr.hbm [resolvable:$true] %s46
      %s48 = sshll.u32 [#allocation7], 4
      %s49 = int_to_ptr.vmem [resolvable:$true] %s48
      %54 = dma.hbm_to_vmem [thread:$0]  %s47, 18432, %s49, [#allocation8], 128, 128, 8
    $region17: #{decentral_planner_gatnet.1} parent=1 // pred_fallthru
      _
    // Predicated region
    $region18: #{decentral_planner_gatnet.1} parent=1 // pred_check
      _
    $region19: #{decentral_planner_gatnet.1} parent=1 // pred_check_branch
      %56 = sbr.rel (0) target = $region21
    $region20: #{decentral_planner_gatnet.1} parent=1 // pred_region
      _
    $region21: #{decentral_planner_gatnet.1} parent=1 // pred_fallthru
      _
    // Predicated region
    $region22: #{decentral_planner_gatnet.1} parent=1 // pred_check
      _
    $region23: #{decentral_planner_gatnet.1} parent=1 // pred_check_branch
      %58 = sbr.rel (0) target = $region25
    $region24: #{decentral_planner_gatnet.1} parent=1 // pred_region
      %60 = vsyncadd [#allocation11], 0
      %s61 = sshll.u32 %s5, 4
      %s62 = int_to_ptr.hbm [resolvable:$true] %s61
      %s63 = sshll.u32 [#allocation10], 4
      %s64 = int_to_ptr.vmem [resolvable:$true] %s63
      %69 = dma.hbm_to_vmem [thread:$0]  %s62, 18432, %s64, [#allocation11], 192, 192, 12
    $region25: #{decentral_planner_gatnet.1} parent=1 // pred_fallthru
      _
    // Predicated region
    $region26: #{decentral_planner_gatnet.1} parent=1 // pred_check
      _
    $region27: #{decentral_planner_gatnet.1} parent=1 // pred_check_branch
      %71 = sbr.rel (0) target = $region29
    $region28: #{decentral_planner_gatnet.1} parent=1 // pred_region
      _
    $region29: #{decentral_planner_gatnet.1} parent=1 // pred_fallthru
      _
    // Predicated region
    $region30: #{decentral_planner_gatnet.1} parent=1 // pred_check
      _
    $region31: #{decentral_planner_gatnet.1} parent=1 // pred_check_branch
      %73 = sbr.rel (0) target = $region33
    $region32: #{decentral_planner_gatnet.1} parent=1 // pred_region
      %75 = vsyncadd [#allocation11], 0
      %s76 = sshll.u32 %s7, 4
      %s77 = int_to_ptr.hbm [resolvable:$true] %s76
      %s78 = sshll.u32 [#allocation12], 4
      %s79 = int_to_ptr.vmem [resolvable:$true] %s78
      %84 = dma.hbm_to_vmem [thread:$0]  %s77, 9216, %s79, [#allocation11], 64, 64, 4
    $region33: #{decentral_planner_gatnet.1} parent=1 // pred_fallthru
      _
    // Predicated region
    $region34: #{decentral_planner_gatnet.1} parent=1 // pred_check
      _
    $region35: #{decentral_planner_gatnet.1} parent=1 // pred_check_branch
      %86 = sbr.rel (0) target = $region37
    $region36: #{decentral_planner_gatnet.1} parent=1 // pred_region
      _
    $region37: #{decentral_planner_gatnet.1} parent=1 // pred_fallthru
      _
    // Predicated region
    $region38: #{decentral_planner_gatnet.1} parent=1 // pred_check
      _
    $region39: #{decentral_planner_gatnet.1} parent=1 // pred_check_branch
      %88 = sbr.rel (0) target = $region41
    $region40: #{decentral_planner_gatnet.1} parent=1 // pred_region
      _
    $region41: #{decentral_planner_gatnet.1} parent=1 // pred_fallthru
      _
    // Predicated region
    $region42: #{decentral_planner_gatnet.1} parent=1 // pred_check
      _
    $region43: #{decentral_planner_gatnet.1} parent=1 // pred_check_branch
      %90 = sbr.rel (0) target = $region45
    $region44: #{decentral_planner_gatnet.1} parent=1 // pred_region
      _
    $region45: #{decentral_planner_gatnet.1} parent=1 // pred_fallthru
      _
    // Predicated region
    $region46: #{decentral_planner_gatnet.1} parent=1 // pred_check
      _
    $region47: #{decentral_planner_gatnet.1} parent=1 // pred_check_branch
      %92 = sbr.rel (0) target = $region49
    $region48: #{decentral_planner_gatnet.1} parent=1 // pred_region
      _
    $region49: #{decentral_planner_gatnet.1} parent=1 // pred_fallthru
      _
    // Predicated region
    $region50: #{decentral_planner_gatnet.1} parent=1 // pred_check
      _
    $region51: #{decentral_planner_gatnet.1} parent=1 // pred_check_branch
      %94 = sbr.rel (0) target = $region53
    $region52: #{decentral_planner_gatnet.1} parent=1 // pred_region
      _
    $region53: #{decentral_planner_gatnet.1} parent=1 // pred_fallthru
      _
    // Predicated region
    $region54: #{decentral_planner_gatnet.1} parent=1 // pred_check
      _
    $region55: #{decentral_planner_gatnet.1} parent=1 // pred_check_branch
      %96 = sbr.rel (0) target = $region57
    $region56: #{decentral_planner_gatnet.1} parent=1 // pred_region
      %98 = vsyncadd [#allocation14], 0
      %s99 = sshll.u32 %s13, 4
      %s100 = int_to_ptr.hbm [resolvable:$true] %s99
      %s101 = sshll.u32 [#allocation13], 4
      %s102 = int_to_ptr.vmem [resolvable:$true] %s101
      %107 = dma.hbm_to_vmem [thread:$0]  %s100, 2048, %s102, [#allocation14], 128, 128, 8
    $region57: #{decentral_planner_gatnet.1} parent=1 // pred_fallthru
      _
    // Predicated region
    $region58: #{decentral_planner_gatnet.1} parent=1 // pred_check
      _
    $region59: #{decentral_planner_gatnet.1} parent=1 // pred_check_branch
      %109 = sbr.rel (0) target = $region61
    $region60: #{decentral_planner_gatnet.1} parent=1 // pred_region
      _
    $region61: #{decentral_planner_gatnet.1} parent=1 // pred_fallthru
      _
    // Predicated region
    $region62: #{decentral_planner_gatnet.1} parent=1 // pred_check
      _
    $region63: #{decentral_planner_gatnet.1} parent=1 // pred_check_branch
      %111 = sbr.rel (0) target = $region65
    $region64: #{decentral_planner_gatnet.1} parent=1 // pred_region
      _
    $region65: #{decentral_planner_gatnet.1} parent=1 // pred_fallthru
      _
    // Predicated region
    $region66: #{decentral_planner_gatnet.1} parent=1 // pred_check
      _
    $region67: #{decentral_planner_gatnet.1} parent=1 // pred_check_branch
      %113 = sbr.rel (0) target = $region69
    $region68: #{decentral_planner_gatnet.1} parent=1 // pred_region
      _
    $region69: #{decentral_planner_gatnet.1} parent=1 // pred_fallthru
      _
    // Predicated region
    $region70: #{decentral_planner_gatnet.1} parent=1 // pred_check
      _
    $region71: #{decentral_planner_gatnet.1} parent=1 // pred_check_branch
      %115 = sbr.rel (0) target = $region73
    $region72: #{decentral_planner_gatnet.1} parent=1 // pred_region
      %117 = vsyncadd [#allocation14], 0
      %s118 = sshll.u32 %s17, 4
      %s119 = int_to_ptr.hbm [resolvable:$true] %s118
      %s120 = sshll.u32 [#allocation15], 4
      %s121 = int_to_ptr.vmem [resolvable:$true] %s120
      %126 = dma.hbm_to_vmem [thread:$0]  %s119, 4096, %s121, [#allocation14], 128, 128, 8
    $region73: #{decentral_planner_gatnet.1} parent=1 // pred_fallthru
      _
    // Predicated region
    $region74: #{decentral_planner_gatnet.1} parent=1 // pred_check
      _
    $region75: #{decentral_planner_gatnet.1} parent=1 // pred_check_branch
      %128 = sbr.rel (0) target = $region77
    $region76: #{decentral_planner_gatnet.1} parent=1 // pred_region
      _
    $region77: #{decentral_planner_gatnet.1} parent=1 // pred_fallthru
      _
    // Predicated region
    $region78: #{decentral_planner_gatnet.1} parent=1 // pred_check
      _
    $region79: #{decentral_planner_gatnet.1} parent=1 // pred_check_branch
      %130 = sbr.rel (0) target = $region81
    $region80: #{decentral_planner_gatnet.1} parent=1 // pred_region
      _
    $region81: #{decentral_planner_gatnet.1} parent=1 // pred_fallthru
      _
    // Predicated region
    $region82: #{decentral_planner_gatnet.1} parent=1 // pred_check
      _
    $region83: #{decentral_planner_gatnet.1} parent=1 // pred_check_branch
      %132 = sbr.rel (0) target = $region85
    $region84: #{decentral_planner_gatnet.1} parent=1 // pred_region
      _
    $region85: #{decentral_planner_gatnet.1} parent=1 // pred_fallthru
      _
    // Predicated region
    $region86: #{decentral_planner_gatnet.1} parent=1 // pred_check
      _
    $region87: #{decentral_planner_gatnet.1} parent=1 // pred_check_branch
      %134 = sbr.rel (0) target = $region89
    $region88: #{decentral_planner_gatnet.1} parent=1 // pred_region
      %136 = vsyncadd [#allocation17], 0
      %s137 = sshll.u32 %s21, 4
      %s138 = int_to_ptr.hbm [resolvable:$true] %s137
      %s139 = sshll.u32 [#allocation16], 4
      %s140 = int_to_ptr.vmem [resolvable:$true] %s139
      %145 = dma.hbm_to_vmem [thread:$0]  %s138, 2048, %s140, [#allocation17], 64, 64, 4
    $region89: #{decentral_planner_gatnet.1} parent=1 // pred_fallthru
      _
    // Predicated region
    $region90: #{decentral_planner_gatnet.1} parent=1 // pred_check
      _
    $region91: #{decentral_planner_gatnet.1} parent=1 // pred_check_branch
      %147 = sbr.rel (0) target = $region93
    $region92: #{decentral_planner_gatnet.1} parent=1 // pred_region
      _
    $region93: #{decentral_planner_gatnet.1} parent=1 // pred_fallthru
      _
    // Predicated region
    $region94: #{decentral_planner_gatnet.1} parent=1 // pred_check
      _
    $region95: #{decentral_planner_gatnet.1} parent=1 // pred_check_branch
      %149 = sbr.rel (0) target = $region97
    $region96: #{decentral_planner_gatnet.1} parent=1 // pred_region
      %151 = vsyncadd [#allocation17], 0
      %s152 = sshll.u32 %s23, 4
      %s153 = int_to_ptr.hbm [resolvable:$true] %s152
      %s154 = sshll.u32 [#allocation18], 4
      %s155 = int_to_ptr.vmem [resolvable:$true] %s154
      %160 = dma.hbm_to_vmem [thread:$0]  %s153, 1024, %s155, [#allocation17], 64, 64, 4
    $region97: #{decentral_planner_gatnet.1} parent=1 // pred_fallthru
      _
    // Predicated region
    $region98: #{decentral_planner_gatnet.1} parent=1 // pred_check
      _
    $region99: #{decentral_planner_gatnet.1} parent=1 // pred_check_branch
      %162 = sbr.rel (0) target = $region101
    $region100: #{decentral_planner_gatnet.1} parent=1 // pred_region
      _
    $region101: #{decentral_planner_gatnet.1} parent=1 // pred_fallthru
      _
    // Predicated region
    $region102: #{decentral_planner_gatnet.1} parent=1 // pred_check
      _
    $region103: #{decentral_planner_gatnet.1} parent=1 // pred_check_branch
      %164 = sbr.rel (0) target = $region105
    $region104: #{decentral_planner_gatnet.1} parent=1 // pred_region
      _
    $region105: #{decentral_planner_gatnet.1} parent=1 // pred_fallthru
      _
    // Predicated region
    $region106: #{decentral_planner_gatnet.1} parent=1 // pred_check
      _
    $region107: #{decentral_planner_gatnet.1} parent=1 // pred_check_branch
      %166 = sbr.rel (0) target = $region109
    $region108: #{decentral_planner_gatnet.1} parent=1 // pred_region
      %168 = dma.done [#allocation8], 18432
    $region109: #{decentral_planner_gatnet.1} parent=1 // pred_fallthru
      _
    // Predicated region
    $region110: #{decentral_planner_gatnet.1} parent=1 // pred_check
      _
    $region111: #{decentral_planner_gatnet.1} parent=1 // pred_check_branch
      %170 = sbr.rel (0) target = $region113
    $region112: #{decentral_planner_gatnet.1} parent=1 // pred_region
      %172 = dma.done [#allocation11], 18432
    $region113: #{decentral_planner_gatnet.1} parent=1 // pred_fallthru
      _
    // Predicated region
    $region114: #{decentral_planner_gatnet.1} parent=1 // pred_check
      _
    $region115: #{decentral_planner_gatnet.1} parent=1 // pred_check_branch
      %174 = sbr.rel (0) target = $region117
    $region116: #{decentral_planner_gatnet.1} parent=1 // pred_region
      %176 = dma.done [#allocation11], 9216
    $region117: #{decentral_planner_gatnet.1} parent=1 // pred_fallthru
      _
    // Predicated region
    $region118: #{decentral_planner_gatnet.1} parent=1 // pred_check
      _
    $region119: #{decentral_planner_gatnet.1} parent=1 // pred_check_branch
      %178 = sbr.rel (0) target = $region121
    $region120: #{decentral_planner_gatnet.1} parent=1 // pred_region
      %180 = dma.done [#allocation14], 2048
    $region121: #{decentral_planner_gatnet.1} parent=1 // pred_fallthru
      _
    // Predicated region
    $region122: #{decentral_planner_gatnet.1} parent=1 // pred_check
      _
    $region123: #{decentral_planner_gatnet.1} parent=1 // pred_check_branch
      %182 = sbr.rel (0) target = $region125
    $region124: #{decentral_planner_gatnet.1} parent=1 // pred_region
      %184 = dma.done [#allocation14], 4096
    $region125: #{decentral_planner_gatnet.1} parent=1 // pred_fallthru
      _
    // Predicated region
    $region126: #{decentral_planner_gatnet.1} parent=1 // pred_check
      _
    $region127: #{decentral_planner_gatnet.1} parent=1 // pred_check_branch
      %186 = sbr.rel (0) target = $region129
    $region128: #{decentral_planner_gatnet.1} parent=1 // pred_region
      %188 = dma.done [#allocation17], 2048
    $region129: #{decentral_planner_gatnet.1} parent=1 // pred_fallthru
      _
    // Predicated region
    $region130: #{decentral_planner_gatnet.1} parent=1 // pred_check
      _
    $region131: #{decentral_planner_gatnet.1} parent=1 // pred_check_branch
      %190 = sbr.rel (0) target = $region133
    $region132: #{decentral_planner_gatnet.1} parent=1 // pred_region
      %192 = dma.done [#allocation17], 1024
    $region133: #{decentral_planner_gatnet.1} parent=1 // pred_fallthru
      _
    %194 = vst [vmem:[#allocation3] sm:$0xff] 0.0
    %195 = vst [vmem:[#allocation3 + $0x8] sm:$0xff] 0.0
    %196 = vst [vmem:[#allocation3 + $0x10] sm:$0xff] 0.0
    %197 = vst [vmem:[#allocation3 + $0x90] sm:$0xff] 0.0
    %198 = vst [vmem:[#allocation3 + $0x98] sm:$0xff] 0.0
    %199 = vst [vmem:[#allocation3 + $0xa0] sm:$0xff] 0.0
    %200 = vst [vmem:[#allocation4] sm:$0xff] 0.0
    %201 = vst [vmem:[#allocation4 + $0x8] sm:$0xff] 0.0
    %202 = vst [vmem:[#allocation4 + $0x60] sm:$0xff] 0.0
    %203 = vst [vmem:[#allocation4 + $0x68] sm:$0xff] 0.0
    %204 = vst [vmem:[#allocation5] sm:$0xff] 0.0
    %205 = vst [vmem:[#allocation5 + $0x8] sm:$0xff] 0.0
    %206 = vst [vmem:[#allocation5 + $0x10] sm:$0xff] 0.0
    %207 = vst [vmem:[#allocation5 + $0x48] sm:$0xff] 0.0
    %208 = vst [vmem:[#allocation5 + $0x50] sm:$0xff] 0.0
    %209 = vst [vmem:[#allocation5 + $0x58] sm:$0xff] 0.0
    %210 = vst [vmem:[#allocation6] sm:$0xff] 0.0
    %211 = vst [vmem:[#allocation6 + $0x18] sm:$0xff] 0.0
    %v212 = vld [vmem:[%s0] sm:$0xff]
    %v213 = vld [vmem:[%s0 + $0x8] sm:$0xff]
    %v214 = vld [vmem:[%s0 + $0x10] sm:$0xff]
    %215 = vst [vmem:[#allocation2] sm:$0xff] %v212
    %216 = vst [vmem:[#allocation2 + $0x8] sm:$0xff] %v213
    %217 = vst [vmem:[#allocation2 + $0x10] sm:$0xff] %v214
    %v218 = vld [vmem:[%s0 + $0x8] sm:$0xff]
    %v219 = vld [vmem:[%s0 + $0x10] sm:$0xff]
    %v220 = vld [vmem:[%s0 + $0x18] sm:$0xff]
    %221 = vst [vmem:[#allocation2 + $0x48] sm:$0xff] %v218
    %222 = vst [vmem:[#allocation2 + $0x50] sm:$0xff] %v219
    %223 = vst [vmem:[#allocation2 + $0x58] sm:$0xff] %v220
    %v224 = vld [vmem:[%s0 + $0x10] sm:$0xff]
    %v225 = vld [vmem:[%s0 + $0x18] sm:$0xff]
    %v226 = vld [vmem:[%s0 + $0x20] sm:$0xff]
    %227 = vst [vmem:[#allocation2 + $0x90] sm:$0xff] %v224
    %228 = vst [vmem:[#allocation2 + $0x98] sm:$0xff] %v225
    %229 = vst [vmem:[#allocation2 + $0xa0] sm:$0xff] %v226
    %v230 = vld [vmem:[%s0 + $0x18] sm:$0xff]
    %v231 = vld [vmem:[%s0 + $0x20] sm:$0xff]
    %v232 = vld [vmem:[%s0 + $0x28] sm:$0xff]
    %233 = vst [vmem:[#allocation2 + $0xd8] sm:$0xff] %v230
    %234 = vst [vmem:[#allocation2 + $0xe0] sm:$0xff] %v231
    %235 = vst [vmem:[#allocation2 + $0xe8] sm:$0xff] %v232
    %v236 = vld [vmem:[%s0 + $0x20] sm:$0xff]
    %v237 = vld [vmem:[%s0 + $0x28] sm:$0xff]
    %v238 = vld [vmem:[%s0 + $0x30] sm:$0xff]
    %239 = vst [vmem:[#allocation2 + $0x120] sm:$0xff] %v236
    %240 = vst [vmem:[#allocation2 + $0x128] sm:$0xff] %v237
    %241 = vst [vmem:[#allocation2 + $0x130] sm:$0xff] %v238
    %v242 = vld [vmem:[%s0 + $0x28] sm:$0xff]
    %v243 = vld [vmem:[%s0 + $0x30] sm:$0xff]
    %v244 = vld [vmem:[%s0 + $0x38] sm:$0xff]
    %245 = vst [vmem:[#allocation2 + $0x168] sm:$0xff] %v242
    %246 = vst [vmem:[#allocation2 + $0x170] sm:$0xff] %v243
    %247 = vst [vmem:[#allocation2 + $0x178] sm:$0xff] %v244
    %v248 = vld [vmem:[%s0 + $0x30] sm:$0xff]
    %v249 = vld [vmem:[%s0 + $0x38] sm:$0xff]
    %v250 = vld [vmem:[%s0 + $0x40] sm:$0xff]
    %251 = vst [vmem:[#allocation2 + $0x1b0] sm:$0xff] %v248
    %252 = vst [vmem:[#allocation2 + $0x1b8] sm:$0xff] %v249
    %253 = vst [vmem:[#allocation2 + $0x1c0] sm:$0xff] %v250
    %v254 = vld [vmem:[%s0 + $0x38] sm:$0xff]
    %v255 = vld [vmem:[%s0 + $0x40] sm:$0xff]
    %v256 = vld [vmem:[%s0 + $0x48] sm:$0xff]
    %257 = vst [vmem:[#allocation2 + $0x1f8] sm:$0xff] %v254
    %258 = vst [vmem:[#allocation2 + $0x200] sm:$0xff] %v255
    %259 = vst [vmem:[#allocation2 + $0x208] sm:$0xff] %v256
    %v260 = vld [vmem:[%s0 + $0x40] sm:$0xff]
    %v261 = vld [vmem:[%s0 + $0x48] sm:$0xff]
    %v262 = vld [vmem:[%s0 + $0x50] sm:$0xff]
    %263 = vst [vmem:[#allocation2 + $0x240] sm:$0xff] %v260
    %264 = vst [vmem:[#allocation2 + $0x248] sm:$0xff] %v261
    %265 = vst [vmem:[#allocation2 + $0x250] sm:$0xff] %v262
    %v266 = vld [vmem:[%s0 + $0x48] sm:$0xff]
    %v267 = vld [vmem:[%s0 + $0x50] sm:$0xff]
    %v268 = vld [vmem:[%s0 + $0x58] sm:$0xff]
    %269 = vst [vmem:[#allocation2 + $0x288] sm:$0xff] %v266
    %270 = vst [vmem:[#allocation2 + $0x290] sm:$0xff] %v267
    %271 = vst [vmem:[#allocation2 + $0x298] sm:$0xff] %v268
    %v272 = vld [vmem:[%s0 + $0x50] sm:$0xff]
    %v273 = vld [vmem:[%s0 + $0x58] sm:$0xff]
    %v274 = vld [vmem:[%s0 + $0x60] sm:$0xff]
    %275 = vst [vmem:[#allocation2 + $0x2d0] sm:$0xff] %v272
    %276 = vst [vmem:[#allocation2 + $0x2d8] sm:$0xff] %v273
    %277 = vst [vmem:[#allocation2 + $0x2e0] sm:$0xff] %v274
    %v278 = vld [vmem:[#allocation2] sm:$0xff]
    %v279 = vld [vmem:[#allocation2 + $0x8] sm:$0xff]
    %v280 = vld [vmem:[#allocation2 + $0x10] sm:$0xff]
    %v281 = vld [vmem:[#allocation2 + $0x48] sm:$0xff]
    %v282 = vld [vmem:[#allocation2 + $0x50] sm:$0xff]
    %v283 = vld [vmem:[#allocation2 + $0x58] sm:$0xff]
    %v284 = vld [vmem:[#allocation2 + $0x90] sm:$0xff]
    %v285 = vld [vmem:[#allocation2 + $0x98] sm:$0xff]
    %v286 = vld [vmem:[#allocation2 + $0xa0] sm:$0xff]
    %v287 = vld [vmem:[#allocation2 + $0xd8] sm:$0xff]
    %v288 = vld [vmem:[#allocation2 + $0xe0] sm:$0xff]
    %v289 = vld [vmem:[#allocation2 + $0xe8] sm:$0xff]
    %v290 = vld [vmem:[#allocation2 + $0x120] sm:$0xff]
    %v291 = vld [vmem:[#allocation2 + $0x128] sm:$0xff]
    %v292 = vld [vmem:[#allocation2 + $0x130] sm:$0xff]
    %v293 = vld [vmem:[#allocation2 + $0x168] sm:$0xff]
    %v294 = vld [vmem:[#allocation2 + $0x170] sm:$0xff]
    %v295 = vld [vmem:[#allocation2 + $0x178] sm:$0xff]
    %v296 = vld [vmem:[#allocation2 + $0x1b0] sm:$0xff]
    %v297 = vld [vmem:[#allocation2 + $0x1b8] sm:$0xff]
    %v298 = vld [vmem:[#allocation2 + $0x1c0] sm:$0xff]
    %v299 = vld [vmem:[#allocation2 + $0x1f8] sm:$0xff]
    %v300 = vld [vmem:[#allocation2 + $0x200] sm:$0xff]
    %v301 = vld [vmem:[#allocation2 + $0x208] sm:$0xff]
    %v302 = vld [vmem:[#allocation2 + $0x240] sm:$0xff]
    %v303 = vld [vmem:[#allocation2 + $0x248] sm:$0xff]
    %v304 = vld [vmem:[#allocation2 + $0x250] sm:$0xff]
    %v305 = vld [vmem:[#allocation2 + $0x288] sm:$0xff]
    %v306 = vld [vmem:[#allocation2 + $0x290] sm:$0xff]
    %v307 = vld [vmem:[#allocation2 + $0x298] sm:$0xff]
    %v308 = vld [vmem:[#allocation2 + $0x2d0] sm:$0xff]
    %v309 = vld [vmem:[#allocation2 + $0x2d8] sm:$0xff]
    %v310 = vld [vmem:[#allocation2 + $0x2e0] sm:$0xff]
    %v311 = vpack.c.bf16 %v281, %v278
    %v312 = vpack.c.bf16 %v282, %v279
    %v313 = vpack.c.bf16 %v283, %v280
    %v314 = vpack.c.bf16 %v287, %v284
    %v315 = vpack.c.bf16 %v288, %v285
    %v316 = vpack.c.bf16 %v289, %v286
    %v317 = vpack.c.bf16 %v293, %v290
    %v318 = vpack.c.bf16 %v294, %v291
    %v319 = vpack.c.bf16 %v295, %v292
    %v320 = vpack.c.bf16 %v299, %v296
    %v321 = vpack.c.bf16 %v300, %v297
    %v322 = vpack.c.bf16 %v301, %v298
    %v323 = vpack.c.bf16 %v305, %v302
    %v324 = vpack.c.bf16 %v306, %v303
    %v325 = vpack.c.bf16 %v307, %v304
    %v326 = vpack.c.bf16 %v308, %v308
    %v327 = vpack.c.bf16 %v309, %v309
    %v328 = vpack.c.bf16 %v310, %v310
    %v329 = vld [vmem:[%s1] sm:$0xff]
    %v330 = vld [vmem:[%s1 + $0x8] sm:$0xf]
    %v331 = vld [vmem:[%s1 + $0xc] sm:$0xff]
    %v332 = vld [vmem:[%s1 + $0x14] sm:$0xf]
    %v333 = vld [vmem:[%s1 + $0x18] sm:$0xff]
    %v334 = vld [vmem:[%s1 + $0x20] sm:$0xf]
    %v335 = vld [vmem:[%s1 + $0x24] sm:$0xff]
    %v336 = vld [vmem:[%s1 + $0x2c] sm:$0xf]
    %v337 = vld [vmem:[%s1 + $0x30] sm:$0xff]
    %v338 = vld [vmem:[%s1 + $0x38] sm:$0xf]
    %v339 = vld [vmem:[%s1 + $0x3c] sm:$0xff]
    %v340 = vld [vmem:[%s1 + $0x44] sm:$0xf]
    %v341 = vld [vmem:[%s1 + $0x48] sm:$0xff]
    %v342 = vld [vmem:[%s1 + $0x50] sm:$0xf]
    %v343 = vld [vmem:[%s1 + $0x54] sm:$0xff]
    %v344 = vld [vmem:[%s1 + $0x5c] sm:$0xf]
    %v345 = vld [vmem:[%s1 + $0x60] sm:$0xff]
    %v346 = vld [vmem:[%s1 + $0x68] sm:$0xf]
    %v347 = vld [vmem:[%s1 + $0x6c] sm:$0xff]
    %v348 = vld [vmem:[%s1 + $0x74] sm:$0xf]
    %v349 = vld [vmem:[%s1 + $0x78] sm:$0xff]
    %v350 = vld [vmem:[%s1 + $0x80] sm:$0xf]
    %v351 = vld [vmem:[%s1 + $0x84] sm:$0xff]
    %v352 = vld [vmem:[%s1 + $0x8c] sm:$0xf]
    %v353 = vld [vmem:[%s1 + $0x90] sm:$0xff]
    %v354 = vld [vmem:[%s1 + $0x98] sm:$0xf]
    %v355 = vld [vmem:[%s1 + $0x9c] sm:$0xff]
    %v356 = vld [vmem:[%s1 + $0xa4] sm:$0xf]
    %v357 = vld [vmem:[%s1 + $0xa8] sm:$0xff]
    %v358 = vld [vmem:[%s1 + $0xb0] sm:$0xf]
    %v359 = vld [vmem:[%s1 + $0xb4] sm:$0xff]
    %v360 = vld [vmem:[%s1 + $0xbc] sm:$0xf]
    %v361 = vld [vmem:[%s1 + $0xc0] sm:$0xff]
    %v362 = vld [vmem:[%s1 + $0xc8] sm:$0xf]
    %v363 = vld [vmem:[%s1 + $0xcc] sm:$0xff]
    %v364 = vld [vmem:[%s1 + $0xd4] sm:$0xf]
    %v365 = vld [vmem:[%s1 + $0xd8] sm:$0xff]
    %v366 = vld [vmem:[%s1 + $0xe0] sm:$0xf]
    %v367 = vld [vmem:[%s1 + $0xe4] sm:$0xff]
    %v368 = vld [vmem:[%s1 + $0xec] sm:$0xf]
    %v369 = vld [vmem:[%s1 + $0xf0] sm:$0xff]
    %v370 = vld [vmem:[%s1 + $0xf8] sm:$0xf]
    %v371 = vld [vmem:[%s1 + $0xfc] sm:$0xff]
    %v372 = vld [vmem:[%s1 + $0x104] sm:$0xf]
    %v373 = vld [vmem:[%s1 + $0x108] sm:$0xff]
    %v374 = vld [vmem:[%s1 + $0x110] sm:$0xf]
    %v375 = vld [vmem:[%s1 + $0x114] sm:$0xff]
    %v376 = vld [vmem:[%s1 + $0x11c] sm:$0xf]
    %v377 = vld [vmem:[%s1 + $0x120] sm:$0xff]
    %v378 = vld [vmem:[%s1 + $0x128] sm:$0xf]
    %v379 = vld [vmem:[%s1 + $0x12c] sm:$0xff]
    %v380 = vld [vmem:[%s1 + $0x134] sm:$0xf]
    %v381 = vld [vmem:[%s1 + $0x138] sm:$0xff]
    %v382 = vld [vmem:[%s1 + $0x140] sm:$0xf]
    %v383 = vld [vmem:[%s1 + $0x144] sm:$0xff]
    %v384 = vld [vmem:[%s1 + $0x14c] sm:$0xf]
    %v385 = vld [vmem:[%s1 + $0x150] sm:$0xff]
    %v386 = vld [vmem:[%s1 + $0x158] sm:$0xf]
    %v387 = vld [vmem:[%s1 + $0x15c] sm:$0xff]
    %v388 = vld [vmem:[%s1 + $0x164] sm:$0xf]
    %v389 = vld [vmem:[%s1 + $0x168] sm:$0xff]
    %v390 = vld [vmem:[%s1 + $0x170] sm:$0xf]
    %v391 = vld [vmem:[%s1 + $0x174] sm:$0xff]
    %v392 = vld [vmem:[%s1 + $0x17c] sm:$0xf]
    %v393 = vld [vmem:[%s1 + $0x180] sm:$0xff]
    %v394 = vld [vmem:[%s1 + $0x188] sm:$0xf]
    %v395 = vld [vmem:[%s1 + $0x18c] sm:$0xff]
    %v396 = vld [vmem:[%s1 + $0x194] sm:$0xf]
    %v397 = vld [vmem:[%s1 + $0x198] sm:$0xff]
    %v398 = vld [vmem:[%s1 + $0x1a0] sm:$0xf]
    %v399 = vld [vmem:[%s1 + $0x1a4] sm:$0xff]
    %v400 = vld [vmem:[%s1 + $0x1ac] sm:$0xf]
    %v401 = vld [vmem:[%s1 + $0x1b0] sm:$0xff]
    %v402 = vld [vmem:[%s1 + $0x1b8] sm:$0xf]
    %v403 = vld [vmem:[%s1 + $0x1bc] sm:$0xff]
    %v404 = vld [vmem:[%s1 + $0x1c4] sm:$0xf]
    %v405 = vld [vmem:[%s1 + $0x1c8] sm:$0xff]
    %v406 = vld [vmem:[%s1 + $0x1d0] sm:$0xf]
    %v407 = vld [vmem:[%s1 + $0x1d4] sm:$0xff]
    %v408 = vld [vmem:[%s1 + $0x1dc] sm:$0xf]
    %v409 = vld [vmem:[%s1 + $0x1e0] sm:$0xff]
    %v410 = vld [vmem:[%s1 + $0x1e8] sm:$0xf]
    %v411 = vld [vmem:[%s1 + $0x1ec] sm:$0xff]
    %v412 = vld [vmem:[%s1 + $0x1f4] sm:$0xf]
    %v413 = vld [vmem:[%s1 + $0x1f8] sm:$0xff]
    %v414 = vld [vmem:[%s1 + $0x200] sm:$0xf]
    %v415 = vld [vmem:[%s1 + $0x204] sm:$0xff]
    %v416 = vld [vmem:[%s1 + $0x20c] sm:$0xf]
    %v417 = vld [vmem:[%s1 + $0x210] sm:$0xff]
    %v418 = vld [vmem:[%s1 + $0x218] sm:$0xf]
    %v419 = vld [vmem:[%s1 + $0x21c] sm:$0xff]
    %v420 = vld [vmem:[%s1 + $0x224] sm:$0xf]
    %v421 = vld [vmem:[%s1 + $0x228] sm:$0xff]
    %v422 = vld [vmem:[%s1 + $0x230] sm:$0xf]
    %v423 = vld [vmem:[%s1 + $0x234] sm:$0xff]
    %v424 = vld [vmem:[%s1 + $0x23c] sm:$0xf]
    %v425 = vld [vmem:[%s2] sm:$0x7]
    %v427 = vperm.slane %v425, 0
    %v428 = vperm.slane %v425, 1
    %v429 = vperm.slane %v425, 2
    %v529 = vunpack.c.l.b16 %v329
    %v530 = vunpack.c.h.b16 %v329
    %v531 = vunpack.c.l.b16 %v330
    %v532 = vunpack.c.l.b16 %v331
    %v533 = vunpack.c.h.b16 %v331
    %v534 = vunpack.c.l.b16 %v332
    %v535 = vunpack.c.l.b16 %v333
    %v536 = vunpack.c.h.b16 %v333
    %v537 = vunpack.c.l.b16 %v334
    %v538 = vunpack.c.l.b16 %v335
    %v539 = vunpack.c.h.b16 %v335
    %v540 = vunpack.c.l.b16 %v336
    %v541 = vunpack.c.l.b16 %v337
    %v542 = vunpack.c.h.b16 %v337
    %v543 = vunpack.c.l.b16 %v338
    %v544 = vunpack.c.l.b16 %v339
    %v545 = vunpack.c.h.b16 %v339
    %v546 = vunpack.c.l.b16 %v340
    %v547 = vunpack.c.l.b16 %v341
    %v548 = vunpack.c.h.b16 %v341
    %v549 = vunpack.c.l.b16 %v342
    %v550 = vunpack.c.l.b16 %v343
    %v551 = vunpack.c.h.b16 %v343
    %v552 = vunpack.c.l.b16 %v344
    %v553 = vunpack.c.l.b16 %v345
    %v554 = vunpack.c.h.b16 %v345
    %v555 = vunpack.c.l.b16 %v346
    %v556 = vunpack.c.l.b16 %v347
    %v557 = vunpack.c.h.b16 %v347
    %v558 = vunpack.c.l.b16 %v348
    %v559 = vunpack.c.l.b16 %v349
    %v560 = vunpack.c.h.b16 %v349
    %v561 = vunpack.c.l.b16 %v350
    %v562 = vunpack.c.l.b16 %v351
    %v563 = vunpack.c.h.b16 %v351
    %v564 = vunpack.c.l.b16 %v352
    %v565 = vunpack.c.l.b16 %v353
    %v566 = vunpack.c.h.b16 %v353
    %v567 = vunpack.c.l.b16 %v354
    %v568 = vunpack.c.l.b16 %v355
    %v569 = vunpack.c.h.b16 %v355
    %v570 = vunpack.c.l.b16 %v356
    %v571 = vunpack.c.l.b16 %v357
    %v572 = vunpack.c.h.b16 %v357
    %v573 = vunpack.c.l.b16 %v358
    %v574 = vunpack.c.l.b16 %v359
    %v575 = vunpack.c.h.b16 %v359
    %v576 = vunpack.c.l.b16 %v360
    %v577 = vunpack.c.l.b16 %v361
    %v578 = vunpack.c.h.b16 %v361
    %v579 = vunpack.c.l.b16 %v362
    %v580 = vunpack.c.l.b16 %v363
    %v581 = vunpack.c.h.b16 %v363
    %v582 = vunpack.c.l.b16 %v364
    %v583 = vunpack.c.l.b16 %v365
    %v584 = vunpack.c.h.b16 %v365
    %v585 = vunpack.c.l.b16 %v366
    %v586 = vunpack.c.l.b16 %v367
    %v587 = vunpack.c.h.b16 %v367
    %v588 = vunpack.c.l.b16 %v368
    %v589 = vunpack.c.l.b16 %v369
    %v590 = vunpack.c.h.b16 %v369
    %v591 = vunpack.c.l.b16 %v370
    %v592 = vunpack.c.l.b16 %v371
    %v593 = vunpack.c.h.b16 %v371
    %v594 = vunpack.c.l.b16 %v372
    %v595 = vunpack.c.l.b16 %v373
    %v596 = vunpack.c.h.b16 %v373
    %v597 = vunpack.c.l.b16 %v374
    %v598 = vunpack.c.l.b16 %v375
    %v599 = vunpack.c.h.b16 %v375
    %v600 = vunpack.c.l.b16 %v376
    %v601 = vunpack.c.l.b16 %v377
    %v602 = vunpack.c.h.b16 %v377
    %v603 = vunpack.c.l.b16 %v378
    %v604 = vunpack.c.l.b16 %v379
    %v605 = vunpack.c.h.b16 %v379
    %v606 = vunpack.c.l.b16 %v380
    %v607 = vunpack.c.l.b16 %v381
    %v608 = vunpack.c.h.b16 %v381
    %v609 = vunpack.c.l.b16 %v382
    %v610 = vunpack.c.l.b16 %v383
    %v611 = vunpack.c.h.b16 %v383
    %v612 = vunpack.c.l.b16 %v384
    %v613 = vunpack.c.l.b16 %v385
    %v614 = vunpack.c.h.b16 %v385
    %v615 = vunpack.c.l.b16 %v386
    %v616 = vunpack.c.l.b16 %v387
    %v617 = vunpack.c.h.b16 %v387
    %v618 = vunpack.c.l.b16 %v388
    %v619 = vunpack.c.l.b16 %v389
    %v620 = vunpack.c.h.b16 %v389
    %v621 = vunpack.c.l.b16 %v390
    %v622 = vunpack.c.l.b16 %v391
    %v623 = vunpack.c.h.b16 %v391
    %v624 = vunpack.c.l.b16 %v392
    %v625 = vunpack.c.l.b16 %v393
    %v626 = vunpack.c.h.b16 %v393
    %v627 = vunpack.c.l.b16 %v394
    %v628 = vunpack.c.l.b16 %v395
    %v629 = vunpack.c.h.b16 %v395
    %v630 = vunpack.c.l.b16 %v396
    %v631 = vunpack.c.l.b16 %v397
    %v632 = vunpack.c.h.b16 %v397
    %v633 = vunpack.c.l.b16 %v398
    %v634 = vunpack.c.l.b16 %v399
    %v635 = vunpack.c.h.b16 %v399
    %v636 = vunpack.c.l.b16 %v400
    %v637 = vunpack.c.l.b16 %v401
    %v638 = vunpack.c.h.b16 %v401
    %v639 = vunpack.c.l.b16 %v402
    %v640 = vunpack.c.l.b16 %v403
    %v641 = vunpack.c.h.b16 %v403
    %v642 = vunpack.c.l.b16 %v404
    %v643 = vunpack.c.l.b16 %v405
    %v644 = vunpack.c.h.b16 %v405
    %v645 = vunpack.c.l.b16 %v406
    %v646 = vunpack.c.l.b16 %v407
    %v647 = vunpack.c.h.b16 %v407
    %v648 = vunpack.c.l.b16 %v408
    %v649 = vunpack.c.l.b16 %v409
    %v650 = vunpack.c.h.b16 %v409
    %v651 = vunpack.c.l.b16 %v410
    %v652 = vunpack.c.l.b16 %v411
    %v653 = vunpack.c.h.b16 %v411
    %v654 = vunpack.c.l.b16 %v412
    %v655 = vunpack.c.l.b16 %v413
    %v656 = vunpack.c.h.b16 %v413
    %v657 = vunpack.c.l.b16 %v414
    %v658 = vunpack.c.l.b16 %v415
    %v659 = vunpack.c.h.b16 %v415
    %v660 = vunpack.c.l.b16 %v416
    %v661 = vunpack.c.l.b16 %v417
    %v662 = vunpack.c.h.b16 %v417
    %v663 = vunpack.c.l.b16 %v418
    %v664 = vunpack.c.l.b16 %v419
    %v665 = vunpack.c.h.b16 %v419
    %v666 = vunpack.c.l.b16 %v420
    %v667 = vunpack.c.l.b16 %v421
    %v668 = vunpack.c.h.b16 %v421
    %v669 = vunpack.c.l.b16 %v422
    %v670 = vunpack.c.l.b16 %v423
    %v671 = vunpack.c.h.b16 %v423
    %v672 = vunpack.c.l.b16 %v424
    %v673 = vpack.c.b16 %v532, %v529
    %v674 = vpack.c.b16 %v533, %v530
    %v675 = vpack.c.b16 %v534, %v531
    %v676 = vpack.c.b16 %v538, %v535
    %v677 = vpack.c.b16 %v539, %v536
    %v678 = vpack.c.b16 %v540, %v537
    %v679 = vpack.c.b16 %v544, %v541
    %v680 = vpack.c.b16 %v545, %v542
    %v681 = vpack.c.b16 %v546, %v543
    %v682 = vpack.c.b16 %v550, %v547
    %v683 = vpack.c.b16 %v551, %v548
    %v684 = vpack.c.b16 %v552, %v549
    %v685 = vpack.c.b16 %v556, %v553
    %v686 = vpack.c.b16 %v557, %v554
    %v687 = vpack.c.b16 %v558, %v555
    %v688 = vpack.c.b16 %v562, %v559
    %v689 = vpack.c.b16 %v563, %v560
    %v690 = vpack.c.b16 %v564, %v561
    %v691 = vpack.c.b16 %v568, %v565
    %v692 = vpack.c.b16 %v569, %v566
    %v693 = vpack.c.b16 %v570, %v567
    %v694 = vpack.c.b16 %v574, %v571
    %v695 = vpack.c.b16 %v575, %v572
    %v696 = vpack.c.b16 %v576, %v573
    %v697 = vpack.c.b16 %v580, %v577
    %v698 = vpack.c.b16 %v581, %v578
    %v699 = vpack.c.b16 %v582, %v579
    %v700 = vpack.c.b16 %v586, %v583
    %v701 = vpack.c.b16 %v587, %v584
    %v702 = vpack.c.b16 %v588, %v585
    %v703 = vpack.c.b16 %v592, %v589
    %v704 = vpack.c.b16 %v593, %v590
    %v705 = vpack.c.b16 %v594, %v591
    %v706 = vpack.c.b16 %v598, %v595
    %v707 = vpack.c.b16 %v599, %v596
    %v708 = vpack.c.b16 %v600, %v597
    %v709 = vpack.c.b16 %v604, %v601
    %v710 = vpack.c.b16 %v605, %v602
    %v711 = vpack.c.b16 %v606, %v603
    %v712 = vpack.c.b16 %v610, %v607
    %v713 = vpack.c.b16 %v611, %v608
    %v714 = vpack.c.b16 %v612, %v609
    %v715 = vpack.c.b16 %v616, %v613
    %v716 = vpack.c.b16 %v617, %v614
    %v717 = vpack.c.b16 %v618, %v615
    %v718 = vpack.c.b16 %v622, %v619
    %v719 = vpack.c.b16 %v623, %v620
    %v720 = vpack.c.b16 %v624, %v621
    %v721 = vpack.c.b16 %v628, %v625
    %v722 = vpack.c.b16 %v629, %v626
    %v723 = vpack.c.b16 %v630, %v627
    %v724 = vpack.c.b16 %v634, %v631
    %v725 = vpack.c.b16 %v635, %v632
    %v726 = vpack.c.b16 %v636, %v633
    %v727 = vpack.c.b16 %v640, %v637
    %v728 = vpack.c.b16 %v641, %v638
    %v729 = vpack.c.b16 %v642, %v639
    %v730 = vpack.c.b16 %v646, %v643
    %v731 = vpack.c.b16 %v647, %v644
    %v732 = vpack.c.b16 %v648, %v645
    %v733 = vpack.c.b16 %v652, %v649
    %v734 = vpack.c.b16 %v653, %v650
    %v735 = vpack.c.b16 %v654, %v651
    %v736 = vpack.c.b16 %v658, %v655
    %v737 = vpack.c.b16 %v659, %v656
    %v738 = vpack.c.b16 %v660, %v657
    %v739 = vpack.c.b16 %v664, %v661
    %v740 = vpack.c.b16 %v665, %v662
    %v741 = vpack.c.b16 %v666, %v663
    %v742 = vpack.c.b16 %v670, %v667
    %v743 = vpack.c.b16 %v671, %v668
    %v744 = vpack.c.b16 %v672, %v669
    %817 = vmatpush.bf16.msra.mxu0 %v694
    %818 = vmatpush.bf16.msra.mxu0 %v691
    %819 = vmatpush.bf16.msra.mxu0 %v688
    %820 = vmatpush.bf16.msra.mxu0 %v685
    %821 = vmatpush.bf16.msra.mxu0 %v682
    %822 = vmatpush.bf16.msra.mxu0 %v679
    %823 = vmatpush.bf16.msra.mxu0 %v676
    %824 = vmatpush.bf16.msra.mxu0 %v673
    %825 = vmatmul.bf16.gmra.mxu0 %v311
    %v826 = vpop.f32.mrf.mxu0
    %v827 = vadd.f32 %v427, %v826
    %v828 = vpop.f32.mrf.mxu0
    %v829 = vadd.f32 %v427, %v828
    %830 = vmatmul.bf16.gmra.mxu0 %v314
    %v831 = vpop.f32.mrf.mxu0
    %v832 = vadd.f32 %v427, %v831
    %v833 = vpop.f32.mrf.mxu0
    %v834 = vadd.f32 %v427, %v833
    %835 = vmatmul.bf16.gmra.mxu0 %v317
    %v836 = vpop.f32.mrf.mxu0
    %v837 = vadd.f32 %v427, %v836
    %v838 = vpop.f32.mrf.mxu0
    %v839 = vadd.f32 %v427, %v838
    %840 = vmatmul.bf16.gmra.mxu0 %v320
    %v841 = vpop.f32.mrf.mxu0
    %v842 = vadd.f32 %v427, %v841
    %v843 = vpop.f32.mrf.mxu0
    %v844 = vadd.f32 %v427, %v843
    %845 = vmatmul.bf16.gmra.mxu0 %v323
    %v846 = vpop.f32.mrf.mxu0
    %v847 = vadd.f32 %v427, %v846
    %v848 = vpop.f32.mrf.mxu0
    %v849 = vadd.f32 %v427, %v848
    %850 = vmatmul.bf16.gmra.mxu0 %v326
    %v851 = vpop.f32.mrf.mxu0
    %v852 = vpop.f32.mrf.mxu0
    %853 = vdwg.mxu0
    %854 = vmatpush.bf16.msra.mxu0 %v718
    %855 = vmatpush.bf16.msra.mxu0 %v715
    %856 = vmatpush.bf16.msra.mxu0 %v712
    %857 = vmatpush.bf16.msra.mxu0 %v709
    %858 = vmatpush.bf16.msra.mxu0 %v706
    %859 = vmatpush.bf16.msra.mxu0 %v703
    %860 = vmatpush.bf16.msra.mxu0 %v700
    %861 = vmatpush.bf16.msra.mxu0 %v697
    %862 = vmatmul.bf16.gmra.mxu0 %v312
    %v863 = vpop.f32.mrf.mxu0
    %v864 = vadd.f32 %v827, %v863
    %v865 = vpop.f32.mrf.mxu0
    %v866 = vadd.f32 %v829, %v865
    %867 = vmatmul.bf16.gmra.mxu0 %v315
    %v868 = vpop.f32.mrf.mxu0
    %v869 = vadd.f32 %v832, %v868
    %v870 = vpop.f32.mrf.mxu0
    %v871 = vadd.f32 %v834, %v870
    %872 = vmatmul.bf16.gmra.mxu0 %v318
    %v873 = vpop.f32.mrf.mxu0
    %v874 = vadd.f32 %v837, %v873
    %v875 = vpop.f32.mrf.mxu0
    %v876 = vadd.f32 %v839, %v875
    %877 = vmatmul.bf16.gmra.mxu0 %v321
    %v878 = vpop.f32.mrf.mxu0
    %v879 = vadd.f32 %v842, %v878
    %v880 = vpop.f32.mrf.mxu0
    %v881 = vadd.f32 %v844, %v880
    %882 = vmatmul.bf16.gmra.mxu0 %v324
    %v883 = vpop.f32.mrf.mxu0
    %v884 = vadd.f32 %v847, %v883
    %v885 = vpop.f32.mrf.mxu0
    %v886 = vadd.f32 %v849, %v885
    %887 = vmatmul.bf16.gmra.mxu0 %v327
    %v888 = vpop.f32.mrf.mxu0
    %v889 = vpop.f32.mrf.mxu0
    %890 = vdwg.mxu0
    %891 = vmatpush.bf16.msra.mxu0 %v742
    %892 = vmatpush.bf16.msra.mxu0 %v739
    %893 = vmatpush.bf16.msra.mxu0 %v736
    %894 = vmatpush.bf16.msra.mxu0 %v733
    %895 = vmatpush.bf16.msra.mxu0 %v730
    %896 = vmatpush.bf16.msra.mxu0 %v727
    %897 = vmatpush.bf16.msra.mxu0 %v724
    %898 = vmatpush.bf16.msra.mxu0 %v721
    %899 = vmatmul.bf16.gmra.mxu0 %v313
    %v900 = vpop.f32.mrf.mxu0
    %v901 = vadd.f32 %v864, %v900
    %v902 = vpop.f32.mrf.mxu0
    %v903 = vadd.f32 %v866, %v902
    %904 = vmatmul.bf16.gmra.mxu0 %v316
    %v905 = vpop.f32.mrf.mxu0
    %v906 = vadd.f32 %v869, %v905
    %v907 = vpop.f32.mrf.mxu0
    %v908 = vadd.f32 %v871, %v907
    %909 = vmatmul.bf16.gmra.mxu0 %v319
    %v910 = vpop.f32.mrf.mxu0
    %v911 = vadd.f32 %v874, %v910
    %v912 = vpop.f32.mrf.mxu0
    %v913 = vadd.f32 %v876, %v912
    %914 = vmatmul.bf16.gmra.mxu0 %v322
    %v915 = vpop.f32.mrf.mxu0
    %v916 = vadd.f32 %v879, %v915
    %v917 = vpop.f32.mrf.mxu0
    %v918 = vadd.f32 %v881, %v917
    %919 = vmatmul.bf16.gmra.mxu0 %v325
    %v920 = vpop.f32.mrf.mxu0
    %v921 = vadd.f32 %v884, %v920
    %v922 = vpop.f32.mrf.mxu0
    %v923 = vadd.f32 %v886, %v922
    %924 = vmatmul.bf16.gmra.mxu0 %v328
    %v925 = vpop.f32.mrf.mxu0
    %v926 = vpop.f32.mrf.mxu0
    %927 = vdwg.mxu0
    %928 = vmatpush.bf16.msra.mxu0 %v695
    %929 = vmatpush.bf16.msra.mxu0 %v692
    %930 = vmatpush.bf16.msra.mxu0 %v689
    %931 = vmatpush.bf16.msra.mxu0 %v686
    %932 = vmatpush.bf16.msra.mxu0 %v683
    %933 = vmatpush.bf16.msra.mxu0 %v680
    %934 = vmatpush.bf16.msra.mxu0 %v677
    %935 = vmatpush.bf16.msra.mxu0 %v674
    %936 = vmatmul.bf16.gmra.mxu0 %v311
    %v937 = vpop.f32.mrf.mxu0
    %v938 = vadd.f32 %v428, %v937
    %v939 = vpop.f32.mrf.mxu0
    %v940 = vadd.f32 %v428, %v939
    %941 = vmatmul.bf16.gmra.mxu0 %v314
    %v942 = vpop.f32.mrf.mxu0
    %v943 = vadd.f32 %v428, %v942
    %v944 = vpop.f32.mrf.mxu0
    %v945 = vadd.f32 %v428, %v944
    %946 = vmatmul.bf16.gmra.mxu0 %v317
    %v947 = vpop.f32.mrf.mxu0
    %v948 = vadd.f32 %v428, %v947
    %v949 = vpop.f32.mrf.mxu0
    %v950 = vadd.f32 %v428, %v949
    %951 = vmatmul.bf16.gmra.mxu0 %v320
    %v952 = vpop.f32.mrf.mxu0
    %v953 = vadd.f32 %v428, %v952
    %v954 = vpop.f32.mrf.mxu0
    %v955 = vadd.f32 %v428, %v954
    %956 = vmatmul.bf16.gmra.mxu0 %v323
    %v957 = vpop.f32.mrf.mxu0
    %v958 = vadd.f32 %v428, %v957
    %v959 = vpop.f32.mrf.mxu0
    %v960 = vadd.f32 %v428, %v959
    %961 = vmatmul.bf16.gmra.mxu0 %v326
    %v962 = vpop.f32.mrf.mxu0
    %v963 = vpop.f32.mrf.mxu0
    %964 = vdwg.mxu0
    %965 = vmatpush.bf16.msra.mxu0 %v719
    %966 = vmatpush.bf16.msra.mxu0 %v716
    %967 = vmatpush.bf16.msra.mxu0 %v713
    %968 = vmatpush.bf16.msra.mxu0 %v710
    %969 = vmatpush.bf16.msra.mxu0 %v707
    %970 = vmatpush.bf16.msra.mxu0 %v704
    %971 = vmatpush.bf16.msra.mxu0 %v701
    %972 = vmatpush.bf16.msra.mxu0 %v698
    %973 = vmatmul.bf16.gmra.mxu0 %v312
    %v974 = vpop.f32.mrf.mxu0
    %v975 = vadd.f32 %v938, %v974
    %v976 = vpop.f32.mrf.mxu0
    %v977 = vadd.f32 %v940, %v976
    %978 = vmatmul.bf16.gmra.mxu0 %v315
    %v979 = vpop.f32.mrf.mxu0
    %v980 = vadd.f32 %v943, %v979
    %v981 = vpop.f32.mrf.mxu0
    %v982 = vadd.f32 %v945, %v981
    %983 = vmatmul.bf16.gmra.mxu0 %v318
    %v984 = vpop.f32.mrf.mxu0
    %v985 = vadd.f32 %v948, %v984
    %v986 = vpop.f32.mrf.mxu0
    %v987 = vadd.f32 %v950, %v986
    %988 = vmatmul.bf16.gmra.mxu0 %v321
    %v989 = vpop.f32.mrf.mxu0
    %v990 = vadd.f32 %v953, %v989
    %v991 = vpop.f32.mrf.mxu0
    %v992 = vadd.f32 %v955, %v991
    %993 = vmatmul.bf16.gmra.mxu0 %v324
    %v994 = vpop.f32.mrf.mxu0
    %v995 = vadd.f32 %v958, %v994
    %v996 = vpop.f32.mrf.mxu0
    %v997 = vadd.f32 %v960, %v996
    %998 = vmatmul.bf16.gmra.mxu0 %v327
    %v999 = vpop.f32.mrf.mxu0
    %v1000 = vpop.f32.mrf.mxu0
    %1001 = vdwg.mxu0
    %1002 = vmatpush.bf16.msra.mxu0 %v743
    %1003 = vmatpush.bf16.msra.mxu0 %v740
    %1004 = vmatpush.bf16.msra.mxu0 %v737
    %1005 = vmatpush.bf16.msra.mxu0 %v734
    %1006 = vmatpush.bf16.msra.mxu0 %v731
    %1007 = vmatpush.bf16.msra.mxu0 %v728
    %1008 = vmatpush.bf16.msra.mxu0 %v725
    %1009 = vmatpush.bf16.msra.mxu0 %v722
    %1010 = vmatmul.bf16.gmra.mxu0 %v313
    %v1011 = vpop.f32.mrf.mxu0
    %v1012 = vadd.f32 %v975, %v1011
    %v1013 = vpop.f32.mrf.mxu0
    %v1014 = vadd.f32 %v977, %v1013
    %1015 = vmatmul.bf16.gmra.mxu0 %v316
    %v1016 = vpop.f32.mrf.mxu0
    %v1017 = vadd.f32 %v980, %v1016
    %v1018 = vpop.f32.mrf.mxu0
    %v1019 = vadd.f32 %v982, %v1018
    %1020 = vmatmul.bf16.gmra.mxu0 %v319
    %v1021 = vpop.f32.mrf.mxu0
    %v1022 = vadd.f32 %v985, %v1021
    %v1023 = vpop.f32.mrf.mxu0
    %v1024 = vadd.f32 %v987, %v1023
    %1025 = vmatmul.bf16.gmra.mxu0 %v322
    %v1026 = vpop.f32.mrf.mxu0
    %v1027 = vadd.f32 %v990, %v1026
    %v1028 = vpop.f32.mrf.mxu0
    %v1029 = vadd.f32 %v992, %v1028
    %1030 = vmatmul.bf16.gmra.mxu0 %v325
    %v1031 = vpop.f32.mrf.mxu0
    %v1032 = vadd.f32 %v995, %v1031
    %v1033 = vpop.f32.mrf.mxu0
    %v1034 = vadd.f32 %v997, %v1033
    %1035 = vmatmul.bf16.gmra.mxu0 %v328
    %v1036 = vpop.f32.mrf.mxu0
    %v1037 = vpop.f32.mrf.mxu0
    %1038 = vdwg.mxu0
    %1039 = vmatpush.bf16.msra.mxu0 %v696
    %1040 = vmatpush.bf16.msra.mxu0 %v693
    %1041 = vmatpush.bf16.msra.mxu0 %v690
    %1042 = vmatpush.bf16.msra.mxu0 %v687
    %1043 = vmatpush.bf16.msra.mxu0 %v684
    %1044 = vmatpush.bf16.msra.mxu0 %v681
    %1045 = vmatpush.bf16.msra.mxu0 %v678
    %1046 = vmatpush.bf16.msra.mxu0 %v675
    %1047 = vmatmul.bf16.gmra.mxu0 %v311
    %v1048 = vpop.f32.mrf.mxu0
    %v1049 = vadd.f32 %v429, %v1048
    %v1050 = vpop.f32.mrf.mxu0
    %v1051 = vadd.f32 %v429, %v1050
    %1052 = vmatmul.bf16.gmra.mxu0 %v314
    %v1053 = vpop.f32.mrf.mxu0
    %v1054 = vadd.f32 %v429, %v1053
    %v1055 = vpop.f32.mrf.mxu0
    %v1056 = vadd.f32 %v429, %v1055
    %1057 = vmatmul.bf16.gmra.mxu0 %v317
    %v1058 = vpop.f32.mrf.mxu0
    %v1059 = vadd.f32 %v429, %v1058
    %v1060 = vpop.f32.mrf.mxu0
    %v1061 = vadd.f32 %v429, %v1060
    %1062 = vmatmul.bf16.gmra.mxu0 %v320
    %v1063 = vpop.f32.mrf.mxu0
    %v1064 = vadd.f32 %v429, %v1063
    %v1065 = vpop.f32.mrf.mxu0
    %v1066 = vadd.f32 %v429, %v1065
    %1067 = vmatmul.bf16.gmra.mxu0 %v323
    %v1068 = vpop.f32.mrf.mxu0
    %v1069 = vadd.f32 %v429, %v1068
    %v1070 = vpop.f32.mrf.mxu0
    %v1071 = vadd.f32 %v429, %v1070
    %1072 = vmatmul.bf16.gmra.mxu0 %v326
    %v1073 = vpop.f32.mrf.mxu0
    %v1074 = vpop.f32.mrf.mxu0
    %1075 = vdwg.mxu0
    %1076 = vmatpush.bf16.msra.mxu0 %v720
    %1077 = vmatpush.bf16.msra.mxu0 %v717
    %1078 = vmatpush.bf16.msra.mxu0 %v714
    %1079 = vmatpush.bf16.msra.mxu0 %v711
    %1080 = vmatpush.bf16.msra.mxu0 %v708
    %1081 = vmatpush.bf16.msra.mxu0 %v705
    %1082 = vmatpush.bf16.msra.mxu0 %v702
    %1083 = vmatpush.bf16.msra.mxu0 %v699
    %1084 = vmatmul.bf16.gmra.mxu0 %v312
    %v1085 = vpop.f32.mrf.mxu0
    %v1086 = vadd.f32 %v1049, %v1085
    %v1087 = vpop.f32.mrf.mxu0
    %v1088 = vadd.f32 %v1051, %v1087
    %1089 = vmatmul.bf16.gmra.mxu0 %v315
    %v1090 = vpop.f32.mrf.mxu0
    %v1091 = vadd.f32 %v1054, %v1090
    %v1092 = vpop.f32.mrf.mxu0
    %v1093 = vadd.f32 %v1056, %v1092
    %1094 = vmatmul.bf16.gmra.mxu0 %v318
    %v1095 = vpop.f32.mrf.mxu0
    %v1096 = vadd.f32 %v1059, %v1095
    %v1097 = vpop.f32.mrf.mxu0
    %v1098 = vadd.f32 %v1061, %v1097
    %1099 = vmatmul.bf16.gmra.mxu0 %v321
    %v1100 = vpop.f32.mrf.mxu0
    %v1101 = vadd.f32 %v1064, %v1100
    %v1102 = vpop.f32.mrf.mxu0
    %v1103 = vadd.f32 %v1066, %v1102
    %1104 = vmatmul.bf16.gmra.mxu0 %v324
    %v1105 = vpop.f32.mrf.mxu0
    %v1106 = vadd.f32 %v1069, %v1105
    %v1107 = vpop.f32.mrf.mxu0
    %v1108 = vadd.f32 %v1071, %v1107
    %1109 = vmatmul.bf16.gmra.mxu0 %v327
    %v1110 = vpop.f32.mrf.mxu0
    %v1111 = vpop.f32.mrf.mxu0
    %1112 = vdwg.mxu0
    %1113 = vmatpush.bf16.msra.mxu0 %v744
    %1114 = vmatpush.bf16.msra.mxu0 %v741
    %1115 = vmatpush.bf16.msra.mxu0 %v738
    %1116 = vmatpush.bf16.msra.mxu0 %v735
    %1117 = vmatpush.bf16.msra.mxu0 %v732
    %1118 = vmatpush.bf16.msra.mxu0 %v729
    %1119 = vmatpush.bf16.msra.mxu0 %v726
    %1120 = vmatpush.bf16.msra.mxu0 %v723
    %1121 = vmatmul.bf16.gmra.mxu0 %v313
    %v1122 = vpop.f32.mrf.mxu0
    %v1123 = vadd.f32 %v1086, %v1122
    %v1124 = vpop.f32.mrf.mxu0
    %v1125 = vadd.f32 %v1088, %v1124
    %1126 = vmatmul.bf16.gmra.mxu0 %v316
    %v1127 = vpop.f32.mrf.mxu0
    %v1128 = vadd.f32 %v1091, %v1127
    %v1129 = vpop.f32.mrf.mxu0
    %v1130 = vadd.f32 %v1093, %v1129
    %1131 = vmatmul.bf16.gmra.mxu0 %v319
    %v1132 = vpop.f32.mrf.mxu0
    %v1133 = vadd.f32 %v1096, %v1132
    %v1134 = vpop.f32.mrf.mxu0
    %v1135 = vadd.f32 %v1098, %v1134
    %1136 = vmatmul.bf16.gmra.mxu0 %v322
    %v1137 = vpop.f32.mrf.mxu0
    %v1138 = vadd.f32 %v1101, %v1137
    %v1139 = vpop.f32.mrf.mxu0
    %v1140 = vadd.f32 %v1103, %v1139
    %1141 = vmatmul.bf16.gmra.mxu0 %v325
    %v1142 = vpop.f32.mrf.mxu0
    %v1143 = vadd.f32 %v1106, %v1142
    %v1144 = vpop.f32.mrf.mxu0
    %v1145 = vadd.f32 %v1108, %v1144
    %1146 = vmatmul.bf16.gmra.mxu0 %v328
    %v1147 = vpop.f32.mrf.mxu0
    %v1148 = vpop.f32.mrf.mxu0
    %1149 = vdwg.mxu0
    %v1150 = vmax.f32 %v901, 0.0
    %v1151 = vmax.f32 %v1012, 0.0
    %v1152 = vmax.f32 %v1123, 0.0
    %v1153 = vmax.f32 %v903, 0.0
    %v1154 = vmax.f32 %v1014, 0.0
    %v1155 = vmax.f32 %v1125, 0.0
    %v1156 = vmax.f32 %v906, 0.0
    %v1157 = vmax.f32 %v1017, 0.0
    %v1158 = vmax.f32 %v1128, 0.0
    %v1159 = vmax.f32 %v908, 0.0
    %v1160 = vmax.f32 %v1019, 0.0
    %v1161 = vmax.f32 %v1130, 0.0
    %v1162 = vmax.f32 %v911, 0.0
    %v1163 = vmax.f32 %v1022, 0.0
    %v1164 = vmax.f32 %v1133, 0.0
    %v1165 = vmax.f32 %v913, 0.0
    %v1166 = vmax.f32 %v1024, 0.0
    %v1167 = vmax.f32 %v1135, 0.0
    %v1168 = vmax.f32 %v916, 0.0
    %v1169 = vmax.f32 %v1027, 0.0
    %v1170 = vmax.f32 %v1138, 0.0
    %v1171 = vmax.f32 %v918, 0.0
    %v1172 = vmax.f32 %v1029, 0.0
    %v1173 = vmax.f32 %v1140, 0.0
    %v1174 = vmax.f32 %v921, 0.0
    %v1175 = vmax.f32 %v1032, 0.0
    %v1176 = vmax.f32 %v1143, 0.0
    %v1177 = vmax.f32 %v923, 0.0
    %v1178 = vmax.f32 %v1034, 0.0
    %v1179 = vmax.f32 %v1145, 0.0
    %v1180 = vmax.f32 %v1150, %v1153
    %v1181 = vmax.f32 %v1151, %v1154
    %v1182 = vmax.f32 %v1152, %v1155
    %1183 = vrot.lane.b32.xlu0 %v1180, 96
    %v1184 = vpop.permute.xlu0 %1183
    %1185 = vrot.lane.b32.xlu0 %v1181, 96
    %v1186 = vpop.permute.xlu0 %1185
    %1187 = vrot.lane.b32.xlu0 %v1182, 96
    %v1188 = vpop.permute.xlu0 %1187
    %v1189 = vlaneseq
    %v1190 = vand.u32 %v1189, 127
    %vm1191 = vcmp.lt.s32.totalorder %v1190, 96
    %v1192 = vsel %vm1191, %v1186, %v1188
    %v1193 = vsel %vm1191, %v1184, %v1186
    %v1194 = vsel %vm1191, %v1188, %v1184
    %v1195 = vmax.f32 %v1180, %v1193
    %v1196 = vmax.f32 %v1181, %v1192
    %v1197 = vmax.f32 %v1182, %v1194
    %1198 = vst [vmem:[#allocation3 + $0x18] sm:$0xff] %v1195
    %1199 = vst [vmem:[#allocation3 + $0x20] sm:$0xff] %v1196
    %1200 = vst [vmem:[#allocation3 + $0x28] sm:$0xff] %v1197
    %v1201 = vmax.f32 %v1156, %v1159
    %v1202 = vmax.f32 %v1157, %v1160
    %v1203 = vmax.f32 %v1158, %v1161
    %1204 = vrot.lane.b32.xlu0 %v1201, 96
    %v1205 = vpop.permute.xlu0 %1204
    %1206 = vrot.lane.b32.xlu0 %v1202, 96
    %v1207 = vpop.permute.xlu0 %1206
    %1208 = vrot.lane.b32.xlu0 %v1203, 96
    %v1209 = vpop.permute.xlu0 %1208
    %v1210 = vsel %vm1191, %v1207, %v1209
    %v1211 = vsel %vm1191, %v1205, %v1207
    %v1212 = vsel %vm1191, %v1209, %v1205
    %v1213 = vmax.f32 %v1201, %v1211
    %v1214 = vmax.f32 %v1202, %v1210
    %v1215 = vmax.f32 %v1203, %v1212
    %1216 = vst [vmem:[#allocation3 + $0x30] sm:$0xff] %v1213
    %1217 = vst [vmem:[#allocation3 + $0x38] sm:$0xff] %v1214
    %1218 = vst [vmem:[#allocation3 + $0x40] sm:$0xff] %v1215
    %v1219 = vmax.f32 %v1162, %v1165
    %v1220 = vmax.f32 %v1163, %v1166
    %v1221 = vmax.f32 %v1164, %v1167
    %1222 = vrot.lane.b32.xlu0 %v1219, 96
    %v1223 = vpop.permute.xlu0 %1222
    %1224 = vrot.lane.b32.xlu0 %v1220, 96
    %v1225 = vpop.permute.xlu0 %1224
    %1226 = vrot.lane.b32.xlu0 %v1221, 96
    %v1227 = vpop.permute.xlu0 %1226
    %v1228 = vsel %vm1191, %v1225, %v1227
    %v1229 = vsel %vm1191, %v1223, %v1225
    %v1230 = vsel %vm1191, %v1227, %v1223
    %v1231 = vmax.f32 %v1219, %v1229
    %v1232 = vmax.f32 %v1220, %v1228
    %v1233 = vmax.f32 %v1221, %v1230
    %1234 = vst [vmem:[#allocation3 + $0x48] sm:$0xff] %v1231
    %1235 = vst [vmem:[#allocation3 + $0x50] sm:$0xff] %v1232
    %1236 = vst [vmem:[#allocation3 + $0x58] sm:$0xff] %v1233
    %v1237 = vmax.f32 %v1168, %v1171
    %v1238 = vmax.f32 %v1169, %v1172
    %v1239 = vmax.f32 %v1170, %v1173
    %1240 = vrot.lane.b32.xlu0 %v1237, 96
    %v1241 = vpop.permute.xlu0 %1240
    %1242 = vrot.lane.b32.xlu0 %v1238, 96
    %v1243 = vpop.permute.xlu0 %1242
    %1244 = vrot.lane.b32.xlu0 %v1239, 96
    %v1245 = vpop.permute.xlu0 %1244
    %v1246 = vsel %vm1191, %v1243, %v1245
    %v1247 = vsel %vm1191, %v1241, %v1243
    %v1248 = vsel %vm1191, %v1245, %v1241
    %v1249 = vmax.f32 %v1237, %v1247
    %v1250 = vmax.f32 %v1238, %v1246
    %v1251 = vmax.f32 %v1239, %v1248
    %1252 = vst [vmem:[#allocation3 + $0x60] sm:$0xff] %v1249
    %1253 = vst [vmem:[#allocation3 + $0x68] sm:$0xff] %v1250
    %1254 = vst [vmem:[#allocation3 + $0x70] sm:$0xff] %v1251
    %v1255 = vmax.f32 %v1174, %v1177
    %v1256 = vmax.f32 %v1175, %v1178
    %v1257 = vmax.f32 %v1176, %v1179
    %1258 = vrot.lane.b32.xlu0 %v1255, 96
    %v1259 = vpop.permute.xlu0 %1258
    %1260 = vrot.lane.b32.xlu0 %v1256, 96
    %v1261 = vpop.permute.xlu0 %1260
    %1262 = vrot.lane.b32.xlu0 %v1257, 96
    %v1263 = vpop.permute.xlu0 %1262
    %v1264 = vsel %vm1191, %v1261, %v1263
    %v1265 = vsel %vm1191, %v1259, %v1261
    %v1266 = vsel %vm1191, %v1263, %v1259
    %v1267 = vmax.f32 %v1255, %v1265
    %v1268 = vmax.f32 %v1256, %v1264
    %v1269 = vmax.f32 %v1257, %v1266
    %1270 = vst [vmem:[#allocation3 + $0x78] sm:$0xff] %v1267
    %1271 = vst [vmem:[#allocation3 + $0x80] sm:$0xff] %v1268
    %1272 = vst [vmem:[#allocation3 + $0x88] sm:$0xff] %v1269
    %v1273 = vld [vmem:[#allocation3] sm:$0xff]
    %v1274 = vld [vmem:[#allocation3 + $0x8] sm:$0xff]
    %v1275 = vld [vmem:[#allocation3 + $0x10] sm:$0xff]
    %v1276 = vld [vmem:[#allocation3 + $0x18] sm:$0xff]
    %v1277 = vld [vmem:[#allocation3 + $0x20] sm:$0xff]
    %v1278 = vld [vmem:[#allocation3 + $0x28] sm:$0xff]
    %v1279 = vld [vmem:[#allocation3 + $0x30] sm:$0xff]
    %v1280 = vld [vmem:[#allocation3 + $0x38] sm:$0xff]
    %v1281 = vld [vmem:[#allocation3 + $0x40] sm:$0xff]
    %1282 = vst [vmem:[#allocation2] sm:$0xff] %v1273
    %1283 = vst [vmem:[#allocation2 + $0x8] sm:$0xff] %v1274
    %1284 = vst [vmem:[#allocation2 + $0x10] sm:$0xff] %v1275
    %1285 = vst [vmem:[#allocation2 + $0x18] sm:$0xff] %v1276
    %1286 = vst [vmem:[#allocation2 + $0x20] sm:$0xff] %v1277
    %1287 = vst [vmem:[#allocation2 + $0x28] sm:$0xff] %v1278
    %1288 = vst [vmem:[#allocation2 + $0x30] sm:$0xff] %v1279
    %1289 = vst [vmem:[#allocation2 + $0x38] sm:$0xff] %v1280
    %1290 = vst [vmem:[#allocation2 + $0x40] sm:$0xff] %v1281
    %v1291 = vld [vmem:[#allocation3 + $0x18] sm:$0xff]
    %v1292 = vld [vmem:[#allocation3 + $0x20] sm:$0xff]
    %v1293 = vld [vmem:[#allocation3 + $0x28] sm:$0xff]
    %v1294 = vld [vmem:[#allocation3 + $0x30] sm:$0xff]
    %v1295 = vld [vmem:[#allocation3 + $0x38] sm:$0xff]
    %v1296 = vld [vmem:[#allocation3 + $0x40] sm:$0xff]
    %v1297 = vld [vmem:[#allocation3 + $0x48] sm:$0xff]
    %v1298 = vld [vmem:[#allocation3 + $0x50] sm:$0xff]
    %v1299 = vld [vmem:[#allocation3 + $0x58] sm:$0xff]
    %1300 = vst [vmem:[#allocation2 + $0x48] sm:$0xff] %v1291
    %1301 = vst [vmem:[#allocation2 + $0x50] sm:$0xff] %v1292
    %1302 = vst [vmem:[#allocation2 + $0x58] sm:$0xff] %v1293
    %1303 = vst [vmem:[#allocation2 + $0x60] sm:$0xff] %v1294
    %1304 = vst [vmem:[#allocation2 + $0x68] sm:$0xff] %v1295
    %1305 = vst [vmem:[#allocation2 + $0x70] sm:$0xff] %v1296
    %1306 = vst [vmem:[#allocation2 + $0x78] sm:$0xff] %v1297
    %1307 = vst [vmem:[#allocation2 + $0x80] sm:$0xff] %v1298
    %1308 = vst [vmem:[#allocation2 + $0x88] sm:$0xff] %v1299
    %v1309 = vld [vmem:[#allocation3 + $0x30] sm:$0xff]
    %v1310 = vld [vmem:[#allocation3 + $0x38] sm:$0xff]
    %v1311 = vld [vmem:[#allocation3 + $0x40] sm:$0xff]
    %v1312 = vld [vmem:[#allocation3 + $0x48] sm:$0xff]
    %v1313 = vld [vmem:[#allocation3 + $0x50] sm:$0xff]
    %v1314 = vld [vmem:[#allocation3 + $0x58] sm:$0xff]
    %v1315 = vld [vmem:[#allocation3 + $0x60] sm:$0xff]
    %v1316 = vld [vmem:[#allocation3 + $0x68] sm:$0xff]
    %v1317 = vld [vmem:[#allocation3 + $0x70] sm:$0xff]
    %1318 = vst [vmem:[#allocation2 + $0x90] sm:$0xff] %v1309
    %1319 = vst [vmem:[#allocation2 + $0x98] sm:$0xff] %v1310
    %1320 = vst [vmem:[#allocation2 + $0xa0] sm:$0xff] %v1311
    %1321 = vst [vmem:[#allocation2 + $0xa8] sm:$0xff] %v1312
    %1322 = vst [vmem:[#allocation2 + $0xb0] sm:$0xff] %v1313
    %1323 = vst [vmem:[#allocation2 + $0xb8] sm:$0xff] %v1314
    %1324 = vst [vmem:[#allocation2 + $0xc0] sm:$0xff] %v1315
    %1325 = vst [vmem:[#allocation2 + $0xc8] sm:$0xff] %v1316
    %1326 = vst [vmem:[#allocation2 + $0xd0] sm:$0xff] %v1317
    %v1327 = vld [vmem:[#allocation3 + $0x48] sm:$0xff]
    %v1328 = vld [vmem:[#allocation3 + $0x50] sm:$0xff]
    %v1329 = vld [vmem:[#allocation3 + $0x58] sm:$0xff]
    %v1330 = vld [vmem:[#allocation3 + $0x60] sm:$0xff]
    %v1331 = vld [vmem:[#allocation3 + $0x68] sm:$0xff]
    %v1332 = vld [vmem:[#allocation3 + $0x70] sm:$0xff]
    %v1333 = vld [vmem:[#allocation3 + $0x78] sm:$0xff]
    %v1334 = vld [vmem:[#allocation3 + $0x80] sm:$0xff]
    %v1335 = vld [vmem:[#allocation3 + $0x88] sm:$0xff]
    %1336 = vst [vmem:[#allocation2 + $0xd8] sm:$0xff] %v1327
    %1337 = vst [vmem:[#allocation2 + $0xe0] sm:$0xff] %v1328
    %1338 = vst [vmem:[#allocation2 + $0xe8] sm:$0xff] %v1329
    %1339 = vst [vmem:[#allocation2 + $0xf0] sm:$0xff] %v1330
    %1340 = vst [vmem:[#allocation2 + $0xf8] sm:$0xff] %v1331
    %1341 = vst [vmem:[#allocation2 + $0x100] sm:$0xff] %v1332
    %1342 = vst [vmem:[#allocation2 + $0x108] sm:$0xff] %v1333
    %1343 = vst [vmem:[#allocation2 + $0x110] sm:$0xff] %v1334
    %1344 = vst [vmem:[#allocation2 + $0x118] sm:$0xff] %v1335
    %v1345 = vld [vmem:[#allocation3 + $0x60] sm:$0xff]
    %v1346 = vld [vmem:[#allocation3 + $0x68] sm:$0xff]
    %v1347 = vld [vmem:[#allocation3 + $0x70] sm:$0xff]
    %v1348 = vld [vmem:[#allocation3 + $0x78] sm:$0xff]
    %v1349 = vld [vmem:[#allocation3 + $0x80] sm:$0xff]
    %v1350 = vld [vmem:[#allocation3 + $0x88] sm:$0xff]
    %v1351 = vld [vmem:[#allocation3 + $0x90] sm:$0xff]
    %v1352 = vld [vmem:[#allocation3 + $0x98] sm:$0xff]
    %v1353 = vld [vmem:[#allocation3 + $0xa0] sm:$0xff]
    %1354 = vst [vmem:[#allocation2 + $0x120] sm:$0xff] %v1345
    %1355 = vst [vmem:[#allocation2 + $0x128] sm:$0xff] %v1346
    %1356 = vst [vmem:[#allocation2 + $0x130] sm:$0xff] %v1347
    %1357 = vst [vmem:[#allocation2 + $0x138] sm:$0xff] %v1348
    %1358 = vst [vmem:[#allocation2 + $0x140] sm:$0xff] %v1349
    %1359 = vst [vmem:[#allocation2 + $0x148] sm:$0xff] %v1350
    %1360 = vst [vmem:[#allocation2 + $0x150] sm:$0xff] %v1351
    %1361 = vst [vmem:[#allocation2 + $0x158] sm:$0xff] %v1352
    %1362 = vst [vmem:[#allocation2 + $0x160] sm:$0xff] %v1353
    %v1363 = vld [vmem:[#allocation2] sm:$0xff]
    %v1364 = vld [vmem:[#allocation2 + $0x8] sm:$0xff]
    %v1365 = vld [vmem:[#allocation2 + $0x10] sm:$0xff]
    %v1366 = vld [vmem:[#allocation2 + $0x18] sm:$0xff]
    %v1367 = vld [vmem:[#allocation2 + $0x20] sm:$0xff]
    %v1368 = vld [vmem:[#allocation2 + $0x28] sm:$0xff]
    %v1369 = vld [vmem:[#allocation2 + $0x30] sm:$0xff]
    %v1370 = vld [vmem:[#allocation2 + $0x38] sm:$0xff]
    %v1371 = vld [vmem:[#allocation2 + $0x40] sm:$0xff]
    %v1372 = vld [vmem:[#allocation2 + $0x48] sm:$0xff]
    %v1373 = vld [vmem:[#allocation2 + $0x50] sm:$0xff]
    %v1374 = vld [vmem:[#allocation2 + $0x58] sm:$0xff]
    %v1375 = vld [vmem:[#allocation2 + $0x60] sm:$0xff]
    %v1376 = vld [vmem:[#allocation2 + $0x68] sm:$0xff]
    %v1377 = vld [vmem:[#allocation2 + $0x70] sm:$0xff]
    %v1378 = vld [vmem:[#allocation2 + $0x78] sm:$0xff]
    %v1379 = vld [vmem:[#allocation2 + $0x80] sm:$0xff]
    %v1380 = vld [vmem:[#allocation2 + $0x88] sm:$0xff]
    %v1381 = vld [vmem:[#allocation2 + $0x90] sm:$0xff]
    %v1382 = vld [vmem:[#allocation2 + $0x98] sm:$0xff]
    %v1383 = vld [vmem:[#allocation2 + $0xa0] sm:$0xff]
    %v1384 = vld [vmem:[#allocation2 + $0xa8] sm:$0xff]
    %v1385 = vld [vmem:[#allocation2 + $0xb0] sm:$0xff]
    %v1386 = vld [vmem:[#allocation2 + $0xb8] sm:$0xff]
    %v1387 = vld [vmem:[#allocation2 + $0xc0] sm:$0xff]
    %v1388 = vld [vmem:[#allocation2 + $0xc8] sm:$0xff]
    %v1389 = vld [vmem:[#allocation2 + $0xd0] sm:$0xff]
    %v1390 = vld [vmem:[#allocation2 + $0xd8] sm:$0xff]
    %v1391 = vld [vmem:[#allocation2 + $0xe0] sm:$0xff]
    %v1392 = vld [vmem:[#allocation2 + $0xe8] sm:$0xff]
    %v1393 = vld [vmem:[#allocation2 + $0xf0] sm:$0xff]
    %v1394 = vld [vmem:[#allocation2 + $0xf8] sm:$0xff]
    %v1395 = vld [vmem:[#allocation2 + $0x100] sm:$0xff]
    %v1396 = vld [vmem:[#allocation2 + $0x108] sm:$0xff]
    %v1397 = vld [vmem:[#allocation2 + $0x110] sm:$0xff]
    %v1398 = vld [vmem:[#allocation2 + $0x118] sm:$0xff]
    %v1399 = vld [vmem:[#allocation2 + $0x120] sm:$0xff]
    %v1400 = vld [vmem:[#allocation2 + $0x128] sm:$0xff]
    %v1401 = vld [vmem:[#allocation2 + $0x130] sm:$0xff]
    %v1402 = vld [vmem:[#allocation2 + $0x138] sm:$0xff]
    %v1403 = vld [vmem:[#allocation2 + $0x140] sm:$0xff]
    %v1404 = vld [vmem:[#allocation2 + $0x148] sm:$0xff]
    %v1405 = vld [vmem:[#allocation2 + $0x150] sm:$0xff]
    %v1406 = vld [vmem:[#allocation2 + $0x158] sm:$0xff]
    %v1407 = vld [vmem:[#allocation2 + $0x160] sm:$0xff]
    %v1408 = vpack.c.bf16 %v1372, %v1363
    %v1409 = vpack.c.bf16 %v1373, %v1364
    %v1410 = vpack.c.bf16 %v1374, %v1365
    %v1411 = vpack.c.bf16 %v1375, %v1366
    %v1412 = vpack.c.bf16 %v1376, %v1367
    %v1413 = vpack.c.bf16 %v1377, %v1368
    %v1414 = vpack.c.bf16 %v1378, %v1369
    %v1415 = vpack.c.bf16 %v1379, %v1370
    %v1416 = vpack.c.bf16 %v1380, %v1371
    %v1417 = vpack.c.bf16 %v1390, %v1381
    %v1418 = vpack.c.bf16 %v1391, %v1382
    %v1419 = vpack.c.bf16 %v1392, %v1383
    %v1420 = vpack.c.bf16 %v1393, %v1384
    %v1421 = vpack.c.bf16 %v1394, %v1385
    %v1422 = vpack.c.bf16 %v1395, %v1386
    %v1423 = vpack.c.bf16 %v1396, %v1387
    %v1424 = vpack.c.bf16 %v1397, %v1388
    %v1425 = vpack.c.bf16 %v1398, %v1389
    %v1426 = vpack.c.bf16 %v1399, %v1399
    %v1427 = vpack.c.bf16 %v1400, %v1400
    %v1428 = vpack.c.bf16 %v1401, %v1401
    %v1429 = vpack.c.bf16 %v1402, %v1402
    %v1430 = vpack.c.bf16 %v1403, %v1403
    %v1431 = vpack.c.bf16 %v1404, %v1404
    %v1432 = vpack.c.bf16 %v1405, %v1405
    %v1433 = vpack.c.bf16 %v1406, %v1406
    %v1434 = vpack.c.bf16 %v1407, %v1407
    %v1435 = vld [vmem:[#allocation7] sm:$0xff]
    %v1436 = vld [vmem:[#allocation7 + $0x8] sm:$0xff]
    %v1437 = vld [vmem:[#allocation7 + $0x10] sm:$0xff]
    %v1438 = vld [vmem:[#allocation7 + $0x18] sm:$0xff]
    %v1439 = vld [vmem:[#allocation7 + $0x20] sm:$0xff]
    %v1440 = vld [vmem:[#allocation7 + $0x28] sm:$0xff]
    %v1441 = vld [vmem:[#allocation7 + $0x30] sm:$0xff]
    %v1442 = vld [vmem:[#allocation7 + $0x38] sm:$0xff]
    %v1443 = vld [vmem:[#allocation7 + $0x40] sm:$0xff]
    %v1444 = vld [vmem:[#allocation7 + $0x48] sm:$0xff]
    %v1445 = vld [vmem:[#allocation7 + $0x50] sm:$0xff]
    %v1446 = vld [vmem:[#allocation7 + $0x58] sm:$0xff]
    %v1447 = vld [vmem:[#allocation7 + $0x60] sm:$0xff]
    %v1448 = vld [vmem:[#allocation7 + $0x68] sm:$0xff]
    %v1449 = vld [vmem:[#allocation7 + $0x70] sm:$0xff]
    %v1450 = vld [vmem:[#allocation7 + $0x78] sm:$0xff]
    %v1451 = vld [vmem:[#allocation7 + $0x80] sm:$0xff]
    %v1452 = vld [vmem:[#allocation7 + $0x88] sm:$0xff]
    %v1453 = vld [vmem:[#allocation7 + $0x90] sm:$0xff]
    %v1454 = vld [vmem:[#allocation7 + $0x98] sm:$0xff]
    %v1455 = vld [vmem:[#allocation7 + $0xa0] sm:$0xff]
    %v1456 = vld [vmem:[#allocation7 + $0xa8] sm:$0xff]
    %v1457 = vld [vmem:[#allocation7 + $0xb0] sm:$0xff]
    %v1458 = vld [vmem:[#allocation7 + $0xb8] sm:$0xff]
    %v1459 = vld [vmem:[#allocation7 + $0xc0] sm:$0xff]
    %v1460 = vld [vmem:[#allocation7 + $0xc8] sm:$0xff]
    %v1461 = vld [vmem:[#allocation7 + $0xd0] sm:$0xff]
    %v1462 = vld [vmem:[#allocation7 + $0xd8] sm:$0xff]
    %v1463 = vld [vmem:[#allocation7 + $0xe0] sm:$0xff]
    %v1464 = vld [vmem:[#allocation7 + $0xe8] sm:$0xff]
    %v1465 = vld [vmem:[#allocation7 + $0xf0] sm:$0xff]
    %v1466 = vld [vmem:[#allocation7 + $0xf8] sm:$0xff]
    %v1467 = vld [vmem:[#allocation7 + $0x100] sm:$0xff]
    %v1468 = vld [vmem:[#allocation7 + $0x108] sm:$0xff]
    %v1469 = vld [vmem:[#allocation7 + $0x110] sm:$0xff]
    %v1470 = vld [vmem:[#allocation7 + $0x118] sm:$0xff]
    %v1471 = vld [vmem:[#allocation7 + $0x120] sm:$0xff]
    %v1472 = vld [vmem:[#allocation7 + $0x128] sm:$0xff]
    %v1473 = vld [vmem:[#allocation7 + $0x130] sm:$0xff]
    %v1474 = vld [vmem:[#allocation7 + $0x138] sm:$0xff]
    %v1475 = vld [vmem:[#allocation7 + $0x140] sm:$0xff]
    %v1476 = vld [vmem:[#allocation7 + $0x148] sm:$0xff]
    %v1477 = vld [vmem:[#allocation7 + $0x150] sm:$0xff]
    %v1478 = vld [vmem:[#allocation7 + $0x158] sm:$0xff]
    %v1479 = vld [vmem:[#allocation7 + $0x160] sm:$0xff]
    %v1480 = vld [vmem:[#allocation7 + $0x168] sm:$0xff]
    %v1481 = vld [vmem:[#allocation7 + $0x170] sm:$0xff]
    %v1482 = vld [vmem:[#allocation7 + $0x178] sm:$0xff]
    %v1483 = vld [vmem:[#allocation7 + $0x180] sm:$0xff]
    %v1484 = vld [vmem:[#allocation7 + $0x188] sm:$0xff]
    %v1485 = vld [vmem:[#allocation7 + $0x190] sm:$0xff]
    %v1486 = vld [vmem:[#allocation7 + $0x198] sm:$0xff]
    %v1487 = vld [vmem:[#allocation7 + $0x1a0] sm:$0xff]
    %v1488 = vld [vmem:[#allocation7 + $0x1a8] sm:$0xff]
    %v1489 = vld [vmem:[#allocation7 + $0x1b0] sm:$0xff]
    %v1490 = vld [vmem:[#allocation7 + $0x1b8] sm:$0xff]
    %v1491 = vld [vmem:[#allocation7 + $0x1c0] sm:$0xff]
    %v1492 = vld [vmem:[#allocation7 + $0x1c8] sm:$0xff]
    %v1493 = vld [vmem:[#allocation7 + $0x1d0] sm:$0xff]
    %v1494 = vld [vmem:[#allocation7 + $0x1d8] sm:$0xff]
    %v1495 = vld [vmem:[#allocation7 + $0x1e0] sm:$0xff]
    %v1496 = vld [vmem:[#allocation7 + $0x1e8] sm:$0xff]
    %v1497 = vld [vmem:[#allocation7 + $0x1f0] sm:$0xff]
    %v1498 = vld [vmem:[#allocation7 + $0x1f8] sm:$0xff]
    %v1499 = vld [vmem:[#allocation7 + $0x200] sm:$0xff]
    %v1500 = vld [vmem:[#allocation7 + $0x208] sm:$0xff]
    %v1501 = vld [vmem:[#allocation7 + $0x210] sm:$0xff]
    %v1502 = vld [vmem:[#allocation7 + $0x218] sm:$0xff]
    %v1503 = vld [vmem:[#allocation7 + $0x220] sm:$0xff]
    %v1504 = vld [vmem:[#allocation7 + $0x228] sm:$0xff]
    %v1505 = vld [vmem:[#allocation7 + $0x230] sm:$0xff]
    %v1506 = vld [vmem:[#allocation7 + $0x238] sm:$0xff]
    %v1507 = vld [vmem:[#allocation7 + $0x240] sm:$0xff]
    %v1508 = vld [vmem:[#allocation7 + $0x248] sm:$0xff]
    %v1509 = vld [vmem:[#allocation7 + $0x250] sm:$0xff]
    %v1510 = vld [vmem:[#allocation7 + $0x258] sm:$0xff]
    %v1511 = vld [vmem:[#allocation7 + $0x260] sm:$0xff]
    %v1512 = vld [vmem:[#allocation7 + $0x268] sm:$0xff]
    %v1513 = vld [vmem:[#allocation7 + $0x270] sm:$0xff]
    %v1514 = vld [vmem:[#allocation7 + $0x278] sm:$0xff]
    %v1515 = vld [vmem:[#allocation7 + $0x280] sm:$0xff]
    %v1516 = vld [vmem:[#allocation7 + $0x288] sm:$0xff]
    %v1517 = vld [vmem:[#allocation7 + $0x290] sm:$0xff]
    %v1518 = vld [vmem:[#allocation7 + $0x298] sm:$0xff]
    %v1519 = vld [vmem:[#allocation7 + $0x2a0] sm:$0xff]
    %v1520 = vld [vmem:[#allocation7 + $0x2a8] sm:$0xff]
    %v1521 = vld [vmem:[#allocation7 + $0x2b0] sm:$0xff]
    %v1522 = vld [vmem:[#allocation7 + $0x2b8] sm:$0xff]
    %v1523 = vld [vmem:[#allocation7 + $0x2c0] sm:$0xff]
    %v1524 = vld [vmem:[#allocation7 + $0x2c8] sm:$0xff]
    %v1525 = vld [vmem:[#allocation7 + $0x2d0] sm:$0xff]
    %v1526 = vld [vmem:[#allocation7 + $0x2d8] sm:$0xff]
    %v1527 = vld [vmem:[#allocation7 + $0x2e0] sm:$0xff]
    %v1528 = vld [vmem:[#allocation7 + $0x2e8] sm:$0xff]
    %v1529 = vld [vmem:[#allocation7 + $0x2f0] sm:$0xff]
    %v1530 = vld [vmem:[#allocation7 + $0x2f8] sm:$0xff]
    %v1531 = vld [vmem:[#allocation7 + $0x300] sm:$0xff]
    %v1532 = vld [vmem:[#allocation7 + $0x308] sm:$0xff]
    %v1533 = vld [vmem:[#allocation7 + $0x310] sm:$0xff]
    %v1534 = vld [vmem:[#allocation7 + $0x318] sm:$0xff]
    %v1535 = vld [vmem:[#allocation7 + $0x320] sm:$0xff]
    %v1536 = vld [vmem:[#allocation7 + $0x328] sm:$0xff]
    %v1537 = vld [vmem:[#allocation7 + $0x330] sm:$0xff]
    %v1538 = vld [vmem:[#allocation7 + $0x338] sm:$0xff]
    %v1539 = vld [vmem:[#allocation7 + $0x340] sm:$0xff]
    %v1540 = vld [vmem:[#allocation7 + $0x348] sm:$0xff]
    %v1541 = vld [vmem:[#allocation7 + $0x350] sm:$0xff]
    %v1542 = vld [vmem:[#allocation7 + $0x358] sm:$0xff]
    %v1543 = vld [vmem:[#allocation7 + $0x360] sm:$0xff]
    %v1544 = vld [vmem:[#allocation7 + $0x368] sm:$0xff]
    %v1545 = vld [vmem:[#allocation7 + $0x370] sm:$0xff]
    %v1546 = vld [vmem:[#allocation7 + $0x378] sm:$0xff]
    %v1547 = vld [vmem:[#allocation7 + $0x380] sm:$0xff]
    %v1548 = vld [vmem:[#allocation7 + $0x388] sm:$0xff]
    %v1549 = vld [vmem:[#allocation7 + $0x390] sm:$0xff]
    %v1550 = vld [vmem:[#allocation7 + $0x398] sm:$0xff]
    %v1551 = vld [vmem:[#allocation7 + $0x3a0] sm:$0xff]
    %v1552 = vld [vmem:[#allocation7 + $0x3a8] sm:$0xff]
    %v1553 = vld [vmem:[#allocation7 + $0x3b0] sm:$0xff]
    %v1554 = vld [vmem:[#allocation7 + $0x3b8] sm:$0xff]
    %v1555 = vld [vmem:[#allocation7 + $0x3c0] sm:$0xff]
    %v1556 = vld [vmem:[#allocation7 + $0x3c8] sm:$0xff]
    %v1557 = vld [vmem:[#allocation7 + $0x3d0] sm:$0xff]
    %v1558 = vld [vmem:[#allocation7 + $0x3d8] sm:$0xff]
    %v1559 = vld [vmem:[#allocation7 + $0x3e0] sm:$0xff]
    %v1560 = vld [vmem:[#allocation7 + $0x3e8] sm:$0xff]
    %v1561 = vld [vmem:[#allocation7 + $0x3f0] sm:$0xff]
    %v1562 = vld [vmem:[#allocation7 + $0x3f8] sm:$0xff]
    %v1563 = vld [vmem:[#allocation7 + $0x400] sm:$0xff]
    %v1564 = vld [vmem:[#allocation7 + $0x408] sm:$0xff]
    %v1565 = vld [vmem:[#allocation7 + $0x410] sm:$0xff]
    %v1566 = vld [vmem:[#allocation7 + $0x418] sm:$0xff]
    %v1567 = vld [vmem:[#allocation7 + $0x420] sm:$0xff]
    %v1568 = vld [vmem:[#allocation7 + $0x428] sm:$0xff]
    %v1569 = vld [vmem:[#allocation7 + $0x430] sm:$0xff]
    %v1570 = vld [vmem:[#allocation7 + $0x438] sm:$0xff]
    %v1571 = vld [vmem:[#allocation7 + $0x440] sm:$0xff]
    %v1572 = vld [vmem:[#allocation7 + $0x448] sm:$0xff]
    %v1573 = vld [vmem:[#allocation7 + $0x450] sm:$0xff]
    %v1574 = vld [vmem:[#allocation7 + $0x458] sm:$0xff]
    %v1575 = vld [vmem:[#allocation7 + $0x460] sm:$0xff]
    %v1576 = vld [vmem:[#allocation7 + $0x468] sm:$0xff]
    %v1577 = vld [vmem:[#allocation7 + $0x470] sm:$0xff]
    %v1578 = vld [vmem:[#allocation7 + $0x478] sm:$0xff]
    %v1579 = vld [vmem:[%s4] sm:$0x3]
    %v1581 = vperm.slane %v1579, 0
    %v1582 = vperm.slane %v1579, 1
    %v1729 = vunpack.c.l.b16 %v1435
    %v1730 = vunpack.c.h.b16 %v1435
    %v1731 = vunpack.c.l.b16 %v1436
    %v1732 = vunpack.c.h.b16 %v1436
    %v1733 = vunpack.c.l.b16 %v1437
    %v1734 = vunpack.c.h.b16 %v1437
    %v1735 = vunpack.c.l.b16 %v1438
    %v1736 = vunpack.c.h.b16 %v1438
    %v1737 = vunpack.c.l.b16 %v1439
    %v1738 = vunpack.c.h.b16 %v1439
    %v1739 = vunpack.c.l.b16 %v1440
    %v1740 = vunpack.c.h.b16 %v1440
    %v1741 = vunpack.c.l.b16 %v1441
    %v1742 = vunpack.c.h.b16 %v1441
    %v1743 = vunpack.c.l.b16 %v1442
    %v1744 = vunpack.c.h.b16 %v1442
    %v1745 = vunpack.c.l.b16 %v1443
    %v1746 = vunpack.c.h.b16 %v1443
    %v1747 = vunpack.c.l.b16 %v1444
    %v1748 = vunpack.c.h.b16 %v1444
    %v1749 = vunpack.c.l.b16 %v1445
    %v1750 = vunpack.c.h.b16 %v1445
    %v1751 = vunpack.c.l.b16 %v1446
    %v1752 = vunpack.c.h.b16 %v1446
    %v1753 = vunpack.c.l.b16 %v1447
    %v1754 = vunpack.c.h.b16 %v1447
    %v1755 = vunpack.c.l.b16 %v1448
    %v1756 = vunpack.c.h.b16 %v1448
    %v1757 = vunpack.c.l.b16 %v1449
    %v1758 = vunpack.c.h.b16 %v1449
    %v1759 = vunpack.c.l.b16 %v1450
    %v1760 = vunpack.c.h.b16 %v1450
    %v1761 = vunpack.c.l.b16 %v1451
    %v1762 = vunpack.c.h.b16 %v1451
    %v1763 = vunpack.c.l.b16 %v1452
    %v1764 = vunpack.c.h.b16 %v1452
    %v1765 = vunpack.c.l.b16 %v1453
    %v1766 = vunpack.c.h.b16 %v1453
    %v1767 = vunpack.c.l.b16 %v1454
    %v1768 = vunpack.c.h.b16 %v1454
    %v1769 = vunpack.c.l.b16 %v1455
    %v1770 = vunpack.c.h.b16 %v1455
    %v1771 = vunpack.c.l.b16 %v1456
    %v1772 = vunpack.c.h.b16 %v1456
    %v1773 = vunpack.c.l.b16 %v1457
    %v1774 = vunpack.c.h.b16 %v1457
    %v1775 = vunpack.c.l.b16 %v1458
    %v1776 = vunpack.c.h.b16 %v1458
    %v1777 = vunpack.c.l.b16 %v1459
    %v1778 = vunpack.c.h.b16 %v1459
    %v1779 = vunpack.c.l.b16 %v1460
    %v1780 = vunpack.c.h.b16 %v1460
    %v1781 = vunpack.c.l.b16 %v1461
    %v1782 = vunpack.c.h.b16 %v1461
    %v1783 = vunpack.c.l.b16 %v1462
    %v1784 = vunpack.c.h.b16 %v1462
    %v1785 = vunpack.c.l.b16 %v1463
    %v1786 = vunpack.c.h.b16 %v1463
    %v1787 = vunpack.c.l.b16 %v1464
    %v1788 = vunpack.c.h.b16 %v1464
    %v1789 = vunpack.c.l.b16 %v1465
    %v1790 = vunpack.c.h.b16 %v1465
    %v1791 = vunpack.c.l.b16 %v1466
    %v1792 = vunpack.c.h.b16 %v1466
    %v1793 = vunpack.c.l.b16 %v1467
    %v1794 = vunpack.c.h.b16 %v1467
    %v1795 = vunpack.c.l.b16 %v1468
    %v1796 = vunpack.c.h.b16 %v1468
    %v1797 = vunpack.c.l.b16 %v1469
    %v1798 = vunpack.c.h.b16 %v1469
    %v1799 = vunpack.c.l.b16 %v1470
    %v1800 = vunpack.c.h.b16 %v1470
    %v1801 = vunpack.c.l.b16 %v1471
    %v1802 = vunpack.c.h.b16 %v1471
    %v1803 = vunpack.c.l.b16 %v1472
    %v1804 = vunpack.c.h.b16 %v1472
    %v1805 = vunpack.c.l.b16 %v1473
    %v1806 = vunpack.c.h.b16 %v1473
    %v1807 = vunpack.c.l.b16 %v1474
    %v1808 = vunpack.c.h.b16 %v1474
    %v1809 = vunpack.c.l.b16 %v1475
    %v1810 = vunpack.c.h.b16 %v1475
    %v1811 = vunpack.c.l.b16 %v1476
    %v1812 = vunpack.c.h.b16 %v1476
    %v1813 = vunpack.c.l.b16 %v1477
    %v1814 = vunpack.c.h.b16 %v1477
    %v1815 = vunpack.c.l.b16 %v1478
    %v1816 = vunpack.c.h.b16 %v1478
    %v1817 = vunpack.c.l.b16 %v1479
    %v1818 = vunpack.c.h.b16 %v1479
    %v1819 = vunpack.c.l.b16 %v1480
    %v1820 = vunpack.c.h.b16 %v1480
    %v1821 = vunpack.c.l.b16 %v1481
    %v1822 = vunpack.c.h.b16 %v1481
    %v1823 = vunpack.c.l.b16 %v1482
    %v1824 = vunpack.c.h.b16 %v1482
    %v1825 = vunpack.c.l.b16 %v1483
    %v1826 = vunpack.c.h.b16 %v1483
    %v1827 = vunpack.c.l.b16 %v1484
    %v1828 = vunpack.c.h.b16 %v1484
    %v1829 = vunpack.c.l.b16 %v1485
    %v1830 = vunpack.c.h.b16 %v1485
    %v1831 = vunpack.c.l.b16 %v1486
    %v1832 = vunpack.c.h.b16 %v1486
    %v1833 = vunpack.c.l.b16 %v1487
    %v1834 = vunpack.c.h.b16 %v1487
    %v1835 = vunpack.c.l.b16 %v1488
    %v1836 = vunpack.c.h.b16 %v1488
    %v1837 = vunpack.c.l.b16 %v1489
    %v1838 = vunpack.c.h.b16 %v1489
    %v1839 = vunpack.c.l.b16 %v1490
    %v1840 = vunpack.c.h.b16 %v1490
    %v1841 = vunpack.c.l.b16 %v1491
    %v1842 = vunpack.c.h.b16 %v1491
    %v1843 = vunpack.c.l.b16 %v1492
    %v1844 = vunpack.c.h.b16 %v1492
    %v1845 = vunpack.c.l.b16 %v1493
    %v1846 = vunpack.c.h.b16 %v1493
    %v1847 = vunpack.c.l.b16 %v1494
    %v1848 = vunpack.c.h.b16 %v1494
    %v1849 = vunpack.c.l.b16 %v1495
    %v1850 = vunpack.c.h.b16 %v1495
    %v1851 = vunpack.c.l.b16 %v1496
    %v1852 = vunpack.c.h.b16 %v1496
    %v1853 = vunpack.c.l.b16 %v1497
    %v1854 = vunpack.c.h.b16 %v1497
    %v1855 = vunpack.c.l.b16 %v1498
    %v1856 = vunpack.c.h.b16 %v1498
    %v1857 = vunpack.c.l.b16 %v1499
    %v1858 = vunpack.c.h.b16 %v1499
    %v1859 = vunpack.c.l.b16 %v1500
    %v1860 = vunpack.c.h.b16 %v1500
    %v1861 = vunpack.c.l.b16 %v1501
    %v1862 = vunpack.c.h.b16 %v1501
    %v1863 = vunpack.c.l.b16 %v1502
    %v1864 = vunpack.c.h.b16 %v1502
    %v1865 = vunpack.c.l.b16 %v1503
    %v1866 = vunpack.c.h.b16 %v1503
    %v1867 = vunpack.c.l.b16 %v1504
    %v1868 = vunpack.c.h.b16 %v1504
    %v1869 = vunpack.c.l.b16 %v1505
    %v1870 = vunpack.c.h.b16 %v1505
    %v1871 = vunpack.c.l.b16 %v1506
    %v1872 = vunpack.c.h.b16 %v1506
    %v1873 = vunpack.c.l.b16 %v1507
    %v1874 = vunpack.c.h.b16 %v1507
    %v1875 = vunpack.c.l.b16 %v1508
    %v1876 = vunpack.c.h.b16 %v1508
    %v1877 = vunpack.c.l.b16 %v1509
    %v1878 = vunpack.c.h.b16 %v1509
    %v1879 = vunpack.c.l.b16 %v1510
    %v1880 = vunpack.c.h.b16 %v1510
    %v1881 = vunpack.c.l.b16 %v1511
    %v1882 = vunpack.c.h.b16 %v1511
    %v1883 = vunpack.c.l.b16 %v1512
    %v1884 = vunpack.c.h.b16 %v1512
    %v1885 = vunpack.c.l.b16 %v1513
    %v1886 = vunpack.c.h.b16 %v1513
    %v1887 = vunpack.c.l.b16 %v1514
    %v1888 = vunpack.c.h.b16 %v1514
    %v1889 = vunpack.c.l.b16 %v1515
    %v1890 = vunpack.c.h.b16 %v1515
    %v1891 = vunpack.c.l.b16 %v1516
    %v1892 = vunpack.c.h.b16 %v1516
    %v1893 = vunpack.c.l.b16 %v1517
    %v1894 = vunpack.c.h.b16 %v1517
    %v1895 = vunpack.c.l.b16 %v1518
    %v1896 = vunpack.c.h.b16 %v1518
    %v1897 = vunpack.c.l.b16 %v1519
    %v1898 = vunpack.c.h.b16 %v1519
    %v1899 = vunpack.c.l.b16 %v1520
    %v1900 = vunpack.c.h.b16 %v1520
    %v1901 = vunpack.c.l.b16 %v1521
    %v1902 = vunpack.c.h.b16 %v1521
    %v1903 = vunpack.c.l.b16 %v1522
    %v1904 = vunpack.c.h.b16 %v1522
    %v1905 = vunpack.c.l.b16 %v1523
    %v1906 = vunpack.c.h.b16 %v1523
    %v1907 = vunpack.c.l.b16 %v1524
    %v1908 = vunpack.c.h.b16 %v1524
    %v1909 = vunpack.c.l.b16 %v1525
    %v1910 = vunpack.c.h.b16 %v1525
    %v1911 = vunpack.c.l.b16 %v1526
    %v1912 = vunpack.c.h.b16 %v1526
    %v1913 = vunpack.c.l.b16 %v1527
    %v1914 = vunpack.c.h.b16 %v1527
    %v1915 = vunpack.c.l.b16 %v1528
    %v1916 = vunpack.c.h.b16 %v1528
    %v1917 = vunpack.c.l.b16 %v1529
    %v1918 = vunpack.c.h.b16 %v1529
    %v1919 = vunpack.c.l.b16 %v1530
    %v1920 = vunpack.c.h.b16 %v1530
    %v1921 = vunpack.c.l.b16 %v1531
    %v1922 = vunpack.c.h.b16 %v1531
    %v1923 = vunpack.c.l.b16 %v1532
    %v1924 = vunpack.c.h.b16 %v1532
    %v1925 = vunpack.c.l.b16 %v1533
    %v1926 = vunpack.c.h.b16 %v1533
    %v1927 = vunpack.c.l.b16 %v1534
    %v1928 = vunpack.c.h.b16 %v1534
    %v1929 = vunpack.c.l.b16 %v1535
    %v1930 = vunpack.c.h.b16 %v1535
    %v1931 = vunpack.c.l.b16 %v1536
    %v1932 = vunpack.c.h.b16 %v1536
    %v1933 = vunpack.c.l.b16 %v1537
    %v1934 = vunpack.c.h.b16 %v1537
    %v1935 = vunpack.c.l.b16 %v1538
    %v1936 = vunpack.c.h.b16 %v1538
    %v1937 = vunpack.c.l.b16 %v1539
    %v1938 = vunpack.c.h.b16 %v1539
    %v1939 = vunpack.c.l.b16 %v1540
    %v1940 = vunpack.c.h.b16 %v1540
    %v1941 = vunpack.c.l.b16 %v1541
    %v1942 = vunpack.c.h.b16 %v1541
    %v1943 = vunpack.c.l.b16 %v1542
    %v1944 = vunpack.c.h.b16 %v1542
    %v1945 = vunpack.c.l.b16 %v1543
    %v1946 = vunpack.c.h.b16 %v1543
    %v1947 = vunpack.c.l.b16 %v1544
    %v1948 = vunpack.c.h.b16 %v1544
    %v1949 = vunpack.c.l.b16 %v1545
    %v1950 = vunpack.c.h.b16 %v1545
    %v1951 = vunpack.c.l.b16 %v1546
    %v1952 = vunpack.c.h.b16 %v1546
    %v1953 = vunpack.c.l.b16 %v1547
    %v1954 = vunpack.c.h.b16 %v1547
    %v1955 = vunpack.c.l.b16 %v1548
    %v1956 = vunpack.c.h.b16 %v1548
    %v1957 = vunpack.c.l.b16 %v1549
    %v1958 = vunpack.c.h.b16 %v1549
    %v1959 = vunpack.c.l.b16 %v1550
    %v1960 = vunpack.c.h.b16 %v1550
    %v1961 = vunpack.c.l.b16 %v1551
    %v1962 = vunpack.c.h.b16 %v1551
    %v1963 = vunpack.c.l.b16 %v1552
    %v1964 = vunpack.c.h.b16 %v1552
    %v1965 = vunpack.c.l.b16 %v1553
    %v1966 = vunpack.c.h.b16 %v1553
    %v1967 = vunpack.c.l.b16 %v1554
    %v1968 = vunpack.c.h.b16 %v1554
    %v1969 = vunpack.c.l.b16 %v1555
    %v1970 = vunpack.c.h.b16 %v1555
    %v1971 = vunpack.c.l.b16 %v1556
    %v1972 = vunpack.c.h.b16 %v1556
    %v1973 = vunpack.c.l.b16 %v1557
    %v1974 = vunpack.c.h.b16 %v1557
    %v1975 = vunpack.c.l.b16 %v1558
    %v1976 = vunpack.c.h.b16 %v1558
    %v1977 = vunpack.c.l.b16 %v1559
    %v1978 = vunpack.c.h.b16 %v1559
    %v1979 = vunpack.c.l.b16 %v1560
    %v1980 = vunpack.c.h.b16 %v1560
    %v1981 = vunpack.c.l.b16 %v1561
    %v1982 = vunpack.c.h.b16 %v1561
    %v1983 = vunpack.c.l.b16 %v1562
    %v1984 = vunpack.c.h.b16 %v1562
    %v1985 = vunpack.c.l.b16 %v1563
    %v1986 = vunpack.c.h.b16 %v1563
    %v1987 = vunpack.c.l.b16 %v1564
    %v1988 = vunpack.c.h.b16 %v1564
    %v1989 = vunpack.c.l.b16 %v1565
    %v1990 = vunpack.c.h.b16 %v1565
    %v1991 = vunpack.c.l.b16 %v1566
    %v1992 = vunpack.c.h.b16 %v1566
    %v1993 = vunpack.c.l.b16 %v1567
    %v1994 = vunpack.c.h.b16 %v1567
    %v1995 = vunpack.c.l.b16 %v1568
    %v1996 = vunpack.c.h.b16 %v1568
    %v1997 = vunpack.c.l.b16 %v1569
    %v1998 = vunpack.c.h.b16 %v1569
    %v1999 = vunpack.c.l.b16 %v1570
    %v2000 = vunpack.c.h.b16 %v1570
    %v2001 = vunpack.c.l.b16 %v1571
    %v2002 = vunpack.c.h.b16 %v1571
    %v2003 = vunpack.c.l.b16 %v1572
    %v2004 = vunpack.c.h.b16 %v1572
    %v2005 = vunpack.c.l.b16 %v1573
    %v2006 = vunpack.c.h.b16 %v1573
    %v2007 = vunpack.c.l.b16 %v1574
    %v2008 = vunpack.c.h.b16 %v1574
    %v2009 = vunpack.c.l.b16 %v1575
    %v2010 = vunpack.c.h.b16 %v1575
    %v2011 = vunpack.c.l.b16 %v1576
    %v2012 = vunpack.c.h.b16 %v1576
    %v2013 = vunpack.c.l.b16 %v1577
    %v2014 = vunpack.c.h.b16 %v1577
    %v2015 = vunpack.c.l.b16 %v1578
    %v2016 = vunpack.c.h.b16 %v1578
    %v2017 = vpack.c.b16 %v1731, %v1729
    %v2018 = vpack.c.b16 %v1732, %v1730
    %v2019 = vpack.c.b16 %v1735, %v1733
    %v2020 = vpack.c.b16 %v1736, %v1734
    %v2021 = vpack.c.b16 %v1739, %v1737
    %v2022 = vpack.c.b16 %v1740, %v1738
    %v2023 = vpack.c.b16 %v1743, %v1741
    %v2024 = vpack.c.b16 %v1744, %v1742
    %v2025 = vpack.c.b16 %v1747, %v1745
    %v2026 = vpack.c.b16 %v1748, %v1746
    %v2027 = vpack.c.b16 %v1751, %v1749
    %v2028 = vpack.c.b16 %v1752, %v1750
    %v2029 = vpack.c.b16 %v1755, %v1753
    %v2030 = vpack.c.b16 %v1756, %v1754
    %v2031 = vpack.c.b16 %v1759, %v1757
    %v2032 = vpack.c.b16 %v1760, %v1758
    %v2033 = vpack.c.b16 %v1763, %v1761
    %v2034 = vpack.c.b16 %v1764, %v1762
    %v2035 = vpack.c.b16 %v1767, %v1765
    %v2036 = vpack.c.b16 %v1768, %v1766
    %v2037 = vpack.c.b16 %v1771, %v1769
    %v2038 = vpack.c.b16 %v1772, %v1770
    %v2039 = vpack.c.b16 %v1775, %v1773
    %v2040 = vpack.c.b16 %v1776, %v1774
    %v2041 = vpack.c.b16 %v1779, %v1777
    %v2042 = vpack.c.b16 %v1780, %v1778
    %v2043 = vpack.c.b16 %v1783, %v1781
    %v2044 = vpack.c.b16 %v1784, %v1782
    %v2045 = vpack.c.b16 %v1787, %v1785
    %v2046 = vpack.c.b16 %v1788, %v1786
    %v2047 = vpack.c.b16 %v1791, %v1789
    %v2048 = vpack.c.b16 %v1792, %v1790
    %v2049 = vpack.c.b16 %v1795, %v1793
    %v2050 = vpack.c.b16 %v1796, %v1794
    %v2051 = vpack.c.b16 %v1799, %v1797
    %v2052 = vpack.c.b16 %v1800, %v1798
    %v2053 = vpack.c.b16 %v1803, %v1801
    %v2054 = vpack.c.b16 %v1804, %v1802
    %v2055 = vpack.c.b16 %v1807, %v1805
    %v2056 = vpack.c.b16 %v1808, %v1806
    %v2057 = vpack.c.b16 %v1811, %v1809
    %v2058 = vpack.c.b16 %v1812, %v1810
    %v2059 = vpack.c.b16 %v1815, %v1813
    %v2060 = vpack.c.b16 %v1816, %v1814
    %v2061 = vpack.c.b16 %v1819, %v1817
    %v2062 = vpack.c.b16 %v1820, %v1818
    %v2063 = vpack.c.b16 %v1823, %v1821
    %v2064 = vpack.c.b16 %v1824, %v1822
    %v2065 = vpack.c.b16 %v1827, %v1825
    %v2066 = vpack.c.b16 %v1828, %v1826
    %v2067 = vpack.c.b16 %v1831, %v1829
    %v2068 = vpack.c.b16 %v1832, %v1830
    %v2069 = vpack.c.b16 %v1835, %v1833
    %v2070 = vpack.c.b16 %v1836, %v1834
    %v2071 = vpack.c.b16 %v1839, %v1837
    %v2072 = vpack.c.b16 %v1840, %v1838
    %v2073 = vpack.c.b16 %v1843, %v1841
    %v2074 = vpack.c.b16 %v1844, %v1842
    %v2075 = vpack.c.b16 %v1847, %v1845
    %v2076 = vpack.c.b16 %v1848, %v1846
    %v2077 = vpack.c.b16 %v1851, %v1849
    %v2078 = vpack.c.b16 %v1852, %v1850
    %v2079 = vpack.c.b16 %v1855, %v1853
    %v2080 = vpack.c.b16 %v1856, %v1854
    %v2081 = vpack.c.b16 %v1859, %v1857
    %v2082 = vpack.c.b16 %v1860, %v1858
    %v2083 = vpack.c.b16 %v1863, %v1861
    %v2084 = vpack.c.b16 %v1864, %v1862
    %v2085 = vpack.c.b16 %v1867, %v1865
    %v2086 = vpack.c.b16 %v1868, %v1866
    %v2087 = vpack.c.b16 %v1871, %v1869
    %v2088 = vpack.c.b16 %v1872, %v1870
    %v2089 = vpack.c.b16 %v1875, %v1873
    %v2090 = vpack.c.b16 %v1876, %v1874
    %v2091 = vpack.c.b16 %v1879, %v1877
    %v2092 = vpack.c.b16 %v1880, %v1878
    %v2093 = vpack.c.b16 %v1883, %v1881
    %v2094 = vpack.c.b16 %v1884, %v1882
    %v2095 = vpack.c.b16 %v1887, %v1885
    %v2096 = vpack.c.b16 %v1888, %v1886
    %v2097 = vpack.c.b16 %v1891, %v1889
    %v2098 = vpack.c.b16 %v1892, %v1890
    %v2099 = vpack.c.b16 %v1895, %v1893
    %v2100 = vpack.c.b16 %v1896, %v1894
    %v2101 = vpack.c.b16 %v1899, %v1897
    %v2102 = vpack.c.b16 %v1900, %v1898
    %v2103 = vpack.c.b16 %v1903, %v1901
    %v2104 = vpack.c.b16 %v1904, %v1902
    %v2105 = vpack.c.b16 %v1907, %v1905
    %v2106 = vpack.c.b16 %v1908, %v1906
    %v2107 = vpack.c.b16 %v1911, %v1909
    %v2108 = vpack.c.b16 %v1912, %v1910
    %v2109 = vpack.c.b16 %v1915, %v1913
    %v2110 = vpack.c.b16 %v1916, %v1914
    %v2111 = vpack.c.b16 %v1919, %v1917
    %v2112 = vpack.c.b16 %v1920, %v1918
    %v2113 = vpack.c.b16 %v1923, %v1921
    %v2114 = vpack.c.b16 %v1924, %v1922
    %v2115 = vpack.c.b16 %v1927, %v1925
    %v2116 = vpack.c.b16 %v1928, %v1926
    %v2117 = vpack.c.b16 %v1931, %v1929
    %v2118 = vpack.c.b16 %v1932, %v1930
    %v2119 = vpack.c.b16 %v1935, %v1933
    %v2120 = vpack.c.b16 %v1936, %v1934
    %v2121 = vpack.c.b16 %v1939, %v1937
    %v2122 = vpack.c.b16 %v1940, %v1938
    %v2123 = vpack.c.b16 %v1943, %v1941
    %v2124 = vpack.c.b16 %v1944, %v1942
    %v2125 = vpack.c.b16 %v1947, %v1945
    %v2126 = vpack.c.b16 %v1948, %v1946
    %v2127 = vpack.c.b16 %v1951, %v1949
    %v2128 = vpack.c.b16 %v1952, %v1950
    %v2129 = vpack.c.b16 %v1955, %v1953
    %v2130 = vpack.c.b16 %v1956, %v1954
    %v2131 = vpack.c.b16 %v1959, %v1957
    %v2132 = vpack.c.b16 %v1960, %v1958
    %v2133 = vpack.c.b16 %v1963, %v1961
    %v2134 = vpack.c.b16 %v1964, %v1962
    %v2135 = vpack.c.b16 %v1967, %v1965
    %v2136 = vpack.c.b16 %v1968, %v1966
    %v2137 = vpack.c.b16 %v1971, %v1969
    %v2138 = vpack.c.b16 %v1972, %v1970
    %v2139 = vpack.c.b16 %v1975, %v1973
    %v2140 = vpack.c.b16 %v1976, %v1974
    %v2141 = vpack.c.b16 %v1979, %v1977
    %v2142 = vpack.c.b16 %v1980, %v1978
    %v2143 = vpack.c.b16 %v1983, %v1981
    %v2144 = vpack.c.b16 %v1984, %v1982
    %v2145 = vpack.c.b16 %v1987, %v1985
    %v2146 = vpack.c.b16 %v1988, %v1986
    %v2147 = vpack.c.b16 %v1991, %v1989
    %v2148 = vpack.c.b16 %v1992, %v1990
    %v2149 = vpack.c.b16 %v1995, %v1993
    %v2150 = vpack.c.b16 %v1996, %v1994
    %v2151 = vpack.c.b16 %v1999, %v1997
    %v2152 = vpack.c.b16 %v2000, %v1998
    %v2153 = vpack.c.b16 %v2003, %v2001
    %v2154 = vpack.c.b16 %v2004, %v2002
    %v2155 = vpack.c.b16 %v2007, %v2005
    %v2156 = vpack.c.b16 %v2008, %v2006
    %v2157 = vpack.c.b16 %v2011, %v2009
    %v2158 = vpack.c.b16 %v2012, %v2010
    %v2159 = vpack.c.b16 %v2015, %v2013
    %v2160 = vpack.c.b16 %v2016, %v2014
    %2305 = vmatpush.bf16.msra.mxu0 %v2031
    %2306 = vmatpush.bf16.msra.mxu0 %v2029
    %2307 = vmatpush.bf16.msra.mxu0 %v2027
    %2308 = vmatpush.bf16.msra.mxu0 %v2025
    %2309 = vmatpush.bf16.msra.mxu0 %v2023
    %2310 = vmatpush.bf16.msra.mxu0 %v2021
    %2311 = vmatpush.bf16.msra.mxu0 %v2019
    %2312 = vmatpush.bf16.msra.mxu0 %v2017
    %2313 = vmatmul.bf16.gmra.mxu0 %v1408
    %v2314 = vpop.f32.mrf.mxu0
    %v2315 = vadd.f32 %v1581, %v2314
    %v2316 = vpop.f32.mrf.mxu0
    %v2317 = vadd.f32 %v1581, %v2316
    %2318 = vmatmul.bf16.gmra.mxu0 %v1417
    %v2319 = vpop.f32.mrf.mxu0
    %v2320 = vadd.f32 %v1581, %v2319
    %v2321 = vpop.f32.mrf.mxu0
    %v2322 = vadd.f32 %v1581, %v2321
    %2323 = vmatmul.bf16.gmra.mxu0 %v1426
    %v2324 = vpop.f32.mrf.mxu0
    %v2325 = vadd.f32 %v1581, %v2324
    %v2326 = vpop.f32.mrf.mxu0
    %2327 = vdwg.mxu0
    %2328 = vmatpush.bf16.msra.mxu0 %v2047
    %2329 = vmatpush.bf16.msra.mxu0 %v2045
    %2330 = vmatpush.bf16.msra.mxu0 %v2043
    %2331 = vmatpush.bf16.msra.mxu0 %v2041
    %2332 = vmatpush.bf16.msra.mxu0 %v2039
    %2333 = vmatpush.bf16.msra.mxu0 %v2037
    %2334 = vmatpush.bf16.msra.mxu0 %v2035
    %2335 = vmatpush.bf16.msra.mxu0 %v2033
    %2336 = vmatmul.bf16.gmra.mxu0 %v1409
    %v2337 = vpop.f32.mrf.mxu0
    %v2338 = vadd.f32 %v2315, %v2337
    %v2339 = vpop.f32.mrf.mxu0
    %v2340 = vadd.f32 %v2317, %v2339
    %2341 = vmatmul.bf16.gmra.mxu0 %v1418
    %v2342 = vpop.f32.mrf.mxu0
    %v2343 = vadd.f32 %v2320, %v2342
    %v2344 = vpop.f32.mrf.mxu0
    %v2345 = vadd.f32 %v2322, %v2344
    %2346 = vmatmul.bf16.gmra.mxu0 %v1427
    %v2347 = vpop.f32.mrf.mxu0
    %v2348 = vadd.f32 %v2325, %v2347
    %v2349 = vpop.f32.mrf.mxu0
    %2350 = vdwg.mxu0
    %2351 = vmatpush.bf16.msra.mxu0 %v2063
    %2352 = vmatpush.bf16.msra.mxu0 %v2061
    %2353 = vmatpush.bf16.msra.mxu0 %v2059
    %2354 = vmatpush.bf16.msra.mxu0 %v2057
    %2355 = vmatpush.bf16.msra.mxu0 %v2055
    %2356 = vmatpush.bf16.msra.mxu0 %v2053
    %2357 = vmatpush.bf16.msra.mxu0 %v2051
    %2358 = vmatpush.bf16.msra.mxu0 %v2049
    %2359 = vmatmul.bf16.gmra.mxu0 %v1410
    %v2360 = vpop.f32.mrf.mxu0
    %v2361 = vadd.f32 %v2338, %v2360
    %v2362 = vpop.f32.mrf.mxu0
    %v2363 = vadd.f32 %v2340, %v2362
    %2364 = vmatmul.bf16.gmra.mxu0 %v1419
    %v2365 = vpop.f32.mrf.mxu0
    %v2366 = vadd.f32 %v2343, %v2365
    %v2367 = vpop.f32.mrf.mxu0
    %v2368 = vadd.f32 %v2345, %v2367
    %2369 = vmatmul.bf16.gmra.mxu0 %v1428
    %v2370 = vpop.f32.mrf.mxu0
    %v2371 = vadd.f32 %v2348, %v2370
    %v2372 = vpop.f32.mrf.mxu0
    %2373 = vdwg.mxu0
    %2374 = vmatpush.bf16.msra.mxu0 %v2079
    %2375 = vmatpush.bf16.msra.mxu0 %v2077
    %2376 = vmatpush.bf16.msra.mxu0 %v2075
    %2377 = vmatpush.bf16.msra.mxu0 %v2073
    %2378 = vmatpush.bf16.msra.mxu0 %v2071
    %2379 = vmatpush.bf16.msra.mxu0 %v2069
    %2380 = vmatpush.bf16.msra.mxu0 %v2067
    %2381 = vmatpush.bf16.msra.mxu0 %v2065
    %2382 = vmatmul.bf16.gmra.mxu0 %v1411
    %v2383 = vpop.f32.mrf.mxu0
    %v2384 = vadd.f32 %v2361, %v2383
    %v2385 = vpop.f32.mrf.mxu0
    %v2386 = vadd.f32 %v2363, %v2385
    %2387 = vmatmul.bf16.gmra.mxu0 %v1420
    %v2388 = vpop.f32.mrf.mxu0
    %v2389 = vadd.f32 %v2366, %v2388
    %v2390 = vpop.f32.mrf.mxu0
    %v2391 = vadd.f32 %v2368, %v2390
    %2392 = vmatmul.bf16.gmra.mxu0 %v1429
    %v2393 = vpop.f32.mrf.mxu0
    %v2394 = vadd.f32 %v2371, %v2393
    %v2395 = vpop.f32.mrf.mxu0
    %2396 = vdwg.mxu0
    %2397 = vmatpush.bf16.msra.mxu0 %v2095
    %2398 = vmatpush.bf16.msra.mxu0 %v2093
    %2399 = vmatpush.bf16.msra.mxu0 %v2091
    %2400 = vmatpush.bf16.msra.mxu0 %v2089
    %2401 = vmatpush.bf16.msra.mxu0 %v2087
    %2402 = vmatpush.bf16.msra.mxu0 %v2085
    %2403 = vmatpush.bf16.msra.mxu0 %v2083
    %2404 = vmatpush.bf16.msra.mxu0 %v2081
    %2405 = vmatmul.bf16.gmra.mxu0 %v1412
    %v2406 = vpop.f32.mrf.mxu0
    %v2407 = vadd.f32 %v2384, %v2406
    %v2408 = vpop.f32.mrf.mxu0
    %v2409 = vadd.f32 %v2386, %v2408
    %2410 = vmatmul.bf16.gmra.mxu0 %v1421
    %v2411 = vpop.f32.mrf.mxu0
    %v2412 = vadd.f32 %v2389, %v2411
    %v2413 = vpop.f32.mrf.mxu0
    %v2414 = vadd.f32 %v2391, %v2413
    %2415 = vmatmul.bf16.gmra.mxu0 %v1430
    %v2416 = vpop.f32.mrf.mxu0
    %v2417 = vadd.f32 %v2394, %v2416
    %v2418 = vpop.f32.mrf.mxu0
    %2419 = vdwg.mxu0
    %2420 = vmatpush.bf16.msra.mxu0 %v2111
    %2421 = vmatpush.bf16.msra.mxu0 %v2109
    %2422 = vmatpush.bf16.msra.mxu0 %v2107
    %2423 = vmatpush.bf16.msra.mxu0 %v2105
    %2424 = vmatpush.bf16.msra.mxu0 %v2103
    %2425 = vmatpush.bf16.msra.mxu0 %v2101
    %2426 = vmatpush.bf16.msra.mxu0 %v2099
    %2427 = vmatpush.bf16.msra.mxu0 %v2097
    %2428 = vmatmul.bf16.gmra.mxu0 %v1413
    %v2429 = vpop.f32.mrf.mxu0
    %v2430 = vadd.f32 %v2407, %v2429
    %v2431 = vpop.f32.mrf.mxu0
    %v2432 = vadd.f32 %v2409, %v2431
    %2433 = vmatmul.bf16.gmra.mxu0 %v1422
    %v2434 = vpop.f32.mrf.mxu0
    %v2435 = vadd.f32 %v2412, %v2434
    %v2436 = vpop.f32.mrf.mxu0
    %v2437 = vadd.f32 %v2414, %v2436
    %2438 = vmatmul.bf16.gmra.mxu0 %v1431
    %v2439 = vpop.f32.mrf.mxu0
    %v2440 = vadd.f32 %v2417, %v2439
    %v2441 = vpop.f32.mrf.mxu0
    %2442 = vdwg.mxu0
    %2443 = vmatpush.bf16.msra.mxu0 %v2127
    %2444 = vmatpush.bf16.msra.mxu0 %v2125
    %2445 = vmatpush.bf16.msra.mxu0 %v2123
    %2446 = vmatpush.bf16.msra.mxu0 %v2121
    %2447 = vmatpush.bf16.msra.mxu0 %v2119
    %2448 = vmatpush.bf16.msra.mxu0 %v2117
    %2449 = vmatpush.bf16.msra.mxu0 %v2115
    %2450 = vmatpush.bf16.msra.mxu0 %v2113
    %2451 = vmatmul.bf16.gmra.mxu0 %v1414
    %v2452 = vpop.f32.mrf.mxu0
    %v2453 = vadd.f32 %v2430, %v2452
    %v2454 = vpop.f32.mrf.mxu0
    %v2455 = vadd.f32 %v2432, %v2454
    %2456 = vmatmul.bf16.gmra.mxu0 %v1423
    %v2457 = vpop.f32.mrf.mxu0
    %v2458 = vadd.f32 %v2435, %v2457
    %v2459 = vpop.f32.mrf.mxu0
    %v2460 = vadd.f32 %v2437, %v2459
    %2461 = vmatmul.bf16.gmra.mxu0 %v1432
    %v2462 = vpop.f32.mrf.mxu0
    %v2463 = vadd.f32 %v2440, %v2462
    %v2464 = vpop.f32.mrf.mxu0
    %2465 = vdwg.mxu0
    %2466 = vmatpush.bf16.msra.mxu0 %v2143
    %2467 = vmatpush.bf16.msra.mxu0 %v2141
    %2468 = vmatpush.bf16.msra.mxu0 %v2139
    %2469 = vmatpush.bf16.msra.mxu0 %v2137
    %2470 = vmatpush.bf16.msra.mxu0 %v2135
    %2471 = vmatpush.bf16.msra.mxu0 %v2133
    %2472 = vmatpush.bf16.msra.mxu0 %v2131
    %2473 = vmatpush.bf16.msra.mxu0 %v2129
    %2474 = vmatmul.bf16.gmra.mxu0 %v1415
    %v2475 = vpop.f32.mrf.mxu0
    %v2476 = vadd.f32 %v2453, %v2475
    %v2477 = vpop.f32.mrf.mxu0
    %v2478 = vadd.f32 %v2455, %v2477
    %2479 = vmatmul.bf16.gmra.mxu0 %v1424
    %v2480 = vpop.f32.mrf.mxu0
    %v2481 = vadd.f32 %v2458, %v2480
    %v2482 = vpop.f32.mrf.mxu0
    %v2483 = vadd.f32 %v2460, %v2482
    %2484 = vmatmul.bf16.gmra.mxu0 %v1433
    %v2485 = vpop.f32.mrf.mxu0
    %v2486 = vadd.f32 %v2463, %v2485
    %v2487 = vpop.f32.mrf.mxu0
    %2488 = vdwg.mxu0
    %2489 = vmatpush.bf16.msra.mxu0 %v2159
    %2490 = vmatpush.bf16.msra.mxu0 %v2157
    %2491 = vmatpush.bf16.msra.mxu0 %v2155
    %2492 = vmatpush.bf16.msra.mxu0 %v2153
    %2493 = vmatpush.bf16.msra.mxu0 %v2151
    %2494 = vmatpush.bf16.msra.mxu0 %v2149
    %2495 = vmatpush.bf16.msra.mxu0 %v2147
    %2496 = vmatpush.bf16.msra.mxu0 %v2145
    %2497 = vmatmul.bf16.gmra.mxu0 %v1416
    %v2498 = vpop.f32.mrf.mxu0
    %v2499 = vadd.f32 %v2476, %v2498
    %v2500 = vpop.f32.mrf.mxu0
    %v2501 = vadd.f32 %v2478, %v2500
    %2502 = vmatmul.bf16.gmra.mxu0 %v1425
    %v2503 = vpop.f32.mrf.mxu0
    %v2504 = vadd.f32 %v2481, %v2503
    %v2505 = vpop.f32.mrf.mxu0
    %v2506 = vadd.f32 %v2483, %v2505
    %2507 = vmatmul.bf16.gmra.mxu0 %v1434
    %v2508 = vpop.f32.mrf.mxu0
    %v2509 = vadd.f32 %v2486, %v2508
    %v2510 = vpop.f32.mrf.mxu0
    %2511 = vdwg.mxu0
    %2512 = vmatpush.bf16.msra.mxu0 %v2032
    %2513 = vmatpush.bf16.msra.mxu0 %v2030
    %2514 = vmatpush.bf16.msra.mxu0 %v2028
    %2515 = vmatpush.bf16.msra.mxu0 %v2026
    %2516 = vmatpush.bf16.msra.mxu0 %v2024
    %2517 = vmatpush.bf16.msra.mxu0 %v2022
    %2518 = vmatpush.bf16.msra.mxu0 %v2020
    %2519 = vmatpush.bf16.msra.mxu0 %v2018
    %2520 = vmatmul.bf16.gmra.mxu0 %v1408
    %v2521 = vpop.f32.mrf.mxu0
    %v2522 = vadd.f32 %v1582, %v2521
    %v2523 = vpop.f32.mrf.mxu0
    %v2524 = vadd.f32 %v1582, %v2523
    %2525 = vmatmul.bf16.gmra.mxu0 %v1417
    %v2526 = vpop.f32.mrf.mxu0
    %v2527 = vadd.f32 %v1582, %v2526
    %v2528 = vpop.f32.mrf.mxu0
    %v2529 = vadd.f32 %v1582, %v2528
    %2530 = vmatmul.bf16.gmra.mxu0 %v1426
    %v2531 = vpop.f32.mrf.mxu0
    %v2532 = vadd.f32 %v1582, %v2531
    %v2533 = vpop.f32.mrf.mxu0
    %2534 = vdwg.mxu0
    %2535 = vmatpush.bf16.msra.mxu0 %v2048
    %2536 = vmatpush.bf16.msra.mxu0 %v2046
    %2537 = vmatpush.bf16.msra.mxu0 %v2044
    %2538 = vmatpush.bf16.msra.mxu0 %v2042
    %2539 = vmatpush.bf16.msra.mxu0 %v2040
    %2540 = vmatpush.bf16.msra.mxu0 %v2038
    %2541 = vmatpush.bf16.msra.mxu0 %v2036
    %2542 = vmatpush.bf16.msra.mxu0 %v2034
    %2543 = vmatmul.bf16.gmra.mxu0 %v1409
    %v2544 = vpop.f32.mrf.mxu0
    %v2545 = vadd.f32 %v2522, %v2544
    %v2546 = vpop.f32.mrf.mxu0
    %v2547 = vadd.f32 %v2524, %v2546
    %2548 = vmatmul.bf16.gmra.mxu0 %v1418
    %v2549 = vpop.f32.mrf.mxu0
    %v2550 = vadd.f32 %v2527, %v2549
    %v2551 = vpop.f32.mrf.mxu0
    %v2552 = vadd.f32 %v2529, %v2551
    %2553 = vmatmul.bf16.gmra.mxu0 %v1427
    %v2554 = vpop.f32.mrf.mxu0
    %v2555 = vadd.f32 %v2532, %v2554
    %v2556 = vpop.f32.mrf.mxu0
    %2557 = vdwg.mxu0
    %2558 = vmatpush.bf16.msra.mxu0 %v2064
    %2559 = vmatpush.bf16.msra.mxu0 %v2062
    %2560 = vmatpush.bf16.msra.mxu0 %v2060
    %2561 = vmatpush.bf16.msra.mxu0 %v2058
    %2562 = vmatpush.bf16.msra.mxu0 %v2056
    %2563 = vmatpush.bf16.msra.mxu0 %v2054
    %2564 = vmatpush.bf16.msra.mxu0 %v2052
    %2565 = vmatpush.bf16.msra.mxu0 %v2050
    %2566 = vmatmul.bf16.gmra.mxu0 %v1410
    %v2567 = vpop.f32.mrf.mxu0
    %v2568 = vadd.f32 %v2545, %v2567
    %v2569 = vpop.f32.mrf.mxu0
    %v2570 = vadd.f32 %v2547, %v2569
    %2571 = vmatmul.bf16.gmra.mxu0 %v1419
    %v2572 = vpop.f32.mrf.mxu0
    %v2573 = vadd.f32 %v2550, %v2572
    %v2574 = vpop.f32.mrf.mxu0
    %v2575 = vadd.f32 %v2552, %v2574
    %2576 = vmatmul.bf16.gmra.mxu0 %v1428
    %v2577 = vpop.f32.mrf.mxu0
    %v2578 = vadd.f32 %v2555, %v2577
    %v2579 = vpop.f32.mrf.mxu0
    %2580 = vdwg.mxu0
    %2581 = vmatpush.bf16.msra.mxu0 %v2080
    %2582 = vmatpush.bf16.msra.mxu0 %v2078
    %2583 = vmatpush.bf16.msra.mxu0 %v2076
    %2584 = vmatpush.bf16.msra.mxu0 %v2074
    %2585 = vmatpush.bf16.msra.mxu0 %v2072
    %2586 = vmatpush.bf16.msra.mxu0 %v2070
    %2587 = vmatpush.bf16.msra.mxu0 %v2068
    %2588 = vmatpush.bf16.msra.mxu0 %v2066
    %2589 = vmatmul.bf16.gmra.mxu0 %v1411
    %v2590 = vpop.f32.mrf.mxu0
    %v2591 = vadd.f32 %v2568, %v2590
    %v2592 = vpop.f32.mrf.mxu0
    %v2593 = vadd.f32 %v2570, %v2592
    %2594 = vmatmul.bf16.gmra.mxu0 %v1420
    %v2595 = vpop.f32.mrf.mxu0
    %v2596 = vadd.f32 %v2573, %v2595
    %v2597 = vpop.f32.mrf.mxu0
    %v2598 = vadd.f32 %v2575, %v2597
    %2599 = vmatmul.bf16.gmra.mxu0 %v1429
    %v2600 = vpop.f32.mrf.mxu0
    %v2601 = vadd.f32 %v2578, %v2600
    %v2602 = vpop.f32.mrf.mxu0
    %2603 = vdwg.mxu0
    %2604 = vmatpush.bf16.msra.mxu0 %v2096
    %2605 = vmatpush.bf16.msra.mxu0 %v2094
    %2606 = vmatpush.bf16.msra.mxu0 %v2092
    %2607 = vmatpush.bf16.msra.mxu0 %v2090
    %2608 = vmatpush.bf16.msra.mxu0 %v2088
    %2609 = vmatpush.bf16.msra.mxu0 %v2086
    %2610 = vmatpush.bf16.msra.mxu0 %v2084
    %2611 = vmatpush.bf16.msra.mxu0 %v2082
    %2612 = vmatmul.bf16.gmra.mxu0 %v1412
    %v2613 = vpop.f32.mrf.mxu0
    %v2614 = vadd.f32 %v2591, %v2613
    %v2615 = vpop.f32.mrf.mxu0
    %v2616 = vadd.f32 %v2593, %v2615
    %2617 = vmatmul.bf16.gmra.mxu0 %v1421
    %v2618 = vpop.f32.mrf.mxu0
    %v2619 = vadd.f32 %v2596, %v2618
    %v2620 = vpop.f32.mrf.mxu0
    %v2621 = vadd.f32 %v2598, %v2620
    %2622 = vmatmul.bf16.gmra.mxu0 %v1430
    %v2623 = vpop.f32.mrf.mxu0
    %v2624 = vadd.f32 %v2601, %v2623
    %v2625 = vpop.f32.mrf.mxu0
    %2626 = vdwg.mxu0
    %2627 = vmatpush.bf16.msra.mxu0 %v2112
    %2628 = vmatpush.bf16.msra.mxu0 %v2110
    %2629 = vmatpush.bf16.msra.mxu0 %v2108
    %2630 = vmatpush.bf16.msra.mxu0 %v2106
    %2631 = vmatpush.bf16.msra.mxu0 %v2104
    %2632 = vmatpush.bf16.msra.mxu0 %v2102
    %2633 = vmatpush.bf16.msra.mxu0 %v2100
    %2634 = vmatpush.bf16.msra.mxu0 %v2098
    %2635 = vmatmul.bf16.gmra.mxu0 %v1413
    %v2636 = vpop.f32.mrf.mxu0
    %v2637 = vadd.f32 %v2614, %v2636
    %v2638 = vpop.f32.mrf.mxu0
    %v2639 = vadd.f32 %v2616, %v2638
    %2640 = vmatmul.bf16.gmra.mxu0 %v1422
    %v2641 = vpop.f32.mrf.mxu0
    %v2642 = vadd.f32 %v2619, %v2641
    %v2643 = vpop.f32.mrf.mxu0
    %v2644 = vadd.f32 %v2621, %v2643
    %2645 = vmatmul.bf16.gmra.mxu0 %v1431
    %v2646 = vpop.f32.mrf.mxu0
    %v2647 = vadd.f32 %v2624, %v2646
    %v2648 = vpop.f32.mrf.mxu0
    %2649 = vdwg.mxu0
    %2650 = vmatpush.bf16.msra.mxu0 %v2128
    %2651 = vmatpush.bf16.msra.mxu0 %v2126
    %2652 = vmatpush.bf16.msra.mxu0 %v2124
    %2653 = vmatpush.bf16.msra.mxu0 %v2122
    %2654 = vmatpush.bf16.msra.mxu0 %v2120
    %2655 = vmatpush.bf16.msra.mxu0 %v2118
    %2656 = vmatpush.bf16.msra.mxu0 %v2116
    %2657 = vmatpush.bf16.msra.mxu0 %v2114
    %2658 = vmatmul.bf16.gmra.mxu0 %v1414
    %v2659 = vpop.f32.mrf.mxu0
    %v2660 = vadd.f32 %v2637, %v2659
    %v2661 = vpop.f32.mrf.mxu0
    %v2662 = vadd.f32 %v2639, %v2661
    %2663 = vmatmul.bf16.gmra.mxu0 %v1423
    %v2664 = vpop.f32.mrf.mxu0
    %v2665 = vadd.f32 %v2642, %v2664
    %v2666 = vpop.f32.mrf.mxu0
    %v2667 = vadd.f32 %v2644, %v2666
    %2668 = vmatmul.bf16.gmra.mxu0 %v1432
    %v2669 = vpop.f32.mrf.mxu0
    %v2670 = vadd.f32 %v2647, %v2669
    %v2671 = vpop.f32.mrf.mxu0
    %2672 = vdwg.mxu0
    %2673 = vmatpush.bf16.msra.mxu0 %v2144
    %2674 = vmatpush.bf16.msra.mxu0 %v2142
    %2675 = vmatpush.bf16.msra.mxu0 %v2140
    %2676 = vmatpush.bf16.msra.mxu0 %v2138
    %2677 = vmatpush.bf16.msra.mxu0 %v2136
    %2678 = vmatpush.bf16.msra.mxu0 %v2134
    %2679 = vmatpush.bf16.msra.mxu0 %v2132
    %2680 = vmatpush.bf16.msra.mxu0 %v2130
    %2681 = vmatmul.bf16.gmra.mxu0 %v1415
    %v2682 = vpop.f32.mrf.mxu0
    %v2683 = vadd.f32 %v2660, %v2682
    %v2684 = vpop.f32.mrf.mxu0
    %v2685 = vadd.f32 %v2662, %v2684
    %2686 = vmatmul.bf16.gmra.mxu0 %v1424
    %v2687 = vpop.f32.mrf.mxu0
    %v2688 = vadd.f32 %v2665, %v2687
    %v2689 = vpop.f32.mrf.mxu0
    %v2690 = vadd.f32 %v2667, %v2689
    %2691 = vmatmul.bf16.gmra.mxu0 %v1433
    %v2692 = vpop.f32.mrf.mxu0
    %v2693 = vadd.f32 %v2670, %v2692
    %v2694 = vpop.f32.mrf.mxu0
    %2695 = vdwg.mxu0
    %2696 = vmatpush.bf16.msra.mxu0 %v2160
    %2697 = vmatpush.bf16.msra.mxu0 %v2158
    %2698 = vmatpush.bf16.msra.mxu0 %v2156
    %2699 = vmatpush.bf16.msra.mxu0 %v2154
    %2700 = vmatpush.bf16.msra.mxu0 %v2152
    %2701 = vmatpush.bf16.msra.mxu0 %v2150
    %2702 = vmatpush.bf16.msra.mxu0 %v2148
    %2703 = vmatpush.bf16.msra.mxu0 %v2146
    %2704 = vmatmul.bf16.gmra.mxu0 %v1416
    %v2705 = vpop.f32.mrf.mxu0
    %v2706 = vadd.f32 %v2683, %v2705
    %v2707 = vpop.f32.mrf.mxu0
    %v2708 = vadd.f32 %v2685, %v2707
    %2709 = vmatmul.bf16.gmra.mxu0 %v1425
    %v2710 = vpop.f32.mrf.mxu0
    %v2711 = vadd.f32 %v2688, %v2710
    %v2712 = vpop.f32.mrf.mxu0
    %v2713 = vadd.f32 %v2690, %v2712
    %2714 = vmatmul.bf16.gmra.mxu0 %v1434
    %v2715 = vpop.f32.mrf.mxu0
    %v2716 = vadd.f32 %v2693, %v2715
    %v2717 = vpop.f32.mrf.mxu0
    %2718 = vdwg.mxu0
    %v2719 = vmax.f32 %v2499, 0.0
    %v2720 = vmax.f32 %v2706, 0.0
    %v2721 = vmax.f32 %v2501, 0.0
    %v2722 = vmax.f32 %v2708, 0.0
    %v2723 = vmax.f32 %v2504, 0.0
    %v2724 = vmax.f32 %v2711, 0.0
    %v2725 = vmax.f32 %v2506, 0.0
    %v2726 = vmax.f32 %v2713, 0.0
    %v2727 = vmax.f32 %v2509, 0.0
    %v2728 = vmax.f32 %v2716, 0.0
    %2729 = vst [vmem:[#allocation4 + $0x10] sm:$0xff] %v2719
    %2730 = vst [vmem:[#allocation4 + $0x18] sm:$0xff] %v2720
    %2731 = vst [vmem:[#allocation4 + $0x20] sm:$0xff] %v2721
    %2732 = vst [vmem:[#allocation4 + $0x28] sm:$0xff] %v2722
    %2733 = vst [vmem:[#allocation4 + $0x30] sm:$0xff] %v2723
    %2734 = vst [vmem:[#allocation4 + $0x38] sm:$0xff] %v2724
    %2735 = vst [vmem:[#allocation4 + $0x40] sm:$0xff] %v2725
    %2736 = vst [vmem:[#allocation4 + $0x48] sm:$0xff] %v2726
    %2737 = vst [vmem:[#allocation4 + $0x50] sm:$0xff] %v2727
    %2738 = vst [vmem:[#allocation4 + $0x58] sm:$0xff] %v2728
    %v2739 = vld [vmem:[#allocation4] sm:$0xff]
    %v2740 = vld [vmem:[#allocation4 + $0x8] sm:$0xff]
    %v2741 = vld [vmem:[#allocation4 + $0x10] sm:$0xff]
    %v2742 = vld [vmem:[#allocation4 + $0x18] sm:$0xff]
    %v2743 = vld [vmem:[#allocation4 + $0x20] sm:$0xff]
    %v2744 = vld [vmem:[#allocation4 + $0x28] sm:$0xff]
    %2745 = vst [vmem:[#allocation2] sm:$0xff] %v2739
    %2746 = vst [vmem:[#allocation2 + $0x8] sm:$0xff] %v2740
    %2747 = vst [vmem:[#allocation2 + $0x10] sm:$0xff] %v2741
    %2748 = vst [vmem:[#allocation2 + $0x18] sm:$0xff] %v2742
    %2749 = vst [vmem:[#allocation2 + $0x20] sm:$0xff] %v2743
    %2750 = vst [vmem:[#allocation2 + $0x28] sm:$0xff] %v2744
    %v2751 = vld [vmem:[#allocation4 + $0x10] sm:$0xff]
    %v2752 = vld [vmem:[#allocation4 + $0x18] sm:$0xff]
    %v2753 = vld [vmem:[#allocation4 + $0x20] sm:$0xff]
    %v2754 = vld [vmem:[#allocation4 + $0x28] sm:$0xff]
    %v2755 = vld [vmem:[#allocation4 + $0x30] sm:$0xff]
    %v2756 = vld [vmem:[#allocation4 + $0x38] sm:$0xff]
    %2757 = vst [vmem:[#allocation2 + $0x48] sm:$0xff] %v2751
    %2758 = vst [vmem:[#allocation2 + $0x50] sm:$0xff] %v2752
    %2759 = vst [vmem:[#allocation2 + $0x58] sm:$0xff] %v2753
    %2760 = vst [vmem:[#allocation2 + $0x60] sm:$0xff] %v2754
    %2761 = vst [vmem:[#allocation2 + $0x68] sm:$0xff] %v2755
    %2762 = vst [vmem:[#allocation2 + $0x70] sm:$0xff] %v2756
    %v2763 = vld [vmem:[#allocation4 + $0x20] sm:$0xff]
    %v2764 = vld [vmem:[#allocation4 + $0x28] sm:$0xff]
    %v2765 = vld [vmem:[#allocation4 + $0x30] sm:$0xff]
    %v2766 = vld [vmem:[#allocation4 + $0x38] sm:$0xff]
    %v2767 = vld [vmem:[#allocation4 + $0x40] sm:$0xff]
    %v2768 = vld [vmem:[#allocation4 + $0x48] sm:$0xff]
    %2769 = vst [vmem:[#allocation2 + $0x90] sm:$0xff] %v2763
    %2770 = vst [vmem:[#allocation2 + $0x98] sm:$0xff] %v2764
    %2771 = vst [vmem:[#allocation2 + $0xa0] sm:$0xff] %v2765
    %2772 = vst [vmem:[#allocation2 + $0xa8] sm:$0xff] %v2766
    %2773 = vst [vmem:[#allocation2 + $0xb0] sm:$0xff] %v2767
    %2774 = vst [vmem:[#allocation2 + $0xb8] sm:$0xff] %v2768
    %v2775 = vld [vmem:[#allocation4 + $0x30] sm:$0xff]
    %v2776 = vld [vmem:[#allocation4 + $0x38] sm:$0xff]
    %v2777 = vld [vmem:[#allocation4 + $0x40] sm:$0xff]
    %v2778 = vld [vmem:[#allocation4 + $0x48] sm:$0xff]
    %v2779 = vld [vmem:[#allocation4 + $0x50] sm:$0xff]
    %v2780 = vld [vmem:[#allocation4 + $0x58] sm:$0xff]
    %2781 = vst [vmem:[#allocation2 + $0xd8] sm:$0xff] %v2775
    %2782 = vst [vmem:[#allocation2 + $0xe0] sm:$0xff] %v2776
    %2783 = vst [vmem:[#allocation2 + $0xe8] sm:$0xff] %v2777
    %2784 = vst [vmem:[#allocation2 + $0xf0] sm:$0xff] %v2778
    %2785 = vst [vmem:[#allocation2 + $0xf8] sm:$0xff] %v2779
    %2786 = vst [vmem:[#allocation2 + $0x100] sm:$0xff] %v2780
    %v2787 = vld [vmem:[#allocation4 + $0x40] sm:$0xff]
    %v2788 = vld [vmem:[#allocation4 + $0x48] sm:$0xff]
    %v2789 = vld [vmem:[#allocation4 + $0x50] sm:$0xff]
    %v2790 = vld [vmem:[#allocation4 + $0x58] sm:$0xff]
    %v2791 = vld [vmem:[#allocation4 + $0x60] sm:$0xff]
    %v2792 = vld [vmem:[#allocation4 + $0x68] sm:$0xff]
    %2793 = vst [vmem:[#allocation2 + $0x120] sm:$0xff] %v2787
    %2794 = vst [vmem:[#allocation2 + $0x128] sm:$0xff] %v2788
    %2795 = vst [vmem:[#allocation2 + $0x130] sm:$0xff] %v2789
    %2796 = vst [vmem:[#allocation2 + $0x138] sm:$0xff] %v2790
    %2797 = vst [vmem:[#allocation2 + $0x140] sm:$0xff] %v2791
    %2798 = vst [vmem:[#allocation2 + $0x148] sm:$0xff] %v2792
    %v2799 = vld [vmem:[#allocation2] sm:$0xff]
    %v2800 = vld [vmem:[#allocation2 + $0x8] sm:$0xff]
    %v2801 = vld [vmem:[#allocation2 + $0x10] sm:$0xff]
    %v2802 = vld [vmem:[#allocation2 + $0x18] sm:$0xff]
    %v2803 = vld [vmem:[#allocation2 + $0x20] sm:$0xff]
    %v2804 = vld [vmem:[#allocation2 + $0x28] sm:$0xff]
    %v2805 = vld [vmem:[#allocation2 + $0x48] sm:$0xff]
    %v2806 = vld [vmem:[#allocation2 + $0x50] sm:$0xff]
    %v2807 = vld [vmem:[#allocation2 + $0x58] sm:$0xff]
    %v2808 = vld [vmem:[#allocation2 + $0x60] sm:$0xff]
    %v2809 = vld [vmem:[#allocation2 + $0x68] sm:$0xff]
    %v2810 = vld [vmem:[#allocation2 + $0x70] sm:$0xff]
    %v2811 = vld [vmem:[#allocation2 + $0x90] sm:$0xff]
    %v2812 = vld [vmem:[#allocation2 + $0x98] sm:$0xff]
    %v2813 = vld [vmem:[#allocation2 + $0xa0] sm:$0xff]
    %v2814 = vld [vmem:[#allocation2 + $0xa8] sm:$0xff]
    %v2815 = vld [vmem:[#allocation2 + $0xb0] sm:$0xff]
    %v2816 = vld [vmem:[#allocation2 + $0xb8] sm:$0xff]
    %v2817 = vld [vmem:[#allocation2 + $0xd8] sm:$0xff]
    %v2818 = vld [vmem:[#allocation2 + $0xe0] sm:$0xff]
    %v2819 = vld [vmem:[#allocation2 + $0xe8] sm:$0xff]
    %v2820 = vld [vmem:[#allocation2 + $0xf0] sm:$0xff]
    %v2821 = vld [vmem:[#allocation2 + $0xf8] sm:$0xff]
    %v2822 = vld [vmem:[#allocation2 + $0x100] sm:$0xff]
    %v2823 = vld [vmem:[#allocation2 + $0x120] sm:$0xff]
    %v2824 = vld [vmem:[#allocation2 + $0x128] sm:$0xff]
    %v2825 = vld [vmem:[#allocation2 + $0x130] sm:$0xff]
    %v2826 = vld [vmem:[#allocation2 + $0x138] sm:$0xff]
    %v2827 = vld [vmem:[#allocation2 + $0x140] sm:$0xff]
    %v2828 = vld [vmem:[#allocation2 + $0x148] sm:$0xff]
    %v2829 = vpack.c.bf16 %v2805, %v2799
    %v2830 = vpack.c.bf16 %v2806, %v2800
    %v2831 = vpack.c.bf16 %v2807, %v2801
    %v2832 = vpack.c.bf16 %v2808, %v2802
    %v2833 = vpack.c.bf16 %v2809, %v2803
    %v2834 = vpack.c.bf16 %v2810, %v2804
    %v2835 = vpack.c.bf16 %v2817, %v2811
    %v2836 = vpack.c.bf16 %v2818, %v2812
    %v2837 = vpack.c.bf16 %v2819, %v2813
    %v2838 = vpack.c.bf16 %v2820, %v2814
    %v2839 = vpack.c.bf16 %v2821, %v2815
    %v2840 = vpack.c.bf16 %v2822, %v2816
    %v2841 = vpack.c.bf16 %v2823, %v2823
    %v2842 = vpack.c.bf16 %v2824, %v2824
    %v2843 = vpack.c.bf16 %v2825, %v2825
    %v2844 = vpack.c.bf16 %v2826, %v2826
    %v2845 = vpack.c.bf16 %v2827, %v2827
    %v2846 = vpack.c.bf16 %v2828, %v2828
    %v2847 = vld [vmem:[#allocation10] sm:$0xff]
    %v2848 = vld [vmem:[#allocation10 + $0x8] sm:$0xf]
    %v2849 = vld [vmem:[#allocation10 + $0xc] sm:$0xff]
    %v2850 = vld [vmem:[#allocation10 + $0x14] sm:$0xf]
    %v2851 = vld [vmem:[#allocation10 + $0x18] sm:$0xff]
    %v2852 = vld [vmem:[#allocation10 + $0x20] sm:$0xf]
    %v2853 = vld [vmem:[#allocation10 + $0x24] sm:$0xff]
    %v2854 = vld [vmem:[#allocation10 + $0x2c] sm:$0xf]
    %v2855 = vld [vmem:[#allocation10 + $0x30] sm:$0xff]
    %v2856 = vld [vmem:[#allocation10 + $0x38] sm:$0xf]
    %v2857 = vld [vmem:[#allocation10 + $0x3c] sm:$0xff]
    %v2858 = vld [vmem:[#allocation10 + $0x44] sm:$0xf]
    %v2859 = vld [vmem:[#allocation10 + $0x48] sm:$0xff]
    %v2860 = vld [vmem:[#allocation10 + $0x50] sm:$0xf]
    %v2861 = vld [vmem:[#allocation10 + $0x54] sm:$0xff]
    %v2862 = vld [vmem:[#allocation10 + $0x5c] sm:$0xf]
    %v2863 = vld [vmem:[#allocation10 + $0x60] sm:$0xff]
    %v2864 = vld [vmem:[#allocation10 + $0x68] sm:$0xf]
    %v2865 = vld [vmem:[#allocation10 + $0x6c] sm:$0xff]
    %v2866 = vld [vmem:[#allocation10 + $0x74] sm:$0xf]
    %v2867 = vld [vmem:[#allocation10 + $0x78] sm:$0xff]
    %v2868 = vld [vmem:[#allocation10 + $0x80] sm:$0xf]
    %v2869 = vld [vmem:[#allocation10 + $0x84] sm:$0xff]
    %v2870 = vld [vmem:[#allocation10 + $0x8c] sm:$0xf]
    %v2871 = vld [vmem:[#allocation10 + $0x90] sm:$0xff]
    %v2872 = vld [vmem:[#allocation10 + $0x98] sm:$0xf]
    %v2873 = vld [vmem:[#allocation10 + $0x9c] sm:$0xff]
    %v2874 = vld [vmem:[#allocation10 + $0xa4] sm:$0xf]
    %v2875 = vld [vmem:[#allocation10 + $0xa8] sm:$0xff]
    %v2876 = vld [vmem:[#allocation10 + $0xb0] sm:$0xf]
    %v2877 = vld [vmem:[#allocation10 + $0xb4] sm:$0xff]
    %v2878 = vld [vmem:[#allocation10 + $0xbc] sm:$0xf]
    %v2879 = vld [vmem:[#allocation10 + $0xc0] sm:$0xff]
    %v2880 = vld [vmem:[#allocation10 + $0xc8] sm:$0xf]
    %v2881 = vld [vmem:[#allocation10 + $0xcc] sm:$0xff]
    %v2882 = vld [vmem:[#allocation10 + $0xd4] sm:$0xf]
    %v2883 = vld [vmem:[#allocation10 + $0xd8] sm:$0xff]
    %v2884 = vld [vmem:[#allocation10 + $0xe0] sm:$0xf]
    %v2885 = vld [vmem:[#allocation10 + $0xe4] sm:$0xff]
    %v2886 = vld [vmem:[#allocation10 + $0xec] sm:$0xf]
    %v2887 = vld [vmem:[#allocation10 + $0xf0] sm:$0xff]
    %v2888 = vld [vmem:[#allocation10 + $0xf8] sm:$0xf]
    %v2889 = vld [vmem:[#allocation10 + $0xfc] sm:$0xff]
    %v2890 = vld [vmem:[#allocation10 + $0x104] sm:$0xf]
    %v2891 = vld [vmem:[#allocation10 + $0x108] sm:$0xff]
    %v2892 = vld [vmem:[#allocation10 + $0x110] sm:$0xf]
    %v2893 = vld [vmem:[#allocation10 + $0x114] sm:$0xff]
    %v2894 = vld [vmem:[#allocation10 + $0x11c] sm:$0xf]
    %v2895 = vld [vmem:[#allocation10 + $0x120] sm:$0xff]
    %v2896 = vld [vmem:[#allocation10 + $0x128] sm:$0xf]
    %v2897 = vld [vmem:[#allocation10 + $0x12c] sm:$0xff]
    %v2898 = vld [vmem:[#allocation10 + $0x134] sm:$0xf]
    %v2899 = vld [vmem:[#allocation10 + $0x138] sm:$0xff]
    %v2900 = vld [vmem:[#allocation10 + $0x140] sm:$0xf]
    %v2901 = vld [vmem:[#allocation10 + $0x144] sm:$0xff]
    %v2902 = vld [vmem:[#allocation10 + $0x14c] sm:$0xf]
    %v2903 = vld [vmem:[#allocation10 + $0x150] sm:$0xff]
    %v2904 = vld [vmem:[#allocation10 + $0x158] sm:$0xf]
    %v2905 = vld [vmem:[#allocation10 + $0x15c] sm:$0xff]
    %v2906 = vld [vmem:[#allocation10 + $0x164] sm:$0xf]
    %v2907 = vld [vmem:[#allocation10 + $0x168] sm:$0xff]
    %v2908 = vld [vmem:[#allocation10 + $0x170] sm:$0xf]
    %v2909 = vld [vmem:[#allocation10 + $0x174] sm:$0xff]
    %v2910 = vld [vmem:[#allocation10 + $0x17c] sm:$0xf]
    %v2911 = vld [vmem:[#allocation10 + $0x180] sm:$0xff]
    %v2912 = vld [vmem:[#allocation10 + $0x188] sm:$0xf]
    %v2913 = vld [vmem:[#allocation10 + $0x18c] sm:$0xff]
    %v2914 = vld [vmem:[#allocation10 + $0x194] sm:$0xf]
    %v2915 = vld [vmem:[#allocation10 + $0x198] sm:$0xff]
    %v2916 = vld [vmem:[#allocation10 + $0x1a0] sm:$0xf]
    %v2917 = vld [vmem:[#allocation10 + $0x1a4] sm:$0xff]
    %v2918 = vld [vmem:[#allocation10 + $0x1ac] sm:$0xf]
    %v2919 = vld [vmem:[#allocation10 + $0x1b0] sm:$0xff]
    %v2920 = vld [vmem:[#allocation10 + $0x1b8] sm:$0xf]
    %v2921 = vld [vmem:[#allocation10 + $0x1bc] sm:$0xff]
    %v2922 = vld [vmem:[#allocation10 + $0x1c4] sm:$0xf]
    %v2923 = vld [vmem:[#allocation10 + $0x1c8] sm:$0xff]
    %v2924 = vld [vmem:[#allocation10 + $0x1d0] sm:$0xf]
    %v2925 = vld [vmem:[#allocation10 + $0x1d4] sm:$0xff]
    %v2926 = vld [vmem:[#allocation10 + $0x1dc] sm:$0xf]
    %v2927 = vld [vmem:[#allocation10 + $0x1e0] sm:$0xff]
    %v2928 = vld [vmem:[#allocation10 + $0x1e8] sm:$0xf]
    %v2929 = vld [vmem:[#allocation10 + $0x1ec] sm:$0xff]
    %v2930 = vld [vmem:[#allocation10 + $0x1f4] sm:$0xf]
    %v2931 = vld [vmem:[#allocation10 + $0x1f8] sm:$0xff]
    %v2932 = vld [vmem:[#allocation10 + $0x200] sm:$0xf]
    %v2933 = vld [vmem:[#allocation10 + $0x204] sm:$0xff]
    %v2934 = vld [vmem:[#allocation10 + $0x20c] sm:$0xf]
    %v2935 = vld [vmem:[#allocation10 + $0x210] sm:$0xff]
    %v2936 = vld [vmem:[#allocation10 + $0x218] sm:$0xf]
    %v2937 = vld [vmem:[#allocation10 + $0x21c] sm:$0xff]
    %v2938 = vld [vmem:[#allocation10 + $0x224] sm:$0xf]
    %v2939 = vld [vmem:[#allocation10 + $0x228] sm:$0xff]
    %v2940 = vld [vmem:[#allocation10 + $0x230] sm:$0xf]
    %v2941 = vld [vmem:[#allocation10 + $0x234] sm:$0xff]
    %v2942 = vld [vmem:[#allocation10 + $0x23c] sm:$0xf]
    %v2943 = vld [vmem:[#allocation10 + $0x240] sm:$0xff]
    %v2944 = vld [vmem:[#allocation10 + $0x248] sm:$0xf]
    %v2945 = vld [vmem:[#allocation10 + $0x24c] sm:$0xff]
    %v2946 = vld [vmem:[#allocation10 + $0x254] sm:$0xf]
    %v2947 = vld [vmem:[#allocation10 + $0x258] sm:$0xff]
    %v2948 = vld [vmem:[#allocation10 + $0x260] sm:$0xf]
    %v2949 = vld [vmem:[#allocation10 + $0x264] sm:$0xff]
    %v2950 = vld [vmem:[#allocation10 + $0x26c] sm:$0xf]
    %v2951 = vld [vmem:[#allocation10 + $0x270] sm:$0xff]
    %v2952 = vld [vmem:[#allocation10 + $0x278] sm:$0xf]
    %v2953 = vld [vmem:[#allocation10 + $0x27c] sm:$0xff]
    %v2954 = vld [vmem:[#allocation10 + $0x284] sm:$0xf]
    %v2955 = vld [vmem:[#allocation10 + $0x288] sm:$0xff]
    %v2956 = vld [vmem:[#allocation10 + $0x290] sm:$0xf]
    %v2957 = vld [vmem:[#allocation10 + $0x294] sm:$0xff]
    %v2958 = vld [vmem:[#allocation10 + $0x29c] sm:$0xf]
    %v2959 = vld [vmem:[#allocation10 + $0x2a0] sm:$0xff]
    %v2960 = vld [vmem:[#allocation10 + $0x2a8] sm:$0xf]
    %v2961 = vld [vmem:[#allocation10 + $0x2ac] sm:$0xff]
    %v2962 = vld [vmem:[#allocation10 + $0x2b4] sm:$0xf]
    %v2963 = vld [vmem:[#allocation10 + $0x2b8] sm:$0xff]
    %v2964 = vld [vmem:[#allocation10 + $0x2c0] sm:$0xf]
    %v2965 = vld [vmem:[#allocation10 + $0x2c4] sm:$0xff]
    %v2966 = vld [vmem:[#allocation10 + $0x2cc] sm:$0xf]
    %v2967 = vld [vmem:[#allocation10 + $0x2d0] sm:$0xff]
    %v2968 = vld [vmem:[#allocation10 + $0x2d8] sm:$0xf]
    %v2969 = vld [vmem:[#allocation10 + $0x2dc] sm:$0xff]
    %v2970 = vld [vmem:[#allocation10 + $0x2e4] sm:$0xf]
    %v2971 = vld [vmem:[#allocation10 + $0x2e8] sm:$0xff]
    %v2972 = vld [vmem:[#allocation10 + $0x2f0] sm:$0xf]
    %v2973 = vld [vmem:[#allocation10 + $0x2f4] sm:$0xff]
    %v2974 = vld [vmem:[#allocation10 + $0x2fc] sm:$0xf]
    %v2975 = vld [vmem:[#allocation10 + $0x300] sm:$0xff]
    %v2976 = vld [vmem:[#allocation10 + $0x308] sm:$0xf]
    %v2977 = vld [vmem:[#allocation10 + $0x30c] sm:$0xff]
    %v2978 = vld [vmem:[#allocation10 + $0x314] sm:$0xf]
    %v2979 = vld [vmem:[#allocation10 + $0x318] sm:$0xff]
    %v2980 = vld [vmem:[#allocation10 + $0x320] sm:$0xf]
    %v2981 = vld [vmem:[#allocation10 + $0x324] sm:$0xff]
    %v2982 = vld [vmem:[#allocation10 + $0x32c] sm:$0xf]
    %v2983 = vld [vmem:[#allocation10 + $0x330] sm:$0xff]
    %v2984 = vld [vmem:[#allocation10 + $0x338] sm:$0xf]
    %v2985 = vld [vmem:[#allocation10 + $0x33c] sm:$0xff]
    %v2986 = vld [vmem:[#allocation10 + $0x344] sm:$0xf]
    %v2987 = vld [vmem:[#allocation10 + $0x348] sm:$0xff]
    %v2988 = vld [vmem:[#allocation10 + $0x350] sm:$0xf]
    %v2989 = vld [vmem:[#allocation10 + $0x354] sm:$0xff]
    %v2990 = vld [vmem:[#allocation10 + $0x35c] sm:$0xf]
    %v2991 = vld [vmem:[#allocation10 + $0x360] sm:$0xff]
    %v2992 = vld [vmem:[#allocation10 + $0x368] sm:$0xf]
    %v2993 = vld [vmem:[#allocation10 + $0x36c] sm:$0xff]
    %v2994 = vld [vmem:[#allocation10 + $0x374] sm:$0xf]
    %v2995 = vld [vmem:[#allocation10 + $0x378] sm:$0xff]
    %v2996 = vld [vmem:[#allocation10 + $0x380] sm:$0xf]
    %v2997 = vld [vmem:[#allocation10 + $0x384] sm:$0xff]
    %v2998 = vld [vmem:[#allocation10 + $0x38c] sm:$0xf]
    %v2999 = vld [vmem:[#allocation10 + $0x390] sm:$0xff]
    %v3000 = vld [vmem:[#allocation10 + $0x398] sm:$0xf]
    %v3001 = vld [vmem:[#allocation10 + $0x39c] sm:$0xff]
    %v3002 = vld [vmem:[#allocation10 + $0x3a4] sm:$0xf]
    %v3003 = vld [vmem:[#allocation10 + $0x3a8] sm:$0xff]
    %v3004 = vld [vmem:[#allocation10 + $0x3b0] sm:$0xf]
    %v3005 = vld [vmem:[#allocation10 + $0x3b4] sm:$0xff]
    %v3006 = vld [vmem:[#allocation10 + $0x3bc] sm:$0xf]
    %v3007 = vld [vmem:[#allocation10 + $0x3c0] sm:$0xff]
    %v3008 = vld [vmem:[#allocation10 + $0x3c8] sm:$0xf]
    %v3009 = vld [vmem:[#allocation10 + $0x3cc] sm:$0xff]
    %v3010 = vld [vmem:[#allocation10 + $0x3d4] sm:$0xf]
    %v3011 = vld [vmem:[#allocation10 + $0x3d8] sm:$0xff]
    %v3012 = vld [vmem:[#allocation10 + $0x3e0] sm:$0xf]
    %v3013 = vld [vmem:[#allocation10 + $0x3e4] sm:$0xff]
    %v3014 = vld [vmem:[#allocation10 + $0x3ec] sm:$0xf]
    %v3015 = vld [vmem:[#allocation10 + $0x3f0] sm:$0xff]
    %v3016 = vld [vmem:[#allocation10 + $0x3f8] sm:$0xf]
    %v3017 = vld [vmem:[#allocation10 + $0x3fc] sm:$0xff]
    %v3018 = vld [vmem:[#allocation10 + $0x404] sm:$0xf]
    %v3019 = vld [vmem:[#allocation10 + $0x408] sm:$0xff]
    %v3020 = vld [vmem:[#allocation10 + $0x410] sm:$0xf]
    %v3021 = vld [vmem:[#allocation10 + $0x414] sm:$0xff]
    %v3022 = vld [vmem:[#allocation10 + $0x41c] sm:$0xf]
    %v3023 = vld [vmem:[#allocation10 + $0x420] sm:$0xff]
    %v3024 = vld [vmem:[#allocation10 + $0x428] sm:$0xf]
    %v3025 = vld [vmem:[#allocation10 + $0x42c] sm:$0xff]
    %v3026 = vld [vmem:[#allocation10 + $0x434] sm:$0xf]
    %v3027 = vld [vmem:[#allocation10 + $0x438] sm:$0xff]
    %v3028 = vld [vmem:[#allocation10 + $0x440] sm:$0xf]
    %v3029 = vld [vmem:[#allocation10 + $0x444] sm:$0xff]
    %v3030 = vld [vmem:[#allocation10 + $0x44c] sm:$0xf]
    %v3031 = vld [vmem:[#allocation10 + $0x450] sm:$0xff]
    %v3032 = vld [vmem:[#allocation10 + $0x458] sm:$0xf]
    %v3033 = vld [vmem:[#allocation10 + $0x45c] sm:$0xff]
    %v3034 = vld [vmem:[#allocation10 + $0x464] sm:$0xf]
    %v3035 = vld [vmem:[#allocation10 + $0x468] sm:$0xff]
    %v3036 = vld [vmem:[#allocation10 + $0x470] sm:$0xf]
    %v3037 = vld [vmem:[#allocation10 + $0x474] sm:$0xff]
    %v3038 = vld [vmem:[#allocation10 + $0x47c] sm:$0xf]
    %v3039 = vld [vmem:[%s6] sm:$0x7]
    %v3041 = vperm.slane %v3039, 0
    %v3042 = vperm.slane %v3039, 1
    %v3043 = vperm.slane %v3039, 2
    %v3239 = vunpack.c.l.b16 %v2847
    %v3240 = vunpack.c.h.b16 %v2847
    %v3241 = vunpack.c.l.b16 %v2848
    %v3242 = vunpack.c.l.b16 %v2849
    %v3243 = vunpack.c.h.b16 %v2849
    %v3244 = vunpack.c.l.b16 %v2850
    %v3245 = vunpack.c.l.b16 %v2851
    %v3246 = vunpack.c.h.b16 %v2851
    %v3247 = vunpack.c.l.b16 %v2852
    %v3248 = vunpack.c.l.b16 %v2853
    %v3249 = vunpack.c.h.b16 %v2853
    %v3250 = vunpack.c.l.b16 %v2854
    %v3251 = vunpack.c.l.b16 %v2855
    %v3252 = vunpack.c.h.b16 %v2855
    %v3253 = vunpack.c.l.b16 %v2856
    %v3254 = vunpack.c.l.b16 %v2857
    %v3255 = vunpack.c.h.b16 %v2857
    %v3256 = vunpack.c.l.b16 %v2858
    %v3257 = vunpack.c.l.b16 %v2859
    %v3258 = vunpack.c.h.b16 %v2859
    %v3259 = vunpack.c.l.b16 %v2860
    %v3260 = vunpack.c.l.b16 %v2861
    %v3261 = vunpack.c.h.b16 %v2861
    %v3262 = vunpack.c.l.b16 %v2862
    %v3263 = vunpack.c.l.b16 %v2863
    %v3264 = vunpack.c.h.b16 %v2863
    %v3265 = vunpack.c.l.b16 %v2864
    %v3266 = vunpack.c.l.b16 %v2865
    %v3267 = vunpack.c.h.b16 %v2865
    %v3268 = vunpack.c.l.b16 %v2866
    %v3269 = vunpack.c.l.b16 %v2867
    %v3270 = vunpack.c.h.b16 %v2867
    %v3271 = vunpack.c.l.b16 %v2868
    %v3272 = vunpack.c.l.b16 %v2869
    %v3273 = vunpack.c.h.b16 %v2869
    %v3274 = vunpack.c.l.b16 %v2870
    %v3275 = vunpack.c.l.b16 %v2871
    %v3276 = vunpack.c.h.b16 %v2871
    %v3277 = vunpack.c.l.b16 %v2872
    %v3278 = vunpack.c.l.b16 %v2873
    %v3279 = vunpack.c.h.b16 %v2873
    %v3280 = vunpack.c.l.b16 %v2874
    %v3281 = vunpack.c.l.b16 %v2875
    %v3282 = vunpack.c.h.b16 %v2875
    %v3283 = vunpack.c.l.b16 %v2876
    %v3284 = vunpack.c.l.b16 %v2877
    %v3285 = vunpack.c.h.b16 %v2877
    %v3286 = vunpack.c.l.b16 %v2878
    %v3287 = vunpack.c.l.b16 %v2879
    %v3288 = vunpack.c.h.b16 %v2879
    %v3289 = vunpack.c.l.b16 %v2880
    %v3290 = vunpack.c.l.b16 %v2881
    %v3291 = vunpack.c.h.b16 %v2881
    %v3292 = vunpack.c.l.b16 %v2882
    %v3293 = vunpack.c.l.b16 %v2883
    %v3294 = vunpack.c.h.b16 %v2883
    %v3295 = vunpack.c.l.b16 %v2884
    %v3296 = vunpack.c.l.b16 %v2885
    %v3297 = vunpack.c.h.b16 %v2885
    %v3298 = vunpack.c.l.b16 %v2886
    %v3299 = vunpack.c.l.b16 %v2887
    %v3300 = vunpack.c.h.b16 %v2887
    %v3301 = vunpack.c.l.b16 %v2888
    %v3302 = vunpack.c.l.b16 %v2889
    %v3303 = vunpack.c.h.b16 %v2889
    %v3304 = vunpack.c.l.b16 %v2890
    %v3305 = vunpack.c.l.b16 %v2891
    %v3306 = vunpack.c.h.b16 %v2891
    %v3307 = vunpack.c.l.b16 %v2892
    %v3308 = vunpack.c.l.b16 %v2893
    %v3309 = vunpack.c.h.b16 %v2893
    %v3310 = vunpack.c.l.b16 %v2894
    %v3311 = vunpack.c.l.b16 %v2895
    %v3312 = vunpack.c.h.b16 %v2895
    %v3313 = vunpack.c.l.b16 %v2896
    %v3314 = vunpack.c.l.b16 %v2897
    %v3315 = vunpack.c.h.b16 %v2897
    %v3316 = vunpack.c.l.b16 %v2898
    %v3317 = vunpack.c.l.b16 %v2899
    %v3318 = vunpack.c.h.b16 %v2899
    %v3319 = vunpack.c.l.b16 %v2900
    %v3320 = vunpack.c.l.b16 %v2901
    %v3321 = vunpack.c.h.b16 %v2901
    %v3322 = vunpack.c.l.b16 %v2902
    %v3323 = vunpack.c.l.b16 %v2903
    %v3324 = vunpack.c.h.b16 %v2903
    %v3325 = vunpack.c.l.b16 %v2904
    %v3326 = vunpack.c.l.b16 %v2905
    %v3327 = vunpack.c.h.b16 %v2905
    %v3328 = vunpack.c.l.b16 %v2906
    %v3329 = vunpack.c.l.b16 %v2907
    %v3330 = vunpack.c.h.b16 %v2907
    %v3331 = vunpack.c.l.b16 %v2908
    %v3332 = vunpack.c.l.b16 %v2909
    %v3333 = vunpack.c.h.b16 %v2909
    %v3334 = vunpack.c.l.b16 %v2910
    %v3335 = vunpack.c.l.b16 %v2911
    %v3336 = vunpack.c.h.b16 %v2911
    %v3337 = vunpack.c.l.b16 %v2912
    %v3338 = vunpack.c.l.b16 %v2913
    %v3339 = vunpack.c.h.b16 %v2913
    %v3340 = vunpack.c.l.b16 %v2914
    %v3341 = vunpack.c.l.b16 %v2915
    %v3342 = vunpack.c.h.b16 %v2915
    %v3343 = vunpack.c.l.b16 %v2916
    %v3344 = vunpack.c.l.b16 %v2917
    %v3345 = vunpack.c.h.b16 %v2917
    %v3346 = vunpack.c.l.b16 %v2918
    %v3347 = vunpack.c.l.b16 %v2919
    %v3348 = vunpack.c.h.b16 %v2919
    %v3349 = vunpack.c.l.b16 %v2920
    %v3350 = vunpack.c.l.b16 %v2921
    %v3351 = vunpack.c.h.b16 %v2921
    %v3352 = vunpack.c.l.b16 %v2922
    %v3353 = vunpack.c.l.b16 %v2923
    %v3354 = vunpack.c.h.b16 %v2923
    %v3355 = vunpack.c.l.b16 %v2924
    %v3356 = vunpack.c.l.b16 %v2925
    %v3357 = vunpack.c.h.b16 %v2925
    %v3358 = vunpack.c.l.b16 %v2926
    %v3359 = vunpack.c.l.b16 %v2927
    %v3360 = vunpack.c.h.b16 %v2927
    %v3361 = vunpack.c.l.b16 %v2928
    %v3362 = vunpack.c.l.b16 %v2929
    %v3363 = vunpack.c.h.b16 %v2929
    %v3364 = vunpack.c.l.b16 %v2930
    %v3365 = vunpack.c.l.b16 %v2931
    %v3366 = vunpack.c.h.b16 %v2931
    %v3367 = vunpack.c.l.b16 %v2932
    %v3368 = vunpack.c.l.b16 %v2933
    %v3369 = vunpack.c.h.b16 %v2933
    %v3370 = vunpack.c.l.b16 %v2934
    %v3371 = vunpack.c.l.b16 %v2935
    %v3372 = vunpack.c.h.b16 %v2935
    %v3373 = vunpack.c.l.b16 %v2936
    %v3374 = vunpack.c.l.b16 %v2937
    %v3375 = vunpack.c.h.b16 %v2937
    %v3376 = vunpack.c.l.b16 %v2938
    %v3377 = vunpack.c.l.b16 %v2939
    %v3378 = vunpack.c.h.b16 %v2939
    %v3379 = vunpack.c.l.b16 %v2940
    %v3380 = vunpack.c.l.b16 %v2941
    %v3381 = vunpack.c.h.b16 %v2941
    %v3382 = vunpack.c.l.b16 %v2942
    %v3383 = vunpack.c.l.b16 %v2943
    %v3384 = vunpack.c.h.b16 %v2943
    %v3385 = vunpack.c.l.b16 %v2944
    %v3386 = vunpack.c.l.b16 %v2945
    %v3387 = vunpack.c.h.b16 %v2945
    %v3388 = vunpack.c.l.b16 %v2946
    %v3389 = vunpack.c.l.b16 %v2947
    %v3390 = vunpack.c.h.b16 %v2947
    %v3391 = vunpack.c.l.b16 %v2948
    %v3392 = vunpack.c.l.b16 %v2949
    %v3393 = vunpack.c.h.b16 %v2949
    %v3394 = vunpack.c.l.b16 %v2950
    %v3395 = vunpack.c.l.b16 %v2951
    %v3396 = vunpack.c.h.b16 %v2951
    %v3397 = vunpack.c.l.b16 %v2952
    %v3398 = vunpack.c.l.b16 %v2953
    %v3399 = vunpack.c.h.b16 %v2953
    %v3400 = vunpack.c.l.b16 %v2954
    %v3401 = vunpack.c.l.b16 %v2955
    %v3402 = vunpack.c.h.b16 %v2955
    %v3403 = vunpack.c.l.b16 %v2956
    %v3404 = vunpack.c.l.b16 %v2957
    %v3405 = vunpack.c.h.b16 %v2957
    %v3406 = vunpack.c.l.b16 %v2958
    %v3407 = vunpack.c.l.b16 %v2959
    %v3408 = vunpack.c.h.b16 %v2959
    %v3409 = vunpack.c.l.b16 %v2960
    %v3410 = vunpack.c.l.b16 %v2961
    %v3411 = vunpack.c.h.b16 %v2961
    %v3412 = vunpack.c.l.b16 %v2962
    %v3413 = vunpack.c.l.b16 %v2963
    %v3414 = vunpack.c.h.b16 %v2963
    %v3415 = vunpack.c.l.b16 %v2964
    %v3416 = vunpack.c.l.b16 %v2965
    %v3417 = vunpack.c.h.b16 %v2965
    %v3418 = vunpack.c.l.b16 %v2966
    %v3419 = vunpack.c.l.b16 %v2967
    %v3420 = vunpack.c.h.b16 %v2967
    %v3421 = vunpack.c.l.b16 %v2968
    %v3422 = vunpack.c.l.b16 %v2969
    %v3423 = vunpack.c.h.b16 %v2969
    %v3424 = vunpack.c.l.b16 %v2970
    %v3425 = vunpack.c.l.b16 %v2971
    %v3426 = vunpack.c.h.b16 %v2971
    %v3427 = vunpack.c.l.b16 %v2972
    %v3428 = vunpack.c.l.b16 %v2973
    %v3429 = vunpack.c.h.b16 %v2973
    %v3430 = vunpack.c.l.b16 %v2974
    %v3431 = vunpack.c.l.b16 %v2975
    %v3432 = vunpack.c.h.b16 %v2975
    %v3433 = vunpack.c.l.b16 %v2976
    %v3434 = vunpack.c.l.b16 %v2977
    %v3435 = vunpack.c.h.b16 %v2977
    %v3436 = vunpack.c.l.b16 %v2978
    %v3437 = vunpack.c.l.b16 %v2979
    %v3438 = vunpack.c.h.b16 %v2979
    %v3439 = vunpack.c.l.b16 %v2980
    %v3440 = vunpack.c.l.b16 %v2981
    %v3441 = vunpack.c.h.b16 %v2981
    %v3442 = vunpack.c.l.b16 %v2982
    %v3443 = vunpack.c.l.b16 %v2983
    %v3444 = vunpack.c.h.b16 %v2983
    %v3445 = vunpack.c.l.b16 %v2984
    %v3446 = vunpack.c.l.b16 %v2985
    %v3447 = vunpack.c.h.b16 %v2985
    %v3448 = vunpack.c.l.b16 %v2986
    %v3449 = vunpack.c.l.b16 %v2987
    %v3450 = vunpack.c.h.b16 %v2987
    %v3451 = vunpack.c.l.b16 %v2988
    %v3452 = vunpack.c.l.b16 %v2989
    %v3453 = vunpack.c.h.b16 %v2989
    %v3454 = vunpack.c.l.b16 %v2990
    %v3455 = vunpack.c.l.b16 %v2991
    %v3456 = vunpack.c.h.b16 %v2991
    %v3457 = vunpack.c.l.b16 %v2992
    %v3458 = vunpack.c.l.b16 %v2993
    %v3459 = vunpack.c.h.b16 %v2993
    %v3460 = vunpack.c.l.b16 %v2994
    %v3461 = vunpack.c.l.b16 %v2995
    %v3462 = vunpack.c.h.b16 %v2995
    %v3463 = vunpack.c.l.b16 %v2996
    %v3464 = vunpack.c.l.b16 %v2997
    %v3465 = vunpack.c.h.b16 %v2997
    %v3466 = vunpack.c.l.b16 %v2998
    %v3467 = vunpack.c.l.b16 %v2999
    %v3468 = vunpack.c.h.b16 %v2999
    %v3469 = vunpack.c.l.b16 %v3000
    %v3470 = vunpack.c.l.b16 %v3001
    %v3471 = vunpack.c.h.b16 %v3001
    %v3472 = vunpack.c.l.b16 %v3002
    %v3473 = vunpack.c.l.b16 %v3003
    %v3474 = vunpack.c.h.b16 %v3003
    %v3475 = vunpack.c.l.b16 %v3004
    %v3476 = vunpack.c.l.b16 %v3005
    %v3477 = vunpack.c.h.b16 %v3005
    %v3478 = vunpack.c.l.b16 %v3006
    %v3479 = vunpack.c.l.b16 %v3007
    %v3480 = vunpack.c.h.b16 %v3007
    %v3481 = vunpack.c.l.b16 %v3008
    %v3482 = vunpack.c.l.b16 %v3009
    %v3483 = vunpack.c.h.b16 %v3009
    %v3484 = vunpack.c.l.b16 %v3010
    %v3485 = vunpack.c.l.b16 %v3011
    %v3486 = vunpack.c.h.b16 %v3011
    %v3487 = vunpack.c.l.b16 %v3012
    %v3488 = vunpack.c.l.b16 %v3013
    %v3489 = vunpack.c.h.b16 %v3013
    %v3490 = vunpack.c.l.b16 %v3014
    %v3491 = vunpack.c.l.b16 %v3015
    %v3492 = vunpack.c.h.b16 %v3015
    %v3493 = vunpack.c.l.b16 %v3016
    %v3494 = vunpack.c.l.b16 %v3017
    %v3495 = vunpack.c.h.b16 %v3017
    %v3496 = vunpack.c.l.b16 %v3018
    %v3497 = vunpack.c.l.b16 %v3019
    %v3498 = vunpack.c.h.b16 %v3019
    %v3499 = vunpack.c.l.b16 %v3020
    %v3500 = vunpack.c.l.b16 %v3021
    %v3501 = vunpack.c.h.b16 %v3021
    %v3502 = vunpack.c.l.b16 %v3022
    %v3503 = vunpack.c.l.b16 %v3023
    %v3504 = vunpack.c.h.b16 %v3023
    %v3505 = vunpack.c.l.b16 %v3024
    %v3506 = vunpack.c.l.b16 %v3025
    %v3507 = vunpack.c.h.b16 %v3025
    %v3508 = vunpack.c.l.b16 %v3026
    %v3509 = vunpack.c.l.b16 %v3027
    %v3510 = vunpack.c.h.b16 %v3027
    %v3511 = vunpack.c.l.b16 %v3028
    %v3512 = vunpack.c.l.b16 %v3029
    %v3513 = vunpack.c.h.b16 %v3029
    %v3514 = vunpack.c.l.b16 %v3030
    %v3515 = vunpack.c.l.b16 %v3031
    %v3516 = vunpack.c.h.b16 %v3031
    %v3517 = vunpack.c.l.b16 %v3032
    %v3518 = vunpack.c.l.b16 %v3033
    %v3519 = vunpack.c.h.b16 %v3033
    %v3520 = vunpack.c.l.b16 %v3034
    %v3521 = vunpack.c.l.b16 %v3035
    %v3522 = vunpack.c.h.b16 %v3035
    %v3523 = vunpack.c.l.b16 %v3036
    %v3524 = vunpack.c.l.b16 %v3037
    %v3525 = vunpack.c.h.b16 %v3037
    %v3526 = vunpack.c.l.b16 %v3038
    %v3527 = vpack.c.b16 %v3242, %v3239
    %v3528 = vpack.c.b16 %v3243, %v3240
    %v3529 = vpack.c.b16 %v3244, %v3241
    %v3530 = vpack.c.b16 %v3248, %v3245
    %v3531 = vpack.c.b16 %v3249, %v3246
    %v3532 = vpack.c.b16 %v3250, %v3247
    %v3533 = vpack.c.b16 %v3254, %v3251
    %v3534 = vpack.c.b16 %v3255, %v3252
    %v3535 = vpack.c.b16 %v3256, %v3253
    %v3536 = vpack.c.b16 %v3260, %v3257
    %v3537 = vpack.c.b16 %v3261, %v3258
    %v3538 = vpack.c.b16 %v3262, %v3259
    %v3539 = vpack.c.b16 %v3266, %v3263
    %v3540 = vpack.c.b16 %v3267, %v3264
    %v3541 = vpack.c.b16 %v3268, %v3265
    %v3542 = vpack.c.b16 %v3272, %v3269
    %v3543 = vpack.c.b16 %v3273, %v3270
    %v3544 = vpack.c.b16 %v3274, %v3271
    %v3545 = vpack.c.b16 %v3278, %v3275
    %v3546 = vpack.c.b16 %v3279, %v3276
    %v3547 = vpack.c.b16 %v3280, %v3277
    %v3548 = vpack.c.b16 %v3284, %v3281
    %v3549 = vpack.c.b16 %v3285, %v3282
    %v3550 = vpack.c.b16 %v3286, %v3283
    %v3551 = vpack.c.b16 %v3290, %v3287
    %v3552 = vpack.c.b16 %v3291, %v3288
    %v3553 = vpack.c.b16 %v3292, %v3289
    %v3554 = vpack.c.b16 %v3296, %v3293
    %v3555 = vpack.c.b16 %v3297, %v3294
    %v3556 = vpack.c.b16 %v3298, %v3295
    %v3557 = vpack.c.b16 %v3302, %v3299
    %v3558 = vpack.c.b16 %v3303, %v3300
    %v3559 = vpack.c.b16 %v3304, %v3301
    %v3560 = vpack.c.b16 %v3308, %v3305
    %v3561 = vpack.c.b16 %v3309, %v3306
    %v3562 = vpack.c.b16 %v3310, %v3307
    %v3563 = vpack.c.b16 %v3314, %v3311
    %v3564 = vpack.c.b16 %v3315, %v3312
    %v3565 = vpack.c.b16 %v3316, %v3313
    %v3566 = vpack.c.b16 %v3320, %v3317
    %v3567 = vpack.c.b16 %v3321, %v3318
    %v3568 = vpack.c.b16 %v3322, %v3319
    %v3569 = vpack.c.b16 %v3326, %v3323
    %v3570 = vpack.c.b16 %v3327, %v3324
    %v3571 = vpack.c.b16 %v3328, %v3325
    %v3572 = vpack.c.b16 %v3332, %v3329
    %v3573 = vpack.c.b16 %v3333, %v3330
    %v3574 = vpack.c.b16 %v3334, %v3331
    %v3575 = vpack.c.b16 %v3338, %v3335
    %v3576 = vpack.c.b16 %v3339, %v3336
    %v3577 = vpack.c.b16 %v3340, %v3337
    %v3578 = vpack.c.b16 %v3344, %v3341
    %v3579 = vpack.c.b16 %v3345, %v3342
    %v3580 = vpack.c.b16 %v3346, %v3343
    %v3581 = vpack.c.b16 %v3350, %v3347
    %v3582 = vpack.c.b16 %v3351, %v3348
    %v3583 = vpack.c.b16 %v3352, %v3349
    %v3584 = vpack.c.b16 %v3356, %v3353
    %v3585 = vpack.c.b16 %v3357, %v3354
    %v3586 = vpack.c.b16 %v3358, %v3355
    %v3587 = vpack.c.b16 %v3362, %v3359
    %v3588 = vpack.c.b16 %v3363, %v3360
    %v3589 = vpack.c.b16 %v3364, %v3361
    %v3590 = vpack.c.b16 %v3368, %v3365
    %v3591 = vpack.c.b16 %v3369, %v3366
    %v3592 = vpack.c.b16 %v3370, %v3367
    %v3593 = vpack.c.b16 %v3374, %v3371
    %v3594 = vpack.c.b16 %v3375, %v3372
    %v3595 = vpack.c.b16 %v3376, %v3373
    %v3596 = vpack.c.b16 %v3380, %v3377
    %v3597 = vpack.c.b16 %v3381, %v3378
    %v3598 = vpack.c.b16 %v3382, %v3379
    %v3599 = vpack.c.b16 %v3386, %v3383
    %v3600 = vpack.c.b16 %v3387, %v3384
    %v3601 = vpack.c.b16 %v3388, %v3385
    %v3602 = vpack.c.b16 %v3392, %v3389
    %v3603 = vpack.c.b16 %v3393, %v3390
    %v3604 = vpack.c.b16 %v3394, %v3391
    %v3605 = vpack.c.b16 %v3398, %v3395
    %v3606 = vpack.c.b16 %v3399, %v3396
    %v3607 = vpack.c.b16 %v3400, %v3397
    %v3608 = vpack.c.b16 %v3404, %v3401
    %v3609 = vpack.c.b16 %v3405, %v3402
    %v3610 = vpack.c.b16 %v3406, %v3403
    %v3611 = vpack.c.b16 %v3410, %v3407
    %v3612 = vpack.c.b16 %v3411, %v3408
    %v3613 = vpack.c.b16 %v3412, %v3409
    %v3614 = vpack.c.b16 %v3416, %v3413
    %v3615 = vpack.c.b16 %v3417, %v3414
    %v3616 = vpack.c.b16 %v3418, %v3415
    %v3617 = vpack.c.b16 %v3422, %v3419
    %v3618 = vpack.c.b16 %v3423, %v3420
    %v3619 = vpack.c.b16 %v3424, %v3421
    %v3620 = vpack.c.b16 %v3428, %v3425
    %v3621 = vpack.c.b16 %v3429, %v3426
    %v3622 = vpack.c.b16 %v3430, %v3427
    %v3623 = vpack.c.b16 %v3434, %v3431
    %v3624 = vpack.c.b16 %v3435, %v3432
    %v3625 = vpack.c.b16 %v3436, %v3433
    %v3626 = vpack.c.b16 %v3440, %v3437
    %v3627 = vpack.c.b16 %v3441, %v3438
    %v3628 = vpack.c.b16 %v3442, %v3439
    %v3629 = vpack.c.b16 %v3446, %v3443
    %v3630 = vpack.c.b16 %v3447, %v3444
    %v3631 = vpack.c.b16 %v3448, %v3445
    %v3632 = vpack.c.b16 %v3452, %v3449
    %v3633 = vpack.c.b16 %v3453, %v3450
    %v3634 = vpack.c.b16 %v3454, %v3451
    %v3635 = vpack.c.b16 %v3458, %v3455
    %v3636 = vpack.c.b16 %v3459, %v3456
    %v3637 = vpack.c.b16 %v3460, %v3457
    %v3638 = vpack.c.b16 %v3464, %v3461
    %v3639 = vpack.c.b16 %v3465, %v3462
    %v3640 = vpack.c.b16 %v3466, %v3463
    %v3641 = vpack.c.b16 %v3470, %v3467
    %v3642 = vpack.c.b16 %v3471, %v3468
    %v3643 = vpack.c.b16 %v3472, %v3469
    %v3644 = vpack.c.b16 %v3476, %v3473
    %v3645 = vpack.c.b16 %v3477, %v3474
    %v3646 = vpack.c.b16 %v3478, %v3475
    %v3647 = vpack.c.b16 %v3482, %v3479
    %v3648 = vpack.c.b16 %v3483, %v3480
    %v3649 = vpack.c.b16 %v3484, %v3481
    %v3650 = vpack.c.b16 %v3488, %v3485
    %v3651 = vpack.c.b16 %v3489, %v3486
    %v3652 = vpack.c.b16 %v3490, %v3487
    %v3653 = vpack.c.b16 %v3494, %v3491
    %v3654 = vpack.c.b16 %v3495, %v3492
    %v3655 = vpack.c.b16 %v3496, %v3493
    %v3656 = vpack.c.b16 %v3500, %v3497
    %v3657 = vpack.c.b16 %v3501, %v3498
    %v3658 = vpack.c.b16 %v3502, %v3499
    %v3659 = vpack.c.b16 %v3506, %v3503
    %v3660 = vpack.c.b16 %v3507, %v3504
    %v3661 = vpack.c.b16 %v3508, %v3505
    %v3662 = vpack.c.b16 %v3512, %v3509
    %v3663 = vpack.c.b16 %v3513, %v3510
    %v3664 = vpack.c.b16 %v3514, %v3511
    %v3665 = vpack.c.b16 %v3518, %v3515
    %v3666 = vpack.c.b16 %v3519, %v3516
    %v3667 = vpack.c.b16 %v3520, %v3517
    %v3668 = vpack.c.b16 %v3524, %v3521
    %v3669 = vpack.c.b16 %v3525, %v3522
    %v3670 = vpack.c.b16 %v3526, %v3523
    %3815 = vmatpush.bf16.msra.mxu0 %v3548
    %3816 = vmatpush.bf16.msra.mxu0 %v3545
    %3817 = vmatpush.bf16.msra.mxu0 %v3542
    %3818 = vmatpush.bf16.msra.mxu0 %v3539
    %3819 = vmatpush.bf16.msra.mxu0 %v3536
    %3820 = vmatpush.bf16.msra.mxu0 %v3533
    %3821 = vmatpush.bf16.msra.mxu0 %v3530
    %3822 = vmatpush.bf16.msra.mxu0 %v3527
    %3823 = vmatmul.bf16.gmra.mxu0 %v2829
    %v3824 = vpop.f32.mrf.mxu0
    %v3825 = vadd.f32 %v3041, %v3824
    %v3826 = vpop.f32.mrf.mxu0
    %v3827 = vadd.f32 %v3041, %v3826
    %3828 = vmatmul.bf16.gmra.mxu0 %v2835
    %v3829 = vpop.f32.mrf.mxu0
    %v3830 = vadd.f32 %v3041, %v3829
    %v3831 = vpop.f32.mrf.mxu0
    %v3832 = vadd.f32 %v3041, %v3831
    %3833 = vmatmul.bf16.gmra.mxu0 %v2841
    %v3834 = vpop.f32.mrf.mxu0
    %v3835 = vpop.f32.mrf.mxu0
    %3836 = vdwg.mxu0
    %3837 = vmatpush.bf16.msra.mxu0 %v3572
    %3838 = vmatpush.bf16.msra.mxu0 %v3569
    %3839 = vmatpush.bf16.msra.mxu0 %v3566
    %3840 = vmatpush.bf16.msra.mxu0 %v3563
    %3841 = vmatpush.bf16.msra.mxu0 %v3560
    %3842 = vmatpush.bf16.msra.mxu0 %v3557
    %3843 = vmatpush.bf16.msra.mxu0 %v3554
    %3844 = vmatpush.bf16.msra.mxu0 %v3551
    %3845 = vmatmul.bf16.gmra.mxu0 %v2830
    %v3846 = vpop.f32.mrf.mxu0
    %v3847 = vadd.f32 %v3825, %v3846
    %v3848 = vpop.f32.mrf.mxu0
    %v3849 = vadd.f32 %v3827, %v3848
    %3850 = vmatmul.bf16.gmra.mxu0 %v2836
    %v3851 = vpop.f32.mrf.mxu0
    %v3852 = vadd.f32 %v3830, %v3851
    %v3853 = vpop.f32.mrf.mxu0
    %v3854 = vadd.f32 %v3832, %v3853
    %3855 = vmatmul.bf16.gmra.mxu0 %v2842
    %v3856 = vpop.f32.mrf.mxu0
    %v3857 = vpop.f32.mrf.mxu0
    %3858 = vdwg.mxu0
    %3859 = vmatpush.bf16.msra.mxu0 %v3596
    %3860 = vmatpush.bf16.msra.mxu0 %v3593
    %3861 = vmatpush.bf16.msra.mxu0 %v3590
    %3862 = vmatpush.bf16.msra.mxu0 %v3587
    %3863 = vmatpush.bf16.msra.mxu0 %v3584
    %3864 = vmatpush.bf16.msra.mxu0 %v3581
    %3865 = vmatpush.bf16.msra.mxu0 %v3578
    %3866 = vmatpush.bf16.msra.mxu0 %v3575
    %3867 = vmatmul.bf16.gmra.mxu0 %v2831
    %v3868 = vpop.f32.mrf.mxu0
    %v3869 = vadd.f32 %v3847, %v3868
    %v3870 = vpop.f32.mrf.mxu0
    %v3871 = vadd.f32 %v3849, %v3870
    %3872 = vmatmul.bf16.gmra.mxu0 %v2837
    %v3873 = vpop.f32.mrf.mxu0
    %v3874 = vadd.f32 %v3852, %v3873
    %v3875 = vpop.f32.mrf.mxu0
    %v3876 = vadd.f32 %v3854, %v3875
    %3877 = vmatmul.bf16.gmra.mxu0 %v2843
    %v3878 = vpop.f32.mrf.mxu0
    %v3879 = vpop.f32.mrf.mxu0
    %3880 = vdwg.mxu0
    %3881 = vmatpush.bf16.msra.mxu0 %v3620
    %3882 = vmatpush.bf16.msra.mxu0 %v3617
    %3883 = vmatpush.bf16.msra.mxu0 %v3614
    %3884 = vmatpush.bf16.msra.mxu0 %v3611
    %3885 = vmatpush.bf16.msra.mxu0 %v3608
    %3886 = vmatpush.bf16.msra.mxu0 %v3605
    %3887 = vmatpush.bf16.msra.mxu0 %v3602
    %3888 = vmatpush.bf16.msra.mxu0 %v3599
    %3889 = vmatmul.bf16.gmra.mxu0 %v2832
    %v3890 = vpop.f32.mrf.mxu0
    %v3891 = vadd.f32 %v3869, %v3890
    %v3892 = vpop.f32.mrf.mxu0
    %v3893 = vadd.f32 %v3871, %v3892
    %3894 = vmatmul.bf16.gmra.mxu0 %v2838
    %v3895 = vpop.f32.mrf.mxu0
    %v3896 = vadd.f32 %v3874, %v3895
    %v3897 = vpop.f32.mrf.mxu0
    %v3898 = vadd.f32 %v3876, %v3897
    %3899 = vmatmul.bf16.gmra.mxu0 %v2844
    %v3900 = vpop.f32.mrf.mxu0
    %v3901 = vpop.f32.mrf.mxu0
    %3902 = vdwg.mxu0
    %3903 = vmatpush.bf16.msra.mxu0 %v3644
    %3904 = vmatpush.bf16.msra.mxu0 %v3641
    %3905 = vmatpush.bf16.msra.mxu0 %v3638
    %3906 = vmatpush.bf16.msra.mxu0 %v3635
    %3907 = vmatpush.bf16.msra.mxu0 %v3632
    %3908 = vmatpush.bf16.msra.mxu0 %v3629
    %3909 = vmatpush.bf16.msra.mxu0 %v3626
    %3910 = vmatpush.bf16.msra.mxu0 %v3623
    %3911 = vmatmul.bf16.gmra.mxu0 %v2833
    %v3912 = vpop.f32.mrf.mxu0
    %v3913 = vadd.f32 %v3891, %v3912
    %v3914 = vpop.f32.mrf.mxu0
    %v3915 = vadd.f32 %v3893, %v3914
    %3916 = vmatmul.bf16.gmra.mxu0 %v2839
    %v3917 = vpop.f32.mrf.mxu0
    %v3918 = vadd.f32 %v3896, %v3917
    %v3919 = vpop.f32.mrf.mxu0
    %v3920 = vadd.f32 %v3898, %v3919
    %3921 = vmatmul.bf16.gmra.mxu0 %v2845
    %v3922 = vpop.f32.mrf.mxu0
    %v3923 = vpop.f32.mrf.mxu0
    %3924 = vdwg.mxu0
    %3925 = vmatpush.bf16.msra.mxu0 %v3668
    %3926 = vmatpush.bf16.msra.mxu0 %v3665
    %3927 = vmatpush.bf16.msra.mxu0 %v3662
    %3928 = vmatpush.bf16.msra.mxu0 %v3659
    %3929 = vmatpush.bf16.msra.mxu0 %v3656
    %3930 = vmatpush.bf16.msra.mxu0 %v3653
    %3931 = vmatpush.bf16.msra.mxu0 %v3650
    %3932 = vmatpush.bf16.msra.mxu0 %v3647
    %3933 = vmatmul.bf16.gmra.mxu0 %v2834
    %v3934 = vpop.f32.mrf.mxu0
    %v3935 = vadd.f32 %v3913, %v3934
    %v3936 = vpop.f32.mrf.mxu0
    %v3937 = vadd.f32 %v3915, %v3936
    %3938 = vmatmul.bf16.gmra.mxu0 %v2840
    %v3939 = vpop.f32.mrf.mxu0
    %v3940 = vadd.f32 %v3918, %v3939
    %v3941 = vpop.f32.mrf.mxu0
    %v3942 = vadd.f32 %v3920, %v3941
    %3943 = vmatmul.bf16.gmra.mxu0 %v2846
    %v3944 = vpop.f32.mrf.mxu0
    %v3945 = vpop.f32.mrf.mxu0
    %3946 = vdwg.mxu0
    %3947 = vmatpush.bf16.msra.mxu0 %v3549
    %3948 = vmatpush.bf16.msra.mxu0 %v3546
    %3949 = vmatpush.bf16.msra.mxu0 %v3543
    %3950 = vmatpush.bf16.msra.mxu0 %v3540
    %3951 = vmatpush.bf16.msra.mxu0 %v3537
    %3952 = vmatpush.bf16.msra.mxu0 %v3534
    %3953 = vmatpush.bf16.msra.mxu0 %v3531
    %3954 = vmatpush.bf16.msra.mxu0 %v3528
    %3955 = vmatmul.bf16.gmra.mxu0 %v2829
    %v3956 = vpop.f32.mrf.mxu0
    %v3957 = vadd.f32 %v3042, %v3956
    %v3958 = vpop.f32.mrf.mxu0
    %v3959 = vadd.f32 %v3042, %v3958
    %3960 = vmatmul.bf16.gmra.mxu0 %v2835
    %v3961 = vpop.f32.mrf.mxu0
    %v3962 = vadd.f32 %v3042, %v3961
    %v3963 = vpop.f32.mrf.mxu0
    %v3964 = vadd.f32 %v3042, %v3963
    %3965 = vmatmul.bf16.gmra.mxu0 %v2841
    %v3966 = vpop.f32.mrf.mxu0
    %v3967 = vpop.f32.mrf.mxu0
    %3968 = vdwg.mxu0
    %3969 = vmatpush.bf16.msra.mxu0 %v3573
    %3970 = vmatpush.bf16.msra.mxu0 %v3570
    %3971 = vmatpush.bf16.msra.mxu0 %v3567
    %3972 = vmatpush.bf16.msra.mxu0 %v3564
    %3973 = vmatpush.bf16.msra.mxu0 %v3561
    %3974 = vmatpush.bf16.msra.mxu0 %v3558
    %3975 = vmatpush.bf16.msra.mxu0 %v3555
    %3976 = vmatpush.bf16.msra.mxu0 %v3552
    %3977 = vmatmul.bf16.gmra.mxu0 %v2830
    %v3978 = vpop.f32.mrf.mxu0
    %v3979 = vadd.f32 %v3957, %v3978
    %v3980 = vpop.f32.mrf.mxu0
    %v3981 = vadd.f32 %v3959, %v3980
    %3982 = vmatmul.bf16.gmra.mxu0 %v2836
    %v3983 = vpop.f32.mrf.mxu0
    %v3984 = vadd.f32 %v3962, %v3983
    %v3985 = vpop.f32.mrf.mxu0
    %v3986 = vadd.f32 %v3964, %v3985
    %3987 = vmatmul.bf16.gmra.mxu0 %v2842
    %v3988 = vpop.f32.mrf.mxu0
    %v3989 = vpop.f32.mrf.mxu0
    %3990 = vdwg.mxu0
    %3991 = vmatpush.bf16.msra.mxu0 %v3597
    %3992 = vmatpush.bf16.msra.mxu0 %v3594
    %3993 = vmatpush.bf16.msra.mxu0 %v3591
    %3994 = vmatpush.bf16.msra.mxu0 %v3588
    %3995 = vmatpush.bf16.msra.mxu0 %v3585
    %3996 = vmatpush.bf16.msra.mxu0 %v3582
    %3997 = vmatpush.bf16.msra.mxu0 %v3579
    %3998 = vmatpush.bf16.msra.mxu0 %v3576
    %3999 = vmatmul.bf16.gmra.mxu0 %v2831
    %v4000 = vpop.f32.mrf.mxu0
    %v4001 = vadd.f32 %v3979, %v4000
    %v4002 = vpop.f32.mrf.mxu0
    %v4003 = vadd.f32 %v3981, %v4002
    %4004 = vmatmul.bf16.gmra.mxu0 %v2837
    %v4005 = vpop.f32.mrf.mxu0
    %v4006 = vadd.f32 %v3984, %v4005
    %v4007 = vpop.f32.mrf.mxu0
    %v4008 = vadd.f32 %v3986, %v4007
    %4009 = vmatmul.bf16.gmra.mxu0 %v2843
    %v4010 = vpop.f32.mrf.mxu0
    %v4011 = vpop.f32.mrf.mxu0
    %4012 = vdwg.mxu0
    %4013 = vmatpush.bf16.msra.mxu0 %v3621
    %4014 = vmatpush.bf16.msra.mxu0 %v3618
    %4015 = vmatpush.bf16.msra.mxu0 %v3615
    %4016 = vmatpush.bf16.msra.mxu0 %v3612
    %4017 = vmatpush.bf16.msra.mxu0 %v3609
    %4018 = vmatpush.bf16.msra.mxu0 %v3606
    %4019 = vmatpush.bf16.msra.mxu0 %v3603
    %4020 = vmatpush.bf16.msra.mxu0 %v3600
    %4021 = vmatmul.bf16.gmra.mxu0 %v2832
    %v4022 = vpop.f32.mrf.mxu0
    %v4023 = vadd.f32 %v4001, %v4022
    %v4024 = vpop.f32.mrf.mxu0
    %v4025 = vadd.f32 %v4003, %v4024
    %4026 = vmatmul.bf16.gmra.mxu0 %v2838
    %v4027 = vpop.f32.mrf.mxu0
    %v4028 = vadd.f32 %v4006, %v4027
    %v4029 = vpop.f32.mrf.mxu0
    %v4030 = vadd.f32 %v4008, %v4029
    %4031 = vmatmul.bf16.gmra.mxu0 %v2844
    %v4032 = vpop.f32.mrf.mxu0
    %v4033 = vpop.f32.mrf.mxu0
    %4034 = vdwg.mxu0
    %4035 = vmatpush.bf16.msra.mxu0 %v3645
    %4036 = vmatpush.bf16.msra.mxu0 %v3642
    %4037 = vmatpush.bf16.msra.mxu0 %v3639
    %4038 = vmatpush.bf16.msra.mxu0 %v3636
    %4039 = vmatpush.bf16.msra.mxu0 %v3633
    %4040 = vmatpush.bf16.msra.mxu0 %v3630
    %4041 = vmatpush.bf16.msra.mxu0 %v3627
    %4042 = vmatpush.bf16.msra.mxu0 %v3624
    %4043 = vmatmul.bf16.gmra.mxu0 %v2833
    %v4044 = vpop.f32.mrf.mxu0
    %v4045 = vadd.f32 %v4023, %v4044
    %v4046 = vpop.f32.mrf.mxu0
    %v4047 = vadd.f32 %v4025, %v4046
    %4048 = vmatmul.bf16.gmra.mxu0 %v2839
    %v4049 = vpop.f32.mrf.mxu0
    %v4050 = vadd.f32 %v4028, %v4049
    %v4051 = vpop.f32.mrf.mxu0
    %v4052 = vadd.f32 %v4030, %v4051
    %4053 = vmatmul.bf16.gmra.mxu0 %v2845
    %v4054 = vpop.f32.mrf.mxu0
    %v4055 = vpop.f32.mrf.mxu0
    %4056 = vdwg.mxu0
    %4057 = vmatpush.bf16.msra.mxu0 %v3669
    %4058 = vmatpush.bf16.msra.mxu0 %v3666
    %4059 = vmatpush.bf16.msra.mxu0 %v3663
    %4060 = vmatpush.bf16.msra.mxu0 %v3660
    %4061 = vmatpush.bf16.msra.mxu0 %v3657
    %4062 = vmatpush.bf16.msra.mxu0 %v3654
    %4063 = vmatpush.bf16.msra.mxu0 %v3651
    %4064 = vmatpush.bf16.msra.mxu0 %v3648
    %4065 = vmatmul.bf16.gmra.mxu0 %v2834
    %v4066 = vpop.f32.mrf.mxu0
    %v4067 = vadd.f32 %v4045, %v4066
    %v4068 = vpop.f32.mrf.mxu0
    %v4069 = vadd.f32 %v4047, %v4068
    %4070 = vmatmul.bf16.gmra.mxu0 %v2840
    %v4071 = vpop.f32.mrf.mxu0
    %v4072 = vadd.f32 %v4050, %v4071
    %v4073 = vpop.f32.mrf.mxu0
    %v4074 = vadd.f32 %v4052, %v4073
    %4075 = vmatmul.bf16.gmra.mxu0 %v2846
    %v4076 = vpop.f32.mrf.mxu0
    %v4077 = vpop.f32.mrf.mxu0
    %4078 = vdwg.mxu0
    %4079 = vmatpush.bf16.msra.mxu0 %v3550
    %4080 = vmatpush.bf16.msra.mxu0 %v3547
    %4081 = vmatpush.bf16.msra.mxu0 %v3544
    %4082 = vmatpush.bf16.msra.mxu0 %v3541
    %4083 = vmatpush.bf16.msra.mxu0 %v3538
    %4084 = vmatpush.bf16.msra.mxu0 %v3535
    %4085 = vmatpush.bf16.msra.mxu0 %v3532
    %4086 = vmatpush.bf16.msra.mxu0 %v3529
    %4087 = vmatmul.bf16.gmra.mxu0 %v2829
    %v4088 = vpop.f32.mrf.mxu0
    %v4089 = vadd.f32 %v3043, %v4088
    %v4090 = vpop.f32.mrf.mxu0
    %v4091 = vadd.f32 %v3043, %v4090
    %4092 = vmatmul.bf16.gmra.mxu0 %v2835
    %v4093 = vpop.f32.mrf.mxu0
    %v4094 = vadd.f32 %v3043, %v4093
    %v4095 = vpop.f32.mrf.mxu0
    %v4096 = vadd.f32 %v3043, %v4095
    %4097 = vmatmul.bf16.gmra.mxu0 %v2841
    %v4098 = vpop.f32.mrf.mxu0
    %v4099 = vpop.f32.mrf.mxu0
    %4100 = vdwg.mxu0
    %4101 = vmatpush.bf16.msra.mxu0 %v3574
    %4102 = vmatpush.bf16.msra.mxu0 %v3571
    %4103 = vmatpush.bf16.msra.mxu0 %v3568
    %4104 = vmatpush.bf16.msra.mxu0 %v3565
    %4105 = vmatpush.bf16.msra.mxu0 %v3562
    %4106 = vmatpush.bf16.msra.mxu0 %v3559
    %4107 = vmatpush.bf16.msra.mxu0 %v3556
    %4108 = vmatpush.bf16.msra.mxu0 %v3553
    %4109 = vmatmul.bf16.gmra.mxu0 %v2830
    %v4110 = vpop.f32.mrf.mxu0
    %v4111 = vadd.f32 %v4089, %v4110
    %v4112 = vpop.f32.mrf.mxu0
    %v4113 = vadd.f32 %v4091, %v4112
    %4114 = vmatmul.bf16.gmra.mxu0 %v2836
    %v4115 = vpop.f32.mrf.mxu0
    %v4116 = vadd.f32 %v4094, %v4115
    %v4117 = vpop.f32.mrf.mxu0
    %v4118 = vadd.f32 %v4096, %v4117
    %4119 = vmatmul.bf16.gmra.mxu0 %v2842
    %v4120 = vpop.f32.mrf.mxu0
    %v4121 = vpop.f32.mrf.mxu0
    %4122 = vdwg.mxu0
    %4123 = vmatpush.bf16.msra.mxu0 %v3598
    %4124 = vmatpush.bf16.msra.mxu0 %v3595
    %4125 = vmatpush.bf16.msra.mxu0 %v3592
    %4126 = vmatpush.bf16.msra.mxu0 %v3589
    %4127 = vmatpush.bf16.msra.mxu0 %v3586
    %4128 = vmatpush.bf16.msra.mxu0 %v3583
    %4129 = vmatpush.bf16.msra.mxu0 %v3580
    %4130 = vmatpush.bf16.msra.mxu0 %v3577
    %4131 = vmatmul.bf16.gmra.mxu0 %v2831
    %v4132 = vpop.f32.mrf.mxu0
    %v4133 = vadd.f32 %v4111, %v4132
    %v4134 = vpop.f32.mrf.mxu0
    %v4135 = vadd.f32 %v4113, %v4134
    %4136 = vmatmul.bf16.gmra.mxu0 %v2837
    %v4137 = vpop.f32.mrf.mxu0
    %v4138 = vadd.f32 %v4116, %v4137
    %v4139 = vpop.f32.mrf.mxu0
    %v4140 = vadd.f32 %v4118, %v4139
    %4141 = vmatmul.bf16.gmra.mxu0 %v2843
    %v4142 = vpop.f32.mrf.mxu0
    %v4143 = vpop.f32.mrf.mxu0
    %4144 = vdwg.mxu0
    %4145 = vmatpush.bf16.msra.mxu0 %v3622
    %4146 = vmatpush.bf16.msra.mxu0 %v3619
    %4147 = vmatpush.bf16.msra.mxu0 %v3616
    %4148 = vmatpush.bf16.msra.mxu0 %v3613
    %4149 = vmatpush.bf16.msra.mxu0 %v3610
    %4150 = vmatpush.bf16.msra.mxu0 %v3607
    %4151 = vmatpush.bf16.msra.mxu0 %v3604
    %4152 = vmatpush.bf16.msra.mxu0 %v3601
    %4153 = vmatmul.bf16.gmra.mxu0 %v2832
    %v4154 = vpop.f32.mrf.mxu0
    %v4155 = vadd.f32 %v4133, %v4154
    %v4156 = vpop.f32.mrf.mxu0
    %v4157 = vadd.f32 %v4135, %v4156
    %4158 = vmatmul.bf16.gmra.mxu0 %v2838
    %v4159 = vpop.f32.mrf.mxu0
    %v4160 = vadd.f32 %v4138, %v4159
    %v4161 = vpop.f32.mrf.mxu0
    %v4162 = vadd.f32 %v4140, %v4161
    %4163 = vmatmul.bf16.gmra.mxu0 %v2844
    %v4164 = vpop.f32.mrf.mxu0
    %v4165 = vpop.f32.mrf.mxu0
    %4166 = vdwg.mxu0
    %4167 = vmatpush.bf16.msra.mxu0 %v3646
    %4168 = vmatpush.bf16.msra.mxu0 %v3643
    %4169 = vmatpush.bf16.msra.mxu0 %v3640
    %4170 = vmatpush.bf16.msra.mxu0 %v3637
    %4171 = vmatpush.bf16.msra.mxu0 %v3634
    %4172 = vmatpush.bf16.msra.mxu0 %v3631
    %4173 = vmatpush.bf16.msra.mxu0 %v3628
    %4174 = vmatpush.bf16.msra.mxu0 %v3625
    %4175 = vmatmul.bf16.gmra.mxu0 %v2833
    %v4176 = vpop.f32.mrf.mxu0
    %v4177 = vadd.f32 %v4155, %v4176
    %v4178 = vpop.f32.mrf.mxu0
    %v4179 = vadd.f32 %v4157, %v4178
    %4180 = vmatmul.bf16.gmra.mxu0 %v2839
    %v4181 = vpop.f32.mrf.mxu0
    %v4182 = vadd.f32 %v4160, %v4181
    %v4183 = vpop.f32.mrf.mxu0
    %v4184 = vadd.f32 %v4162, %v4183
    %4185 = vmatmul.bf16.gmra.mxu0 %v2845
    %v4186 = vpop.f32.mrf.mxu0
    %v4187 = vpop.f32.mrf.mxu0
    %4188 = vdwg.mxu0
    %4189 = vmatpush.bf16.msra.mxu0 %v3670
    %4190 = vmatpush.bf16.msra.mxu0 %v3667
    %4191 = vmatpush.bf16.msra.mxu0 %v3664
    %4192 = vmatpush.bf16.msra.mxu0 %v3661
    %4193 = vmatpush.bf16.msra.mxu0 %v3658
    %4194 = vmatpush.bf16.msra.mxu0 %v3655
    %4195 = vmatpush.bf16.msra.mxu0 %v3652
    %4196 = vmatpush.bf16.msra.mxu0 %v3649
    %4197 = vmatmul.bf16.gmra.mxu0 %v2834
    %v4198 = vpop.f32.mrf.mxu0
    %v4199 = vadd.f32 %v4177, %v4198
    %v4200 = vpop.f32.mrf.mxu0
    %v4201 = vadd.f32 %v4179, %v4200
    %4202 = vmatmul.bf16.gmra.mxu0 %v2840
    %v4203 = vpop.f32.mrf.mxu0
    %v4204 = vadd.f32 %v4182, %v4203
    %v4205 = vpop.f32.mrf.mxu0
    %v4206 = vadd.f32 %v4184, %v4205
    %4207 = vmatmul.bf16.gmra.mxu0 %v2846
    %v4208 = vpop.f32.mrf.mxu0
    %v4209 = vpop.f32.mrf.mxu0
    %4210 = vdwg.mxu0
    %v4211 = vmax.f32 %v3935, 0.0
    %v4212 = vmax.f32 %v4067, 0.0
    %v4213 = vmax.f32 %v4199, 0.0
    %v4214 = vmax.f32 %v3937, 0.0
    %v4215 = vmax.f32 %v4069, 0.0
    %v4216 = vmax.f32 %v4201, 0.0
    %v4217 = vmax.f32 %v3940, 0.0
    %v4218 = vmax.f32 %v4072, 0.0
    %v4219 = vmax.f32 %v4204, 0.0
    %v4220 = vmax.f32 %v3942, 0.0
    %v4221 = vmax.f32 %v4074, 0.0
    %v4222 = vmax.f32 %v4206, 0.0
    %v4223 = vmax.f32 %v4211, %v4214
    %v4224 = vmax.f32 %v4212, %v4215
    %v4225 = vmax.f32 %v4213, %v4216
    %4226 = vrot.lane.b32.xlu0 %v4223, 64
    %v4227 = vpop.permute.xlu0 %4226
    %4228 = vrot.lane.b32.xlu0 %v4224, 64
    %v4229 = vpop.permute.xlu0 %4228
    %4230 = vrot.lane.b32.xlu0 %v4225, 64
    %v4231 = vpop.permute.xlu0 %4230
    %vm4232 = vcmp.lt.s32.totalorder %v1190, 64
    %v4233 = vsel %vm4232, %v4229, %v4231
    %v4234 = vsel %vm4232, %v4227, %v4229
    %v4235 = vsel %vm4232, %v4231, %v4227
    %v4236 = vmax.f32 %v4223, %v4234
    %v4237 = vmax.f32 %v4224, %v4233
    %v4238 = vmax.f32 %v4225, %v4235
    %4239 = vst [vmem:[#allocation5 + $0x18] sm:$0xff] %v4236
    %4240 = vst [vmem:[#allocation5 + $0x20] sm:$0xff] %v4237
    %4241 = vst [vmem:[#allocation5 + $0x28] sm:$0xff] %v4238
    %v4242 = vmax.f32 %v4217, %v4220
    %v4243 = vmax.f32 %v4218, %v4221
    %v4244 = vmax.f32 %v4219, %v4222
    %4245 = vrot.lane.b32.xlu0 %v4242, 64
    %v4246 = vpop.permute.xlu0 %4245
    %4247 = vrot.lane.b32.xlu0 %v4243, 64
    %v4248 = vpop.permute.xlu0 %4247
    %4249 = vrot.lane.b32.xlu0 %v4244, 64
    %v4250 = vpop.permute.xlu0 %4249
    %v4251 = vsel %vm4232, %v4248, %v4250
    %v4252 = vsel %vm4232, %v4246, %v4248
    %v4253 = vsel %vm4232, %v4250, %v4246
    %v4254 = vmax.f32 %v4242, %v4252
    %v4255 = vmax.f32 %v4243, %v4251
    %v4256 = vmax.f32 %v4244, %v4253
    %4257 = vst [vmem:[#allocation5 + $0x30] sm:$0xff] %v4254
    %4258 = vst [vmem:[#allocation5 + $0x38] sm:$0xff] %v4255
    %4259 = vst [vmem:[#allocation5 + $0x40] sm:$0xff] %v4256
    %v4260 = vld [vmem:[#allocation5] sm:$0xff]
    %v4261 = vld [vmem:[#allocation5 + $0x8] sm:$0xff]
    %v4262 = vld [vmem:[#allocation5 + $0x10] sm:$0xff]
    %v4263 = vld [vmem:[#allocation5 + $0x18] sm:$0xff]
    %v4264 = vld [vmem:[#allocation5 + $0x20] sm:$0xff]
    %v4265 = vld [vmem:[#allocation5 + $0x28] sm:$0xff]
    %v4266 = vld [vmem:[#allocation5 + $0x30] sm:$0xff]
    %v4267 = vld [vmem:[#allocation5 + $0x38] sm:$0xff]
    %v4268 = vld [vmem:[#allocation5 + $0x40] sm:$0xff]
    %4269 = vst [vmem:[#allocation2] sm:$0xff] %v4260
    %4270 = vst [vmem:[#allocation2 + $0x8] sm:$0xff] %v4261
    %4271 = vst [vmem:[#allocation2 + $0x10] sm:$0xff] %v4262
    %4272 = vst [vmem:[#allocation2 + $0x18] sm:$0xff] %v4263
    %4273 = vst [vmem:[#allocation2 + $0x20] sm:$0xff] %v4264
    %4274 = vst [vmem:[#allocation2 + $0x28] sm:$0xff] %v4265
    %4275 = vst [vmem:[#allocation2 + $0x30] sm:$0xff] %v4266
    %4276 = vst [vmem:[#allocation2 + $0x38] sm:$0xff] %v4267
    %4277 = vst [vmem:[#allocation2 + $0x40] sm:$0xff] %v4268
    %v4278 = vld [vmem:[#allocation5 + $0x18] sm:$0xff]
    %v4279 = vld [vmem:[#allocation5 + $0x20] sm:$0xff]
    %v4280 = vld [vmem:[#allocation5 + $0x28] sm:$0xff]
    %v4281 = vld [vmem:[#allocation5 + $0x30] sm:$0xff]
    %v4282 = vld [vmem:[#allocation5 + $0x38] sm:$0xff]
    %v4283 = vld [vmem:[#allocation5 + $0x40] sm:$0xff]
    %v4284 = vld [vmem:[#allocation5 + $0x48] sm:$0xff]
    %v4285 = vld [vmem:[#allocation5 + $0x50] sm:$0xff]
    %v4286 = vld [vmem:[#allocation5 + $0x58] sm:$0xff]
    %4287 = vst [vmem:[#allocation2 + $0x48] sm:$0xff] %v4278
    %4288 = vst [vmem:[#allocation2 + $0x50] sm:$0xff] %v4279
    %4289 = vst [vmem:[#allocation2 + $0x58] sm:$0xff] %v4280
    %4290 = vst [vmem:[#allocation2 + $0x60] sm:$0xff] %v4281
    %4291 = vst [vmem:[#allocation2 + $0x68] sm:$0xff] %v4282
    %4292 = vst [vmem:[#allocation2 + $0x70] sm:$0xff] %v4283
    %4293 = vst [vmem:[#allocation2 + $0x78] sm:$0xff] %v4284
    %4294 = vst [vmem:[#allocation2 + $0x80] sm:$0xff] %v4285
    %4295 = vst [vmem:[#allocation2 + $0x88] sm:$0xff] %v4286
    %v4296 = vld [vmem:[#allocation2] sm:$0xff]
    %v4297 = vld [vmem:[#allocation2 + $0x8] sm:$0xff]
    %v4298 = vld [vmem:[#allocation2 + $0x10] sm:$0xff]
    %v4299 = vld [vmem:[#allocation2 + $0x18] sm:$0xff]
    %v4300 = vld [vmem:[#allocation2 + $0x20] sm:$0xff]
    %v4301 = vld [vmem:[#allocation2 + $0x28] sm:$0xff]
    %v4302 = vld [vmem:[#allocation2 + $0x30] sm:$0xff]
    %v4303 = vld [vmem:[#allocation2 + $0x38] sm:$0xff]
    %v4304 = vld [vmem:[#allocation2 + $0x40] sm:$0xff]
    %v4305 = vld [vmem:[#allocation2 + $0x48] sm:$0xff]
    %v4306 = vld [vmem:[#allocation2 + $0x50] sm:$0xff]
    %v4307 = vld [vmem:[#allocation2 + $0x58] sm:$0xff]
    %v4308 = vld [vmem:[#allocation2 + $0x60] sm:$0xff]
    %v4309 = vld [vmem:[#allocation2 + $0x68] sm:$0xff]
    %v4310 = vld [vmem:[#allocation2 + $0x70] sm:$0xff]
    %v4311 = vld [vmem:[#allocation2 + $0x78] sm:$0xff]
    %v4312 = vld [vmem:[#allocation2 + $0x80] sm:$0xff]
    %v4313 = vld [vmem:[#allocation2 + $0x88] sm:$0xff]
    %v4314 = vpack.c.bf16 %v4305, %v4296
    %v4315 = vpack.c.bf16 %v4306, %v4297
    %v4316 = vpack.c.bf16 %v4307, %v4298
    %v4317 = vpack.c.bf16 %v4308, %v4299
    %v4318 = vpack.c.bf16 %v4309, %v4300
    %v4319 = vpack.c.bf16 %v4310, %v4301
    %v4320 = vpack.c.bf16 %v4311, %v4302
    %v4321 = vpack.c.bf16 %v4312, %v4303
    %v4322 = vpack.c.bf16 %v4313, %v4304
    %v4323 = vld [vmem:[#allocation12] sm:$0xf]
    %v4324 = vld [vmem:[#allocation12 + $0x4] sm:$0xf]
    %v4325 = vld [vmem:[#allocation12 + $0x8] sm:$0xf]
    %v4326 = vld [vmem:[#allocation12 + $0xc] sm:$0xf]
    %v4327 = vld [vmem:[#allocation12 + $0x10] sm:$0xf]
    %v4328 = vld [vmem:[#allocation12 + $0x14] sm:$0xf]
    %v4329 = vld [vmem:[#allocation12 + $0x18] sm:$0xf]
    %v4330 = vld [vmem:[#allocation12 + $0x1c] sm:$0xf]
    %v4331 = vld [vmem:[#allocation12 + $0x20] sm:$0xf]
    %v4332 = vld [vmem:[#allocation12 + $0x24] sm:$0xf]
    %v4333 = vld [vmem:[#allocation12 + $0x28] sm:$0xf]
    %v4334 = vld [vmem:[#allocation12 + $0x2c] sm:$0xf]
    %v4335 = vld [vmem:[#allocation12 + $0x30] sm:$0xf]
    %v4336 = vld [vmem:[#allocation12 + $0x34] sm:$0xf]
    %v4337 = vld [vmem:[#allocation12 + $0x38] sm:$0xf]
    %v4338 = vld [vmem:[#allocation12 + $0x3c] sm:$0xf]
    %v4339 = vld [vmem:[#allocation12 + $0x40] sm:$0xf]
    %v4340 = vld [vmem:[#allocation12 + $0x44] sm:$0xf]
    %v4341 = vld [vmem:[#allocation12 + $0x48] sm:$0xf]
    %v4342 = vld [vmem:[#allocation12 + $0x4c] sm:$0xf]
    %v4343 = vld [vmem:[#allocation12 + $0x50] sm:$0xf]
    %v4344 = vld [vmem:[#allocation12 + $0x54] sm:$0xf]
    %v4345 = vld [vmem:[#allocation12 + $0x58] sm:$0xf]
    %v4346 = vld [vmem:[#allocation12 + $0x5c] sm:$0xf]
    %v4347 = vld [vmem:[#allocation12 + $0x60] sm:$0xf]
    %v4348 = vld [vmem:[#allocation12 + $0x64] sm:$0xf]
    %v4349 = vld [vmem:[#allocation12 + $0x68] sm:$0xf]
    %v4350 = vld [vmem:[#allocation12 + $0x6c] sm:$0xf]
    %v4351 = vld [vmem:[#allocation12 + $0x70] sm:$0xf]
    %v4352 = vld [vmem:[#allocation12 + $0x74] sm:$0xf]
    %v4353 = vld [vmem:[#allocation12 + $0x78] sm:$0xf]
    %v4354 = vld [vmem:[#allocation12 + $0x7c] sm:$0xf]
    %v4355 = vld [vmem:[#allocation12 + $0x80] sm:$0xf]
    %v4356 = vld [vmem:[#allocation12 + $0x84] sm:$0xf]
    %v4357 = vld [vmem:[#allocation12 + $0x88] sm:$0xf]
    %v4358 = vld [vmem:[#allocation12 + $0x8c] sm:$0xf]
    %v4359 = vld [vmem:[#allocation12 + $0x90] sm:$0xf]
    %v4360 = vld [vmem:[#allocation12 + $0x94] sm:$0xf]
    %v4361 = vld [vmem:[#allocation12 + $0x98] sm:$0xf]
    %v4362 = vld [vmem:[#allocation12 + $0x9c] sm:$0xf]
    %v4363 = vld [vmem:[#allocation12 + $0xa0] sm:$0xf]
    %v4364 = vld [vmem:[#allocation12 + $0xa4] sm:$0xf]
    %v4365 = vld [vmem:[#allocation12 + $0xa8] sm:$0xf]
    %v4366 = vld [vmem:[#allocation12 + $0xac] sm:$0xf]
    %v4367 = vld [vmem:[#allocation12 + $0xb0] sm:$0xf]
    %v4368 = vld [vmem:[#allocation12 + $0xb4] sm:$0xf]
    %v4369 = vld [vmem:[#allocation12 + $0xb8] sm:$0xf]
    %v4370 = vld [vmem:[#allocation12 + $0xbc] sm:$0xf]
    %v4371 = vld [vmem:[#allocation12 + $0xc0] sm:$0xf]
    %v4372 = vld [vmem:[#allocation12 + $0xc4] sm:$0xf]
    %v4373 = vld [vmem:[#allocation12 + $0xc8] sm:$0xf]
    %v4374 = vld [vmem:[#allocation12 + $0xcc] sm:$0xf]
    %v4375 = vld [vmem:[#allocation12 + $0xd0] sm:$0xf]
    %v4376 = vld [vmem:[#allocation12 + $0xd4] sm:$0xf]
    %v4377 = vld [vmem:[#allocation12 + $0xd8] sm:$0xf]
    %v4378 = vld [vmem:[#allocation12 + $0xdc] sm:$0xf]
    %v4379 = vld [vmem:[#allocation12 + $0xe0] sm:$0xf]
    %v4380 = vld [vmem:[#allocation12 + $0xe4] sm:$0xf]
    %v4381 = vld [vmem:[#allocation12 + $0xe8] sm:$0xf]
    %v4382 = vld [vmem:[#allocation12 + $0xec] sm:$0xf]
    %v4383 = vld [vmem:[#allocation12 + $0xf0] sm:$0xf]
    %v4384 = vld [vmem:[#allocation12 + $0xf4] sm:$0xf]
    %v4385 = vld [vmem:[#allocation12 + $0xf8] sm:$0xf]
    %v4386 = vld [vmem:[#allocation12 + $0xfc] sm:$0xf]
    %v4387 = vld [vmem:[#allocation12 + $0x100] sm:$0xf]
    %v4388 = vld [vmem:[#allocation12 + $0x104] sm:$0xf]
    %v4389 = vld [vmem:[#allocation12 + $0x108] sm:$0xf]
    %v4390 = vld [vmem:[#allocation12 + $0x10c] sm:$0xf]
    %v4391 = vld [vmem:[#allocation12 + $0x110] sm:$0xf]
    %v4392 = vld [vmem:[#allocation12 + $0x114] sm:$0xf]
    %v4393 = vld [vmem:[#allocation12 + $0x118] sm:$0xf]
    %v4394 = vld [vmem:[#allocation12 + $0x11c] sm:$0xf]
    %v4395 = vld [vmem:[#allocation12 + $0x120] sm:$0xf]
    %v4396 = vld [vmem:[#allocation12 + $0x124] sm:$0xf]
    %v4397 = vld [vmem:[#allocation12 + $0x128] sm:$0xf]
    %v4398 = vld [vmem:[#allocation12 + $0x12c] sm:$0xf]
    %v4399 = vld [vmem:[#allocation12 + $0x130] sm:$0xf]
    %v4400 = vld [vmem:[#allocation12 + $0x134] sm:$0xf]
    %v4401 = vld [vmem:[#allocation12 + $0x138] sm:$0xf]
    %v4402 = vld [vmem:[#allocation12 + $0x13c] sm:$0xf]
    %v4403 = vld [vmem:[#allocation12 + $0x140] sm:$0xf]
    %v4404 = vld [vmem:[#allocation12 + $0x144] sm:$0xf]
    %v4405 = vld [vmem:[#allocation12 + $0x148] sm:$0xf]
    %v4406 = vld [vmem:[#allocation12 + $0x14c] sm:$0xf]
    %v4407 = vld [vmem:[#allocation12 + $0x150] sm:$0xf]
    %v4408 = vld [vmem:[#allocation12 + $0x154] sm:$0xf]
    %v4409 = vld [vmem:[#allocation12 + $0x158] sm:$0xf]
    %v4410 = vld [vmem:[#allocation12 + $0x15c] sm:$0xf]
    %v4411 = vld [vmem:[#allocation12 + $0x160] sm:$0xf]
    %v4412 = vld [vmem:[#allocation12 + $0x164] sm:$0xf]
    %v4413 = vld [vmem:[#allocation12 + $0x168] sm:$0xf]
    %v4414 = vld [vmem:[#allocation12 + $0x16c] sm:$0xf]
    %v4415 = vld [vmem:[#allocation12 + $0x170] sm:$0xf]
    %v4416 = vld [vmem:[#allocation12 + $0x174] sm:$0xf]
    %v4417 = vld [vmem:[#allocation12 + $0x178] sm:$0xf]
    %v4418 = vld [vmem:[#allocation12 + $0x17c] sm:$0xf]
    %v4419 = vld [vmem:[#allocation12 + $0x180] sm:$0xf]
    %v4420 = vld [vmem:[#allocation12 + $0x184] sm:$0xf]
    %v4421 = vld [vmem:[#allocation12 + $0x188] sm:$0xf]
    %v4422 = vld [vmem:[#allocation12 + $0x18c] sm:$0xf]
    %v4423 = vld [vmem:[#allocation12 + $0x190] sm:$0xf]
    %v4424 = vld [vmem:[#allocation12 + $0x194] sm:$0xf]
    %v4425 = vld [vmem:[#allocation12 + $0x198] sm:$0xf]
    %v4426 = vld [vmem:[#allocation12 + $0x19c] sm:$0xf]
    %v4427 = vld [vmem:[#allocation12 + $0x1a0] sm:$0xf]
    %v4428 = vld [vmem:[#allocation12 + $0x1a4] sm:$0xf]
    %v4429 = vld [vmem:[#allocation12 + $0x1a8] sm:$0xf]
    %v4430 = vld [vmem:[#allocation12 + $0x1ac] sm:$0xf]
    %v4431 = vld [vmem:[#allocation12 + $0x1b0] sm:$0xf]
    %v4432 = vld [vmem:[#allocation12 + $0x1b4] sm:$0xf]
    %v4433 = vld [vmem:[#allocation12 + $0x1b8] sm:$0xf]
    %v4434 = vld [vmem:[#allocation12 + $0x1bc] sm:$0xf]
    %v4435 = vld [vmem:[#allocation12 + $0x1c0] sm:$0xf]
    %v4436 = vld [vmem:[#allocation12 + $0x1c4] sm:$0xf]
    %v4437 = vld [vmem:[#allocation12 + $0x1c8] sm:$0xf]
    %v4438 = vld [vmem:[#allocation12 + $0x1cc] sm:$0xf]
    %v4439 = vld [vmem:[#allocation12 + $0x1d0] sm:$0xf]
    %v4440 = vld [vmem:[#allocation12 + $0x1d4] sm:$0xf]
    %v4441 = vld [vmem:[#allocation12 + $0x1d8] sm:$0xf]
    %v4442 = vld [vmem:[#allocation12 + $0x1dc] sm:$0xf]
    %v4443 = vld [vmem:[#allocation12 + $0x1e0] sm:$0xf]
    %v4444 = vld [vmem:[#allocation12 + $0x1e4] sm:$0xf]
    %v4445 = vld [vmem:[#allocation12 + $0x1e8] sm:$0xf]
    %v4446 = vld [vmem:[#allocation12 + $0x1ec] sm:$0xf]
    %v4447 = vld [vmem:[#allocation12 + $0x1f0] sm:$0xf]
    %v4448 = vld [vmem:[#allocation12 + $0x1f4] sm:$0xf]
    %v4449 = vld [vmem:[#allocation12 + $0x1f8] sm:$0xf]
    %v4450 = vld [vmem:[#allocation12 + $0x1fc] sm:$0xf]
    %v4451 = vld [vmem:[#allocation12 + $0x200] sm:$0xf]
    %v4452 = vld [vmem:[#allocation12 + $0x204] sm:$0xf]
    %v4453 = vld [vmem:[#allocation12 + $0x208] sm:$0xf]
    %v4454 = vld [vmem:[#allocation12 + $0x20c] sm:$0xf]
    %v4455 = vld [vmem:[#allocation12 + $0x210] sm:$0xf]
    %v4456 = vld [vmem:[#allocation12 + $0x214] sm:$0xf]
    %v4457 = vld [vmem:[#allocation12 + $0x218] sm:$0xf]
    %v4458 = vld [vmem:[#allocation12 + $0x21c] sm:$0xf]
    %v4459 = vld [vmem:[#allocation12 + $0x220] sm:$0xf]
    %v4460 = vld [vmem:[#allocation12 + $0x224] sm:$0xf]
    %v4461 = vld [vmem:[#allocation12 + $0x228] sm:$0xf]
    %v4462 = vld [vmem:[#allocation12 + $0x22c] sm:$0xf]
    %v4463 = vld [vmem:[#allocation12 + $0x230] sm:$0xf]
    %v4464 = vld [vmem:[#allocation12 + $0x234] sm:$0xf]
    %v4465 = vld [vmem:[#allocation12 + $0x238] sm:$0xf]
    %v4466 = vld [vmem:[#allocation12 + $0x23c] sm:$0xf]
    %v4467 = vld [vmem:[%s8] sm:$0x1]
    %v4469 = vperm.slane %v4467, 0
    %v4615 = vunpack.c.l.b16 %v4323
    %v4616 = vunpack.c.l.b16 %v4324
    %v4617 = vunpack.c.l.b16 %v4325
    %v4618 = vunpack.c.l.b16 %v4326
    %v4619 = vunpack.c.l.b16 %v4327
    %v4620 = vunpack.c.l.b16 %v4328
    %v4621 = vunpack.c.l.b16 %v4329
    %v4622 = vunpack.c.l.b16 %v4330
    %v4623 = vunpack.c.l.b16 %v4331
    %v4624 = vunpack.c.l.b16 %v4332
    %v4625 = vunpack.c.l.b16 %v4333
    %v4626 = vunpack.c.l.b16 %v4334
    %v4627 = vunpack.c.l.b16 %v4335
    %v4628 = vunpack.c.l.b16 %v4336
    %v4629 = vunpack.c.l.b16 %v4337
    %v4630 = vunpack.c.l.b16 %v4338
    %v4631 = vunpack.c.l.b16 %v4339
    %v4632 = vunpack.c.l.b16 %v4340
    %v4633 = vunpack.c.l.b16 %v4341
    %v4634 = vunpack.c.l.b16 %v4342
    %v4635 = vunpack.c.l.b16 %v4343
    %v4636 = vunpack.c.l.b16 %v4344
    %v4637 = vunpack.c.l.b16 %v4345
    %v4638 = vunpack.c.l.b16 %v4346
    %v4639 = vunpack.c.l.b16 %v4347
    %v4640 = vunpack.c.l.b16 %v4348
    %v4641 = vunpack.c.l.b16 %v4349
    %v4642 = vunpack.c.l.b16 %v4350
    %v4643 = vunpack.c.l.b16 %v4351
    %v4644 = vunpack.c.l.b16 %v4352
    %v4645 = vunpack.c.l.b16 %v4353
    %v4646 = vunpack.c.l.b16 %v4354
    %v4647 = vunpack.c.l.b16 %v4355
    %v4648 = vunpack.c.l.b16 %v4356
    %v4649 = vunpack.c.l.b16 %v4357
    %v4650 = vunpack.c.l.b16 %v4358
    %v4651 = vunpack.c.l.b16 %v4359
    %v4652 = vunpack.c.l.b16 %v4360
    %v4653 = vunpack.c.l.b16 %v4361
    %v4654 = vunpack.c.l.b16 %v4362
    %v4655 = vunpack.c.l.b16 %v4363
    %v4656 = vunpack.c.l.b16 %v4364
    %v4657 = vunpack.c.l.b16 %v4365
    %v4658 = vunpack.c.l.b16 %v4366
    %v4659 = vunpack.c.l.b16 %v4367
    %v4660 = vunpack.c.l.b16 %v4368
    %v4661 = vunpack.c.l.b16 %v4369
    %v4662 = vunpack.c.l.b16 %v4370
    %v4663 = vunpack.c.l.b16 %v4371
    %v4664 = vunpack.c.l.b16 %v4372
    %v4665 = vunpack.c.l.b16 %v4373
    %v4666 = vunpack.c.l.b16 %v4374
    %v4667 = vunpack.c.l.b16 %v4375
    %v4668 = vunpack.c.l.b16 %v4376
    %v4669 = vunpack.c.l.b16 %v4377
    %v4670 = vunpack.c.l.b16 %v4378
    %v4671 = vunpack.c.l.b16 %v4379
    %v4672 = vunpack.c.l.b16 %v4380
    %v4673 = vunpack.c.l.b16 %v4381
    %v4674 = vunpack.c.l.b16 %v4382
    %v4675 = vunpack.c.l.b16 %v4383
    %v4676 = vunpack.c.l.b16 %v4384
    %v4677 = vunpack.c.l.b16 %v4385
    %v4678 = vunpack.c.l.b16 %v4386
    %v4679 = vunpack.c.l.b16 %v4387
    %v4680 = vunpack.c.l.b16 %v4388
    %v4681 = vunpack.c.l.b16 %v4389
    %v4682 = vunpack.c.l.b16 %v4390
    %v4683 = vunpack.c.l.b16 %v4391
    %v4684 = vunpack.c.l.b16 %v4392
    %v4685 = vunpack.c.l.b16 %v4393
    %v4686 = vunpack.c.l.b16 %v4394
    %v4687 = vunpack.c.l.b16 %v4395
    %v4688 = vunpack.c.l.b16 %v4396
    %v4689 = vunpack.c.l.b16 %v4397
    %v4690 = vunpack.c.l.b16 %v4398
    %v4691 = vunpack.c.l.b16 %v4399
    %v4692 = vunpack.c.l.b16 %v4400
    %v4693 = vunpack.c.l.b16 %v4401
    %v4694 = vunpack.c.l.b16 %v4402
    %v4695 = vunpack.c.l.b16 %v4403
    %v4696 = vunpack.c.l.b16 %v4404
    %v4697 = vunpack.c.l.b16 %v4405
    %v4698 = vunpack.c.l.b16 %v4406
    %v4699 = vunpack.c.l.b16 %v4407
    %v4700 = vunpack.c.l.b16 %v4408
    %v4701 = vunpack.c.l.b16 %v4409
    %v4702 = vunpack.c.l.b16 %v4410
    %v4703 = vunpack.c.l.b16 %v4411
    %v4704 = vunpack.c.l.b16 %v4412
    %v4705 = vunpack.c.l.b16 %v4413
    %v4706 = vunpack.c.l.b16 %v4414
    %v4707 = vunpack.c.l.b16 %v4415
    %v4708 = vunpack.c.l.b16 %v4416
    %v4709 = vunpack.c.l.b16 %v4417
    %v4710 = vunpack.c.l.b16 %v4418
    %v4711 = vunpack.c.l.b16 %v4419
    %v4712 = vunpack.c.l.b16 %v4420
    %v4713 = vunpack.c.l.b16 %v4421
    %v4714 = vunpack.c.l.b16 %v4422
    %v4715 = vunpack.c.l.b16 %v4423
    %v4716 = vunpack.c.l.b16 %v4424
    %v4717 = vunpack.c.l.b16 %v4425
    %v4718 = vunpack.c.l.b16 %v4426
    %v4719 = vunpack.c.l.b16 %v4427
    %v4720 = vunpack.c.l.b16 %v4428
    %v4721 = vunpack.c.l.b16 %v4429
    %v4722 = vunpack.c.l.b16 %v4430
    %v4723 = vunpack.c.l.b16 %v4431
    %v4724 = vunpack.c.l.b16 %v4432
    %v4725 = vunpack.c.l.b16 %v4433
    %v4726 = vunpack.c.l.b16 %v4434
    %v4727 = vunpack.c.l.b16 %v4435
    %v4728 = vunpack.c.l.b16 %v4436
    %v4729 = vunpack.c.l.b16 %v4437
    %v4730 = vunpack.c.l.b16 %v4438
    %v4731 = vunpack.c.l.b16 %v4439
    %v4732 = vunpack.c.l.b16 %v4440
    %v4733 = vunpack.c.l.b16 %v4441
    %v4734 = vunpack.c.l.b16 %v4442
    %v4735 = vunpack.c.l.b16 %v4443
    %v4736 = vunpack.c.l.b16 %v4444
    %v4737 = vunpack.c.l.b16 %v4445
    %v4738 = vunpack.c.l.b16 %v4446
    %v4739 = vunpack.c.l.b16 %v4447
    %v4740 = vunpack.c.l.b16 %v4448
    %v4741 = vunpack.c.l.b16 %v4449
    %v4742 = vunpack.c.l.b16 %v4450
    %v4743 = vunpack.c.l.b16 %v4451
    %v4744 = vunpack.c.l.b16 %v4452
    %v4745 = vunpack.c.l.b16 %v4453
    %v4746 = vunpack.c.l.b16 %v4454
    %v4747 = vunpack.c.l.b16 %v4455
    %v4748 = vunpack.c.l.b16 %v4456
    %v4749 = vunpack.c.l.b16 %v4457
    %v4750 = vunpack.c.l.b16 %v4458
    %v4751 = vunpack.c.l.b16 %v4459
    %v4752 = vunpack.c.l.b16 %v4460
    %v4753 = vunpack.c.l.b16 %v4461
    %v4754 = vunpack.c.l.b16 %v4462
    %v4755 = vunpack.c.l.b16 %v4463
    %v4756 = vunpack.c.l.b16 %v4464
    %v4757 = vunpack.c.l.b16 %v4465
    %v4758 = vunpack.c.l.b16 %v4466
    %v4759 = vpack.c.b16 %v4616, %v4615
    %v4760 = vpack.c.b16 %v4618, %v4617
    %v4761 = vpack.c.b16 %v4620, %v4619
    %v4762 = vpack.c.b16 %v4622, %v4621
    %v4763 = vpack.c.b16 %v4624, %v4623
    %v4764 = vpack.c.b16 %v4626, %v4625
    %v4765 = vpack.c.b16 %v4628, %v4627
    %v4766 = vpack.c.b16 %v4630, %v4629
    %v4767 = vpack.c.b16 %v4632, %v4631
    %v4768 = vpack.c.b16 %v4634, %v4633
    %v4769 = vpack.c.b16 %v4636, %v4635
    %v4770 = vpack.c.b16 %v4638, %v4637
    %v4771 = vpack.c.b16 %v4640, %v4639
    %v4772 = vpack.c.b16 %v4642, %v4641
    %v4773 = vpack.c.b16 %v4644, %v4643
    %v4774 = vpack.c.b16 %v4646, %v4645
    %v4775 = vpack.c.b16 %v4648, %v4647
    %v4776 = vpack.c.b16 %v4650, %v4649
    %v4777 = vpack.c.b16 %v4652, %v4651
    %v4778 = vpack.c.b16 %v4654, %v4653
    %v4779 = vpack.c.b16 %v4656, %v4655
    %v4780 = vpack.c.b16 %v4658, %v4657
    %v4781 = vpack.c.b16 %v4660, %v4659
    %v4782 = vpack.c.b16 %v4662, %v4661
    %v4783 = vpack.c.b16 %v4664, %v4663
    %v4784 = vpack.c.b16 %v4666, %v4665
    %v4785 = vpack.c.b16 %v4668, %v4667
    %v4786 = vpack.c.b16 %v4670, %v4669
    %v4787 = vpack.c.b16 %v4672, %v4671
    %v4788 = vpack.c.b16 %v4674, %v4673
    %v4789 = vpack.c.b16 %v4676, %v4675
    %v4790 = vpack.c.b16 %v4678, %v4677
    %v4791 = vpack.c.b16 %v4680, %v4679
    %v4792 = vpack.c.b16 %v4682, %v4681
    %v4793 = vpack.c.b16 %v4684, %v4683
    %v4794 = vpack.c.b16 %v4686, %v4685
    %v4795 = vpack.c.b16 %v4688, %v4687
    %v4796 = vpack.c.b16 %v4690, %v4689
    %v4797 = vpack.c.b16 %v4692, %v4691
    %v4798 = vpack.c.b16 %v4694, %v4693
    %v4799 = vpack.c.b16 %v4696, %v4695
    %v4800 = vpack.c.b16 %v4698, %v4697
    %v4801 = vpack.c.b16 %v4700, %v4699
    %v4802 = vpack.c.b16 %v4702, %v4701
    %v4803 = vpack.c.b16 %v4704, %v4703
    %v4804 = vpack.c.b16 %v4706, %v4705
    %v4805 = vpack.c.b16 %v4708, %v4707
    %v4806 = vpack.c.b16 %v4710, %v4709
    %v4807 = vpack.c.b16 %v4712, %v4711
    %v4808 = vpack.c.b16 %v4714, %v4713
    %v4809 = vpack.c.b16 %v4716, %v4715
    %v4810 = vpack.c.b16 %v4718, %v4717
    %v4811 = vpack.c.b16 %v4720, %v4719
    %v4812 = vpack.c.b16 %v4722, %v4721
    %v4813 = vpack.c.b16 %v4724, %v4723
    %v4814 = vpack.c.b16 %v4726, %v4725
    %v4815 = vpack.c.b16 %v4728, %v4727
    %v4816 = vpack.c.b16 %v4730, %v4729
    %v4817 = vpack.c.b16 %v4732, %v4731
    %v4818 = vpack.c.b16 %v4734, %v4733
    %v4819 = vpack.c.b16 %v4736, %v4735
    %v4820 = vpack.c.b16 %v4738, %v4737
    %v4821 = vpack.c.b16 %v4740, %v4739
    %v4822 = vpack.c.b16 %v4742, %v4741
    %v4823 = vpack.c.b16 %v4744, %v4743
    %v4824 = vpack.c.b16 %v4746, %v4745
    %v4825 = vpack.c.b16 %v4748, %v4747
    %v4826 = vpack.c.b16 %v4750, %v4749
    %v4827 = vpack.c.b16 %v4752, %v4751
    %v4828 = vpack.c.b16 %v4754, %v4753
    %v4829 = vpack.c.b16 %v4756, %v4755
    %v4830 = vpack.c.b16 %v4758, %v4757
    %4903 = vmatpush.bf16.msra.mxu0 %v4766
    %4904 = vmatpush.bf16.msra.mxu0 %v4765
    %4905 = vmatpush.bf16.msra.mxu0 %v4764
    %4906 = vmatpush.bf16.msra.mxu0 %v4763
    %4907 = vmatpush.bf16.msra.mxu0 %v4762
    %4908 = vmatpush.bf16.msra.mxu0 %v4761
    %4909 = vmatpush.bf16.msra.mxu0 %v4760
    %4910 = vmatpush.bf16.msra.mxu0 %v4759
    %4911 = vmatmul.bf16.gmra.mxu0 %v4314
    %v4912 = vpop.f32.mrf.mxu0
    %v4913 = vadd.f32 %v4469, %v4912
    %v4914 = vpop.f32.mrf.mxu0
    %v4915 = vadd.f32 %v4469, %v4914
    %4916 = vdwg.mxu0
    %4917 = vmatpush.bf16.msra.mxu0 %v4774
    %4918 = vmatpush.bf16.msra.mxu0 %v4773
    %4919 = vmatpush.bf16.msra.mxu0 %v4772
    %4920 = vmatpush.bf16.msra.mxu0 %v4771
    %4921 = vmatpush.bf16.msra.mxu0 %v4770
    %4922 = vmatpush.bf16.msra.mxu0 %v4769
    %4923 = vmatpush.bf16.msra.mxu0 %v4768
    %4924 = vmatpush.bf16.msra.mxu0 %v4767
    %4925 = vmatmul.bf16.gmra.mxu0 %v4315
    %v4926 = vpop.f32.mrf.mxu0
    %v4927 = vadd.f32 %v4913, %v4926
    %v4928 = vpop.f32.mrf.mxu0
    %v4929 = vadd.f32 %v4915, %v4928
    %4930 = vdwg.mxu0
    %4931 = vmatpush.bf16.msra.mxu0 %v4782
    %4932 = vmatpush.bf16.msra.mxu0 %v4781
    %4933 = vmatpush.bf16.msra.mxu0 %v4780
    %4934 = vmatpush.bf16.msra.mxu0 %v4779
    %4935 = vmatpush.bf16.msra.mxu0 %v4778
    %4936 = vmatpush.bf16.msra.mxu0 %v4777
    %4937 = vmatpush.bf16.msra.mxu0 %v4776
    %4938 = vmatpush.bf16.msra.mxu0 %v4775
    %4939 = vmatmul.bf16.gmra.mxu0 %v4316
    %v4940 = vpop.f32.mrf.mxu0
    %v4941 = vadd.f32 %v4927, %v4940
    %v4942 = vpop.f32.mrf.mxu0
    %v4943 = vadd.f32 %v4929, %v4942
    %4944 = vdwg.mxu0
    %4945 = vmatpush.bf16.msra.mxu0 %v4790
    %4946 = vmatpush.bf16.msra.mxu0 %v4789
    %4947 = vmatpush.bf16.msra.mxu0 %v4788
    %4948 = vmatpush.bf16.msra.mxu0 %v4787
    %4949 = vmatpush.bf16.msra.mxu0 %v4786
    %4950 = vmatpush.bf16.msra.mxu0 %v4785
    %4951 = vmatpush.bf16.msra.mxu0 %v4784
    %4952 = vmatpush.bf16.msra.mxu0 %v4783
    %4953 = vmatmul.bf16.gmra.mxu0 %v4317
    %v4954 = vpop.f32.mrf.mxu0
    %v4955 = vadd.f32 %v4941, %v4954
    %v4956 = vpop.f32.mrf.mxu0
    %v4957 = vadd.f32 %v4943, %v4956
    %4958 = vdwg.mxu0
    %4959 = vmatpush.bf16.msra.mxu0 %v4798
    %4960 = vmatpush.bf16.msra.mxu0 %v4797
    %4961 = vmatpush.bf16.msra.mxu0 %v4796
    %4962 = vmatpush.bf16.msra.mxu0 %v4795
    %4963 = vmatpush.bf16.msra.mxu0 %v4794
    %4964 = vmatpush.bf16.msra.mxu0 %v4793
    %4965 = vmatpush.bf16.msra.mxu0 %v4792
    %4966 = vmatpush.bf16.msra.mxu0 %v4791
    %4967 = vmatmul.bf16.gmra.mxu0 %v4318
    %v4968 = vpop.f32.mrf.mxu0
    %v4969 = vadd.f32 %v4955, %v4968
    %v4970 = vpop.f32.mrf.mxu0
    %v4971 = vadd.f32 %v4957, %v4970
    %4972 = vdwg.mxu0
    %4973 = vmatpush.bf16.msra.mxu0 %v4806
    %4974 = vmatpush.bf16.msra.mxu0 %v4805
    %4975 = vmatpush.bf16.msra.mxu0 %v4804
    %4976 = vmatpush.bf16.msra.mxu0 %v4803
    %4977 = vmatpush.bf16.msra.mxu0 %v4802
    %4978 = vmatpush.bf16.msra.mxu0 %v4801
    %4979 = vmatpush.bf16.msra.mxu0 %v4800
    %4980 = vmatpush.bf16.msra.mxu0 %v4799
    %4981 = vmatmul.bf16.gmra.mxu0 %v4319
    %v4982 = vpop.f32.mrf.mxu0
    %v4983 = vadd.f32 %v4969, %v4982
    %v4984 = vpop.f32.mrf.mxu0
    %v4985 = vadd.f32 %v4971, %v4984
    %4986 = vdwg.mxu0
    %4987 = vmatpush.bf16.msra.mxu0 %v4814
    %4988 = vmatpush.bf16.msra.mxu0 %v4813
    %4989 = vmatpush.bf16.msra.mxu0 %v4812
    %4990 = vmatpush.bf16.msra.mxu0 %v4811
    %4991 = vmatpush.bf16.msra.mxu0 %v4810
    %4992 = vmatpush.bf16.msra.mxu0 %v4809
    %4993 = vmatpush.bf16.msra.mxu0 %v4808
    %4994 = vmatpush.bf16.msra.mxu0 %v4807
    %4995 = vmatmul.bf16.gmra.mxu0 %v4320
    %v4996 = vpop.f32.mrf.mxu0
    %v4997 = vadd.f32 %v4983, %v4996
    %v4998 = vpop.f32.mrf.mxu0
    %v4999 = vadd.f32 %v4985, %v4998
    %5000 = vdwg.mxu0
    %5001 = vmatpush.bf16.msra.mxu0 %v4822
    %5002 = vmatpush.bf16.msra.mxu0 %v4821
    %5003 = vmatpush.bf16.msra.mxu0 %v4820
    %5004 = vmatpush.bf16.msra.mxu0 %v4819
    %5005 = vmatpush.bf16.msra.mxu0 %v4818
    %5006 = vmatpush.bf16.msra.mxu0 %v4817
    %5007 = vmatpush.bf16.msra.mxu0 %v4816
    %5008 = vmatpush.bf16.msra.mxu0 %v4815
    %5009 = vmatmul.bf16.gmra.mxu0 %v4321
    %v5010 = vpop.f32.mrf.mxu0
    %v5011 = vadd.f32 %v4997, %v5010
    %v5012 = vpop.f32.mrf.mxu0
    %v5013 = vadd.f32 %v4999, %v5012
    %5014 = vdwg.mxu0
    %5015 = vmatpush.bf16.msra.mxu0 %v4830
    %5016 = vmatpush.bf16.msra.mxu0 %v4829
    %5017 = vmatpush.bf16.msra.mxu0 %v4828
    %5018 = vmatpush.bf16.msra.mxu0 %v4827
    %5019 = vmatpush.bf16.msra.mxu0 %v4826
    %5020 = vmatpush.bf16.msra.mxu0 %v4825
    %5021 = vmatpush.bf16.msra.mxu0 %v4824
    %5022 = vmatpush.bf16.msra.mxu0 %v4823
    %5023 = vmatmul.bf16.gmra.mxu0 %v4322
    %v5024 = vpop.f32.mrf.mxu0
    %v5025 = vadd.f32 %v5011, %v5024
    %v5026 = vpop.f32.mrf.mxu0
    %v5027 = vadd.f32 %v5013, %v5026
    %5028 = vdwg.mxu0
    %v5029 = vmax.f32 %v5025, 0.0
    %v5030 = vmax.f32 %v5027, 0.0
    %5031 = vst [vmem:[#allocation6 + $0x8] sm:$0xff] %v5029
    %5032 = vst [vmem:[#allocation6 + $0x10] sm:$0xff] %v5030
    %v5033 = vld [vmem:[#allocation6] sm:$0xff]
    %v5034 = vld [vmem:[#allocation6 + $0x8] sm:$0xff]
    %v5035 = vld [vmem:[#allocation6 + $0x10] sm:$0xff]
    %5036 = vst [vmem:[#allocation2] sm:$0xff] %v5033
    %5037 = vst [vmem:[#allocation2 + $0x8] sm:$0xff] %v5034
    %5038 = vst [vmem:[#allocation2 + $0x10] sm:$0xff] %v5035
    %v5039 = vld [vmem:[#allocation6 + $0x8] sm:$0xff]
    %v5040 = vld [vmem:[#allocation6 + $0x10] sm:$0xff]
    %v5041 = vld [vmem:[#allocation6 + $0x18] sm:$0xff]
    %5042 = vst [vmem:[#allocation2 + $0x48] sm:$0xff] %v5039
    %5043 = vst [vmem:[#allocation2 + $0x50] sm:$0xff] %v5040
    %5044 = vst [vmem:[#allocation2 + $0x58] sm:$0xff] %v5041
    %v5045 = vld [vmem:[#allocation2] sm:$0xff]
    %v5046 = vld [vmem:[#allocation2 + $0x8] sm:$0xff]
    %v5047 = vld [vmem:[#allocation2 + $0x10] sm:$0xff]
    %v5048 = vld [vmem:[#allocation2 + $0x48] sm:$0xff]
    %v5049 = vld [vmem:[#allocation2 + $0x50] sm:$0xff]
    %v5050 = vld [vmem:[#allocation2 + $0x58] sm:$0xff]
    %v5051 = vpack.c.bf16 %v5048, %v5045
    %v5052 = vpack.c.bf16 %v5049, %v5046
    %v5053 = vpack.c.bf16 %v5050, %v5047
    %v5054 = vld [vmem:[%s9] sm:$0xff]
    %v5055 = vld [vmem:[%s9 + $0x8] sm:$0xff]
    %v5056 = vld [vmem:[%s9 + $0x10] sm:$0xff]
    %v5057 = vld [vmem:[%s9 + $0x18] sm:$0xff]
    %v5058 = vld [vmem:[%s9 + $0x20] sm:$0xff]
    %v5059 = vld [vmem:[%s9 + $0x28] sm:$0xff]
    %v5060 = vld [vmem:[%s9 + $0x30] sm:$0xff]
    %v5061 = vld [vmem:[%s9 + $0x38] sm:$0xff]
    %v5062 = vld [vmem:[%s9 + $0x40] sm:$0xff]
    %v5063 = vld [vmem:[%s9 + $0x48] sm:$0xff]
    %v5064 = vld [vmem:[%s9 + $0x50] sm:$0xff]
    %v5065 = vld [vmem:[%s9 + $0x58] sm:$0xff]
    %v5066 = vld [vmem:[%s9 + $0x60] sm:$0xff]
    %v5067 = vld [vmem:[%s9 + $0x68] sm:$0xff]
    %v5068 = vld [vmem:[%s9 + $0x70] sm:$0xff]
    %v5069 = vld [vmem:[%s9 + $0x78] sm:$0xff]
    %v5070 = vld [vmem:[%s9 + $0x80] sm:$0xff]
    %v5071 = vld [vmem:[%s9 + $0x88] sm:$0xff]
    %v5072 = vld [vmem:[%s9 + $0x90] sm:$0xff]
    %v5073 = vld [vmem:[%s9 + $0x98] sm:$0xff]
    %v5074 = vld [vmem:[%s9 + $0xa0] sm:$0xff]
    %v5075 = vld [vmem:[%s9 + $0xa8] sm:$0xff]
    %v5076 = vld [vmem:[%s9 + $0xb0] sm:$0xff]
    %v5077 = vld [vmem:[%s9 + $0xb8] sm:$0xff]
    %v5078 = vld [vmem:[%s9 + $0xc0] sm:$0xff]
    %v5079 = vld [vmem:[%s9 + $0xc8] sm:$0xff]
    %v5080 = vld [vmem:[%s9 + $0xd0] sm:$0xff]
    %v5081 = vld [vmem:[%s9 + $0xd8] sm:$0xff]
    %v5082 = vld [vmem:[%s9 + $0xe0] sm:$0xff]
    %v5083 = vld [vmem:[%s9 + $0xe8] sm:$0xff]
    %v5084 = vld [vmem:[%s9 + $0xf0] sm:$0xff]
    %v5085 = vld [vmem:[%s9 + $0xf8] sm:$0xff]
    %v5086 = vld [vmem:[%s9 + $0x100] sm:$0xff]
    %v5087 = vld [vmem:[%s9 + $0x108] sm:$0xff]
    %v5088 = vld [vmem:[%s9 + $0x110] sm:$0xff]
    %v5089 = vld [vmem:[%s9 + $0x118] sm:$0xff]
    %v5090 = vld [vmem:[%s9 + $0x120] sm:$0xff]
    %v5091 = vld [vmem:[%s9 + $0x128] sm:$0xff]
    %v5092 = vld [vmem:[%s9 + $0x130] sm:$0xff]
    %v5093 = vld [vmem:[%s9 + $0x138] sm:$0xff]
    %v5094 = vld [vmem:[%s9 + $0x140] sm:$0xff]
    %v5095 = vld [vmem:[%s9 + $0x148] sm:$0xff]
    %v5096 = vld [vmem:[%s9 + $0x150] sm:$0xff]
    %v5097 = vld [vmem:[%s9 + $0x158] sm:$0xff]
    %v5098 = vld [vmem:[%s9 + $0x160] sm:$0xff]
    %v5099 = vld [vmem:[%s9 + $0x168] sm:$0xff]
    %v5100 = vld [vmem:[%s9 + $0x170] sm:$0xff]
    %v5101 = vld [vmem:[%s9 + $0x178] sm:$0xff]
    %v5102 = vld [vmem:[%s10] sm:$0x3]
    %v5104 = vperm.slane %v5102, 0
    %v5105 = vperm.slane %v5102, 1
    %v5156 = vunpack.c.l.b16 %v5054
    %v5157 = vunpack.c.h.b16 %v5054
    %v5158 = vunpack.c.l.b16 %v5055
    %v5159 = vunpack.c.h.b16 %v5055
    %v5160 = vunpack.c.l.b16 %v5056
    %v5161 = vunpack.c.h.b16 %v5056
    %v5162 = vunpack.c.l.b16 %v5057
    %v5163 = vunpack.c.h.b16 %v5057
    %v5164 = vunpack.c.l.b16 %v5058
    %v5165 = vunpack.c.h.b16 %v5058
    %v5166 = vunpack.c.l.b16 %v5059
    %v5167 = vunpack.c.h.b16 %v5059
    %v5168 = vunpack.c.l.b16 %v5060
    %v5169 = vunpack.c.h.b16 %v5060
    %v5170 = vunpack.c.l.b16 %v5061
    %v5171 = vunpack.c.h.b16 %v5061
    %v5172 = vunpack.c.l.b16 %v5062
    %v5173 = vunpack.c.h.b16 %v5062
    %v5174 = vunpack.c.l.b16 %v5063
    %v5175 = vunpack.c.h.b16 %v5063
    %v5176 = vunpack.c.l.b16 %v5064
    %v5177 = vunpack.c.h.b16 %v5064
    %v5178 = vunpack.c.l.b16 %v5065
    %v5179 = vunpack.c.h.b16 %v5065
    %v5180 = vunpack.c.l.b16 %v5066
    %v5181 = vunpack.c.h.b16 %v5066
    %v5182 = vunpack.c.l.b16 %v5067
    %v5183 = vunpack.c.h.b16 %v5067
    %v5184 = vunpack.c.l.b16 %v5068
    %v5185 = vunpack.c.h.b16 %v5068
    %v5186 = vunpack.c.l.b16 %v5069
    %v5187 = vunpack.c.h.b16 %v5069
    %v5188 = vunpack.c.l.b16 %v5070
    %v5189 = vunpack.c.h.b16 %v5070
    %v5190 = vunpack.c.l.b16 %v5071
    %v5191 = vunpack.c.h.b16 %v5071
    %v5192 = vunpack.c.l.b16 %v5072
    %v5193 = vunpack.c.h.b16 %v5072
    %v5194 = vunpack.c.l.b16 %v5073
    %v5195 = vunpack.c.h.b16 %v5073
    %v5196 = vunpack.c.l.b16 %v5074
    %v5197 = vunpack.c.h.b16 %v5074
    %v5198 = vunpack.c.l.b16 %v5075
    %v5199 = vunpack.c.h.b16 %v5075
    %v5200 = vunpack.c.l.b16 %v5076
    %v5201 = vunpack.c.h.b16 %v5076
    %v5202 = vunpack.c.l.b16 %v5077
    %v5203 = vunpack.c.h.b16 %v5077
    %v5204 = vunpack.c.l.b16 %v5078
    %v5205 = vunpack.c.h.b16 %v5078
    %v5206 = vunpack.c.l.b16 %v5079
    %v5207 = vunpack.c.h.b16 %v5079
    %v5208 = vunpack.c.l.b16 %v5080
    %v5209 = vunpack.c.h.b16 %v5080
    %v5210 = vunpack.c.l.b16 %v5081
    %v5211 = vunpack.c.h.b16 %v5081
    %v5212 = vunpack.c.l.b16 %v5082
    %v5213 = vunpack.c.h.b16 %v5082
    %v5214 = vunpack.c.l.b16 %v5083
    %v5215 = vunpack.c.h.b16 %v5083
    %v5216 = vunpack.c.l.b16 %v5084
    %v5217 = vunpack.c.h.b16 %v5084
    %v5218 = vunpack.c.l.b16 %v5085
    %v5219 = vunpack.c.h.b16 %v5085
    %v5220 = vunpack.c.l.b16 %v5086
    %v5221 = vunpack.c.h.b16 %v5086
    %v5222 = vunpack.c.l.b16 %v5087
    %v5223 = vunpack.c.h.b16 %v5087
    %v5224 = vunpack.c.l.b16 %v5088
    %v5225 = vunpack.c.h.b16 %v5088
    %v5226 = vunpack.c.l.b16 %v5089
    %v5227 = vunpack.c.h.b16 %v5089
    %v5228 = vunpack.c.l.b16 %v5090
    %v5229 = vunpack.c.h.b16 %v5090
    %v5230 = vunpack.c.l.b16 %v5091
    %v5231 = vunpack.c.h.b16 %v5091
    %v5232 = vunpack.c.l.b16 %v5092
    %v5233 = vunpack.c.h.b16 %v5092
    %v5234 = vunpack.c.l.b16 %v5093
    %v5235 = vunpack.c.h.b16 %v5093
    %v5236 = vunpack.c.l.b16 %v5094
    %v5237 = vunpack.c.h.b16 %v5094
    %v5238 = vunpack.c.l.b16 %v5095
    %v5239 = vunpack.c.h.b16 %v5095
    %v5240 = vunpack.c.l.b16 %v5096
    %v5241 = vunpack.c.h.b16 %v5096
    %v5242 = vunpack.c.l.b16 %v5097
    %v5243 = vunpack.c.h.b16 %v5097
    %v5244 = vunpack.c.l.b16 %v5098
    %v5245 = vunpack.c.h.b16 %v5098
    %v5246 = vunpack.c.l.b16 %v5099
    %v5247 = vunpack.c.h.b16 %v5099
    %v5248 = vunpack.c.l.b16 %v5100
    %v5249 = vunpack.c.h.b16 %v5100
    %v5250 = vunpack.c.l.b16 %v5101
    %v5251 = vunpack.c.h.b16 %v5101
    %v5252 = vpack.c.b16 %v5158, %v5156
    %v5253 = vpack.c.b16 %v5159, %v5157
    %v5254 = vpack.c.b16 %v5162, %v5160
    %v5255 = vpack.c.b16 %v5163, %v5161
    %v5256 = vpack.c.b16 %v5166, %v5164
    %v5257 = vpack.c.b16 %v5167, %v5165
    %v5258 = vpack.c.b16 %v5170, %v5168
    %v5259 = vpack.c.b16 %v5171, %v5169
    %v5260 = vpack.c.b16 %v5174, %v5172
    %v5261 = vpack.c.b16 %v5175, %v5173
    %v5262 = vpack.c.b16 %v5178, %v5176
    %v5263 = vpack.c.b16 %v5179, %v5177
    %v5264 = vpack.c.b16 %v5182, %v5180
    %v5265 = vpack.c.b16 %v5183, %v5181
    %v5266 = vpack.c.b16 %v5186, %v5184
    %v5267 = vpack.c.b16 %v5187, %v5185
    %v5268 = vpack.c.b16 %v5190, %v5188
    %v5269 = vpack.c.b16 %v5191, %v5189
    %v5270 = vpack.c.b16 %v5194, %v5192
    %v5271 = vpack.c.b16 %v5195, %v5193
    %v5272 = vpack.c.b16 %v5198, %v5196
    %v5273 = vpack.c.b16 %v5199, %v5197
    %v5274 = vpack.c.b16 %v5202, %v5200
    %v5275 = vpack.c.b16 %v5203, %v5201
    %v5276 = vpack.c.b16 %v5206, %v5204
    %v5277 = vpack.c.b16 %v5207, %v5205
    %v5278 = vpack.c.b16 %v5210, %v5208
    %v5279 = vpack.c.b16 %v5211, %v5209
    %v5280 = vpack.c.b16 %v5214, %v5212
    %v5281 = vpack.c.b16 %v5215, %v5213
    %v5282 = vpack.c.b16 %v5218, %v5216
    %v5283 = vpack.c.b16 %v5219, %v5217
    %v5284 = vpack.c.b16 %v5222, %v5220
    %v5285 = vpack.c.b16 %v5223, %v5221
    %v5286 = vpack.c.b16 %v5226, %v5224
    %v5287 = vpack.c.b16 %v5227, %v5225
    %v5288 = vpack.c.b16 %v5230, %v5228
    %v5289 = vpack.c.b16 %v5231, %v5229
    %v5290 = vpack.c.b16 %v5234, %v5232
    %v5291 = vpack.c.b16 %v5235, %v5233
    %v5292 = vpack.c.b16 %v5238, %v5236
    %v5293 = vpack.c.b16 %v5239, %v5237
    %v5294 = vpack.c.b16 %v5242, %v5240
    %v5295 = vpack.c.b16 %v5243, %v5241
    %v5296 = vpack.c.b16 %v5246, %v5244
    %v5297 = vpack.c.b16 %v5247, %v5245
    %v5298 = vpack.c.b16 %v5250, %v5248
    %v5299 = vpack.c.b16 %v5251, %v5249
    %5348 = vmatpush.bf16.msra.mxu0 %v5266
    %5349 = vmatpush.bf16.msra.mxu0 %v5264
    %5350 = vmatpush.bf16.msra.mxu0 %v5262
    %5351 = vmatpush.bf16.msra.mxu0 %v5260
    %5352 = vmatpush.bf16.msra.mxu0 %v5258
    %5353 = vmatpush.bf16.msra.mxu0 %v5256
    %5354 = vmatpush.bf16.msra.mxu0 %v5254
    %5355 = vmatpush.bf16.msra.mxu0 %v5252
    %5356 = vmatmul.bf16.gmra.mxu0 %v5051
    %v5357 = vpop.f32.mrf.mxu0
    %v5358 = vadd.f32 %v5104, %v5357
    %v5359 = vpop.f32.mrf.mxu0
    %v5360 = vadd.f32 %v5104, %v5359
    %5361 = vdwg.mxu0
    %5362 = vmatpush.bf16.msra.mxu0 %v5282
    %5363 = vmatpush.bf16.msra.mxu0 %v5280
    %5364 = vmatpush.bf16.msra.mxu0 %v5278
    %5365 = vmatpush.bf16.msra.mxu0 %v5276
    %5366 = vmatpush.bf16.msra.mxu0 %v5274
    %5367 = vmatpush.bf16.msra.mxu0 %v5272
    %5368 = vmatpush.bf16.msra.mxu0 %v5270
    %5369 = vmatpush.bf16.msra.mxu0 %v5268
    %5370 = vmatmul.bf16.gmra.mxu0 %v5052
    %v5371 = vpop.f32.mrf.mxu0
    %v5372 = vadd.f32 %v5358, %v5371
    %v5373 = vpop.f32.mrf.mxu0
    %v5374 = vadd.f32 %v5360, %v5373
    %5375 = vdwg.mxu0
    %5376 = vmatpush.bf16.msra.mxu0 %v5298
    %5377 = vmatpush.bf16.msra.mxu0 %v5296
    %5378 = vmatpush.bf16.msra.mxu0 %v5294
    %5379 = vmatpush.bf16.msra.mxu0 %v5292
    %5380 = vmatpush.bf16.msra.mxu0 %v5290
    %5381 = vmatpush.bf16.msra.mxu0 %v5288
    %5382 = vmatpush.bf16.msra.mxu0 %v5286
    %5383 = vmatpush.bf16.msra.mxu0 %v5284
    %5384 = vmatmul.bf16.gmra.mxu0 %v5053
    %v5385 = vpop.f32.mrf.mxu0
    %v5386 = vadd.f32 %v5372, %v5385
    %v5387 = vpop.f32.mrf.mxu0
    %v5388 = vadd.f32 %v5374, %v5387
    %5389 = vdwg.mxu0
    %5390 = vmatpush.bf16.msra.mxu0 %v5267
    %5391 = vmatpush.bf16.msra.mxu0 %v5265
    %5392 = vmatpush.bf16.msra.mxu0 %v5263
    %5393 = vmatpush.bf16.msra.mxu0 %v5261
    %5394 = vmatpush.bf16.msra.mxu0 %v5259
    %5395 = vmatpush.bf16.msra.mxu0 %v5257
    %5396 = vmatpush.bf16.msra.mxu0 %v5255
    %5397 = vmatpush.bf16.msra.mxu0 %v5253
    %5398 = vmatmul.bf16.gmra.mxu0 %v5051
    %v5399 = vpop.f32.mrf.mxu0
    %v5400 = vadd.f32 %v5105, %v5399
    %v5401 = vpop.f32.mrf.mxu0
    %v5402 = vadd.f32 %v5105, %v5401
    %5403 = vdwg.mxu0
    %5404 = vmatpush.bf16.msra.mxu0 %v5283
    %5405 = vmatpush.bf16.msra.mxu0 %v5281
    %5406 = vmatpush.bf16.msra.mxu0 %v5279
    %5407 = vmatpush.bf16.msra.mxu0 %v5277
    %5408 = vmatpush.bf16.msra.mxu0 %v5275
    %5409 = vmatpush.bf16.msra.mxu0 %v5273
    %5410 = vmatpush.bf16.msra.mxu0 %v5271
    %5411 = vmatpush.bf16.msra.mxu0 %v5269
    %5412 = vmatmul.bf16.gmra.mxu0 %v5052
    %v5413 = vpop.f32.mrf.mxu0
    %v5414 = vadd.f32 %v5400, %v5413
    %v5415 = vpop.f32.mrf.mxu0
    %v5416 = vadd.f32 %v5402, %v5415
    %5417 = vdwg.mxu0
    %5418 = vmatpush.bf16.msra.mxu0 %v5299
    %5419 = vmatpush.bf16.msra.mxu0 %v5297
    %5420 = vmatpush.bf16.msra.mxu0 %v5295
    %5421 = vmatpush.bf16.msra.mxu0 %v5293
    %5422 = vmatpush.bf16.msra.mxu0 %v5291
    %5423 = vmatpush.bf16.msra.mxu0 %v5289
    %5424 = vmatpush.bf16.msra.mxu0 %v5287
    %5425 = vmatpush.bf16.msra.mxu0 %v5285
    %5426 = vmatmul.bf16.gmra.mxu0 %v5053
    %v5427 = vpop.f32.mrf.mxu0
    %v5428 = vadd.f32 %v5414, %v5427
    %v5429 = vpop.f32.mrf.mxu0
    %v5430 = vadd.f32 %v5416, %v5429
    %5431 = vdwg.mxu0
    %v5432 = vmax.f32 %v5386, 0.0
    %v5433 = vmax.f32 %v5428, 0.0
    %v5434 = vmax.f32 %v5388, 0.0
    %v5435 = vmax.f32 %v5430, 0.0
    %v5436 = vmax.f32 %v5432, %v5434
    %v5437 = vmax.f32 %v5433, %v5435
    %v5438 = vmax.f32 %v5436, %v5437
    %v5439 = vpack.c.bf16 %v5438, %v5438
    %v5440 = vld [vmem:[%s11] sm:$0xf]
    %v5441 = vld [vmem:[%s11 + $0x4] sm:$0xf]
    %v5442 = vld [vmem:[%s11 + $0x8] sm:$0xf]
    %v5443 = vld [vmem:[%s11 + $0xc] sm:$0xf]
    %v5444 = vld [vmem:[%s11 + $0x10] sm:$0xf]
    %v5445 = vld [vmem:[%s11 + $0x14] sm:$0xf]
    %v5446 = vld [vmem:[%s11 + $0x18] sm:$0xf]
    %v5447 = vld [vmem:[%s11 + $0x1c] sm:$0xf]
    %v5448 = vld [vmem:[%s11 + $0x20] sm:$0xf]
    %v5449 = vld [vmem:[%s11 + $0x24] sm:$0xf]
    %v5450 = vld [vmem:[%s11 + $0x28] sm:$0xf]
    %v5451 = vld [vmem:[%s11 + $0x2c] sm:$0xf]
    %v5452 = vld [vmem:[%s11 + $0x30] sm:$0xf]
    %v5453 = vld [vmem:[%s11 + $0x34] sm:$0xf]
    %v5454 = vld [vmem:[%s11 + $0x38] sm:$0xf]
    %v5455 = vld [vmem:[%s11 + $0x3c] sm:$0xf]
    %v5456 = vld [vmem:[%s12] sm:$0x1]
    %v5458 = vperm.slane %v5456, 0
    %v5476 = vunpack.c.l.b16 %v5440
    %v5477 = vunpack.c.l.b16 %v5441
    %v5478 = vunpack.c.l.b16 %v5442
    %v5479 = vunpack.c.l.b16 %v5443
    %v5480 = vunpack.c.l.b16 %v5444
    %v5481 = vunpack.c.l.b16 %v5445
    %v5482 = vunpack.c.l.b16 %v5446
    %v5483 = vunpack.c.l.b16 %v5447
    %v5484 = vunpack.c.l.b16 %v5448
    %v5485 = vunpack.c.l.b16 %v5449
    %v5486 = vunpack.c.l.b16 %v5450
    %v5487 = vunpack.c.l.b16 %v5451
    %v5488 = vunpack.c.l.b16 %v5452
    %v5489 = vunpack.c.l.b16 %v5453
    %v5490 = vunpack.c.l.b16 %v5454
    %v5491 = vunpack.c.l.b16 %v5455
    %v5492 = vpack.c.b16 %v5477, %v5476
    %v5493 = vpack.c.b16 %v5479, %v5478
    %v5494 = vpack.c.b16 %v5481, %v5480
    %v5495 = vpack.c.b16 %v5483, %v5482
    %v5496 = vpack.c.b16 %v5485, %v5484
    %v5497 = vpack.c.b16 %v5487, %v5486
    %v5498 = vpack.c.b16 %v5489, %v5488
    %v5499 = vpack.c.b16 %v5491, %v5490
    %5508 = vmatpush.bf16.msra.mxu0 %v5499
    %5509 = vmatpush.bf16.msra.mxu0 %v5498
    %5510 = vmatpush.bf16.msra.mxu0 %v5497
    %5511 = vmatpush.bf16.msra.mxu0 %v5496
    %5512 = vmatpush.bf16.msra.mxu0 %v5495
    %5513 = vmatpush.bf16.msra.mxu0 %v5494
    %5514 = vmatpush.bf16.msra.mxu0 %v5493
    %5515 = vmatpush.bf16.msra.mxu0 %v5492
    %5516 = vmatmul.bf16.gmra.mxu0 %v5439
    %v5517 = vpop.f32.mrf.mxu0
    %v5518 = vadd.f32 %v5458, %v5517
    %v5519 = vpop.f32.mrf.mxu0
    %5520 = vdwg.mxu0
    %v5521 = vmax.f32 %v5518, 0.0
    %v5522 = vld [vmem:[%s25] sm:$0xff]
    %v5523 = vpack.c.bf16 %v5521, %v5521
    %v5524 = vld [vmem:[#allocation13] sm:$0xff]
    %v5525 = vld [vmem:[#allocation13 + $0x8] sm:$0xff]
    %v5526 = vld [vmem:[#allocation13 + $0x10] sm:$0xff]
    %v5527 = vld [vmem:[#allocation13 + $0x18] sm:$0xff]
    %v5528 = vld [vmem:[#allocation13 + $0x20] sm:$0xff]
    %v5529 = vld [vmem:[#allocation13 + $0x28] sm:$0xff]
    %v5530 = vld [vmem:[#allocation13 + $0x30] sm:$0xff]
    %v5531 = vld [vmem:[#allocation13 + $0x38] sm:$0xff]
    %v5532 = vld [vmem:[#allocation13 + $0x40] sm:$0xff]
    %v5533 = vld [vmem:[#allocation13 + $0x48] sm:$0xff]
    %v5534 = vld [vmem:[#allocation13 + $0x50] sm:$0xff]
    %v5535 = vld [vmem:[#allocation13 + $0x58] sm:$0xff]
    %v5536 = vld [vmem:[#allocation13 + $0x60] sm:$0xff]
    %v5537 = vld [vmem:[#allocation13 + $0x68] sm:$0xff]
    %v5538 = vld [vmem:[#allocation13 + $0x70] sm:$0xff]
    %v5539 = vld [vmem:[#allocation13 + $0x78] sm:$0xff]
    %v5556 = vunpack.c.l.b16 %v5524
    %v5557 = vunpack.c.h.b16 %v5524
    %v5558 = vunpack.c.l.b16 %v5525
    %v5559 = vunpack.c.h.b16 %v5525
    %v5560 = vunpack.c.l.b16 %v5526
    %v5561 = vunpack.c.h.b16 %v5526
    %v5562 = vunpack.c.l.b16 %v5527
    %v5563 = vunpack.c.h.b16 %v5527
    %v5564 = vunpack.c.l.b16 %v5528
    %v5565 = vunpack.c.h.b16 %v5528
    %v5566 = vunpack.c.l.b16 %v5529
    %v5567 = vunpack.c.h.b16 %v5529
    %v5568 = vunpack.c.l.b16 %v5530
    %v5569 = vunpack.c.h.b16 %v5530
    %v5570 = vunpack.c.l.b16 %v5531
    %v5571 = vunpack.c.h.b16 %v5531
    %v5572 = vunpack.c.l.b16 %v5532
    %v5573 = vunpack.c.h.b16 %v5532
    %v5574 = vunpack.c.l.b16 %v5533
    %v5575 = vunpack.c.h.b16 %v5533
    %v5576 = vunpack.c.l.b16 %v5534
    %v5577 = vunpack.c.h.b16 %v5534
    %v5578 = vunpack.c.l.b16 %v5535
    %v5579 = vunpack.c.h.b16 %v5535
    %v5580 = vunpack.c.l.b16 %v5536
    %v5581 = vunpack.c.h.b16 %v5536
    %v5582 = vunpack.c.l.b16 %v5537
    %v5583 = vunpack.c.h.b16 %v5537
    %v5584 = vunpack.c.l.b16 %v5538
    %v5585 = vunpack.c.h.b16 %v5538
    %v5586 = vunpack.c.l.b16 %v5539
    %v5587 = vunpack.c.h.b16 %v5539
    %v5588 = vpack.c.b16 %v5558, %v5556
    %v5589 = vpack.c.b16 %v5559, %v5557
    %v5590 = vpack.c.b16 %v5562, %v5560
    %v5591 = vpack.c.b16 %v5563, %v5561
    %v5592 = vpack.c.b16 %v5566, %v5564
    %v5593 = vpack.c.b16 %v5567, %v5565
    %v5594 = vpack.c.b16 %v5570, %v5568
    %v5595 = vpack.c.b16 %v5571, %v5569
    %v5596 = vpack.c.b16 %v5574, %v5572
    %v5597 = vpack.c.b16 %v5575, %v5573
    %v5598 = vpack.c.b16 %v5578, %v5576
    %v5599 = vpack.c.b16 %v5579, %v5577
    %v5600 = vpack.c.b16 %v5582, %v5580
    %v5601 = vpack.c.b16 %v5583, %v5581
    %v5602 = vpack.c.b16 %v5586, %v5584
    %v5603 = vpack.c.b16 %v5587, %v5585
    %5620 = vmatpush.bf16.msra.mxu0 %v5602
    %5621 = vmatpush.bf16.msra.mxu0 %v5600
    %5622 = vmatpush.bf16.msra.mxu0 %v5598
    %5623 = vmatpush.bf16.msra.mxu0 %v5596
    %5624 = vmatpush.bf16.msra.mxu0 %v5594
    %5625 = vmatpush.bf16.msra.mxu0 %v5592
    %5626 = vmatpush.bf16.msra.mxu0 %v5590
    %5627 = vmatpush.bf16.msra.mxu0 %v5588
    %5628 = vmatmul.bf16.gmra.mxu0 %v5523
    %v5629 = vpop.f32.mrf.mxu0
    %v5630 = vadd.f32 0.0, %v5629
    %v5631 = vpop.f32.mrf.mxu0
    %5632 = vdwg.mxu0
    %5633 = vmatpush.bf16.msra.mxu0 %v5603
    %5634 = vmatpush.bf16.msra.mxu0 %v5601
    %5635 = vmatpush.bf16.msra.mxu0 %v5599
    %5636 = vmatpush.bf16.msra.mxu0 %v5597
    %5637 = vmatpush.bf16.msra.mxu0 %v5595
    %5638 = vmatpush.bf16.msra.mxu0 %v5593
    %5639 = vmatpush.bf16.msra.mxu0 %v5591
    %5640 = vmatpush.bf16.msra.mxu0 %v5589
    %5641 = vmatmul.bf16.gmra.mxu0 %v5523
    %v5642 = vpop.f32.mrf.mxu0
    %v5643 = vadd.f32 0.0, %v5642
    %v5644 = vpop.f32.mrf.mxu0
    %5645 = vdwg.mxu0
    %v5646 = vld [vmem:[%s14] sm:$0x3]
    %v5648 = vperm.slane %v5646, 0
    %v5649 = vperm.slane %v5646, 1
    %v5652 = vmul.f32 %v5630, %v5648
    %v5653 = vmul.f32 %v5643, %v5649
    %v5654 = vld [vmem:[%s15] sm:$0x3]
    %v5656 = vperm.slane %v5654, 0
    %v5657 = vperm.slane %v5654, 1
    %v5660 = vmul.f32 %v5630, %v5656
    %v5661 = vmul.f32 %v5643, %v5657
    %5662 = vadd.xlane.f32.xlu0 %v5652
    %v5663 = vpop.xlane.xlu0 %5662
    %5664 = vadd.xlane.f32.xlu0 %v5660
    %v5665 = vpop.xlane.xlu0 %5664
    %5666 = vxpose.xlu0.b32.start [1/16] %v5663, 128
    %5667 = vxpose.xlu0.b32.cont [2/16] 0.0, 128
    %5668 = vxpose.xlu0.b32.cont [3/16] 0.0, 128
    %5669 = vxpose.xlu0.b32.cont [4/16] 0.0, 128
    %5670 = vxpose.xlu0.b32.cont [5/16] 0.0, 128
    %5671 = vxpose.xlu0.b32.cont [6/16] 0.0, 128
    %5672 = vxpose.xlu0.b32.cont [7/16] 0.0, 128
    %5673 = vxpose.xlu0.b32.cont [8/16] 0.0, 128
    %5674 = vxpose.xlu0.b32.cont [9/16] 0.0, 128
    %5675 = vxpose.xlu0.b32.cont [10/16] 0.0, 128
    %5676 = vxpose.xlu0.b32.cont [11/16] 0.0, 128
    %5677 = vxpose.xlu0.b32.cont [12/16] 0.0, 128
    %5678 = vxpose.xlu0.b32.cont [13/16] 0.0, 128
    %5679 = vxpose.xlu0.b32.cont [14/16] 0.0, 128
    %5680 = vxpose.xlu0.b32.cont [15/16] 0.0, 128
    %5681 = vxpose.xlu0.b32.end [16/16] 0.0, 128
    %v5682 = vpop.trf.xlu0
    %v5683 = vpop.trf.xlu0
    %v5684 = vpop.trf.xlu0
    %v5685 = vpop.trf.xlu0
    %v5686 = vpop.trf.xlu0
    %v5687 = vpop.trf.xlu0
    %v5688 = vpop.trf.xlu0
    %v5689 = vpop.trf.xlu0
    %v5690 = vpop.trf.xlu0
    %v5691 = vpop.trf.xlu0
    %v5692 = vpop.trf.xlu0
    %v5693 = vpop.trf.xlu0
    %v5694 = vpop.trf.xlu0
    %v5695 = vpop.trf.xlu0
    %v5696 = vpop.trf.xlu0
    %v5697 = vpop.trf.xlu0
    %v5698 = vperm.slane %v5682, 0
    %v5699 = vadd.f32 %v5665, %v5698
    %vm5700 = vcmp.ge.f32.partialorder %v5699, 0.0
    %v5701 = vmul.f32 %v5699, 0.2
    %v5702 = vsel %vm5700, %v5699, %v5701
    %vm5703 = vcmp.gt.f32.partialorder %v5522, 0.0
    %v5704 = vsel %vm5703, %v5702, -1e+30
    %vm5705 = vcmask 64512
    %v5706 = vsel %vm5705, %v5704, -inf
    %5707 = vmax.xlane.f32.xlu0 %v5706
    %v5708 = vpop.xlane.xlu0 %5707
    %v5709 = vsub.f32 %v5704, %v5708
    %v5710 = vmul.f32 %v5709, 1.442695
    %v5711 = vpow.pop %v5710
    %v5712 = vsel %vm5703, %v5711, 0.0
    %v5713 = vsel %vm5705, %v5712, 0.0
    %5714 = vadd.xlane.f32.xlu0 %v5713
    %v5715 = vpop.xlane.xlu0 %5714
    %v5716 = vrcp.pop %v5715
    %v5717 = vmul.f32 %v5712, %v5716
    %v5718 = vpack.c.bf16 %v5717, %v5717
    %v5719 = vpack.c.bf16 %v5630, %v5630
    %v5721 = vsel %vm5705, %v5718, 0
    %vm5723 = vcmask 1043456
    %v5725 = vsel %vm5723, %v5719, 0
    %5727 = vmatpush.bf16.msra.mxu0 0
    %5728 = vmatpush.bf16.msra.mxu0 0
    %5729 = vmatpush.bf16.msra.mxu0 0
    %5730 = vmatpush.bf16.msra.mxu0 0
    %5731 = vmatpush.bf16.msra.mxu0 0
    %5732 = vmatpush.bf16.msra.mxu0 0
    %5733 = vmatpush.bf16.msra.mxu0 0
    %5734 = vmatpush.bf16.msra.mxu0 %v5725
    %5735 = vmatmul.bf16.gmra.mxu0 %v5721
    %v5736 = vpop.f32.mrf.mxu0
    %v5737 = vadd.f32 0.0, %v5736
    %v5738 = vpop.f32.mrf.mxu0
    %5739 = vdwg.mxu0
    %5740 = vadd.xlane.f32.xlu0 %v5653
    %v5741 = vpop.xlane.xlu0 %5740
    %5742 = vadd.xlane.f32.xlu0 %v5661
    %v5743 = vpop.xlane.xlu0 %5742
    %5744 = vxpose.xlu0.b32.start [1/16] %v5741, 128
    %5745 = vxpose.xlu0.b32.cont [2/16] 0.0, 128
    %5746 = vxpose.xlu0.b32.cont [3/16] 0.0, 128
    %5747 = vxpose.xlu0.b32.cont [4/16] 0.0, 128
    %5748 = vxpose.xlu0.b32.cont [5/16] 0.0, 128
    %5749 = vxpose.xlu0.b32.cont [6/16] 0.0, 128
    %5750 = vxpose.xlu0.b32.cont [7/16] 0.0, 128
    %5751 = vxpose.xlu0.b32.cont [8/16] 0.0, 128
    %5752 = vxpose.xlu0.b32.cont [9/16] 0.0, 128
    %5753 = vxpose.xlu0.b32.cont [10/16] 0.0, 128
    %5754 = vxpose.xlu0.b32.cont [11/16] 0.0, 128
    %5755 = vxpose.xlu0.b32.cont [12/16] 0.0, 128
    %5756 = vxpose.xlu0.b32.cont [13/16] 0.0, 128
    %5757 = vxpose.xlu0.b32.cont [14/16] 0.0, 128
    %5758 = vxpose.xlu0.b32.cont [15/16] 0.0, 128
    %5759 = vxpose.xlu0.b32.end [16/16] 0.0, 128
    %v5760 = vpop.trf.xlu0
    %v5761 = vpop.trf.xlu0
    %v5762 = vpop.trf.xlu0
    %v5763 = vpop.trf.xlu0
    %v5764 = vpop.trf.xlu0
    %v5765 = vpop.trf.xlu0
    %v5766 = vpop.trf.xlu0
    %v5767 = vpop.trf.xlu0
    %v5768 = vpop.trf.xlu0
    %v5769 = vpop.trf.xlu0
    %v5770 = vpop.trf.xlu0
    %v5771 = vpop.trf.xlu0
    %v5772 = vpop.trf.xlu0
    %v5773 = vpop.trf.xlu0
    %v5774 = vpop.trf.xlu0
    %v5775 = vpop.trf.xlu0
    %v5776 = vperm.slane %v5760, 0
    %v5777 = vadd.f32 %v5743, %v5776
    %vm5778 = vcmp.ge.f32.partialorder %v5777, 0.0
    %v5779 = vmul.f32 %v5777, 0.2
    %v5780 = vsel %vm5778, %v5777, %v5779
    %v5781 = vsel %vm5703, %v5780, -1e+30
    %v5782 = vsel %vm5705, %v5781, -inf
    %5783 = vmax.xlane.f32.xlu0 %v5782
    %v5784 = vpop.xlane.xlu0 %5783
    %v5785 = vsub.f32 %v5781, %v5784
    %v5786 = vmul.f32 %v5785, 1.442695
    %v5787 = vpow.pop %v5786
    %v5788 = vsel %vm5703, %v5787, 0.0
    %v5789 = vsel %vm5705, %v5788, 0.0
    %5790 = vadd.xlane.f32.xlu0 %v5789
    %v5791 = vpop.xlane.xlu0 %5790
    %v5792 = vrcp.pop %v5791
    %v5793 = vmul.f32 %v5788, %v5792
    %v5794 = vpack.c.bf16 %v5793, %v5793
    %v5795 = vpack.c.bf16 %v5643, %v5643
    %v5797 = vsel %vm5705, %v5794, 0
    %v5800 = vsel %vm5723, %v5795, 0
    %5802 = vmatpush.bf16.msra.mxu0 0
    %5803 = vmatpush.bf16.msra.mxu0 0
    %5804 = vmatpush.bf16.msra.mxu0 0
    %5805 = vmatpush.bf16.msra.mxu0 0
    %5806 = vmatpush.bf16.msra.mxu0 0
    %5807 = vmatpush.bf16.msra.mxu0 0
    %5808 = vmatpush.bf16.msra.mxu0 0
    %5809 = vmatpush.bf16.msra.mxu0 %v5800
    %5810 = vmatmul.bf16.gmra.mxu0 %v5797
    %v5811 = vpop.f32.mrf.mxu0
    %v5812 = vadd.f32 0.0, %v5811
    %v5813 = vpop.f32.mrf.mxu0
    %5814 = vdwg.mxu0
    %v5815 = vld [vmem:[%s16] sm:$0x3]
    %v5817 = vperm.slane %v5815, 0
    %v5818 = vperm.slane %v5815, 1
    %v5821 = vadd.f32 %v5737, %v5817
    %v5822 = vadd.f32 %v5812, %v5818
    %v5823 = vmax.f32 %v5821, 0.0
    %v5824 = vmax.f32 %v5822, 0.0
    %v5825 = vpack.c.bf16 %v5823, %v5823
    %v5826 = vpack.c.bf16 %v5824, %v5824
    %v5827 = vld [vmem:[#allocation15] sm:$0xff]
    %v5828 = vld [vmem:[#allocation15 + $0x8] sm:$0xff]
    %v5829 = vld [vmem:[#allocation15 + $0x10] sm:$0xff]
    %v5830 = vld [vmem:[#allocation15 + $0x18] sm:$0xff]
    %v5831 = vld [vmem:[#allocation15 + $0x20] sm:$0xff]
    %v5832 = vld [vmem:[#allocation15 + $0x28] sm:$0xff]
    %v5833 = vld [vmem:[#allocation15 + $0x30] sm:$0xff]
    %v5834 = vld [vmem:[#allocation15 + $0x38] sm:$0xff]
    %v5835 = vld [vmem:[#allocation15 + $0x40] sm:$0xff]
    %v5836 = vld [vmem:[#allocation15 + $0x48] sm:$0xff]
    %v5837 = vld [vmem:[#allocation15 + $0x50] sm:$0xff]
    %v5838 = vld [vmem:[#allocation15 + $0x58] sm:$0xff]
    %v5839 = vld [vmem:[#allocation15 + $0x60] sm:$0xff]
    %v5840 = vld [vmem:[#allocation15 + $0x68] sm:$0xff]
    %v5841 = vld [vmem:[#allocation15 + $0x70] sm:$0xff]
    %v5842 = vld [vmem:[#allocation15 + $0x78] sm:$0xff]
    %v5843 = vld [vmem:[#allocation15 + $0x80] sm:$0xff]
    %v5844 = vld [vmem:[#allocation15 + $0x88] sm:$0xff]
    %v5845 = vld [vmem:[#allocation15 + $0x90] sm:$0xff]
    %v5846 = vld [vmem:[#allocation15 + $0x98] sm:$0xff]
    %v5847 = vld [vmem:[#allocation15 + $0xa0] sm:$0xff]
    %v5848 = vld [vmem:[#allocation15 + $0xa8] sm:$0xff]
    %v5849 = vld [vmem:[#allocation15 + $0xb0] sm:$0xff]
    %v5850 = vld [vmem:[#allocation15 + $0xb8] sm:$0xff]
    %v5851 = vld [vmem:[#allocation15 + $0xc0] sm:$0xff]
    %v5852 = vld [vmem:[#allocation15 + $0xc8] sm:$0xff]
    %v5853 = vld [vmem:[#allocation15 + $0xd0] sm:$0xff]
    %v5854 = vld [vmem:[#allocation15 + $0xd8] sm:$0xff]
    %v5855 = vld [vmem:[#allocation15 + $0xe0] sm:$0xff]
    %v5856 = vld [vmem:[#allocation15 + $0xe8] sm:$0xff]
    %v5857 = vld [vmem:[#allocation15 + $0xf0] sm:$0xff]
    %v5858 = vld [vmem:[#allocation15 + $0xf8] sm:$0xff]
    %v5891 = vunpack.c.l.b16 %v5827
    %v5892 = vunpack.c.h.b16 %v5827
    %v5893 = vunpack.c.l.b16 %v5828
    %v5894 = vunpack.c.h.b16 %v5828
    %v5895 = vunpack.c.l.b16 %v5829
    %v5896 = vunpack.c.h.b16 %v5829
    %v5897 = vunpack.c.l.b16 %v5830
    %v5898 = vunpack.c.h.b16 %v5830
    %v5899 = vunpack.c.l.b16 %v5831
    %v5900 = vunpack.c.h.b16 %v5831
    %v5901 = vunpack.c.l.b16 %v5832
    %v5902 = vunpack.c.h.b16 %v5832
    %v5903 = vunpack.c.l.b16 %v5833
    %v5904 = vunpack.c.h.b16 %v5833
    %v5905 = vunpack.c.l.b16 %v5834
    %v5906 = vunpack.c.h.b16 %v5834
    %v5907 = vunpack.c.l.b16 %v5835
    %v5908 = vunpack.c.h.b16 %v5835
    %v5909 = vunpack.c.l.b16 %v5836
    %v5910 = vunpack.c.h.b16 %v5836
    %v5911 = vunpack.c.l.b16 %v5837
    %v5912 = vunpack.c.h.b16 %v5837
    %v5913 = vunpack.c.l.b16 %v5838
    %v5914 = vunpack.c.h.b16 %v5838
    %v5915 = vunpack.c.l.b16 %v5839
    %v5916 = vunpack.c.h.b16 %v5839
    %v5917 = vunpack.c.l.b16 %v5840
    %v5918 = vunpack.c.h.b16 %v5840
    %v5919 = vunpack.c.l.b16 %v5841
    %v5920 = vunpack.c.h.b16 %v5841
    %v5921 = vunpack.c.l.b16 %v5842
    %v5922 = vunpack.c.h.b16 %v5842
    %v5923 = vunpack.c.l.b16 %v5843
    %v5924 = vunpack.c.h.b16 %v5843
    %v5925 = vunpack.c.l.b16 %v5844
    %v5926 = vunpack.c.h.b16 %v5844
    %v5927 = vunpack.c.l.b16 %v5845
    %v5928 = vunpack.c.h.b16 %v5845
    %v5929 = vunpack.c.l.b16 %v5846
    %v5930 = vunpack.c.h.b16 %v5846
    %v5931 = vunpack.c.l.b16 %v5847
    %v5932 = vunpack.c.h.b16 %v5847
    %v5933 = vunpack.c.l.b16 %v5848
    %v5934 = vunpack.c.h.b16 %v5848
    %v5935 = vunpack.c.l.b16 %v5849
    %v5936 = vunpack.c.h.b16 %v5849
    %v5937 = vunpack.c.l.b16 %v5850
    %v5938 = vunpack.c.h.b16 %v5850
    %v5939 = vunpack.c.l.b16 %v5851
    %v5940 = vunpack.c.h.b16 %v5851
    %v5941 = vunpack.c.l.b16 %v5852
    %v5942 = vunpack.c.h.b16 %v5852
    %v5943 = vunpack.c.l.b16 %v5853
    %v5944 = vunpack.c.h.b16 %v5853
    %v5945 = vunpack.c.l.b16 %v5854
    %v5946 = vunpack.c.h.b16 %v5854
    %v5947 = vunpack.c.l.b16 %v5855
    %v5948 = vunpack.c.h.b16 %v5855
    %v5949 = vunpack.c.l.b16 %v5856
    %v5950 = vunpack.c.h.b16 %v5856
    %v5951 = vunpack.c.l.b16 %v5857
    %v5952 = vunpack.c.h.b16 %v5857
    %v5953 = vunpack.c.l.b16 %v5858
    %v5954 = vunpack.c.h.b16 %v5858
    %v5955 = vpack.c.b16 %v5893, %v5891
    %v5956 = vpack.c.b16 %v5894, %v5892
    %v5957 = vpack.c.b16 %v5897, %v5895
    %v5958 = vpack.c.b16 %v5898, %v5896
    %v5959 = vpack.c.b16 %v5901, %v5899
    %v5960 = vpack.c.b16 %v5902, %v5900
    %v5961 = vpack.c.b16 %v5905, %v5903
    %v5962 = vpack.c.b16 %v5906, %v5904
    %v5963 = vpack.c.b16 %v5909, %v5907
    %v5964 = vpack.c.b16 %v5910, %v5908
    %v5965 = vpack.c.b16 %v5913, %v5911
    %v5966 = vpack.c.b16 %v5914, %v5912
    %v5967 = vpack.c.b16 %v5917, %v5915
    %v5968 = vpack.c.b16 %v5918, %v5916
    %v5969 = vpack.c.b16 %v5921, %v5919
    %v5970 = vpack.c.b16 %v5922, %v5920
    %v5971 = vpack.c.b16 %v5925, %v5923
    %v5972 = vpack.c.b16 %v5926, %v5924
    %v5973 = vpack.c.b16 %v5929, %v5927
    %v5974 = vpack.c.b16 %v5930, %v5928
    %v5975 = vpack.c.b16 %v5933, %v5931
    %v5976 = vpack.c.b16 %v5934, %v5932
    %v5977 = vpack.c.b16 %v5937, %v5935
    %v5978 = vpack.c.b16 %v5938, %v5936
    %v5979 = vpack.c.b16 %v5941, %v5939
    %v5980 = vpack.c.b16 %v5942, %v5940
    %v5981 = vpack.c.b16 %v5945, %v5943
    %v5982 = vpack.c.b16 %v5946, %v5944
    %v5983 = vpack.c.b16 %v5949, %v5947
    %v5984 = vpack.c.b16 %v5950, %v5948
    %v5985 = vpack.c.b16 %v5953, %v5951
    %v5986 = vpack.c.b16 %v5954, %v5952
    %6019 = vmatpush.bf16.msra.mxu0 %v5969
    %6020 = vmatpush.bf16.msra.mxu0 %v5967
    %6021 = vmatpush.bf16.msra.mxu0 %v5965
    %6022 = vmatpush.bf16.msra.mxu0 %v5963
    %6023 = vmatpush.bf16.msra.mxu0 %v5961
    %6024 = vmatpush.bf16.msra.mxu0 %v5959
    %6025 = vmatpush.bf16.msra.mxu0 %v5957
    %6026 = vmatpush.bf16.msra.mxu0 %v5955
    %6027 = vmatmul.bf16.gmra.mxu0 %v5825
    %v6028 = vpop.f32.mrf.mxu0
    %v6029 = vadd.f32 0.0, %v6028
    %v6030 = vpop.f32.mrf.mxu0
    %6031 = vdwg.mxu0
    %6032 = vmatpush.bf16.msra.mxu0 %v5985
    %6033 = vmatpush.bf16.msra.mxu0 %v5983
    %6034 = vmatpush.bf16.msra.mxu0 %v5981
    %6035 = vmatpush.bf16.msra.mxu0 %v5979
    %6036 = vmatpush.bf16.msra.mxu0 %v5977
    %6037 = vmatpush.bf16.msra.mxu0 %v5975
    %6038 = vmatpush.bf16.msra.mxu0 %v5973
    %6039 = vmatpush.bf16.msra.mxu0 %v5971
    %6040 = vmatmul.bf16.gmra.mxu0 %v5826
    %v6041 = vpop.f32.mrf.mxu0
    %v6042 = vadd.f32 %v6029, %v6041
    %v6043 = vpop.f32.mrf.mxu0
    %6044 = vdwg.mxu0
    %6045 = vmatpush.bf16.msra.mxu0 %v5970
    %6046 = vmatpush.bf16.msra.mxu0 %v5968
    %6047 = vmatpush.bf16.msra.mxu0 %v5966
    %6048 = vmatpush.bf16.msra.mxu0 %v5964
    %6049 = vmatpush.bf16.msra.mxu0 %v5962
    %6050 = vmatpush.bf16.msra.mxu0 %v5960
    %6051 = vmatpush.bf16.msra.mxu0 %v5958
    %6052 = vmatpush.bf16.msra.mxu0 %v5956
    %6053 = vmatmul.bf16.gmra.mxu0 %v5825
    %v6054 = vpop.f32.mrf.mxu0
    %v6055 = vadd.f32 0.0, %v6054
    %v6056 = vpop.f32.mrf.mxu0
    %6057 = vdwg.mxu0
    %6058 = vmatpush.bf16.msra.mxu0 %v5986
    %6059 = vmatpush.bf16.msra.mxu0 %v5984
    %6060 = vmatpush.bf16.msra.mxu0 %v5982
    %6061 = vmatpush.bf16.msra.mxu0 %v5980
    %6062 = vmatpush.bf16.msra.mxu0 %v5978
    %6063 = vmatpush.bf16.msra.mxu0 %v5976
    %6064 = vmatpush.bf16.msra.mxu0 %v5974
    %6065 = vmatpush.bf16.msra.mxu0 %v5972
    %6066 = vmatmul.bf16.gmra.mxu0 %v5826
    %v6067 = vpop.f32.mrf.mxu0
    %v6068 = vadd.f32 %v6055, %v6067
    %v6069 = vpop.f32.mrf.mxu0
    %6070 = vdwg.mxu0
    %v6071 = vld [vmem:[%s18] sm:$0x3]
    %v6073 = vperm.slane %v6071, 0
    %v6074 = vperm.slane %v6071, 1
    %v6077 = vmul.f32 %v6042, %v6073
    %v6078 = vmul.f32 %v6068, %v6074
    %v6079 = vld [vmem:[%s19] sm:$0x3]
    %v6081 = vperm.slane %v6079, 0
    %v6082 = vperm.slane %v6079, 1
    %v6085 = vmul.f32 %v6042, %v6081
    %v6086 = vmul.f32 %v6068, %v6082
    %6087 = vadd.xlane.f32.xlu0 %v6077
    %v6088 = vpop.xlane.xlu0 %6087
    %6089 = vadd.xlane.f32.xlu0 %v6085
    %v6090 = vpop.xlane.xlu0 %6089
    %6091 = vxpose.xlu0.b32.start [1/16] %v6088, 128
    %6092 = vxpose.xlu0.b32.cont [2/16] 0.0, 128
    %6093 = vxpose.xlu0.b32.cont [3/16] 0.0, 128
    %6094 = vxpose.xlu0.b32.cont [4/16] 0.0, 128
    %6095 = vxpose.xlu0.b32.cont [5/16] 0.0, 128
    %6096 = vxpose.xlu0.b32.cont [6/16] 0.0, 128
    %6097 = vxpose.xlu0.b32.cont [7/16] 0.0, 128
    %6098 = vxpose.xlu0.b32.cont [8/16] 0.0, 128
    %6099 = vxpose.xlu0.b32.cont [9/16] 0.0, 128
    %6100 = vxpose.xlu0.b32.cont [10/16] 0.0, 128
    %6101 = vxpose.xlu0.b32.cont [11/16] 0.0, 128
    %6102 = vxpose.xlu0.b32.cont [12/16] 0.0, 128
    %6103 = vxpose.xlu0.b32.cont [13/16] 0.0, 128
    %6104 = vxpose.xlu0.b32.cont [14/16] 0.0, 128
    %6105 = vxpose.xlu0.b32.cont [15/16] 0.0, 128
    %6106 = vxpose.xlu0.b32.end [16/16] 0.0, 128
    %v6107 = vpop.trf.xlu0
    %v6108 = vpop.trf.xlu0
    %v6109 = vpop.trf.xlu0
    %v6110 = vpop.trf.xlu0
    %v6111 = vpop.trf.xlu0
    %v6112 = vpop.trf.xlu0
    %v6113 = vpop.trf.xlu0
    %v6114 = vpop.trf.xlu0
    %v6115 = vpop.trf.xlu0
    %v6116 = vpop.trf.xlu0
    %v6117 = vpop.trf.xlu0
    %v6118 = vpop.trf.xlu0
    %v6119 = vpop.trf.xlu0
    %v6120 = vpop.trf.xlu0
    %v6121 = vpop.trf.xlu0
    %v6122 = vpop.trf.xlu0
    %v6123 = vperm.slane %v6107, 0
    %v6124 = vadd.f32 %v6090, %v6123
    %vm6125 = vcmp.ge.f32.partialorder %v6124, 0.0
    %v6126 = vmul.f32 %v6124, 0.2
    %v6127 = vsel %vm6125, %v6124, %v6126
    %v6128 = vsel %vm5703, %v6127, -1e+30
    %v6129 = vsel %vm5705, %v6128, -inf
    %6130 = vmax.xlane.f32.xlu0 %v6129
    %v6131 = vpop.xlane.xlu0 %6130
    %v6132 = vsub.f32 %v6128, %v6131
    %v6133 = vmul.f32 %v6132, 1.442695
    %v6134 = vpow.pop %v6133
    %v6135 = vsel %vm5703, %v6134, 0.0
    %v6136 = vsel %vm5705, %v6135, 0.0
    %6137 = vadd.xlane.f32.xlu0 %v6136
    %v6138 = vpop.xlane.xlu0 %6137
    %v6139 = vrcp.pop %v6138
    %v6140 = vmul.f32 %v6135, %v6139
    %v6141 = vpack.c.bf16 %v6140, %v6140
    %v6142 = vpack.c.bf16 %v6042, %v6042
    %v6144 = vsel %vm5705, %v6141, 0
    %v6147 = vsel %vm5723, %v6142, 0
    %6149 = vmatpush.bf16.msra.mxu0 0
    %6150 = vmatpush.bf16.msra.mxu0 0
    %6151 = vmatpush.bf16.msra.mxu0 0
    %6152 = vmatpush.bf16.msra.mxu0 0
    %6153 = vmatpush.bf16.msra.mxu0 0
    %6154 = vmatpush.bf16.msra.mxu0 0
    %6155 = vmatpush.bf16.msra.mxu0 0
    %6156 = vmatpush.bf16.msra.mxu0 %v6147
    %6157 = vmatmul.bf16.gmra.mxu0 %v6144
    %v6158 = vpop.f32.mrf.mxu0
    %v6159 = vadd.f32 0.0, %v6158
    %v6160 = vpop.f32.mrf.mxu0
    %6161 = vdwg.mxu0
    %6162 = vadd.xlane.f32.xlu0 %v6078
    %v6163 = vpop.xlane.xlu0 %6162
    %6164 = vadd.xlane.f32.xlu0 %v6086
    %v6165 = vpop.xlane.xlu0 %6164
    %6166 = vxpose.xlu0.b32.start [1/16] %v6163, 128
    %6167 = vxpose.xlu0.b32.cont [2/16] 0.0, 128
    %6168 = vxpose.xlu0.b32.cont [3/16] 0.0, 128
    %6169 = vxpose.xlu0.b32.cont [4/16] 0.0, 128
    %6170 = vxpose.xlu0.b32.cont [5/16] 0.0, 128
    %6171 = vxpose.xlu0.b32.cont [6/16] 0.0, 128
    %6172 = vxpose.xlu0.b32.cont [7/16] 0.0, 128
    %6173 = vxpose.xlu0.b32.cont [8/16] 0.0, 128
    %6174 = vxpose.xlu0.b32.cont [9/16] 0.0, 128
    %6175 = vxpose.xlu0.b32.cont [10/16] 0.0, 128
    %6176 = vxpose.xlu0.b32.cont [11/16] 0.0, 128
    %6177 = vxpose.xlu0.b32.cont [12/16] 0.0, 128
    %6178 = vxpose.xlu0.b32.cont [13/16] 0.0, 128
    %6179 = vxpose.xlu0.b32.cont [14/16] 0.0, 128
    %6180 = vxpose.xlu0.b32.cont [15/16] 0.0, 128
    %6181 = vxpose.xlu0.b32.end [16/16] 0.0, 128
    %v6182 = vpop.trf.xlu0
    %v6183 = vpop.trf.xlu0
    %v6184 = vpop.trf.xlu0
    %v6185 = vpop.trf.xlu0
    %v6186 = vpop.trf.xlu0
    %v6187 = vpop.trf.xlu0
    %v6188 = vpop.trf.xlu0
    %v6189 = vpop.trf.xlu0
    %v6190 = vpop.trf.xlu0
    %v6191 = vpop.trf.xlu0
    %v6192 = vpop.trf.xlu0
    %v6193 = vpop.trf.xlu0
    %v6194 = vpop.trf.xlu0
    %v6195 = vpop.trf.xlu0
    %v6196 = vpop.trf.xlu0
    %v6197 = vpop.trf.xlu0
    %v6198 = vperm.slane %v6182, 0
    %v6199 = vadd.f32 %v6165, %v6198
    %vm6200 = vcmp.ge.f32.partialorder %v6199, 0.0
    %v6201 = vmul.f32 %v6199, 0.2
    %v6202 = vsel %vm6200, %v6199, %v6201
    %v6203 = vsel %vm5703, %v6202, -1e+30
    %v6204 = vsel %vm5705, %v6203, -inf
    %6205 = vmax.xlane.f32.xlu0 %v6204
    %v6206 = vpop.xlane.xlu0 %6205
    %v6207 = vsub.f32 %v6203, %v6206
    %v6208 = vmul.f32 %v6207, 1.442695
    %v6209 = vpow.pop %v6208
    %v6210 = vsel %vm5703, %v6209, 0.0
    %v6211 = vsel %vm5705, %v6210, 0.0
    %6212 = vadd.xlane.f32.xlu0 %v6211
    %v6213 = vpop.xlane.xlu0 %6212
    %v6214 = vrcp.pop %v6213
    %v6215 = vmul.f32 %v6210, %v6214
    %v6216 = vpack.c.bf16 %v6215, %v6215
    %v6217 = vpack.c.bf16 %v6068, %v6068
    %v6219 = vsel %vm5705, %v6216, 0
    %v6222 = vsel %vm5723, %v6217, 0
    %6224 = vmatpush.bf16.msra.mxu0 0
    %6225 = vmatpush.bf16.msra.mxu0 0
    %6226 = vmatpush.bf16.msra.mxu0 0
    %6227 = vmatpush.bf16.msra.mxu0 0
    %6228 = vmatpush.bf16.msra.mxu0 0
    %6229 = vmatpush.bf16.msra.mxu0 0
    %6230 = vmatpush.bf16.msra.mxu0 0
    %6231 = vmatpush.bf16.msra.mxu0 %v6222
    %6232 = vmatmul.bf16.gmra.mxu0 %v6219
    %v6233 = vpop.f32.mrf.mxu0
    %v6234 = vadd.f32 0.0, %v6233
    %v6235 = vpop.f32.mrf.mxu0
    %6236 = vdwg.mxu0
    %v6237 = vld [vmem:[%s20] sm:$0x3]
    %v6239 = vperm.slane %v6237, 0
    %v6240 = vperm.slane %v6237, 1
    %v6243 = vadd.f32 %v6159, %v6239
    %v6244 = vadd.f32 %v6234, %v6240
    %v6245 = vmax.f32 %v6243, 0.0
    %v6246 = vmax.f32 %v6244, 0.0
    %v6247 = vpack.c.bf16 %v6245, %v6245
    %v6248 = vpack.c.bf16 %v6246, %v6246
    %v6249 = vld [vmem:[#allocation16] sm:$0xf]
    %v6250 = vld [vmem:[#allocation16 + $0x4] sm:$0xf]
    %v6251 = vld [vmem:[#allocation16 + $0x8] sm:$0xf]
    %v6252 = vld [vmem:[#allocation16 + $0xc] sm:$0xf]
    %v6253 = vld [vmem:[#allocation16 + $0x10] sm:$0xf]
    %v6254 = vld [vmem:[#allocation16 + $0x14] sm:$0xf]
    %v6255 = vld [vmem:[#allocation16 + $0x18] sm:$0xf]
    %v6256 = vld [vmem:[#allocation16 + $0x1c] sm:$0xf]
    %v6257 = vld [vmem:[#allocation16 + $0x20] sm:$0xf]
    %v6258 = vld [vmem:[#allocation16 + $0x24] sm:$0xf]
    %v6259 = vld [vmem:[#allocation16 + $0x28] sm:$0xf]
    %v6260 = vld [vmem:[#allocation16 + $0x2c] sm:$0xf]
    %v6261 = vld [vmem:[#allocation16 + $0x30] sm:$0xf]
    %v6262 = vld [vmem:[#allocation16 + $0x34] sm:$0xf]
    %v6263 = vld [vmem:[#allocation16 + $0x38] sm:$0xf]
    %v6264 = vld [vmem:[#allocation16 + $0x3c] sm:$0xf]
    %v6265 = vld [vmem:[#allocation16 + $0x40] sm:$0xf]
    %v6266 = vld [vmem:[#allocation16 + $0x44] sm:$0xf]
    %v6267 = vld [vmem:[#allocation16 + $0x48] sm:$0xf]
    %v6268 = vld [vmem:[#allocation16 + $0x4c] sm:$0xf]
    %v6269 = vld [vmem:[#allocation16 + $0x50] sm:$0xf]
    %v6270 = vld [vmem:[#allocation16 + $0x54] sm:$0xf]
    %v6271 = vld [vmem:[#allocation16 + $0x58] sm:$0xf]
    %v6272 = vld [vmem:[#allocation16 + $0x5c] sm:$0xf]
    %v6273 = vld [vmem:[#allocation16 + $0x60] sm:$0xf]
    %v6274 = vld [vmem:[#allocation16 + $0x64] sm:$0xf]
    %v6275 = vld [vmem:[#allocation16 + $0x68] sm:$0xf]
    %v6276 = vld [vmem:[#allocation16 + $0x6c] sm:$0xf]
    %v6277 = vld [vmem:[#allocation16 + $0x70] sm:$0xf]
    %v6278 = vld [vmem:[#allocation16 + $0x74] sm:$0xf]
    %v6279 = vld [vmem:[#allocation16 + $0x78] sm:$0xf]
    %v6280 = vld [vmem:[#allocation16 + $0x7c] sm:$0xf]
    %v6281 = vld [vmem:[%s22] sm:$0x1]
    %v6283 = vperm.slane %v6281, 0
    %v6317 = vunpack.c.l.b16 %v6249
    %v6318 = vunpack.c.l.b16 %v6250
    %v6319 = vunpack.c.l.b16 %v6251
    %v6320 = vunpack.c.l.b16 %v6252
    %v6321 = vunpack.c.l.b16 %v6253
    %v6322 = vunpack.c.l.b16 %v6254
    %v6323 = vunpack.c.l.b16 %v6255
    %v6324 = vunpack.c.l.b16 %v6256
    %v6325 = vunpack.c.l.b16 %v6257
    %v6326 = vunpack.c.l.b16 %v6258
    %v6327 = vunpack.c.l.b16 %v6259
    %v6328 = vunpack.c.l.b16 %v6260
    %v6329 = vunpack.c.l.b16 %v6261
    %v6330 = vunpack.c.l.b16 %v6262
    %v6331 = vunpack.c.l.b16 %v6263
    %v6332 = vunpack.c.l.b16 %v6264
    %v6333 = vunpack.c.l.b16 %v6265
    %v6334 = vunpack.c.l.b16 %v6266
    %v6335 = vunpack.c.l.b16 %v6267
    %v6336 = vunpack.c.l.b16 %v6268
    %v6337 = vunpack.c.l.b16 %v6269
    %v6338 = vunpack.c.l.b16 %v6270
    %v6339 = vunpack.c.l.b16 %v6271
    %v6340 = vunpack.c.l.b16 %v6272
    %v6341 = vunpack.c.l.b16 %v6273
    %v6342 = vunpack.c.l.b16 %v6274
    %v6343 = vunpack.c.l.b16 %v6275
    %v6344 = vunpack.c.l.b16 %v6276
    %v6345 = vunpack.c.l.b16 %v6277
    %v6346 = vunpack.c.l.b16 %v6278
    %v6347 = vunpack.c.l.b16 %v6279
    %v6348 = vunpack.c.l.b16 %v6280
    %v6349 = vpack.c.b16 %v6318, %v6317
    %v6350 = vpack.c.b16 %v6320, %v6319
    %v6351 = vpack.c.b16 %v6322, %v6321
    %v6352 = vpack.c.b16 %v6324, %v6323
    %v6353 = vpack.c.b16 %v6326, %v6325
    %v6354 = vpack.c.b16 %v6328, %v6327
    %v6355 = vpack.c.b16 %v6330, %v6329
    %v6356 = vpack.c.b16 %v6332, %v6331
    %v6357 = vpack.c.b16 %v6334, %v6333
    %v6358 = vpack.c.b16 %v6336, %v6335
    %v6359 = vpack.c.b16 %v6338, %v6337
    %v6360 = vpack.c.b16 %v6340, %v6339
    %v6361 = vpack.c.b16 %v6342, %v6341
    %v6362 = vpack.c.b16 %v6344, %v6343
    %v6363 = vpack.c.b16 %v6346, %v6345
    %v6364 = vpack.c.b16 %v6348, %v6347
    %6381 = vmatpush.bf16.msra.mxu0 %v6356
    %6382 = vmatpush.bf16.msra.mxu0 %v6355
    %6383 = vmatpush.bf16.msra.mxu0 %v6354
    %6384 = vmatpush.bf16.msra.mxu0 %v6353
    %6385 = vmatpush.bf16.msra.mxu0 %v6352
    %6386 = vmatpush.bf16.msra.mxu0 %v6351
    %6387 = vmatpush.bf16.msra.mxu0 %v6350
    %6388 = vmatpush.bf16.msra.mxu0 %v6349
    %6389 = vmatmul.bf16.gmra.mxu0 %v6247
    %v6390 = vpop.f32.mrf.mxu0
    %v6391 = vadd.f32 %v6283, %v6390
    %v6392 = vpop.f32.mrf.mxu0
    %6393 = vdwg.mxu0
    %6394 = vmatpush.bf16.msra.mxu0 %v6364
    %6395 = vmatpush.bf16.msra.mxu0 %v6363
    %6396 = vmatpush.bf16.msra.mxu0 %v6362
    %6397 = vmatpush.bf16.msra.mxu0 %v6361
    %6398 = vmatpush.bf16.msra.mxu0 %v6360
    %6399 = vmatpush.bf16.msra.mxu0 %v6359
    %6400 = vmatpush.bf16.msra.mxu0 %v6358
    %6401 = vmatpush.bf16.msra.mxu0 %v6357
    %6402 = vmatmul.bf16.gmra.mxu0 %v6248
    %v6403 = vpop.f32.mrf.mxu0
    %v6404 = vadd.f32 %v6391, %v6403
    %v6405 = vpop.f32.mrf.mxu0
    %6406 = vdwg.mxu0
    %v6407 = vmax.f32 %v6404, 0.0
    %v6408 = vpack.c.bf16 %v6407, %v6407
    %v6409 = vld [vmem:[#allocation18] sm:$0xf]
    %v6410 = vld [vmem:[#allocation18 + $0x4] sm:$0xf]
    %v6411 = vld [vmem:[#allocation18 + $0x8] sm:$0xf]
    %v6412 = vld [vmem:[#allocation18 + $0xc] sm:$0xf]
    %v6413 = vld [vmem:[#allocation18 + $0x10] sm:$0xf]
    %v6414 = vld [vmem:[#allocation18 + $0x14] sm:$0xf]
    %v6415 = vld [vmem:[#allocation18 + $0x18] sm:$0xf]
    %v6416 = vld [vmem:[#allocation18 + $0x1c] sm:$0xf]
    %v6417 = vld [vmem:[#allocation18 + $0x20] sm:$0xf]
    %v6418 = vld [vmem:[#allocation18 + $0x24] sm:$0xf]
    %v6419 = vld [vmem:[#allocation18 + $0x28] sm:$0xf]
    %v6420 = vld [vmem:[#allocation18 + $0x2c] sm:$0xf]
    %v6421 = vld [vmem:[#allocation18 + $0x30] sm:$0xf]
    %v6422 = vld [vmem:[#allocation18 + $0x34] sm:$0xf]
    %v6423 = vld [vmem:[#allocation18 + $0x38] sm:$0xf]
    %v6424 = vld [vmem:[#allocation18 + $0x3c] sm:$0xf]
    %v6425 = vld [vmem:[%s24] sm:$0x1]
    %v6427 = vperm.slane %v6425, 0
    %v6445 = vunpack.c.l.b16 %v6409
    %v6446 = vunpack.c.l.b16 %v6410
    %v6447 = vunpack.c.l.b16 %v6411
    %v6448 = vunpack.c.l.b16 %v6412
    %v6449 = vunpack.c.l.b16 %v6413
    %v6450 = vunpack.c.l.b16 %v6414
    %v6451 = vunpack.c.l.b16 %v6415
    %v6452 = vunpack.c.l.b16 %v6416
    %v6453 = vunpack.c.l.b16 %v6417
    %v6454 = vunpack.c.l.b16 %v6418
    %v6455 = vunpack.c.l.b16 %v6419
    %v6456 = vunpack.c.l.b16 %v6420
    %v6457 = vunpack.c.l.b16 %v6421
    %v6458 = vunpack.c.l.b16 %v6422
    %v6459 = vunpack.c.l.b16 %v6423
    %v6460 = vunpack.c.l.b16 %v6424
    %v6461 = vpack.c.b16 %v6446, %v6445
    %v6462 = vpack.c.b16 %v6448, %v6447
    %v6463 = vpack.c.b16 %v6450, %v6449
    %v6464 = vpack.c.b16 %v6452, %v6451
    %v6465 = vpack.c.b16 %v6454, %v6453
    %v6466 = vpack.c.b16 %v6456, %v6455
    %v6467 = vpack.c.b16 %v6458, %v6457
    %v6468 = vpack.c.b16 %v6460, %v6459
    %6477 = vmatpush.bf16.msra.mxu0 %v6468
    %6478 = vmatpush.bf16.msra.mxu0 %v6467
    %6479 = vmatpush.bf16.msra.mxu0 %v6466
    %6480 = vmatpush.bf16.msra.mxu0 %v6465
    %6481 = vmatpush.bf16.msra.mxu0 %v6464
    %6482 = vmatpush.bf16.msra.mxu0 %v6463
    %6483 = vmatpush.bf16.msra.mxu0 %v6462
    %6484 = vmatpush.bf16.msra.mxu0 %v6461
    %6485 = vmatmul.bf16.gmra.mxu0 %v6408
    %v6486 = vpop.f32.mrf.mxu0
    %v6487 = vadd.f32 %v6427, %v6486
    %v6488 = vpop.f32.mrf.mxu0
    %6489 = vdwg.mxu0
    %6490 = vst [vmem:[#allocation19] sm:$0xff] %v6487
    // Predicated region
    $region134: #{decentral_planner_gatnet.1} parent=1 // pred_check
      _
    $region135: #{decentral_planner_gatnet.1} parent=1 // pred_check_branch
      %6492 = sbr.rel (0) target = $region137
    $region136: #{decentral_planner_gatnet.1} parent=1 // pred_region
      %6494 = vsyncadd [#allocation9], 0
      %s6496 = sshll.u32 [#allocation19], 4
      %s6497 = int_to_ptr.vmem [resolvable:$true] %s6496
      %s6498 = sshll.u32 %s26, 4
      %s6499 = int_to_ptr.hbm [resolvable:$true] %s6498
      %6501 = dma.vmem_to_hbm [thread:$0]  %s6497, 128, %s6499, [#allocation9]
    $region137: #{decentral_planner_gatnet.1} parent=1 // pred_fallthru
      _
    // Predicated region
    $region138: #{decentral_planner_gatnet.1} parent=1 // pred_check
      _
    $region139: #{decentral_planner_gatnet.1} parent=1 // pred_check_branch
      %6503 = sbr.rel (0) target = $region141
    $region140: #{decentral_planner_gatnet.1} parent=1 // pred_region
      %6505 = dma.done [#allocation9], 128
    $region141: #{decentral_planner_gatnet.1} parent=1 // pred_fallthru
      _
    %6506 = vsyncpa [#allocation8], 1
    %6507 = vsyncpa [#allocation11], 1
    %6508 = vsyncpa [#allocation14], 1
    %6509 = vsyncpa [#allocation17], 1
    %6510 = vsyncpa [#allocation9], 1

</llo_original>
